<compile_context>
chip_gen: v6e
topology: v6e:2x2x1
jax: 0.10.0
libtpu: 0.0.40
codegen_flags: <defaults>
</compile_context>

<pallas_src>
import jax
import jax.numpy as jnp
from jax.experimental import pallas as pl
from jax.experimental.pallas import tpu as pltpu

# ---- model hyper-parameters (Goal_Example_Model defaults) ----
INPUT_FEAT = 2
OUTPUT_FEAT = 5
SEQ_LEN = 8
PRED_SEQ_LEN = 12
KERNEL_T = 3           # temporal kernel of the tcn conv, padding = 1
TILE_R = 128           # rows (= B*V) per grid block on the lane axis


# =====================================================================================
# fused kernel
# =====================================================================================
def _fused_kernel(
    # ---- per-row blocked inputs (rows on lanes) ----
    x_ref,                     # (Cin, T, TR)   input features
    m_ref,                     # (T, TR)        mask ('nctv,ntv->nctv')
    noise_ref,                 # (PRED, 2, TR)  standard-normal noise for the GMM rsample
    # ---- SMEM scalar conv params (flattened, static-index reads) ----
    w_res_ref, b_res_ref,      # (Cin*H,), (H,)
    w_gcn_ref, b_gcn_ref,      # (Cin*H,), (H,)
    w_tcn_ref, b_tcn_ref,      # (KT*H*H,), (H,)   index (k*H + ci)*H + co
    prelu_ref,                 # (1,)
    # ---- VMEM lane-broadcast params (constant index_map: loaded once) ----
    ln_g_ref, ln_b_ref,        # (H, T, TR)  self.bn   (shared: residual branch + tcn output)
    ln0_g_ref, ln0_b_ref,      # (H, T, TR)  self.bn0
    wih_e_ref, whh_e_ref, b_e_ref,   # (H,4H,TR), (H,4H,TR), (4H,TR)
    wih_d_ref, whh_d_ref, b_d_ref,   # (H+2,4H,TR), (H,4H,TR), (4H,TR)
    w_head_ref, b_head_ref,          # (H,5,TR), (5,TR)
    # ---- outputs ----
    vpred_ref,                 # (PRED, 5, TR)     rows = (mu_x, mu_y, log_sx, log_sy, corr)
    apred_ref,                 # (PRED+1, 2, TR)
):
    cin, t_dim, tr = x_ref.shape
    h_dim = OUTPUT_FEAT
    h3, h4 = 3 * h_dim, 4 * h_dim

    x = x_ref[...]                       # (Cin, T, TR)
    m = m_ref[...][None, :, :]           # (1, T, TR)
    alpha = prelu_ref[0]                 # PReLU slope (single parameter)

    # ---------------- helpers (traced) ----------------
    def conv1x1(w_ref, b_ref):
        # 1x1 conv over the channel axis with scalar weights from SMEM.
        chans = []
        for co in range(h_dim):
            acc = x[0] * w_ref[co]
            for ci in range(1, cin):
                acc = acc + x[ci] * w_ref[ci * h_dim + co]
            chans.append(acc + b_ref[co])
        return jnp.stack(chans, axis=0)                      # (H, T, TR)

    def layernorm(z, g, b):
        # torch.nn.LayerNorm([T, C]) : normalise jointly over (C, T) per row (lane).
        denom = 1.0 / float(z.shape[0] * z.shape[1])
        mu = jnp.sum(jnp.sum(z, axis=0, keepdims=True), axis=1, keepdims=True) * denom
        zc = z - mu
        var = jnp.sum(jnp.sum(zc * zc, axis=0, keepdims=True), axis=1, keepdims=True) * denom
        return zc * jax.lax.rsqrt(var + 1e-5) * g + b

    def prelu(z):
        return jnp.where(z >= 0, z, alpha * z)

    # ---------------- st_gcn ----------------
    ln_g = ln_g_ref[...]
    ln_b = ln_b_ref[...]
    ln0_g = ln0_g_ref[...]
    ln0_b = ln0_b_ref[...]

    # residual branch: 1x1 conv (Cin->H), mask, LayerNorm (self.bn)
    res = layernorm(conv1x1(w_res_ref, b_res_ref) * m, ln_g, ln_b)

    # graph conv (ConvTemporalGraphical == 1x1 conv) + mask, LayerNorm (self.bn0), PReLU
    h = layernorm(conv1x1(w_gcn_ref, b_gcn_ref) * m, ln0_g, ln0_b)
    h = prelu(h)

    # temporal conv (k=3, pad=1) along T: three shifted taps, stays within the 8-sublane tile
    zrow = jnp.zeros_like(h[:, 0:1, :])
    taps = (jnp.concatenate([zrow, h[:, :-1, :]], axis=1),   # h[:, t-1, :]
            h,                                               # h[:, t,   :]
            jnp.concatenate([h[:, 1:, :], zrow], axis=1))    # h[:, t+1, :]
    out_ch = []
    for co in range(h_dim):
        acc = taps[0][0] * w_tcn_ref[co]                     # k=0, ci=0 term
        for k in range(KERNEL_T):
            for ci in range(h_dim):
                if k == 0 and ci == 0:
                    continue
                acc = acc + taps[k][ci] * w_tcn_ref[(k * h_dim + ci) * h_dim + co]
        out_ch.append(acc + b_tcn_ref[co])
    # NOTE: the torch module reuses self.bn (same LayerNorm params) for the tcn output — intentional.
    out = layernorm(jnp.stack(out_ch, axis=0) * m, ln_g, ln_b)

    feat = prelu(out + res)                                  # (H, T, TR); dropout(p=0) == identity

    # ---------------- encoder LSTM ----------------
    wih_e = wih_e_ref[...]
    whh_e = whh_e_ref[...]
    b_e = b_e_ref[...]

    # hoist the input projection out of the serial loop: g_ih[t] = sum_c wih_e[c] * feat[c, t, :]
    g_ih = wih_e[0][None, :, :] * feat[0][:, None, :]        # (T, 4H, TR)
    for c in range(1, h_dim):
        g_ih = g_ih + wih_e[c][None, :, :] * feat[c][:, None, :]

    def lstm_step(gates, c_prev):
        # gate columns ordered (i, f, o, g): one sigmoid slab (3H) + one tanh slab (H)
        sact = jax.nn.sigmoid(gates[0:h3])
        g_g = jnp.tanh(gates[h3:h4])
        c_new = sact[h_dim:2 * h_dim] * c_prev + sact[0:h_dim] * g_g
        h_new = sact[2 * h_dim:h3] * jnp.tanh(c_new)
        return h_new, c_new

    h_e = jnp.zeros((h_dim, tr), dtype=jnp.float32)
    c_e = jnp.zeros((h_dim, tr), dtype=jnp.float32)
    for t in range(t_dim):
        gates = g_ih[t] + b_e
        if t > 0:                                            # h_e == 0 at t == 0
            for k in range(h_dim):
                gates = gates + whh_e[k] * h_e[k:k + 1, :]
        h_e, c_e = lstm_step(gates, c_e)
    # h_e == encoder final hidden state (h_inp)

    # ---------------- autoregressive decoder ----------------
    wih_d = wih_d_ref[...]
    whh_d = whh_d_ref[...]
    b_d = b_d_ref[...]
    w_head = w_head_ref[...]
    b_head = b_head_ref[...]

    # decoder input = concat(h_inp, a_i); the h_inp part is constant over the 12 steps -> hoist
    g_base = b_d
    for k in range(h_dim):
        g_base = g_base + wih_d[k] * h_e[k:k + 1, :]
    w_ax = wih_d[h_dim]                                      # (4H, TR) rows acting on a_x
    w_ay = wih_d[h_dim + 1]

    # a_0 = v[:, :2, -1, :]  (last-frame position)
    a_x = x[0, t_dim - 1:t_dim, :]                           # (1, TR)
    a_y = x[1, t_dim - 1:t_dim, :]
    apred_ref[0] = jnp.concatenate([a_x, a_y], axis=0)

    h_d = jnp.zeros((h_dim, tr), dtype=jnp.float32)
    c_d = jnp.zeros((h_dim, tr), dtype=jnp.float32)
    for i in range(PRED_SEQ_LEN):
        gates = g_base + w_ax * a_x + w_ay * a_y
        if i > 0:                                            # h_d == 0 at i == 0 (init_hidden)
            for k in range(h_dim):
                gates = gates + whh_d[k] * h_d[k:k + 1, :]
        h_d, c_d = lstm_step(gates, c_d)

        # output heads: raw (mus, log_sigmas, corr) exactly as torch cat([mus, sigma, corr])
        v5 = b_head
        for k in range(h_dim):
            v5 = v5 + w_head[k] * h_d[k:k + 1, :]
        vpred_ref[i] = v5                                    # lane-dense (5, TR) store

        # GMM2D (single component) reparameterised rsample:
        #   a = mu + L @ eps,  L = [[sx, 0], [sy*rho, sy*sqrt(1-rho^2)]]
        # TODO(synk): GMM2D is external (Trajectron++); standard-normal noise is supplied as a
        #             deterministic kernel input instead of torch.randn.
        sig = jnp.exp(v5[2:4, :])                            # (2, TR)
        rho = jnp.tanh(v5[4:5, :])                           # (1, TR)  (may saturate to +-1 in f32)
        eps = noise_ref[i]                                   # (2, TR)
        a_x = v5[0:1, :] + sig[0:1, :] * eps[0:1, :]
        a_y = v5[1:2, :] + sig[1:2, :] * (rho * eps[0:1, :] +
                                          jnp.sqrt(1.0 - rho * rho) * eps[1:2, :])
        apred_ref[i + 1] = jnp.concatenate([a_x, a_y], axis=0)


# =====================================================================================
# wrappers
# =====================================================================================
_SMEM_SPEC = pl.BlockSpec(memory_space=pltpu.MemorySpace.SMEM)


def _const_spec(shape):
    zeros = (0,) * len(shape)
    return pl.BlockSpec(shape, lambda r: zeros)


def fused_forward(x, m, noise, kp):
    """x: (Cin, T, R_pad), m: (T, R_pad), noise: (PRED, 2, R_pad); R_pad % TILE_R == 0."""
    r_pad = x.shape[-1]
    grid = (r_pad // TILE_R,)

    row_in = [
        (x, pl.BlockSpec((INPUT_FEAT, SEQ_LEN, TILE_R), lambda r: (0, 0, r))),
        (m, pl.BlockSpec((SEQ_LEN, TILE_R), lambda r: (0, r))),
        (noise, pl.BlockSpec((PRED_SEQ_LEN, 2, TILE_R), lambda r: (0, 0, r))),
    ]
    smem_in = [(kp[k], _SMEM_SPEC) for k in
               ('w_res', 'b_res', 'w_gcn', 'b_gcn', 'w_tcn', 'b_tcn', 'prelu')]
    vmem_in = [(kp[k], _const_spec(kp[k].shape)) for k in
               ('ln_g', 'ln_b', 'ln0_g', 'ln0_b',
                'wih_e', 'whh_e', 'b_e', 'wih_d', 'whh_d', 'b_d',
                'w_head', 'b_head')]
    args = row_in + smem_in + vmem_in

    out_shape = (jax.ShapeDtypeStruct((PRED_SEQ_LEN, OUTPUT_FEAT, r_pad), jnp.float32),
                 jax.ShapeDtypeStruct((PRED_SEQ_LEN + 1, 2, r_pad), jnp.float32))
    out_specs = (pl.BlockSpec((PRED_SEQ_LEN, OUTPUT_FEAT, TILE_R), lambda r: (0, 0, r)),
                 pl.BlockSpec((PRED_SEQ_LEN + 1, 2, TILE_R), lambda r: (0, 0, r)))

    return pl.pallas_call(
        _fused_kernel,
        out_shape=out_shape,
        grid=grid,
        in_specs=[s for _, s in args],
        out_specs=out_specs,
        compiler_params=pltpu.CompilerParams(dimension_semantics=("parallel",)),
    )(*[a for a, _ in args])


def prep_params(p, tile_r):
    """Glue: flatten tiny conv weights for SMEM, lane-broadcast the rest to the block width."""
    f32 = jnp.float32

    def lane_bcast(arr):
        arr = arr.astype(f32)
        return jnp.broadcast_to(arr[..., None], arr.shape + (tile_r,))

    return {
        # SMEM scalars (flattened)
        'w_res': p['w_res'].astype(f32).reshape(-1),
        'b_res': p['b_res'].astype(f32).reshape(-1),
        'w_gcn': p['w_gcn'].astype(f32).reshape(-1),
        'b_gcn': p['b_gcn'].astype(f32).reshape(-1),
        'w_tcn': p['w_tcn'].astype(f32).reshape(-1),
        'b_tcn': p['b_tcn'].astype(f32).reshape(-1),
        'prelu': p['prelu'].astype(f32).reshape(-1),
        # VMEM lane-broadcast params ((T,C) LayerNorm affine transposed to (C,T))
        'ln_g': lane_bcast(p['ln_g'].T), 'ln_b': lane_bcast(p['ln_b'].T),
        'ln0_g': lane_bcast(p['ln0_g'].T), 'ln0_b': lane_bcast(p['ln0_b'].T),
        'wih_e': lane_bcast(p['wih_e']), 'whh_e': lane_bcast(p['whh_e']), 'b_e': lane_bcast(p['b_e']),
        'wih_d': lane_bcast(p['wih_d']), 'whh_d': lane_bcast(p['whh_d']), 'b_d': lane_bcast(p['b_d']),
        'w_head': lane_bcast(jnp.concatenate([p['w_mu'], p['w_sg'], p['w_cr']], axis=1)),
        'b_head': lane_bcast(jnp.concatenate([p['b_mu'], p['b_sg'], p['b_cr']], axis=0)),
    }


@jax.jit
def goal_example_model_forward(v, a, mask, noise, params):
    """v: (B, 2, T=8, V) float32 (PyTorch NCTV), a: (T, V, V) adjacency (passed through, never used
    in compute), mask: (B, T, V), noise: (12, B*V, 2) standard normal."""
    del a  # adjacency is threaded through the torch forward but never used in its compute
    B, c_in, T, V = v.shape
    bv = B * V
    r_pad = ((bv + TILE_R - 1) // TILE_R) * TILE_R
    pad = r_pad - bv

    # layout change: rows r = b*V + v_node go on the LANE axis (matches torch reshape(T, B*N, C))
    x = jnp.transpose(v, (1, 2, 0, 3)).reshape(c_in, T, bv)        # (2, 8, BV)
    m = jnp.transpose(mask, (1, 0, 2)).reshape(T, bv)              # (8, BV)
    nz = jnp.transpose(noise, (0, 2, 1))                           # (12, 2, BV)
    if pad:
        x = jnp.pad(x, ((0, 0), (0, 0), (0, pad)))
        m = jnp.pad(m, ((0, 0), (0, pad)))
        nz = jnp.pad(nz, ((0, 0), (0, 0), (0, pad)))

    kp = prep_params(params, TILE_R)
    vpred, apred = fused_forward(x, m, nz, kp)                     # (12,5,Rp), (13,2,Rp)

    vp = vpred[:, :, :bv].reshape(PRED_SEQ_LEN, OUTPUT_FEAT, B, V)
    V_pred = jnp.transpose(vp, (2, 0, 3, 1))                       # (B, 12, V, 5)
    a_pred = jnp.transpose(apred[:, :, :bv], (0, 2, 1))[None]      # (1, 13, B*V, 2)
    return V_pred, a_pred


# =====================================================================================
# deterministic parameter init
# =====================================================================================
def init_params(key):
    keys = jax.random.split(key, 16)
    H = OUTPUT_FEAT

    def w(k, shape, scale=0.3):
        return jax.random.uniform(k, shape, jnp.float32, -1.0, 1.0) * scale

    return {
        # st_gcn (1x1 convs stored (in, out); tcn stored (tap, in, out))
        'w_res': w(keys[0], (INPUT_FEAT, H)), 'b_res': w(keys[1], (H,), 0.1),
        'w_gcn': w(keys[2], (INPUT_FEAT, H)), 'b_gcn': w(keys[3], (H,), 0.1),
        'w_tcn': w(keys[4], (KERNEL_T, H, H)), 'b_tcn': w(keys[5], (H,), 0.1),
        'ln_g': jnp.ones((SEQ_LEN, H), jnp.float32), 'ln_b': jnp.zeros((SEQ_LEN, H), jnp.float32),
        'ln0_g': jnp.ones((SEQ_LEN, H), jnp.float32), 'ln0_b': jnp.zeros((SEQ_LEN, H), jnp.float32),
        'prelu': jnp.full((1,), 0.25, jnp.float32),
        # LSTMs: weights stored (in_features, 4H) with gate COLUMN order (i, f, o, g)
        # (to load torch weights: transpose and permute torch's (i, f, g, o) gate blocks);
        # bias = b_ih + b_hh folded into a single vector.
        'wih_e': w(keys[6], (H, 4 * H)), 'whh_e': w(keys[7], (H, 4 * H)), 'b_e': w(keys[8], (4 * H,), 0.1),
        'wih_d': w(keys[9], (H + 2, 4 * H)), 'whh_d': w(keys[10], (H, 4 * H)), 'b_d': w(keys[11], (4 * H,), 0.1),
        # output heads
        'w_mu': w(keys[12], (H, 2)), 'b_mu': jnp.zeros((2,), jnp.float32),
        'w_sg': w(keys[13], (H, 2), 0.2), 'b_sg': jnp.zeros((2,), jnp.float32),
        'w_cr': w(keys[14], (H, 1), 0.2), 'b_cr': jnp.zeros((1,), jnp.float32),
        # NOTE: self.state_start Linear and self.bn1 LayerNorm exist in __init__ but are unused
        #       in forward, so they are omitted.
    }


if __name__ == "__main__":
    key = jax.random.PRNGKey(0)
    k_v, k_a, k_mask, k_noise, k_param = jax.random.split(key, 5)

    B, V = 2, 3  # batch, graph nodes
    v = jax.random.normal(k_v, (B, INPUT_FEAT, SEQ_LEN, V), jnp.float32)
    a = jax.random.normal(k_a, (SEQ_LEN, V, V), jnp.float32)          # adjacency (unused)
    mask = (jax.random.uniform(k_mask, (B, SEQ_LEN, V)) > 0.2).astype(jnp.float32)
    noise = jax.random.normal(k_noise, (PRED_SEQ_LEN, B * V, 2), jnp.float32)
    params = init_params(k_param)

    V_pred, a_pred = goal_example_model_forward(v, a, mask, noise, params)
    jax.block_until_ready((V_pred, a_pred))

    assert V_pred.shape == (B, PRED_SEQ_LEN, V, OUTPUT_FEAT)
    assert a_pred.shape == (1, PRED_SEQ_LEN + 1, B * V, 2)
    assert bool(jnp.all(jnp.isfinite(V_pred))) and bool(jnp.all(jnp.isfinite(a_pred)))
    print("KERNEL_OK")
</pallas_src>

<mosaic_0001>
module attributes {stable_mosaic.version = 11 : i64} {
  func.func @_fused_kernel(%arg0: i32, %arg1: memref<2x8x128xf32, #tpu.memory_space<vmem>>, %arg2: memref<8x128xf32, #tpu.memory_space<vmem>>, %arg3: memref<12x2x128xf32, #tpu.memory_space<vmem>>, %arg4: memref<10xf32, #tpu.memory_space<smem>>, %arg5: memref<5xf32, #tpu.memory_space<smem>>, %arg6: memref<10xf32, #tpu.memory_space<smem>>, %arg7: memref<5xf32, #tpu.memory_space<smem>>, %arg8: memref<75xf32, #tpu.memory_space<smem>>, %arg9: memref<5xf32, #tpu.memory_space<smem>>, %arg10: memref<1xf32, #tpu.memory_space<smem>>, %arg11: memref<5x8x128xf32, #tpu.memory_space<vmem>>, %arg12: memref<5x8x128xf32, #tpu.memory_space<vmem>>, %arg13: memref<5x8x128xf32, #tpu.memory_space<vmem>>, %arg14: memref<5x8x128xf32, #tpu.memory_space<vmem>>, %arg15: memref<5x20x128xf32, #tpu.memory_space<vmem>>, %arg16: memref<5x20x128xf32, #tpu.memory_space<vmem>>, %arg17: memref<20x128xf32, #tpu.memory_space<vmem>>, %arg18: memref<7x20x128xf32, #tpu.memory_space<vmem>>, %arg19: memref<5x20x128xf32, #tpu.memory_space<vmem>>, %arg20: memref<20x128xf32, #tpu.memory_space<vmem>>, %arg21: memref<5x5x128xf32, #tpu.memory_space<vmem>>, %arg22: memref<5x128xf32, #tpu.memory_space<vmem>>, %arg23: memref<12x5x128xf32, #tpu.memory_space<vmem>>, %arg24: memref<13x2x128xf32, #tpu.memory_space<vmem>>) attributes {dimension_semantics = [#tpu.dimension_semantics<parallel>], iteration_bounds = array<i64: 1>, scalar_prefetch = 0 : i64, scratch_operands = 0 : i64, tpu.core_type = #tpu.core_type<tc>, window_params = [{transform_indices = @transform_0, window_bounds = array<i64: 2, 8, 128>}, {transform_indices = @transform_1, window_bounds = array<i64: 8, 128>}, {transform_indices = @transform_2, window_bounds = array<i64: 12, 2, 128>}, {transform_indices = @transform_3, window_bounds = array<i64: 10>}, {transform_indices = @transform_4, window_bounds = array<i64: 5>}, {transform_indices = @transform_5, window_bounds = array<i64: 10>}, {transform_indices = @transform_6, window_bounds = array<i64: 5>}, {transform_indices = @transform_7, window_bounds = array<i64: 75>}, {transform_indices = @transform_8, window_bounds = array<i64: 5>}, {transform_indices = @transform_9, window_bounds = array<i64: 1>}, {pipeline_mode = #tpu.pipeline_mode<synchronous>, transform_indices = @transform_10, window_bounds = array<i64: 5, 8, 128>}, {pipeline_mode = #tpu.pipeline_mode<synchronous>, transform_indices = @transform_11, window_bounds = array<i64: 5, 8, 128>}, {pipeline_mode = #tpu.pipeline_mode<synchronous>, transform_indices = @transform_12, window_bounds = array<i64: 5, 8, 128>}, {pipeline_mode = #tpu.pipeline_mode<synchronous>, transform_indices = @transform_13, window_bounds = array<i64: 5, 8, 128>}, {pipeline_mode = #tpu.pipeline_mode<synchronous>, transform_indices = @transform_14, window_bounds = array<i64: 5, 20, 128>}, {pipeline_mode = #tpu.pipeline_mode<synchronous>, transform_indices = @transform_15, window_bounds = array<i64: 5, 20, 128>}, {pipeline_mode = #tpu.pipeline_mode<synchronous>, transform_indices = @transform_16, window_bounds = array<i64: 20, 128>}, {pipeline_mode = #tpu.pipeline_mode<synchronous>, transform_indices = @transform_17, window_bounds = array<i64: 7, 20, 128>}, {pipeline_mode = #tpu.pipeline_mode<synchronous>, transform_indices = @transform_18, window_bounds = array<i64: 5, 20, 128>}, {pipeline_mode = #tpu.pipeline_mode<synchronous>, transform_indices = @transform_19, window_bounds = array<i64: 20, 128>}, {pipeline_mode = #tpu.pipeline_mode<synchronous>, transform_indices = @transform_20, window_bounds = array<i64: 5, 5, 128>}, {pipeline_mode = #tpu.pipeline_mode<synchronous>, transform_indices = @transform_21, window_bounds = array<i64: 5, 128>}, {transform_indices = @transform_22, window_bounds = array<i64: 12, 5, 128>}, {transform_indices = @transform_23, window_bounds = array<i64: 13, 2, 128>}]} {
    %c0 = arith.constant 0 : index
    %c0_0 = arith.constant 0 : index
    %c0_1 = arith.constant 0 : index
    %0 = vector.load %arg1[%c0, %c0_0, %c0_1] : memref<2x8x128xf32, #tpu.memory_space<vmem>>, vector<2x8x128xf32>
    %c0_2 = arith.constant 0 : index
    %c0_3 = arith.constant 0 : index
    %1 = vector.load %arg2[%c0_2, %c0_3] : memref<8x128xf32, #tpu.memory_space<vmem>>, vector<8x128xf32>
    %2 = vector.shape_cast %1 : vector<8x128xf32> to vector<1x8x128xf32>
    %c0_4 = arith.constant 0 : index
    %3 = memref.load %arg10[%c0_4] : memref<1xf32, #tpu.memory_space<smem>>
    %c0_5 = arith.constant 0 : index
    %c0_6 = arith.constant 0 : index
    %c0_7 = arith.constant 0 : index
    %4 = vector.load %arg11[%c0_5, %c0_6, %c0_7] : memref<5x8x128xf32, #tpu.memory_space<vmem>>, vector<5x8x128xf32>
    %c0_8 = arith.constant 0 : index
    %c0_9 = arith.constant 0 : index
    %c0_10 = arith.constant 0 : index
    %5 = vector.load %arg12[%c0_8, %c0_9, %c0_10] : memref<5x8x128xf32, #tpu.memory_space<vmem>>, vector<5x8x128xf32>
    %c0_11 = arith.constant 0 : index
    %c0_12 = arith.constant 0 : index
    %c0_13 = arith.constant 0 : index
    %6 = vector.load %arg13[%c0_11, %c0_12, %c0_13] : memref<5x8x128xf32, #tpu.memory_space<vmem>>, vector<5x8x128xf32>
    %c0_14 = arith.constant 0 : index
    %c0_15 = arith.constant 0 : index
    %c0_16 = arith.constant 0 : index
    %7 = vector.load %arg14[%c0_14, %c0_15, %c0_16] : memref<5x8x128xf32, #tpu.memory_space<vmem>>, vector<5x8x128xf32>
    %8 = vector.extract_strided_slice %0 {offsets = [0, 0, 0], sizes = [1, 8, 128], strides = [1, 1, 1]} : vector<2x8x128xf32> to vector<1x8x128xf32>
    %9 = vector.shape_cast %8 : vector<1x8x128xf32> to vector<8x128xf32>
    %c0_17 = arith.constant 0 : index
    %10 = memref.load %arg4[%c0_17] : memref<10xf32, #tpu.memory_space<smem>>
    %11 = vector.broadcast %10 : f32 to vector<8x128xf32>
    %12 = arith.mulf %9, %11 : vector<8x128xf32>
    %13 = vector.extract_strided_slice %0 {offsets = [1, 0, 0], sizes = [1, 8, 128], strides = [1, 1, 1]} : vector<2x8x128xf32> to vector<1x8x128xf32>
    %14 = vector.shape_cast %13 : vector<1x8x128xf32> to vector<8x128xf32>
    %c5 = arith.constant 5 : index
    %15 = memref.load %arg4[%c5] : memref<10xf32, #tpu.memory_space<smem>>
    %16 = vector.broadcast %15 : f32 to vector<8x128xf32>
    %17 = arith.mulf %14, %16 : vector<8x128xf32>
    %18 = arith.addf %12, %17 : vector<8x128xf32>
    %c0_18 = arith.constant 0 : index
    %19 = memref.load %arg5[%c0_18] : memref<5xf32, #tpu.memory_space<smem>>
    %20 = vector.broadcast %19 : f32 to vector<8x128xf32>
    %21 = arith.addf %18, %20 : vector<8x128xf32>
    %22 = vector.extract_strided_slice %0 {offsets = [0, 0, 0], sizes = [1, 8, 128], strides = [1, 1, 1]} : vector<2x8x128xf32> to vector<1x8x128xf32>
    %23 = vector.shape_cast %22 : vector<1x8x128xf32> to vector<8x128xf32>
    %c1 = arith.constant 1 : index
    %24 = memref.load %arg4[%c1] : memref<10xf32, #tpu.memory_space<smem>>
    %25 = vector.broadcast %24 : f32 to vector<8x128xf32>
    %26 = arith.mulf %23, %25 : vector<8x128xf32>
    %27 = vector.extract_strided_slice %0 {offsets = [1, 0, 0], sizes = [1, 8, 128], strides = [1, 1, 1]} : vector<2x8x128xf32> to vector<1x8x128xf32>
    %28 = vector.shape_cast %27 : vector<1x8x128xf32> to vector<8x128xf32>
    %c6 = arith.constant 6 : index
    %29 = memref.load %arg4[%c6] : memref<10xf32, #tpu.memory_space<smem>>
    %30 = vector.broadcast %29 : f32 to vector<8x128xf32>
    %31 = arith.mulf %28, %30 : vector<8x128xf32>
    %32 = arith.addf %26, %31 : vector<8x128xf32>
    %c1_19 = arith.constant 1 : index
    %33 = memref.load %arg5[%c1_19] : memref<5xf32, #tpu.memory_space<smem>>
    %34 = vector.broadcast %33 : f32 to vector<8x128xf32>
    %35 = arith.addf %32, %34 : vector<8x128xf32>
    %36 = vector.extract_strided_slice %0 {offsets = [0, 0, 0], sizes = [1, 8, 128], strides = [1, 1, 1]} : vector<2x8x128xf32> to vector<1x8x128xf32>
    %37 = vector.shape_cast %36 : vector<1x8x128xf32> to vector<8x128xf32>
    %c2 = arith.constant 2 : index
    %38 = memref.load %arg4[%c2] : memref<10xf32, #tpu.memory_space<smem>>
    %39 = vector.broadcast %38 : f32 to vector<8x128xf32>
    %40 = arith.mulf %37, %39 : vector<8x128xf32>
    %41 = vector.extract_strided_slice %0 {offsets = [1, 0, 0], sizes = [1, 8, 128], strides = [1, 1, 1]} : vector<2x8x128xf32> to vector<1x8x128xf32>
    %42 = vector.shape_cast %41 : vector<1x8x128xf32> to vector<8x128xf32>
    %c7 = arith.constant 7 : index
    %43 = memref.load %arg4[%c7] : memref<10xf32, #tpu.memory_space<smem>>
    %44 = vector.broadcast %43 : f32 to vector<8x128xf32>
    %45 = arith.mulf %42, %44 : vector<8x128xf32>
    %46 = arith.addf %40, %45 : vector<8x128xf32>
    %c2_20 = arith.constant 2 : index
    %47 = memref.load %arg5[%c2_20] : memref<5xf32, #tpu.memory_space<smem>>
    %48 = vector.broadcast %47 : f32 to vector<8x128xf32>
    %49 = arith.addf %46, %48 : vector<8x128xf32>
    %50 = vector.extract_strided_slice %0 {offsets = [0, 0, 0], sizes = [1, 8, 128], strides = [1, 1, 1]} : vector<2x8x128xf32> to vector<1x8x128xf32>
    %51 = vector.shape_cast %50 : vector<1x8x128xf32> to vector<8x128xf32>
    %c3 = arith.constant 3 : index
    %52 = memref.load %arg4[%c3] : memref<10xf32, #tpu.memory_space<smem>>
    %53 = vector.broadcast %52 : f32 to vector<8x128xf32>
    %54 = arith.mulf %51, %53 : vector<8x128xf32>
    %55 = vector.extract_strided_slice %0 {offsets = [1, 0, 0], sizes = [1, 8, 128], strides = [1, 1, 1]} : vector<2x8x128xf32> to vector<1x8x128xf32>
    %56 = vector.shape_cast %55 : vector<1x8x128xf32> to vector<8x128xf32>
    %c8 = arith.constant 8 : index
    %57 = memref.load %arg4[%c8] : memref<10xf32, #tpu.memory_space<smem>>
    %58 = vector.broadcast %57 : f32 to vector<8x128xf32>
    %59 = arith.mulf %56, %58 : vector<8x128xf32>
    %60 = arith.addf %54, %59 : vector<8x128xf32>
    %c3_21 = arith.constant 3 : index
    %61 = memref.load %arg5[%c3_21] : memref<5xf32, #tpu.memory_space<smem>>
    %62 = vector.broadcast %61 : f32 to vector<8x128xf32>
    %63 = arith.addf %60, %62 : vector<8x128xf32>
    %64 = vector.extract_strided_slice %0 {offsets = [0, 0, 0], sizes = [1, 8, 128], strides = [1, 1, 1]} : vector<2x8x128xf32> to vector<1x8x128xf32>
    %65 = vector.shape_cast %64 : vector<1x8x128xf32> to vector<8x128xf32>
    %c4 = arith.constant 4 : index
    %66 = memref.load %arg4[%c4] : memref<10xf32, #tpu.memory_space<smem>>
    %67 = vector.broadcast %66 : f32 to vector<8x128xf32>
    %68 = arith.mulf %65, %67 : vector<8x128xf32>
    %69 = vector.extract_strided_slice %0 {offsets = [1, 0, 0], sizes = [1, 8, 128], strides = [1, 1, 1]} : vector<2x8x128xf32> to vector<1x8x128xf32>
    %70 = vector.shape_cast %69 : vector<1x8x128xf32> to vector<8x128xf32>
    %c9 = arith.constant 9 : index
    %71 = memref.load %arg4[%c9] : memref<10xf32, #tpu.memory_space<smem>>
    %72 = vector.broadcast %71 : f32 to vector<8x128xf32>
    %73 = arith.mulf %70, %72 : vector<8x128xf32>
    %74 = arith.addf %68, %73 : vector<8x128xf32>
    %c4_22 = arith.constant 4 : index
    %75 = memref.load %arg5[%c4_22] : memref<5xf32, #tpu.memory_space<smem>>
    %76 = vector.broadcast %75 : f32 to vector<8x128xf32>
    %77 = arith.addf %74, %76 : vector<8x128xf32>
    %78 = vector.shape_cast %21 : vector<8x128xf32> to vector<1x8x128xf32>
    %79 = vector.shape_cast %35 : vector<8x128xf32> to vector<1x8x128xf32>
    %80 = vector.shape_cast %49 : vector<8x128xf32> to vector<1x8x128xf32>
    %81 = vector.shape_cast %63 : vector<8x128xf32> to vector<1x8x128xf32>
    %82 = vector.shape_cast %77 : vector<8x128xf32> to vector<1x8x128xf32>
    %83 = tpu.concatenate %78, %79, %80, %81, %82 in 0 : vector<1x8x128xf32>, vector<1x8x128xf32>, vector<1x8x128xf32>, vector<1x8x128xf32>, vector<1x8x128xf32> -> vector<5x8x128xf32>
    %84 = vector.broadcast %2 : vector<1x8x128xf32> to vector<5x8x128xf32>
    %85 = arith.mulf %83, %84 : vector<5x8x128xf32>
    %cst = arith.constant dense<0.000000e+00> : vector<8x128xf32>
    %86 = vector.multi_reduction <add>, %85, %cst [0] : vector<5x8x128xf32> to vector<8x128xf32>
    %87 = vector.shape_cast %86 : vector<8x128xf32> to vector<1x8x128xf32>
    %cst_23 = arith.constant dense<0.000000e+00> : vector<1x128xf32>
    %88 = vector.multi_reduction <add>, %87, %cst_23 [1] : vector<1x8x128xf32> to vector<1x128xf32>
    %89 = vector.shape_cast %88 : vector<1x128xf32> to vector<1x1x128xf32>
    %cst_24 = arith.constant 2.500000e-02 : f32
    %90 = vector.broadcast %cst_24 : f32 to vector<1x1x128xf32>
    %91 = arith.mulf %89, %90 : vector<1x1x128xf32>
    %92 = vector.broadcast %91 : vector<1x1x128xf32> to vector<5x8x128xf32>
    %93 = arith.subf %85, %92 : vector<5x8x128xf32>
    %94 = arith.mulf %93, %93 : vector<5x8x128xf32>
    %cst_25 = arith.constant dense<0.000000e+00> : vector<8x128xf32>
    %95 = vector.multi_reduction <add>, %94, %cst_25 [0] : vector<5x8x128xf32> to vector<8x128xf32>
    %96 = vector.shape_cast %95 : vector<8x128xf32> to vector<1x8x128xf32>
    %cst_26 = arith.constant dense<0.000000e+00> : vector<1x128xf32>
    %97 = vector.multi_reduction <add>, %96, %cst_26 [1] : vector<1x8x128xf32> to vector<1x128xf32>
    %98 = vector.shape_cast %97 : vector<1x128xf32> to vector<1x1x128xf32>
    %cst_27 = arith.constant 2.500000e-02 : f32
    %99 = vector.broadcast %cst_27 : f32 to vector<1x1x128xf32>
    %100 = arith.mulf %98, %99 : vector<1x1x128xf32>
    %cst_28 = arith.constant 9.99999974E-6 : f32
    %101 = vector.broadcast %cst_28 : f32 to vector<1x1x128xf32>
    %102 = arith.addf %100, %101 : vector<1x1x128xf32>
    %103 = math.rsqrt %102 : vector<1x1x128xf32>
    %104 = vector.broadcast %103 : vector<1x1x128xf32> to vector<5x8x128xf32>
    %105 = arith.mulf %93, %104 : vector<5x8x128xf32>
    %106 = arith.mulf %105, %4 : vector<5x8x128xf32>
    %107 = arith.addf %106, %5 : vector<5x8x128xf32>
    %108 = vector.extract_strided_slice %0 {offsets = [0, 0, 0], sizes = [1, 8, 128], strides = [1, 1, 1]} : vector<2x8x128xf32> to vector<1x8x128xf32>
    %109 = vector.shape_cast %108 : vector<1x8x128xf32> to vector<8x128xf32>
    %c0_29 = arith.constant 0 : index
    %110 = memref.load %arg6[%c0_29] : memref<10xf32, #tpu.memory_space<smem>>
    %111 = vector.broadcast %110 : f32 to vector<8x128xf32>
    %112 = arith.mulf %109, %111 : vector<8x128xf32>
    %113 = vector.extract_strided_slice %0 {offsets = [1, 0, 0], sizes = [1, 8, 128], strides = [1, 1, 1]} : vector<2x8x128xf32> to vector<1x8x128xf32>
    %114 = vector.shape_cast %113 : vector<1x8x128xf32> to vector<8x128xf32>
    %c5_30 = arith.constant 5 : index
    %115 = memref.load %arg6[%c5_30] : memref<10xf32, #tpu.memory_space<smem>>
    %116 = vector.broadcast %115 : f32 to vector<8x128xf32>
    %117 = arith.mulf %114, %116 : vector<8x128xf32>
    %118 = arith.addf %112, %117 : vector<8x128xf32>
    %c0_31 = arith.constant 0 : index
    %119 = memref.load %arg7[%c0_31] : memref<5xf32, #tpu.memory_space<smem>>
    %120 = vector.broadcast %119 : f32 to vector<8x128xf32>
    %121 = arith.addf %118, %120 : vector<8x128xf32>
    %122 = vector.extract_strided_slice %0 {offsets = [0, 0, 0], sizes = [1, 8, 128], strides = [1, 1, 1]} : vector<2x8x128xf32> to vector<1x8x128xf32>
    %123 = vector.shape_cast %122 : vector<1x8x128xf32> to vector<8x128xf32>
    %c1_32 = arith.constant 1 : index
    %124 = memref.load %arg6[%c1_32] : memref<10xf32, #tpu.memory_space<smem>>
    %125 = vector.broadcast %124 : f32 to vector<8x128xf32>
    %126 = arith.mulf %123, %125 : vector<8x128xf32>
    %127 = vector.extract_strided_slice %0 {offsets = [1, 0, 0], sizes = [1, 8, 128], strides = [1, 1, 1]} : vector<2x8x128xf32> to vector<1x8x128xf32>
    %128 = vector.shape_cast %127 : vector<1x8x128xf32> to vector<8x128xf32>
    %c6_33 = arith.constant 6 : index
    %129 = memref.load %arg6[%c6_33] : memref<10xf32, #tpu.memory_space<smem>>
    %130 = vector.broadcast %129 : f32 to vector<8x128xf32>
    %131 = arith.mulf %128, %130 : vector<8x128xf32>
    %132 = arith.addf %126, %131 : vector<8x128xf32>
    %c1_34 = arith.constant 1 : index
    %133 = memref.load %arg7[%c1_34] : memref<5xf32, #tpu.memory_space<smem>>
    %134 = vector.broadcast %133 : f32 to vector<8x128xf32>
    %135 = arith.addf %132, %134 : vector<8x128xf32>
    %136 = vector.extract_strided_slice %0 {offsets = [0, 0, 0], sizes = [1, 8, 128], strides = [1, 1, 1]} : vector<2x8x128xf32> to vector<1x8x128xf32>
    %137 = vector.shape_cast %136 : vector<1x8x128xf32> to vector<8x128xf32>
    %c2_35 = arith.constant 2 : index
    %138 = memref.load %arg6[%c2_35] : memref<10xf32, #tpu.memory_space<smem>>
    %139 = vector.broadcast %138 : f32 to vector<8x128xf32>
    %140 = arith.mulf %137, %139 : vector<8x128xf32>
    %141 = vector.extract_strided_slice %0 {offsets = [1, 0, 0], sizes = [1, 8, 128], strides = [1, 1, 1]} : vector<2x8x128xf32> to vector<1x8x128xf32>
    %142 = vector.shape_cast %141 : vector<1x8x128xf32> to vector<8x128xf32>
    %c7_36 = arith.constant 7 : index
    %143 = memref.load %arg6[%c7_36] : memref<10xf32, #tpu.memory_space<smem>>
    %144 = vector.broadcast %143 : f32 to vector<8x128xf32>
    %145 = arith.mulf %142, %144 : vector<8x128xf32>
    %146 = arith.addf %140, %145 : vector<8x128xf32>
    %c2_37 = arith.constant 2 : index
    %147 = memref.load %arg7[%c2_37] : memref<5xf32, #tpu.memory_space<smem>>
    %148 = vector.broadcast %147 : f32 to vector<8x128xf32>
    %149 = arith.addf %146, %148 : vector<8x128xf32>
    %150 = vector.extract_strided_slice %0 {offsets = [0, 0, 0], sizes = [1, 8, 128], strides = [1, 1, 1]} : vector<2x8x128xf32> to vector<1x8x128xf32>
    %151 = vector.shape_cast %150 : vector<1x8x128xf32> to vector<8x128xf32>
    %c3_38 = arith.constant 3 : index
    %152 = memref.load %arg6[%c3_38] : memref<10xf32, #tpu.memory_space<smem>>
    %153 = vector.broadcast %152 : f32 to vector<8x128xf32>
    %154 = arith.mulf %151, %153 : vector<8x128xf32>
    %155 = vector.extract_strided_slice %0 {offsets = [1, 0, 0], sizes = [1, 8, 128], strides = [1, 1, 1]} : vector<2x8x128xf32> to vector<1x8x128xf32>
    %156 = vector.shape_cast %155 : vector<1x8x128xf32> to vector<8x128xf32>
    %c8_39 = arith.constant 8 : index
    %157 = memref.load %arg6[%c8_39] : memref<10xf32, #tpu.memory_space<smem>>
    %158 = vector.broadcast %157 : f32 to vector<8x128xf32>
    %159 = arith.mulf %156, %158 : vector<8x128xf32>
    %160 = arith.addf %154, %159 : vector<8x128xf32>
    %c3_40 = arith.constant 3 : index
    %161 = memref.load %arg7[%c3_40] : memref<5xf32, #tpu.memory_space<smem>>
    %162 = vector.broadcast %161 : f32 to vector<8x128xf32>
    %163 = arith.addf %160, %162 : vector<8x128xf32>
    %164 = vector.extract_strided_slice %0 {offsets = [0, 0, 0], sizes = [1, 8, 128], strides = [1, 1, 1]} : vector<2x8x128xf32> to vector<1x8x128xf32>
    %165 = vector.shape_cast %164 : vector<1x8x128xf32> to vector<8x128xf32>
    %c4_41 = arith.constant 4 : index
    %166 = memref.load %arg6[%c4_41] : memref<10xf32, #tpu.memory_space<smem>>
    %167 = vector.broadcast %166 : f32 to vector<8x128xf32>
    %168 = arith.mulf %165, %167 : vector<8x128xf32>
    %169 = vector.extract_strided_slice %0 {offsets = [1, 0, 0], sizes = [1, 8, 128], strides = [1, 1, 1]} : vector<2x8x128xf32> to vector<1x8x128xf32>
    %170 = vector.shape_cast %169 : vector<1x8x128xf32> to vector<8x128xf32>
    %c9_42 = arith.constant 9 : index
    %171 = memref.load %arg6[%c9_42] : memref<10xf32, #tpu.memory_space<smem>>
    %172 = vector.broadcast %171 : f32 to vector<8x128xf32>
    %173 = arith.mulf %170, %172 : vector<8x128xf32>
    %174 = arith.addf %168, %173 : vector<8x128xf32>
    %c4_43 = arith.constant 4 : index
    %175 = memref.load %arg7[%c4_43] : memref<5xf32, #tpu.memory_space<smem>>
    %176 = vector.broadcast %175 : f32 to vector<8x128xf32>
    %177 = arith.addf %174, %176 : vector<8x128xf32>
    %178 = vector.shape_cast %121 : vector<8x128xf32> to vector<1x8x128xf32>
    %179 = vector.shape_cast %135 : vector<8x128xf32> to vector<1x8x128xf32>
    %180 = vector.shape_cast %149 : vector<8x128xf32> to vector<1x8x128xf32>
    %181 = vector.shape_cast %163 : vector<8x128xf32> to vector<1x8x128xf32>
    %182 = vector.shape_cast %177 : vector<8x128xf32> to vector<1x8x128xf32>
    %183 = tpu.concatenate %178, %179, %180, %181, %182 in 0 : vector<1x8x128xf32>, vector<1x8x128xf32>, vector<1x8x128xf32>, vector<1x8x128xf32>, vector<1x8x128xf32> -> vector<5x8x128xf32>
    %184 = vector.broadcast %2 : vector<1x8x128xf32> to vector<5x8x128xf32>
    %185 = arith.mulf %183, %184 : vector<5x8x128xf32>
    %cst_44 = arith.constant dense<0.000000e+00> : vector<8x128xf32>
    %186 = vector.multi_reduction <add>, %185, %cst_44 [0] : vector<5x8x128xf32> to vector<8x128xf32>
    %187 = vector.shape_cast %186 : vector<8x128xf32> to vector<1x8x128xf32>
    %cst_45 = arith.constant dense<0.000000e+00> : vector<1x128xf32>
    %188 = vector.multi_reduction <add>, %187, %cst_45 [1] : vector<1x8x128xf32> to vector<1x128xf32>
    %189 = vector.shape_cast %188 : vector<1x128xf32> to vector<1x1x128xf32>
    %cst_46 = arith.constant 2.500000e-02 : f32
    %190 = vector.broadcast %cst_46 : f32 to vector<1x1x128xf32>
    %191 = arith.mulf %189, %190 : vector<1x1x128xf32>
    %192 = vector.broadcast %191 : vector<1x1x128xf32> to vector<5x8x128xf32>
    %193 = arith.subf %185, %192 : vector<5x8x128xf32>
    %194 = arith.mulf %193, %193 : vector<5x8x128xf32>
    %cst_47 = arith.constant dense<0.000000e+00> : vector<8x128xf32>
    %195 = vector.multi_reduction <add>, %194, %cst_47 [0] : vector<5x8x128xf32> to vector<8x128xf32>
    %196 = vector.shape_cast %195 : vector<8x128xf32> to vector<1x8x128xf32>
    %cst_48 = arith.constant dense<0.000000e+00> : vector<1x128xf32>
    %197 = vector.multi_reduction <add>, %196, %cst_48 [1] : vector<1x8x128xf32> to vector<1x128xf32>
    %198 = vector.shape_cast %197 : vector<1x128xf32> to vector<1x1x128xf32>
    %cst_49 = arith.constant 2.500000e-02 : f32
    %199 = vector.broadcast %cst_49 : f32 to vector<1x1x128xf32>
    %200 = arith.mulf %198, %199 : vector<1x1x128xf32>
    %cst_50 = arith.constant 9.99999974E-6 : f32
    %201 = vector.broadcast %cst_50 : f32 to vector<1x1x128xf32>
    %202 = arith.addf %200, %201 : vector<1x1x128xf32>
    %203 = math.rsqrt %202 : vector<1x1x128xf32>
    %204 = vector.broadcast %203 : vector<1x1x128xf32> to vector<5x8x128xf32>
    %205 = arith.mulf %193, %204 : vector<5x8x128xf32>
    %206 = arith.mulf %205, %6 : vector<5x8x128xf32>
    %207 = arith.addf %206, %7 : vector<5x8x128xf32>
    %cst_51 = arith.constant 0.000000e+00 : f32
    %208 = vector.broadcast %cst_51 : f32 to vector<5x8x128xf32>
    %209 = arith.cmpf oge, %207, %208 : vector<5x8x128xf32>
    %210 = vector.broadcast %3 : f32 to vector<5x8x128xf32>
    %211 = arith.mulf %210, %207 : vector<5x8x128xf32>
    %212 = arith.select %209, %207, %211 : vector<5x8x128xi1>, vector<5x8x128xf32>
    %cst_52 = arith.constant 0.000000e+00 : f32
    %213 = vector.broadcast %cst_52 : f32 to vector<5x1x128xf32>
    %214 = vector.extract_strided_slice %212 {offsets = [0, 0, 0], sizes = [5, 7, 128], strides = [1, 1, 1]} : vector<5x8x128xf32> to vector<5x7x128xf32>
    %215 = tpu.concatenate %213, %214 in 1 : vector<5x1x128xf32>, vector<5x7x128xf32> -> vector<5x8x128xf32>
    %216 = vector.extract_strided_slice %212 {offsets = [0, 1, 0], sizes = [5, 7, 128], strides = [1, 1, 1]} : vector<5x8x128xf32> to vector<5x7x128xf32>
    %217 = tpu.concatenate %216, %213 in 1 : vector<5x7x128xf32>, vector<5x1x128xf32> -> vector<5x8x128xf32>
    %218 = vector.extract_strided_slice %215 {offsets = [0, 0, 0], sizes = [1, 8, 128], strides = [1, 1, 1]} : vector<5x8x128xf32> to vector<1x8x128xf32>
    %219 = vector.shape_cast %218 : vector<1x8x128xf32> to vector<8x128xf32>
    %c0_53 = arith.constant 0 : index
    %220 = memref.load %arg8[%c0_53] : memref<75xf32, #tpu.memory_space<smem>>
    %221 = vector.broadcast %220 : f32 to vector<8x128xf32>
    %222 = arith.mulf %219, %221 : vector<8x128xf32>
    %223 = vector.extract_strided_slice %215 {offsets = [1, 0, 0], sizes = [1, 8, 128], strides = [1, 1, 1]} : vector<5x8x128xf32> to vector<1x8x128xf32>
    %224 = vector.shape_cast %223 : vector<1x8x128xf32> to vector<8x128xf32>
    %c5_54 = arith.constant 5 : index
    %225 = memref.load %arg8[%c5_54] : memref<75xf32, #tpu.memory_space<smem>>
    %226 = vector.broadcast %225 : f32 to vector<8x128xf32>
    %227 = arith.mulf %224, %226 : vector<8x128xf32>
    %228 = arith.addf %222, %227 : vector<8x128xf32>
    %229 = vector.extract_strided_slice %215 {offsets = [2, 0, 0], sizes = [1, 8, 128], strides = [1, 1, 1]} : vector<5x8x128xf32> to vector<1x8x128xf32>
    %230 = vector.shape_cast %229 : vector<1x8x128xf32> to vector<8x128xf32>
    %c10 = arith.constant 10 : index
    %231 = memref.load %arg8[%c10] : memref<75xf32, #tpu.memory_space<smem>>
    %232 = vector.broadcast %231 : f32 to vector<8x128xf32>
    %233 = arith.mulf %230, %232 : vector<8x128xf32>
    %234 = arith.addf %228, %233 : vector<8x128xf32>
    %235 = vector.extract_strided_slice %215 {offsets = [3, 0, 0], sizes = [1, 8, 128], strides = [1, 1, 1]} : vector<5x8x128xf32> to vector<1x8x128xf32>
    %236 = vector.shape_cast %235 : vector<1x8x128xf32> to vector<8x128xf32>
    %c15 = arith.constant 15 : index
    %237 = memref.load %arg8[%c15] : memref<75xf32, #tpu.memory_space<smem>>
    %238 = vector.broadcast %237 : f32 to vector<8x128xf32>
    %239 = arith.mulf %236, %238 : vector<8x128xf32>
    %240 = arith.addf %234, %239 : vector<8x128xf32>
    %241 = vector.extract_strided_slice %215 {offsets = [4, 0, 0], sizes = [1, 8, 128], strides = [1, 1, 1]} : vector<5x8x128xf32> to vector<1x8x128xf32>
    %242 = vector.shape_cast %241 : vector<1x8x128xf32> to vector<8x128xf32>
    %c20 = arith.constant 20 : index
    %243 = memref.load %arg8[%c20] : memref<75xf32, #tpu.memory_space<smem>>
    %244 = vector.broadcast %243 : f32 to vector<8x128xf32>
    %245 = arith.mulf %242, %244 : vector<8x128xf32>
    %246 = arith.addf %240, %245 : vector<8x128xf32>
    %247 = vector.extract_strided_slice %212 {offsets = [0, 0, 0], sizes = [1, 8, 128], strides = [1, 1, 1]} : vector<5x8x128xf32> to vector<1x8x128xf32>
    %248 = vector.shape_cast %247 : vector<1x8x128xf32> to vector<8x128xf32>
    %c25 = arith.constant 25 : index
    %249 = memref.load %arg8[%c25] : memref<75xf32, #tpu.memory_space<smem>>
    %250 = vector.broadcast %249 : f32 to vector<8x128xf32>
    %251 = arith.mulf %248, %250 : vector<8x128xf32>
    %252 = arith.addf %246, %251 : vector<8x128xf32>
    %253 = vector.extract_strided_slice %212 {offsets = [1, 0, 0], sizes = [1, 8, 128], strides = [1, 1, 1]} : vector<5x8x128xf32> to vector<1x8x128xf32>
    %254 = vector.shape_cast %253 : vector<1x8x128xf32> to vector<8x128xf32>
    %c30 = arith.constant 30 : index
    %255 = memref.load %arg8[%c30] : memref<75xf32, #tpu.memory_space<smem>>
    %256 = vector.broadcast %255 : f32 to vector<8x128xf32>
    %257 = arith.mulf %254, %256 : vector<8x128xf32>
    %258 = arith.addf %252, %257 : vector<8x128xf32>
    %259 = vector.extract_strided_slice %212 {offsets = [2, 0, 0], sizes = [1, 8, 128], strides = [1, 1, 1]} : vector<5x8x128xf32> to vector<1x8x128xf32>
    %260 = vector.shape_cast %259 : vector<1x8x128xf32> to vector<8x128xf32>
    %c35 = arith.constant 35 : index
    %261 = memref.load %arg8[%c35] : memref<75xf32, #tpu.memory_space<smem>>
    %262 = vector.broadcast %261 : f32 to vector<8x128xf32>
    %263 = arith.mulf %260, %262 : vector<8x128xf32>
    %264 = arith.addf %258, %263 : vector<8x128xf32>
    %265 = vector.extract_strided_slice %212 {offsets = [3, 0, 0], sizes = [1, 8, 128], strides = [1, 1, 1]} : vector<5x8x128xf32> to vector<1x8x128xf32>
    %266 = vector.shape_cast %265 : vector<1x8x128xf32> to vector<8x128xf32>
    %c40 = arith.constant 40 : index
    %267 = memref.load %arg8[%c40] : memref<75xf32, #tpu.memory_space<smem>>
    %268 = vector.broadcast %267 : f32 to vector<8x128xf32>
    %269 = arith.mulf %266, %268 : vector<8x128xf32>
    %270 = arith.addf %264, %269 : vector<8x128xf32>
    %271 = vector.extract_strided_slice %212 {offsets = [4, 0, 0], sizes = [1, 8, 128], strides = [1, 1, 1]} : vector<5x8x128xf32> to vector<1x8x128xf32>
    %272 = vector.shape_cast %271 : vector<1x8x128xf32> to vector<8x128xf32>
    %c45 = arith.constant 45 : index
    %273 = memref.load %arg8[%c45] : memref<75xf32, #tpu.memory_space<smem>>
    %274 = vector.broadcast %273 : f32 to vector<8x128xf32>
    %275 = arith.mulf %272, %274 : vector<8x128xf32>
    %276 = arith.addf %270, %275 : vector<8x128xf32>
    %277 = vector.extract_strided_slice %217 {offsets = [0, 0, 0], sizes = [1, 8, 128], strides = [1, 1, 1]} : vector<5x8x128xf32> to vector<1x8x128xf32>
    %278 = vector.shape_cast %277 : vector<1x8x128xf32> to vector<8x128xf32>
    %c50 = arith.constant 50 : index
    %279 = memref.load %arg8[%c50] : memref<75xf32, #tpu.memory_space<smem>>
    %280 = vector.broadcast %279 : f32 to vector<8x128xf32>
    %281 = arith.mulf %278, %280 : vector<8x128xf32>
    %282 = arith.addf %276, %281 : vector<8x128xf32>
    %283 = vector.extract_strided_slice %217 {offsets = [1, 0, 0], sizes = [1, 8, 128], strides = [1, 1, 1]} : vector<5x8x128xf32> to vector<1x8x128xf32>
    %284 = vector.shape_cast %283 : vector<1x8x128xf32> to vector<8x128xf32>
    %c55 = arith.constant 55 : index
    %285 = memref.load %arg8[%c55] : memref<75xf32, #tpu.memory_space<smem>>
    %286 = vector.broadcast %285 : f32 to vector<8x128xf32>
    %287 = arith.mulf %284, %286 : vector<8x128xf32>
    %288 = arith.addf %282, %287 : vector<8x128xf32>
    %289 = vector.extract_strided_slice %217 {offsets = [2, 0, 0], sizes = [1, 8, 128], strides = [1, 1, 1]} : vector<5x8x128xf32> to vector<1x8x128xf32>
    %290 = vector.shape_cast %289 : vector<1x8x128xf32> to vector<8x128xf32>
    %c60 = arith.constant 60 : index
    %291 = memref.load %arg8[%c60] : memref<75xf32, #tpu.memory_space<smem>>
    %292 = vector.broadcast %291 : f32 to vector<8x128xf32>
    %293 = arith.mulf %290, %292 : vector<8x128xf32>
    %294 = arith.addf %288, %293 : vector<8x128xf32>
    %295 = vector.extract_strided_slice %217 {offsets = [3, 0, 0], sizes = [1, 8, 128], strides = [1, 1, 1]} : vector<5x8x128xf32> to vector<1x8x128xf32>
    %296 = vector.shape_cast %295 : vector<1x8x128xf32> to vector<8x128xf32>
    %c65 = arith.constant 65 : index
    %297 = memref.load %arg8[%c65] : memref<75xf32, #tpu.memory_space<smem>>
    %298 = vector.broadcast %297 : f32 to vector<8x128xf32>
    %299 = arith.mulf %296, %298 : vector<8x128xf32>
    %300 = arith.addf %294, %299 : vector<8x128xf32>
    %301 = vector.extract_strided_slice %217 {offsets = [4, 0, 0], sizes = [1, 8, 128], strides = [1, 1, 1]} : vector<5x8x128xf32> to vector<1x8x128xf32>
    %302 = vector.shape_cast %301 : vector<1x8x128xf32> to vector<8x128xf32>
    %c70 = arith.constant 70 : index
    %303 = memref.load %arg8[%c70] : memref<75xf32, #tpu.memory_space<smem>>
    %304 = vector.broadcast %303 : f32 to vector<8x128xf32>
    %305 = arith.mulf %302, %304 : vector<8x128xf32>
    %306 = arith.addf %300, %305 : vector<8x128xf32>
    %c0_55 = arith.constant 0 : index
    %307 = memref.load %arg9[%c0_55] : memref<5xf32, #tpu.memory_space<smem>>
    %308 = vector.broadcast %307 : f32 to vector<8x128xf32>
    %309 = arith.addf %306, %308 : vector<8x128xf32>
    %310 = vector.extract_strided_slice %215 {offsets = [0, 0, 0], sizes = [1, 8, 128], strides = [1, 1, 1]} : vector<5x8x128xf32> to vector<1x8x128xf32>
    %311 = vector.shape_cast %310 : vector<1x8x128xf32> to vector<8x128xf32>
    %c1_56 = arith.constant 1 : index
    %312 = memref.load %arg8[%c1_56] : memref<75xf32, #tpu.memory_space<smem>>
    %313 = vector.broadcast %312 : f32 to vector<8x128xf32>
    %314 = arith.mulf %311, %313 : vector<8x128xf32>
    %315 = vector.extract_strided_slice %215 {offsets = [1, 0, 0], sizes = [1, 8, 128], strides = [1, 1, 1]} : vector<5x8x128xf32> to vector<1x8x128xf32>
    %316 = vector.shape_cast %315 : vector<1x8x128xf32> to vector<8x128xf32>
    %c6_57 = arith.constant 6 : index
    %317 = memref.load %arg8[%c6_57] : memref<75xf32, #tpu.memory_space<smem>>
    %318 = vector.broadcast %317 : f32 to vector<8x128xf32>
    %319 = arith.mulf %316, %318 : vector<8x128xf32>
    %320 = arith.addf %314, %319 : vector<8x128xf32>
    %321 = vector.extract_strided_slice %215 {offsets = [2, 0, 0], sizes = [1, 8, 128], strides = [1, 1, 1]} : vector<5x8x128xf32> to vector<1x8x128xf32>
    %322 = vector.shape_cast %321 : vector<1x8x128xf32> to vector<8x128xf32>
    %c11 = arith.constant 11 : index
    %323 = memref.load %arg8[%c11] : memref<75xf32, #tpu.memory_space<smem>>
    %324 = vector.broadcast %323 : f32 to vector<8x128xf32>
    %325 = arith.mulf %322, %324 : vector<8x128xf32>
    %326 = arith.addf %320, %325 : vector<8x128xf32>
    %327 = vector.extract_strided_slice %215 {offsets = [3, 0, 0], sizes = [1, 8, 128], strides = [1, 1, 1]} : vector<5x8x128xf32> to vector<1x8x128xf32>
    %328 = vector.shape_cast %327 : vector<1x8x128xf32> to vector<8x128xf32>
    %c16 = arith.constant 16 : index
    %329 = memref.load %arg8[%c16] : memref<75xf32, #tpu.memory_space<smem>>
    %330 = vector.broadcast %329 : f32 to vector<8x128xf32>
    %331 = arith.mulf %328, %330 : vector<8x128xf32>
    %332 = arith.addf %326, %331 : vector<8x128xf32>
    %333 = vector.extract_strided_slice %215 {offsets = [4, 0, 0], sizes = [1, 8, 128], strides = [1, 1, 1]} : vector<5x8x128xf32> to vector<1x8x128xf32>
    %334 = vector.shape_cast %333 : vector<1x8x128xf32> to vector<8x128xf32>
    %c21 = arith.constant 21 : index
    %335 = memref.load %arg8[%c21] : memref<75xf32, #tpu.memory_space<smem>>
    %336 = vector.broadcast %335 : f32 to vector<8x128xf32>
    %337 = arith.mulf %334, %336 : vector<8x128xf32>
    %338 = arith.addf %332, %337 : vector<8x128xf32>
    %339 = vector.extract_strided_slice %212 {offsets = [0, 0, 0], sizes = [1, 8, 128], strides = [1, 1, 1]} : vector<5x8x128xf32> to vector<1x8x128xf32>
    %340 = vector.shape_cast %339 : vector<1x8x128xf32> to vector<8x128xf32>
    %c26 = arith.constant 26 : index
    %341 = memref.load %arg8[%c26] : memref<75xf32, #tpu.memory_space<smem>>
    %342 = vector.broadcast %341 : f32 to vector<8x128xf32>
    %343 = arith.mulf %340, %342 : vector<8x128xf32>
    %344 = arith.addf %338, %343 : vector<8x128xf32>
    %345 = vector.extract_strided_slice %212 {offsets = [1, 0, 0], sizes = [1, 8, 128], strides = [1, 1, 1]} : vector<5x8x128xf32> to vector<1x8x128xf32>
    %346 = vector.shape_cast %345 : vector<1x8x128xf32> to vector<8x128xf32>
    %c31 = arith.constant 31 : index
    %347 = memref.load %arg8[%c31] : memref<75xf32, #tpu.memory_space<smem>>
    %348 = vector.broadcast %347 : f32 to vector<8x128xf32>
    %349 = arith.mulf %346, %348 : vector<8x128xf32>
    %350 = arith.addf %344, %349 : vector<8x128xf32>
    %351 = vector.extract_strided_slice %212 {offsets = [2, 0, 0], sizes = [1, 8, 128], strides = [1, 1, 1]} : vector<5x8x128xf32> to vector<1x8x128xf32>
    %352 = vector.shape_cast %351 : vector<1x8x128xf32> to vector<8x128xf32>
    %c36 = arith.constant 36 : index
    %353 = memref.load %arg8[%c36] : memref<75xf32, #tpu.memory_space<smem>>
    %354 = vector.broadcast %353 : f32 to vector<8x128xf32>
    %355 = arith.mulf %352, %354 : vector<8x128xf32>
    %356 = arith.addf %350, %355 : vector<8x128xf32>
    %357 = vector.extract_strided_slice %212 {offsets = [3, 0, 0], sizes = [1, 8, 128], strides = [1, 1, 1]} : vector<5x8x128xf32> to vector<1x8x128xf32>
    %358 = vector.shape_cast %357 : vector<1x8x128xf32> to vector<8x128xf32>
    %c41 = arith.constant 41 : index
    %359 = memref.load %arg8[%c41] : memref<75xf32, #tpu.memory_space<smem>>
    %360 = vector.broadcast %359 : f32 to vector<8x128xf32>
    %361 = arith.mulf %358, %360 : vector<8x128xf32>
    %362 = arith.addf %356, %361 : vector<8x128xf32>
    %363 = vector.extract_strided_slice %212 {offsets = [4, 0, 0], sizes = [1, 8, 128], strides = [1, 1, 1]} : vector<5x8x128xf32> to vector<1x8x128xf32>
    %364 = vector.shape_cast %363 : vector<1x8x128xf32> to vector<8x128xf32>
    %c46 = arith.constant 46 : index
    %365 = memref.load %arg8[%c46] : memref<75xf32, #tpu.memory_space<smem>>
    %366 = vector.broadcast %365 : f32 to vector<8x128xf32>
    %367 = arith.mulf %364, %366 : vector<8x128xf32>
    %368 = arith.addf %362, %367 : vector<8x128xf32>
    %369 = vector.extract_strided_slice %217 {offsets = [0, 0, 0], sizes = [1, 8, 128], strides = [1, 1, 1]} : vector<5x8x128xf32> to vector<1x8x128xf32>
    %370 = vector.shape_cast %369 : vector<1x8x128xf32> to vector<8x128xf32>
    %c51 = arith.constant 51 : index
    %371 = memref.load %arg8[%c51] : memref<75xf32, #tpu.memory_space<smem>>
    %372 = vector.broadcast %371 : f32 to vector<8x128xf32>
    %373 = arith.mulf %370, %372 : vector<8x128xf32>
    %374 = arith.addf %368, %373 : vector<8x128xf32>
    %375 = vector.extract_strided_slice %217 {offsets = [1, 0, 0], sizes = [1, 8, 128], strides = [1, 1, 1]} : vector<5x8x128xf32> to vector<1x8x128xf32>
    %376 = vector.shape_cast %375 : vector<1x8x128xf32> to vector<8x128xf32>
    %c56 = arith.constant 56 : index
    %377 = memref.load %arg8[%c56] : memref<75xf32, #tpu.memory_space<smem>>
    %378 = vector.broadcast %377 : f32 to vector<8x128xf32>
    %379 = arith.mulf %376, %378 : vector<8x128xf32>
    %380 = arith.addf %374, %379 : vector<8x128xf32>
    %381 = vector.extract_strided_slice %217 {offsets = [2, 0, 0], sizes = [1, 8, 128], strides = [1, 1, 1]} : vector<5x8x128xf32> to vector<1x8x128xf32>
    %382 = vector.shape_cast %381 : vector<1x8x128xf32> to vector<8x128xf32>
    %c61 = arith.constant 61 : index
    %383 = memref.load %arg8[%c61] : memref<75xf32, #tpu.memory_space<smem>>
    %384 = vector.broadcast %383 : f32 to vector<8x128xf32>
    %385 = arith.mulf %382, %384 : vector<8x128xf32>
    %386 = arith.addf %380, %385 : vector<8x128xf32>
    %387 = vector.extract_strided_slice %217 {offsets = [3, 0, 0], sizes = [1, 8, 128], strides = [1, 1, 1]} : vector<5x8x128xf32> to vector<1x8x128xf32>
    %388 = vector.shape_cast %387 : vector<1x8x128xf32> to vector<8x128xf32>
    %c66 = arith.constant 66 : index
    %389 = memref.load %arg8[%c66] : memref<75xf32, #tpu.memory_space<smem>>
    %390 = vector.broadcast %389 : f32 to vector<8x128xf32>
    %391 = arith.mulf %388, %390 : vector<8x128xf32>
    %392 = arith.addf %386, %391 : vector<8x128xf32>
    %393 = vector.extract_strided_slice %217 {offsets = [4, 0, 0], sizes = [1, 8, 128], strides = [1, 1, 1]} : vector<5x8x128xf32> to vector<1x8x128xf32>
    %394 = vector.shape_cast %393 : vector<1x8x128xf32> to vector<8x128xf32>
    %c71 = arith.constant 71 : index
    %395 = memref.load %arg8[%c71] : memref<75xf32, #tpu.memory_space<smem>>
    %396 = vector.broadcast %395 : f32 to vector<8x128xf32>
    %397 = arith.mulf %394, %396 : vector<8x128xf32>
    %398 = arith.addf %392, %397 : vector<8x128xf32>
    %c1_58 = arith.constant 1 : index
    %399 = memref.load %arg9[%c1_58] : memref<5xf32, #tpu.memory_space<smem>>
    %400 = vector.broadcast %399 : f32 to vector<8x128xf32>
    %401 = arith.addf %398, %400 : vector<8x128xf32>
    %402 = vector.extract_strided_slice %215 {offsets = [0, 0, 0], sizes = [1, 8, 128], strides = [1, 1, 1]} : vector<5x8x128xf32> to vector<1x8x128xf32>
    %403 = vector.shape_cast %402 : vector<1x8x128xf32> to vector<8x128xf32>
    %c2_59 = arith.constant 2 : index
    %404 = memref.load %arg8[%c2_59] : memref<75xf32, #tpu.memory_space<smem>>
    %405 = vector.broadcast %404 : f32 to vector<8x128xf32>
    %406 = arith.mulf %403, %405 : vector<8x128xf32>
    %407 = vector.extract_strided_slice %215 {offsets = [1, 0, 0], sizes = [1, 8, 128], strides = [1, 1, 1]} : vector<5x8x128xf32> to vector<1x8x128xf32>
    %408 = vector.shape_cast %407 : vector<1x8x128xf32> to vector<8x128xf32>
    %c7_60 = arith.constant 7 : index
    %409 = memref.load %arg8[%c7_60] : memref<75xf32, #tpu.memory_space<smem>>
    %410 = vector.broadcast %409 : f32 to vector<8x128xf32>
    %411 = arith.mulf %408, %410 : vector<8x128xf32>
    %412 = arith.addf %406, %411 : vector<8x128xf32>
    %413 = vector.extract_strided_slice %215 {offsets = [2, 0, 0], sizes = [1, 8, 128], strides = [1, 1, 1]} : vector<5x8x128xf32> to vector<1x8x128xf32>
    %414 = vector.shape_cast %413 : vector<1x8x128xf32> to vector<8x128xf32>
    %c12 = arith.constant 12 : index
    %415 = memref.load %arg8[%c12] : memref<75xf32, #tpu.memory_space<smem>>
    %416 = vector.broadcast %415 : f32 to vector<8x128xf32>
    %417 = arith.mulf %414, %416 : vector<8x128xf32>
    %418 = arith.addf %412, %417 : vector<8x128xf32>
    %419 = vector.extract_strided_slice %215 {offsets = [3, 0, 0], sizes = [1, 8, 128], strides = [1, 1, 1]} : vector<5x8x128xf32> to vector<1x8x128xf32>
    %420 = vector.shape_cast %419 : vector<1x8x128xf32> to vector<8x128xf32>
    %c17 = arith.constant 17 : index
    %421 = memref.load %arg8[%c17] : memref<75xf32, #tpu.memory_space<smem>>
    %422 = vector.broadcast %421 : f32 to vector<8x128xf32>
    %423 = arith.mulf %420, %422 : vector<8x128xf32>
    %424 = arith.addf %418, %423 : vector<8x128xf32>
    %425 = vector.extract_strided_slice %215 {offsets = [4, 0, 0], sizes = [1, 8, 128], strides = [1, 1, 1]} : vector<5x8x128xf32> to vector<1x8x128xf32>
    %426 = vector.shape_cast %425 : vector<1x8x128xf32> to vector<8x128xf32>
    %c22 = arith.constant 22 : index
    %427 = memref.load %arg8[%c22] : memref<75xf32, #tpu.memory_space<smem>>
    %428 = vector.broadcast %427 : f32 to vector<8x128xf32>
    %429 = arith.mulf %426, %428 : vector<8x128xf32>
    %430 = arith.addf %424, %429 : vector<8x128xf32>
    %431 = vector.extract_strided_slice %212 {offsets = [0, 0, 0], sizes = [1, 8, 128], strides = [1, 1, 1]} : vector<5x8x128xf32> to vector<1x8x128xf32>
    %432 = vector.shape_cast %431 : vector<1x8x128xf32> to vector<8x128xf32>
    %c27 = arith.constant 27 : index
    %433 = memref.load %arg8[%c27] : memref<75xf32, #tpu.memory_space<smem>>
    %434 = vector.broadcast %433 : f32 to vector<8x128xf32>
    %435 = arith.mulf %432, %434 : vector<8x128xf32>
    %436 = arith.addf %430, %435 : vector<8x128xf32>
    %437 = vector.extract_strided_slice %212 {offsets = [1, 0, 0], sizes = [1, 8, 128], strides = [1, 1, 1]} : vector<5x8x128xf32> to vector<1x8x128xf32>
    %438 = vector.shape_cast %437 : vector<1x8x128xf32> to vector<8x128xf32>
    %c32 = arith.constant 32 : index
    %439 = memref.load %arg8[%c32] : memref<75xf32, #tpu.memory_space<smem>>
    %440 = vector.broadcast %439 : f32 to vector<8x128xf32>
    %441 = arith.mulf %438, %440 : vector<8x128xf32>
    %442 = arith.addf %436, %441 : vector<8x128xf32>
    %443 = vector.extract_strided_slice %212 {offsets = [2, 0, 0], sizes = [1, 8, 128], strides = [1, 1, 1]} : vector<5x8x128xf32> to vector<1x8x128xf32>
    %444 = vector.shape_cast %443 : vector<1x8x128xf32> to vector<8x128xf32>
    %c37 = arith.constant 37 : index
    %445 = memref.load %arg8[%c37] : memref<75xf32, #tpu.memory_space<smem>>
    %446 = vector.broadcast %445 : f32 to vector<8x128xf32>
    %447 = arith.mulf %444, %446 : vector<8x128xf32>
    %448 = arith.addf %442, %447 : vector<8x128xf32>
    %449 = vector.extract_strided_slice %212 {offsets = [3, 0, 0], sizes = [1, 8, 128], strides = [1, 1, 1]} : vector<5x8x128xf32> to vector<1x8x128xf32>
    %450 = vector.shape_cast %449 : vector<1x8x128xf32> to vector<8x128xf32>
    %c42 = arith.constant 42 : index
    %451 = memref.load %arg8[%c42] : memref<75xf32, #tpu.memory_space<smem>>
    %452 = vector.broadcast %451 : f32 to vector<8x128xf32>
    %453 = arith.mulf %450, %452 : vector<8x128xf32>
    %454 = arith.addf %448, %453 : vector<8x128xf32>
    %455 = vector.extract_strided_slice %212 {offsets = [4, 0, 0], sizes = [1, 8, 128], strides = [1, 1, 1]} : vector<5x8x128xf32> to vector<1x8x128xf32>
    %456 = vector.shape_cast %455 : vector<1x8x128xf32> to vector<8x128xf32>
    %c47 = arith.constant 47 : index
    %457 = memref.load %arg8[%c47] : memref<75xf32, #tpu.memory_space<smem>>
    %458 = vector.broadcast %457 : f32 to vector<8x128xf32>
    %459 = arith.mulf %456, %458 : vector<8x128xf32>
    %460 = arith.addf %454, %459 : vector<8x128xf32>
    %461 = vector.extract_strided_slice %217 {offsets = [0, 0, 0], sizes = [1, 8, 128], strides = [1, 1, 1]} : vector<5x8x128xf32> to vector<1x8x128xf32>
    %462 = vector.shape_cast %461 : vector<1x8x128xf32> to vector<8x128xf32>
    %c52 = arith.constant 52 : index
    %463 = memref.load %arg8[%c52] : memref<75xf32, #tpu.memory_space<smem>>
    %464 = vector.broadcast %463 : f32 to vector<8x128xf32>
    %465 = arith.mulf %462, %464 : vector<8x128xf32>
    %466 = arith.addf %460, %465 : vector<8x128xf32>
    %467 = vector.extract_strided_slice %217 {offsets = [1, 0, 0], sizes = [1, 8, 128], strides = [1, 1, 1]} : vector<5x8x128xf32> to vector<1x8x128xf32>
    %468 = vector.shape_cast %467 : vector<1x8x128xf32> to vector<8x128xf32>
    %c57 = arith.constant 57 : index
    %469 = memref.load %arg8[%c57] : memref<75xf32, #tpu.memory_space<smem>>
    %470 = vector.broadcast %469 : f32 to vector<8x128xf32>
    %471 = arith.mulf %468, %470 : vector<8x128xf32>
    %472 = arith.addf %466, %471 : vector<8x128xf32>
    %473 = vector.extract_strided_slice %217 {offsets = [2, 0, 0], sizes = [1, 8, 128], strides = [1, 1, 1]} : vector<5x8x128xf32> to vector<1x8x128xf32>
    %474 = vector.shape_cast %473 : vector<1x8x128xf32> to vector<8x128xf32>
    %c62 = arith.constant 62 : index
    %475 = memref.load %arg8[%c62] : memref<75xf32, #tpu.memory_space<smem>>
    %476 = vector.broadcast %475 : f32 to vector<8x128xf32>
    %477 = arith.mulf %474, %476 : vector<8x128xf32>
    %478 = arith.addf %472, %477 : vector<8x128xf32>
    %479 = vector.extract_strided_slice %217 {offsets = [3, 0, 0], sizes = [1, 8, 128], strides = [1, 1, 1]} : vector<5x8x128xf32> to vector<1x8x128xf32>
    %480 = vector.shape_cast %479 : vector<1x8x128xf32> to vector<8x128xf32>
    %c67 = arith.constant 67 : index
    %481 = memref.load %arg8[%c67] : memref<75xf32, #tpu.memory_space<smem>>
    %482 = vector.broadcast %481 : f32 to vector<8x128xf32>
    %483 = arith.mulf %480, %482 : vector<8x128xf32>
    %484 = arith.addf %478, %483 : vector<8x128xf32>
    %485 = vector.extract_strided_slice %217 {offsets = [4, 0, 0], sizes = [1, 8, 128], strides = [1, 1, 1]} : vector<5x8x128xf32> to vector<1x8x128xf32>
    %486 = vector.shape_cast %485 : vector<1x8x128xf32> to vector<8x128xf32>
    %c72 = arith.constant 72 : index
    %487 = memref.load %arg8[%c72] : memref<75xf32, #tpu.memory_space<smem>>
    %488 = vector.broadcast %487 : f32 to vector<8x128xf32>
    %489 = arith.mulf %486, %488 : vector<8x128xf32>
    %490 = arith.addf %484, %489 : vector<8x128xf32>
    %c2_61 = arith.constant 2 : index
    %491 = memref.load %arg9[%c2_61] : memref<5xf32, #tpu.memory_space<smem>>
    %492 = vector.broadcast %491 : f32 to vector<8x128xf32>
    %493 = arith.addf %490, %492 : vector<8x128xf32>
    %494 = vector.extract_strided_slice %215 {offsets = [0, 0, 0], sizes = [1, 8, 128], strides = [1, 1, 1]} : vector<5x8x128xf32> to vector<1x8x128xf32>
    %495 = vector.shape_cast %494 : vector<1x8x128xf32> to vector<8x128xf32>
    %c3_62 = arith.constant 3 : index
    %496 = memref.load %arg8[%c3_62] : memref<75xf32, #tpu.memory_space<smem>>
    %497 = vector.broadcast %496 : f32 to vector<8x128xf32>
    %498 = arith.mulf %495, %497 : vector<8x128xf32>
    %499 = vector.extract_strided_slice %215 {offsets = [1, 0, 0], sizes = [1, 8, 128], strides = [1, 1, 1]} : vector<5x8x128xf32> to vector<1x8x128xf32>
    %500 = vector.shape_cast %499 : vector<1x8x128xf32> to vector<8x128xf32>
    %c8_63 = arith.constant 8 : index
    %501 = memref.load %arg8[%c8_63] : memref<75xf32, #tpu.memory_space<smem>>
    %502 = vector.broadcast %501 : f32 to vector<8x128xf32>
    %503 = arith.mulf %500, %502 : vector<8x128xf32>
    %504 = arith.addf %498, %503 : vector<8x128xf32>
    %505 = vector.extract_strided_slice %215 {offsets = [2, 0, 0], sizes = [1, 8, 128], strides = [1, 1, 1]} : vector<5x8x128xf32> to vector<1x8x128xf32>
    %506 = vector.shape_cast %505 : vector<1x8x128xf32> to vector<8x128xf32>
    %c13 = arith.constant 13 : index
    %507 = memref.load %arg8[%c13] : memref<75xf32, #tpu.memory_space<smem>>
    %508 = vector.broadcast %507 : f32 to vector<8x128xf32>
    %509 = arith.mulf %506, %508 : vector<8x128xf32>
    %510 = arith.addf %504, %509 : vector<8x128xf32>
    %511 = vector.extract_strided_slice %215 {offsets = [3, 0, 0], sizes = [1, 8, 128], strides = [1, 1, 1]} : vector<5x8x128xf32> to vector<1x8x128xf32>
    %512 = vector.shape_cast %511 : vector<1x8x128xf32> to vector<8x128xf32>
    %c18 = arith.constant 18 : index
    %513 = memref.load %arg8[%c18] : memref<75xf32, #tpu.memory_space<smem>>
    %514 = vector.broadcast %513 : f32 to vector<8x128xf32>
    %515 = arith.mulf %512, %514 : vector<8x128xf32>
    %516 = arith.addf %510, %515 : vector<8x128xf32>
    %517 = vector.extract_strided_slice %215 {offsets = [4, 0, 0], sizes = [1, 8, 128], strides = [1, 1, 1]} : vector<5x8x128xf32> to vector<1x8x128xf32>
    %518 = vector.shape_cast %517 : vector<1x8x128xf32> to vector<8x128xf32>
    %c23 = arith.constant 23 : index
    %519 = memref.load %arg8[%c23] : memref<75xf32, #tpu.memory_space<smem>>
    %520 = vector.broadcast %519 : f32 to vector<8x128xf32>
    %521 = arith.mulf %518, %520 : vector<8x128xf32>
    %522 = arith.addf %516, %521 : vector<8x128xf32>
    %523 = vector.extract_strided_slice %212 {offsets = [0, 0, 0], sizes = [1, 8, 128], strides = [1, 1, 1]} : vector<5x8x128xf32> to vector<1x8x128xf32>
    %524 = vector.shape_cast %523 : vector<1x8x128xf32> to vector<8x128xf32>
    %c28 = arith.constant 28 : index
    %525 = memref.load %arg8[%c28] : memref<75xf32, #tpu.memory_space<smem>>
    %526 = vector.broadcast %525 : f32 to vector<8x128xf32>
    %527 = arith.mulf %524, %526 : vector<8x128xf32>
    %528 = arith.addf %522, %527 : vector<8x128xf32>
    %529 = vector.extract_strided_slice %212 {offsets = [1, 0, 0], sizes = [1, 8, 128], strides = [1, 1, 1]} : vector<5x8x128xf32> to vector<1x8x128xf32>
    %530 = vector.shape_cast %529 : vector<1x8x128xf32> to vector<8x128xf32>
    %c33 = arith.constant 33 : index
    %531 = memref.load %arg8[%c33] : memref<75xf32, #tpu.memory_space<smem>>
    %532 = vector.broadcast %531 : f32 to vector<8x128xf32>
    %533 = arith.mulf %530, %532 : vector<8x128xf32>
    %534 = arith.addf %528, %533 : vector<8x128xf32>
    %535 = vector.extract_strided_slice %212 {offsets = [2, 0, 0], sizes = [1, 8, 128], strides = [1, 1, 1]} : vector<5x8x128xf32> to vector<1x8x128xf32>
    %536 = vector.shape_cast %535 : vector<1x8x128xf32> to vector<8x128xf32>
    %c38 = arith.constant 38 : index
    %537 = memref.load %arg8[%c38] : memref<75xf32, #tpu.memory_space<smem>>
    %538 = vector.broadcast %537 : f32 to vector<8x128xf32>
    %539 = arith.mulf %536, %538 : vector<8x128xf32>
    %540 = arith.addf %534, %539 : vector<8x128xf32>
    %541 = vector.extract_strided_slice %212 {offsets = [3, 0, 0], sizes = [1, 8, 128], strides = [1, 1, 1]} : vector<5x8x128xf32> to vector<1x8x128xf32>
    %542 = vector.shape_cast %541 : vector<1x8x128xf32> to vector<8x128xf32>
    %c43 = arith.constant 43 : index
    %543 = memref.load %arg8[%c43] : memref<75xf32, #tpu.memory_space<smem>>
    %544 = vector.broadcast %543 : f32 to vector<8x128xf32>
    %545 = arith.mulf %542, %544 : vector<8x128xf32>
    %546 = arith.addf %540, %545 : vector<8x128xf32>
    %547 = vector.extract_strided_slice %212 {offsets = [4, 0, 0], sizes = [1, 8, 128], strides = [1, 1, 1]} : vector<5x8x128xf32> to vector<1x8x128xf32>
    %548 = vector.shape_cast %547 : vector<1x8x128xf32> to vector<8x128xf32>
    %c48 = arith.constant 48 : index
    %549 = memref.load %arg8[%c48] : memref<75xf32, #tpu.memory_space<smem>>
    %550 = vector.broadcast %549 : f32 to vector<8x128xf32>
    %551 = arith.mulf %548, %550 : vector<8x128xf32>
    %552 = arith.addf %546, %551 : vector<8x128xf32>
    %553 = vector.extract_strided_slice %217 {offsets = [0, 0, 0], sizes = [1, 8, 128], strides = [1, 1, 1]} : vector<5x8x128xf32> to vector<1x8x128xf32>
    %554 = vector.shape_cast %553 : vector<1x8x128xf32> to vector<8x128xf32>
    %c53 = arith.constant 53 : index
    %555 = memref.load %arg8[%c53] : memref<75xf32, #tpu.memory_space<smem>>
    %556 = vector.broadcast %555 : f32 to vector<8x128xf32>
    %557 = arith.mulf %554, %556 : vector<8x128xf32>
    %558 = arith.addf %552, %557 : vector<8x128xf32>
    %559 = vector.extract_strided_slice %217 {offsets = [1, 0, 0], sizes = [1, 8, 128], strides = [1, 1, 1]} : vector<5x8x128xf32> to vector<1x8x128xf32>
    %560 = vector.shape_cast %559 : vector<1x8x128xf32> to vector<8x128xf32>
    %c58 = arith.constant 58 : index
    %561 = memref.load %arg8[%c58] : memref<75xf32, #tpu.memory_space<smem>>
    %562 = vector.broadcast %561 : f32 to vector<8x128xf32>
    %563 = arith.mulf %560, %562 : vector<8x128xf32>
    %564 = arith.addf %558, %563 : vector<8x128xf32>
    %565 = vector.extract_strided_slice %217 {offsets = [2, 0, 0], sizes = [1, 8, 128], strides = [1, 1, 1]} : vector<5x8x128xf32> to vector<1x8x128xf32>
    %566 = vector.shape_cast %565 : vector<1x8x128xf32> to vector<8x128xf32>
    %c63 = arith.constant 63 : index
    %567 = memref.load %arg8[%c63] : memref<75xf32, #tpu.memory_space<smem>>
    %568 = vector.broadcast %567 : f32 to vector<8x128xf32>
    %569 = arith.mulf %566, %568 : vector<8x128xf32>
    %570 = arith.addf %564, %569 : vector<8x128xf32>
    %571 = vector.extract_strided_slice %217 {offsets = [3, 0, 0], sizes = [1, 8, 128], strides = [1, 1, 1]} : vector<5x8x128xf32> to vector<1x8x128xf32>
    %572 = vector.shape_cast %571 : vector<1x8x128xf32> to vector<8x128xf32>
    %c68 = arith.constant 68 : index
    %573 = memref.load %arg8[%c68] : memref<75xf32, #tpu.memory_space<smem>>
    %574 = vector.broadcast %573 : f32 to vector<8x128xf32>
    %575 = arith.mulf %572, %574 : vector<8x128xf32>
    %576 = arith.addf %570, %575 : vector<8x128xf32>
    %577 = vector.extract_strided_slice %217 {offsets = [4, 0, 0], sizes = [1, 8, 128], strides = [1, 1, 1]} : vector<5x8x128xf32> to vector<1x8x128xf32>
    %578 = vector.shape_cast %577 : vector<1x8x128xf32> to vector<8x128xf32>
    %c73 = arith.constant 73 : index
    %579 = memref.load %arg8[%c73] : memref<75xf32, #tpu.memory_space<smem>>
    %580 = vector.broadcast %579 : f32 to vector<8x128xf32>
    %581 = arith.mulf %578, %580 : vector<8x128xf32>
    %582 = arith.addf %576, %581 : vector<8x128xf32>
    %c3_64 = arith.constant 3 : index
    %583 = memref.load %arg9[%c3_64] : memref<5xf32, #tpu.memory_space<smem>>
    %584 = vector.broadcast %583 : f32 to vector<8x128xf32>
    %585 = arith.addf %582, %584 : vector<8x128xf32>
    %586 = vector.extract_strided_slice %215 {offsets = [0, 0, 0], sizes = [1, 8, 128], strides = [1, 1, 1]} : vector<5x8x128xf32> to vector<1x8x128xf32>
    %587 = vector.shape_cast %586 : vector<1x8x128xf32> to vector<8x128xf32>
    %c4_65 = arith.constant 4 : index
    %588 = memref.load %arg8[%c4_65] : memref<75xf32, #tpu.memory_space<smem>>
    %589 = vector.broadcast %588 : f32 to vector<8x128xf32>
    %590 = arith.mulf %587, %589 : vector<8x128xf32>
    %591 = vector.extract_strided_slice %215 {offsets = [1, 0, 0], sizes = [1, 8, 128], strides = [1, 1, 1]} : vector<5x8x128xf32> to vector<1x8x128xf32>
    %592 = vector.shape_cast %591 : vector<1x8x128xf32> to vector<8x128xf32>
    %c9_66 = arith.constant 9 : index
    %593 = memref.load %arg8[%c9_66] : memref<75xf32, #tpu.memory_space<smem>>
    %594 = vector.broadcast %593 : f32 to vector<8x128xf32>
    %595 = arith.mulf %592, %594 : vector<8x128xf32>
    %596 = arith.addf %590, %595 : vector<8x128xf32>
    %597 = vector.extract_strided_slice %215 {offsets = [2, 0, 0], sizes = [1, 8, 128], strides = [1, 1, 1]} : vector<5x8x128xf32> to vector<1x8x128xf32>
    %598 = vector.shape_cast %597 : vector<1x8x128xf32> to vector<8x128xf32>
    %c14 = arith.constant 14 : index
    %599 = memref.load %arg8[%c14] : memref<75xf32, #tpu.memory_space<smem>>
    %600 = vector.broadcast %599 : f32 to vector<8x128xf32>
    %601 = arith.mulf %598, %600 : vector<8x128xf32>
    %602 = arith.addf %596, %601 : vector<8x128xf32>
    %603 = vector.extract_strided_slice %215 {offsets = [3, 0, 0], sizes = [1, 8, 128], strides = [1, 1, 1]} : vector<5x8x128xf32> to vector<1x8x128xf32>
    %604 = vector.shape_cast %603 : vector<1x8x128xf32> to vector<8x128xf32>
    %c19 = arith.constant 19 : index
    %605 = memref.load %arg8[%c19] : memref<75xf32, #tpu.memory_space<smem>>
    %606 = vector.broadcast %605 : f32 to vector<8x128xf32>
    %607 = arith.mulf %604, %606 : vector<8x128xf32>
    %608 = arith.addf %602, %607 : vector<8x128xf32>
    %609 = vector.extract_strided_slice %215 {offsets = [4, 0, 0], sizes = [1, 8, 128], strides = [1, 1, 1]} : vector<5x8x128xf32> to vector<1x8x128xf32>
    %610 = vector.shape_cast %609 : vector<1x8x128xf32> to vector<8x128xf32>
    %c24 = arith.constant 24 : index
    %611 = memref.load %arg8[%c24] : memref<75xf32, #tpu.memory_space<smem>>
    %612 = vector.broadcast %611 : f32 to vector<8x128xf32>
    %613 = arith.mulf %610, %612 : vector<8x128xf32>
    %614 = arith.addf %608, %613 : vector<8x128xf32>
    %615 = vector.extract_strided_slice %212 {offsets = [0, 0, 0], sizes = [1, 8, 128], strides = [1, 1, 1]} : vector<5x8x128xf32> to vector<1x8x128xf32>
    %616 = vector.shape_cast %615 : vector<1x8x128xf32> to vector<8x128xf32>
    %c29 = arith.constant 29 : index
    %617 = memref.load %arg8[%c29] : memref<75xf32, #tpu.memory_space<smem>>
    %618 = vector.broadcast %617 : f32 to vector<8x128xf32>
    %619 = arith.mulf %616, %618 : vector<8x128xf32>
    %620 = arith.addf %614, %619 : vector<8x128xf32>
    %621 = vector.extract_strided_slice %212 {offsets = [1, 0, 0], sizes = [1, 8, 128], strides = [1, 1, 1]} : vector<5x8x128xf32> to vector<1x8x128xf32>
    %622 = vector.shape_cast %621 : vector<1x8x128xf32> to vector<8x128xf32>
    %c34 = arith.constant 34 : index
    %623 = memref.load %arg8[%c34] : memref<75xf32, #tpu.memory_space<smem>>
    %624 = vector.broadcast %623 : f32 to vector<8x128xf32>
    %625 = arith.mulf %622, %624 : vector<8x128xf32>
    %626 = arith.addf %620, %625 : vector<8x128xf32>
    %627 = vector.extract_strided_slice %212 {offsets = [2, 0, 0], sizes = [1, 8, 128], strides = [1, 1, 1]} : vector<5x8x128xf32> to vector<1x8x128xf32>
    %628 = vector.shape_cast %627 : vector<1x8x128xf32> to vector<8x128xf32>
    %c39 = arith.constant 39 : index
    %629 = memref.load %arg8[%c39] : memref<75xf32, #tpu.memory_space<smem>>
    %630 = vector.broadcast %629 : f32 to vector<8x128xf32>
    %631 = arith.mulf %628, %630 : vector<8x128xf32>
    %632 = arith.addf %626, %631 : vector<8x128xf32>
    %633 = vector.extract_strided_slice %212 {offsets = [3, 0, 0], sizes = [1, 8, 128], strides = [1, 1, 1]} : vector<5x8x128xf32> to vector<1x8x128xf32>
    %634 = vector.shape_cast %633 : vector<1x8x128xf32> to vector<8x128xf32>
    %c44 = arith.constant 44 : index
    %635 = memref.load %arg8[%c44] : memref<75xf32, #tpu.memory_space<smem>>
    %636 = vector.broadcast %635 : f32 to vector<8x128xf32>
    %637 = arith.mulf %634, %636 : vector<8x128xf32>
    %638 = arith.addf %632, %637 : vector<8x128xf32>
    %639 = vector.extract_strided_slice %212 {offsets = [4, 0, 0], sizes = [1, 8, 128], strides = [1, 1, 1]} : vector<5x8x128xf32> to vector<1x8x128xf32>
    %640 = vector.shape_cast %639 : vector<1x8x128xf32> to vector<8x128xf32>
    %c49 = arith.constant 49 : index
    %641 = memref.load %arg8[%c49] : memref<75xf32, #tpu.memory_space<smem>>
    %642 = vector.broadcast %641 : f32 to vector<8x128xf32>
    %643 = arith.mulf %640, %642 : vector<8x128xf32>
    %644 = arith.addf %638, %643 : vector<8x128xf32>
    %645 = vector.extract_strided_slice %217 {offsets = [0, 0, 0], sizes = [1, 8, 128], strides = [1, 1, 1]} : vector<5x8x128xf32> to vector<1x8x128xf32>
    %646 = vector.shape_cast %645 : vector<1x8x128xf32> to vector<8x128xf32>
    %c54 = arith.constant 54 : index
    %647 = memref.load %arg8[%c54] : memref<75xf32, #tpu.memory_space<smem>>
    %648 = vector.broadcast %647 : f32 to vector<8x128xf32>
    %649 = arith.mulf %646, %648 : vector<8x128xf32>
    %650 = arith.addf %644, %649 : vector<8x128xf32>
    %651 = vector.extract_strided_slice %217 {offsets = [1, 0, 0], sizes = [1, 8, 128], strides = [1, 1, 1]} : vector<5x8x128xf32> to vector<1x8x128xf32>
    %652 = vector.shape_cast %651 : vector<1x8x128xf32> to vector<8x128xf32>
    %c59 = arith.constant 59 : index
    %653 = memref.load %arg8[%c59] : memref<75xf32, #tpu.memory_space<smem>>
    %654 = vector.broadcast %653 : f32 to vector<8x128xf32>
    %655 = arith.mulf %652, %654 : vector<8x128xf32>
    %656 = arith.addf %650, %655 : vector<8x128xf32>
    %657 = vector.extract_strided_slice %217 {offsets = [2, 0, 0], sizes = [1, 8, 128], strides = [1, 1, 1]} : vector<5x8x128xf32> to vector<1x8x128xf32>
    %658 = vector.shape_cast %657 : vector<1x8x128xf32> to vector<8x128xf32>
    %c64 = arith.constant 64 : index
    %659 = memref.load %arg8[%c64] : memref<75xf32, #tpu.memory_space<smem>>
    %660 = vector.broadcast %659 : f32 to vector<8x128xf32>
    %661 = arith.mulf %658, %660 : vector<8x128xf32>
    %662 = arith.addf %656, %661 : vector<8x128xf32>
    %663 = vector.extract_strided_slice %217 {offsets = [3, 0, 0], sizes = [1, 8, 128], strides = [1, 1, 1]} : vector<5x8x128xf32> to vector<1x8x128xf32>
    %664 = vector.shape_cast %663 : vector<1x8x128xf32> to vector<8x128xf32>
    %c69 = arith.constant 69 : index
    %665 = memref.load %arg8[%c69] : memref<75xf32, #tpu.memory_space<smem>>
    %666 = vector.broadcast %665 : f32 to vector<8x128xf32>
    %667 = arith.mulf %664, %666 : vector<8x128xf32>
    %668 = arith.addf %662, %667 : vector<8x128xf32>
    %669 = vector.extract_strided_slice %217 {offsets = [4, 0, 0], sizes = [1, 8, 128], strides = [1, 1, 1]} : vector<5x8x128xf32> to vector<1x8x128xf32>
    %670 = vector.shape_cast %669 : vector<1x8x128xf32> to vector<8x128xf32>
    %c74 = arith.constant 74 : index
    %671 = memref.load %arg8[%c74] : memref<75xf32, #tpu.memory_space<smem>>
    %672 = vector.broadcast %671 : f32 to vector<8x128xf32>
    %673 = arith.mulf %670, %672 : vector<8x128xf32>
    %674 = arith.addf %668, %673 : vector<8x128xf32>
    %c4_67 = arith.constant 4 : index
    %675 = memref.load %arg9[%c4_67] : memref<5xf32, #tpu.memory_space<smem>>
    %676 = vector.broadcast %675 : f32 to vector<8x128xf32>
    %677 = arith.addf %674, %676 : vector<8x128xf32>
    %678 = vector.shape_cast %309 : vector<8x128xf32> to vector<1x8x128xf32>
    %679 = vector.shape_cast %401 : vector<8x128xf32> to vector<1x8x128xf32>
    %680 = vector.shape_cast %493 : vector<8x128xf32> to vector<1x8x128xf32>
    %681 = vector.shape_cast %585 : vector<8x128xf32> to vector<1x8x128xf32>
    %682 = vector.shape_cast %677 : vector<8x128xf32> to vector<1x8x128xf32>
    %683 = tpu.concatenate %678, %679, %680, %681, %682 in 0 : vector<1x8x128xf32>, vector<1x8x128xf32>, vector<1x8x128xf32>, vector<1x8x128xf32>, vector<1x8x128xf32> -> vector<5x8x128xf32>
    %684 = vector.broadcast %2 : vector<1x8x128xf32> to vector<5x8x128xf32>
    %685 = arith.mulf %683, %684 : vector<5x8x128xf32>
    %cst_68 = arith.constant dense<0.000000e+00> : vector<8x128xf32>
    %686 = vector.multi_reduction <add>, %685, %cst_68 [0] : vector<5x8x128xf32> to vector<8x128xf32>
    %687 = vector.shape_cast %686 : vector<8x128xf32> to vector<1x8x128xf32>
    %cst_69 = arith.constant dense<0.000000e+00> : vector<1x128xf32>
    %688 = vector.multi_reduction <add>, %687, %cst_69 [1] : vector<1x8x128xf32> to vector<1x128xf32>
    %689 = vector.shape_cast %688 : vector<1x128xf32> to vector<1x1x128xf32>
    %cst_70 = arith.constant 2.500000e-02 : f32
    %690 = vector.broadcast %cst_70 : f32 to vector<1x1x128xf32>
    %691 = arith.mulf %689, %690 : vector<1x1x128xf32>
    %692 = vector.broadcast %691 : vector<1x1x128xf32> to vector<5x8x128xf32>
    %693 = arith.subf %685, %692 : vector<5x8x128xf32>
    %694 = arith.mulf %693, %693 : vector<5x8x128xf32>
    %cst_71 = arith.constant dense<0.000000e+00> : vector<8x128xf32>
    %695 = vector.multi_reduction <add>, %694, %cst_71 [0] : vector<5x8x128xf32> to vector<8x128xf32>
    %696 = vector.shape_cast %695 : vector<8x128xf32> to vector<1x8x128xf32>
    %cst_72 = arith.constant dense<0.000000e+00> : vector<1x128xf32>
    %697 = vector.multi_reduction <add>, %696, %cst_72 [1] : vector<1x8x128xf32> to vector<1x128xf32>
    %698 = vector.shape_cast %697 : vector<1x128xf32> to vector<1x1x128xf32>
    %cst_73 = arith.constant 2.500000e-02 : f32
    %699 = vector.broadcast %cst_73 : f32 to vector<1x1x128xf32>
    %700 = arith.mulf %698, %699 : vector<1x1x128xf32>
    %cst_74 = arith.constant 9.99999974E-6 : f32
    %701 = vector.broadcast %cst_74 : f32 to vector<1x1x128xf32>
    %702 = arith.addf %700, %701 : vector<1x1x128xf32>
    %703 = math.rsqrt %702 : vector<1x1x128xf32>
    %704 = vector.broadcast %703 : vector<1x1x128xf32> to vector<5x8x128xf32>
    %705 = arith.mulf %693, %704 : vector<5x8x128xf32>
    %706 = arith.mulf %705, %4 : vector<5x8x128xf32>
    %707 = arith.addf %706, %5 : vector<5x8x128xf32>
    %708 = arith.addf %707, %107 : vector<5x8x128xf32>
    %cst_75 = arith.constant 0.000000e+00 : f32
    %709 = vector.broadcast %cst_75 : f32 to vector<5x8x128xf32>
    %710 = arith.cmpf oge, %708, %709 : vector<5x8x128xf32>
    %711 = vector.broadcast %3 : f32 to vector<5x8x128xf32>
    %712 = arith.mulf %711, %708 : vector<5x8x128xf32>
    %713 = arith.select %710, %708, %712 : vector<5x8x128xi1>, vector<5x8x128xf32>
    %c0_76 = arith.constant 0 : index
    %c0_77 = arith.constant 0 : index
    %c0_78 = arith.constant 0 : index
    %714 = vector.load %arg15[%c0_76, %c0_77, %c0_78] : memref<5x20x128xf32, #tpu.memory_space<vmem>>, vector<5x20x128xf32>
    %c0_79 = arith.constant 0 : index
    %c0_80 = arith.constant 0 : index
    %c0_81 = arith.constant 0 : index
    %715 = vector.load %arg16[%c0_79, %c0_80, %c0_81] : memref<5x20x128xf32, #tpu.memory_space<vmem>>, vector<5x20x128xf32>
    %c0_82 = arith.constant 0 : index
    %c0_83 = arith.constant 0 : index
    %716 = vector.load %arg17[%c0_82, %c0_83] : memref<20x128xf32, #tpu.memory_space<vmem>>, vector<20x128xf32>
    %717 = vector.extract_strided_slice %714 {offsets = [0, 0, 0], sizes = [1, 20, 128], strides = [1, 1, 1]} : vector<5x20x128xf32> to vector<1x20x128xf32>
    %718 = vector.shape_cast %717 : vector<1x20x128xf32> to vector<20x128xf32>
    %719 = vector.shape_cast %718 : vector<20x128xf32> to vector<1x20x128xf32>
    %720 = vector.extract_strided_slice %713 {offsets = [0, 0, 0], sizes = [1, 8, 128], strides = [1, 1, 1]} : vector<5x8x128xf32> to vector<1x8x128xf32>
    %721 = vector.shape_cast %720 : vector<1x8x128xf32> to vector<8x128xf32>
    %722 = vector.shape_cast %721 : vector<8x128xf32> to vector<8x1x128xf32>
    %723 = vector.broadcast %719 : vector<1x20x128xf32> to vector<8x20x128xf32>
    %724 = vector.broadcast %722 : vector<8x1x128xf32> to vector<8x20x128xf32>
    %725 = arith.mulf %723, %724 : vector<8x20x128xf32>
    %726 = vector.extract_strided_slice %714 {offsets = [1, 0, 0], sizes = [1, 20, 128], strides = [1, 1, 1]} : vector<5x20x128xf32> to vector<1x20x128xf32>
    %727 = vector.shape_cast %726 : vector<1x20x128xf32> to vector<20x128xf32>
    %728 = vector.shape_cast %727 : vector<20x128xf32> to vector<1x20x128xf32>
    %729 = vector.extract_strided_slice %713 {offsets = [1, 0, 0], sizes = [1, 8, 128], strides = [1, 1, 1]} : vector<5x8x128xf32> to vector<1x8x128xf32>
    %730 = vector.shape_cast %729 : vector<1x8x128xf32> to vector<8x128xf32>
    %731 = vector.shape_cast %730 : vector<8x128xf32> to vector<8x1x128xf32>
    %732 = vector.broadcast %728 : vector<1x20x128xf32> to vector<8x20x128xf32>
    %733 = vector.broadcast %731 : vector<8x1x128xf32> to vector<8x20x128xf32>
    %734 = arith.mulf %732, %733 : vector<8x20x128xf32>
    %735 = arith.addf %725, %734 : vector<8x20x128xf32>
    %736 = vector.extract_strided_slice %714 {offsets = [2, 0, 0], sizes = [1, 20, 128], strides = [1, 1, 1]} : vector<5x20x128xf32> to vector<1x20x128xf32>
    %737 = vector.shape_cast %736 : vector<1x20x128xf32> to vector<20x128xf32>
    %738 = vector.shape_cast %737 : vector<20x128xf32> to vector<1x20x128xf32>
    %739 = vector.extract_strided_slice %713 {offsets = [2, 0, 0], sizes = [1, 8, 128], strides = [1, 1, 1]} : vector<5x8x128xf32> to vector<1x8x128xf32>
    %740 = vector.shape_cast %739 : vector<1x8x128xf32> to vector<8x128xf32>
    %741 = vector.shape_cast %740 : vector<8x128xf32> to vector<8x1x128xf32>
    %742 = vector.broadcast %738 : vector<1x20x128xf32> to vector<8x20x128xf32>
    %743 = vector.broadcast %741 : vector<8x1x128xf32> to vector<8x20x128xf32>
    %744 = arith.mulf %742, %743 : vector<8x20x128xf32>
    %745 = arith.addf %735, %744 : vector<8x20x128xf32>
    %746 = vector.extract_strided_slice %714 {offsets = [3, 0, 0], sizes = [1, 20, 128], strides = [1, 1, 1]} : vector<5x20x128xf32> to vector<1x20x128xf32>
    %747 = vector.shape_cast %746 : vector<1x20x128xf32> to vector<20x128xf32>
    %748 = vector.shape_cast %747 : vector<20x128xf32> to vector<1x20x128xf32>
    %749 = vector.extract_strided_slice %713 {offsets = [3, 0, 0], sizes = [1, 8, 128], strides = [1, 1, 1]} : vector<5x8x128xf32> to vector<1x8x128xf32>
    %750 = vector.shape_cast %749 : vector<1x8x128xf32> to vector<8x128xf32>
    %751 = vector.shape_cast %750 : vector<8x128xf32> to vector<8x1x128xf32>
    %752 = vector.broadcast %748 : vector<1x20x128xf32> to vector<8x20x128xf32>
    %753 = vector.broadcast %751 : vector<8x1x128xf32> to vector<8x20x128xf32>
    %754 = arith.mulf %752, %753 : vector<8x20x128xf32>
    %755 = arith.addf %745, %754 : vector<8x20x128xf32>
    %756 = vector.extract_strided_slice %714 {offsets = [4, 0, 0], sizes = [1, 20, 128], strides = [1, 1, 1]} : vector<5x20x128xf32> to vector<1x20x128xf32>
    %757 = vector.shape_cast %756 : vector<1x20x128xf32> to vector<20x128xf32>
    %758 = vector.shape_cast %757 : vector<20x128xf32> to vector<1x20x128xf32>
    %759 = vector.extract_strided_slice %713 {offsets = [4, 0, 0], sizes = [1, 8, 128], strides = [1, 1, 1]} : vector<5x8x128xf32> to vector<1x8x128xf32>
    %760 = vector.shape_cast %759 : vector<1x8x128xf32> to vector<8x128xf32>
    %761 = vector.shape_cast %760 : vector<8x128xf32> to vector<8x1x128xf32>
    %762 = vector.broadcast %758 : vector<1x20x128xf32> to vector<8x20x128xf32>
    %763 = vector.broadcast %761 : vector<8x1x128xf32> to vector<8x20x128xf32>
    %764 = arith.mulf %762, %763 : vector<8x20x128xf32>
    %765 = arith.addf %755, %764 : vector<8x20x128xf32>
    %cst_84 = arith.constant 0.000000e+00 : f32
    %766 = vector.broadcast %cst_84 : f32 to vector<5x128xf32>
    %767 = vector.extract_strided_slice %765 {offsets = [0, 0, 0], sizes = [1, 20, 128], strides = [1, 1, 1]} : vector<8x20x128xf32> to vector<1x20x128xf32>
    %768 = vector.shape_cast %767 : vector<1x20x128xf32> to vector<20x128xf32>
    %769 = arith.addf %768, %716 : vector<20x128xf32>
    %770 = vector.extract_strided_slice %769 {offsets = [0, 0], sizes = [15, 128], strides = [1, 1]} : vector<20x128xf32> to vector<15x128xf32>
    %771 = arith.negf %770 : vector<15x128xf32>
    %772 = math.exp %771 : vector<15x128xf32>
    %cst_85 = arith.constant 1.000000e+00 : f32
    %773 = vector.broadcast %cst_85 : f32 to vector<15x128xf32>
    %774 = arith.addf %773, %772 : vector<15x128xf32>
    %775 = arith.divf %773, %774 : vector<15x128xf32>
    %776 = vector.extract_strided_slice %769 {offsets = [15, 0], sizes = [5, 128], strides = [1, 1]} : vector<20x128xf32> to vector<5x128xf32>
    %777 = math.tanh %776 : vector<5x128xf32>
    %778 = vector.extract_strided_slice %775 {offsets = [5, 0], sizes = [5, 128], strides = [1, 1]} : vector<15x128xf32> to vector<5x128xf32>
    %779 = arith.mulf %778, %766 : vector<5x128xf32>
    %780 = vector.extract_strided_slice %775 {offsets = [0, 0], sizes = [5, 128], strides = [1, 1]} : vector<15x128xf32> to vector<5x128xf32>
    %781 = arith.mulf %780, %777 : vector<5x128xf32>
    %782 = arith.addf %779, %781 : vector<5x128xf32>
    %783 = vector.extract_strided_slice %775 {offsets = [10, 0], sizes = [5, 128], strides = [1, 1]} : vector<15x128xf32> to vector<5x128xf32>
    %784 = math.tanh %782 : vector<5x128xf32>
    %785 = arith.mulf %783, %784 : vector<5x128xf32>
    %786 = vector.extract_strided_slice %765 {offsets = [1, 0, 0], sizes = [1, 20, 128], strides = [1, 1, 1]} : vector<8x20x128xf32> to vector<1x20x128xf32>
    %787 = vector.shape_cast %786 : vector<1x20x128xf32> to vector<20x128xf32>
    %788 = arith.addf %787, %716 : vector<20x128xf32>
    %789 = vector.extract_strided_slice %715 {offsets = [0, 0, 0], sizes = [1, 20, 128], strides = [1, 1, 1]} : vector<5x20x128xf32> to vector<1x20x128xf32>
    %790 = vector.shape_cast %789 : vector<1x20x128xf32> to vector<20x128xf32>
    %791 = vector.extract_strided_slice %785 {offsets = [0, 0], sizes = [1, 128], strides = [1, 1]} : vector<5x128xf32> to vector<1x128xf32>
    %792 = vector.broadcast %791 : vector<1x128xf32> to vector<20x128xf32>
    %793 = arith.mulf %790, %792 : vector<20x128xf32>
    %794 = arith.addf %788, %793 : vector<20x128xf32>
    %795 = vector.extract_strided_slice %715 {offsets = [1, 0, 0], sizes = [1, 20, 128], strides = [1, 1, 1]} : vector<5x20x128xf32> to vector<1x20x128xf32>
    %796 = vector.shape_cast %795 : vector<1x20x128xf32> to vector<20x128xf32>
    %797 = vector.extract_strided_slice %785 {offsets = [1, 0], sizes = [1, 128], strides = [1, 1]} : vector<5x128xf32> to vector<1x128xf32>
    %798 = vector.broadcast %797 : vector<1x128xf32> to vector<20x128xf32>
    %799 = arith.mulf %796, %798 : vector<20x128xf32>
    %800 = arith.addf %794, %799 : vector<20x128xf32>
    %801 = vector.extract_strided_slice %715 {offsets = [2, 0, 0], sizes = [1, 20, 128], strides = [1, 1, 1]} : vector<5x20x128xf32> to vector<1x20x128xf32>
    %802 = vector.shape_cast %801 : vector<1x20x128xf32> to vector<20x128xf32>
    %803 = vector.extract_strided_slice %785 {offsets = [2, 0], sizes = [1, 128], strides = [1, 1]} : vector<5x128xf32> to vector<1x128xf32>
    %804 = vector.broadcast %803 : vector<1x128xf32> to vector<20x128xf32>
    %805 = arith.mulf %802, %804 : vector<20x128xf32>
    %806 = arith.addf %800, %805 : vector<20x128xf32>
    %807 = vector.extract_strided_slice %715 {offsets = [3, 0, 0], sizes = [1, 20, 128], strides = [1, 1, 1]} : vector<5x20x128xf32> to vector<1x20x128xf32>
    %808 = vector.shape_cast %807 : vector<1x20x128xf32> to vector<20x128xf32>
    %809 = vector.extract_strided_slice %785 {offsets = [3, 0], sizes = [1, 128], strides = [1, 1]} : vector<5x128xf32> to vector<1x128xf32>
    %810 = vector.broadcast %809 : vector<1x128xf32> to vector<20x128xf32>
    %811 = arith.mulf %808, %810 : vector<20x128xf32>
    %812 = arith.addf %806, %811 : vector<20x128xf32>
    %813 = vector.extract_strided_slice %715 {offsets = [4, 0, 0], sizes = [1, 20, 128], strides = [1, 1, 1]} : vector<5x20x128xf32> to vector<1x20x128xf32>
    %814 = vector.shape_cast %813 : vector<1x20x128xf32> to vector<20x128xf32>
    %815 = vector.extract_strided_slice %785 {offsets = [4, 0], sizes = [1, 128], strides = [1, 1]} : vector<5x128xf32> to vector<1x128xf32>
    %816 = vector.broadcast %815 : vector<1x128xf32> to vector<20x128xf32>
    %817 = arith.mulf %814, %816 : vector<20x128xf32>
    %818 = arith.addf %812, %817 : vector<20x128xf32>
    %819 = vector.extract_strided_slice %818 {offsets = [0, 0], sizes = [15, 128], strides = [1, 1]} : vector<20x128xf32> to vector<15x128xf32>
    %820 = arith.negf %819 : vector<15x128xf32>
    %821 = math.exp %820 : vector<15x128xf32>
    %cst_86 = arith.constant 1.000000e+00 : f32
    %822 = vector.broadcast %cst_86 : f32 to vector<15x128xf32>
    %823 = arith.addf %822, %821 : vector<15x128xf32>
    %824 = arith.divf %822, %823 : vector<15x128xf32>
    %825 = vector.extract_strided_slice %818 {offsets = [15, 0], sizes = [5, 128], strides = [1, 1]} : vector<20x128xf32> to vector<5x128xf32>
    %826 = math.tanh %825 : vector<5x128xf32>
    %827 = vector.extract_strided_slice %824 {offsets = [5, 0], sizes = [5, 128], strides = [1, 1]} : vector<15x128xf32> to vector<5x128xf32>
    %828 = arith.mulf %827, %782 : vector<5x128xf32>
    %829 = vector.extract_strided_slice %824 {offsets = [0, 0], sizes = [5, 128], strides = [1, 1]} : vector<15x128xf32> to vector<5x128xf32>
    %830 = arith.mulf %829, %826 : vector<5x128xf32>
    %831 = arith.addf %828, %830 : vector<5x128xf32>
    %832 = vector.extract_strided_slice %824 {offsets = [10, 0], sizes = [5, 128], strides = [1, 1]} : vector<15x128xf32> to vector<5x128xf32>
    %833 = math.tanh %831 : vector<5x128xf32>
    %834 = arith.mulf %832, %833 : vector<5x128xf32>
    %835 = vector.extract_strided_slice %765 {offsets = [2, 0, 0], sizes = [1, 20, 128], strides = [1, 1, 1]} : vector<8x20x128xf32> to vector<1x20x128xf32>
    %836 = vector.shape_cast %835 : vector<1x20x128xf32> to vector<20x128xf32>
    %837 = arith.addf %836, %716 : vector<20x128xf32>
    %838 = vector.extract_strided_slice %715 {offsets = [0, 0, 0], sizes = [1, 20, 128], strides = [1, 1, 1]} : vector<5x20x128xf32> to vector<1x20x128xf32>
    %839 = vector.shape_cast %838 : vector<1x20x128xf32> to vector<20x128xf32>
    %840 = vector.extract_strided_slice %834 {offsets = [0, 0], sizes = [1, 128], strides = [1, 1]} : vector<5x128xf32> to vector<1x128xf32>
    %841 = vector.broadcast %840 : vector<1x128xf32> to vector<20x128xf32>
    %842 = arith.mulf %839, %841 : vector<20x128xf32>
    %843 = arith.addf %837, %842 : vector<20x128xf32>
    %844 = vector.extract_strided_slice %715 {offsets = [1, 0, 0], sizes = [1, 20, 128], strides = [1, 1, 1]} : vector<5x20x128xf32> to vector<1x20x128xf32>
    %845 = vector.shape_cast %844 : vector<1x20x128xf32> to vector<20x128xf32>
    %846 = vector.extract_strided_slice %834 {offsets = [1, 0], sizes = [1, 128], strides = [1, 1]} : vector<5x128xf32> to vector<1x128xf32>
    %847 = vector.broadcast %846 : vector<1x128xf32> to vector<20x128xf32>
    %848 = arith.mulf %845, %847 : vector<20x128xf32>
    %849 = arith.addf %843, %848 : vector<20x128xf32>
    %850 = vector.extract_strided_slice %715 {offsets = [2, 0, 0], sizes = [1, 20, 128], strides = [1, 1, 1]} : vector<5x20x128xf32> to vector<1x20x128xf32>
    %851 = vector.shape_cast %850 : vector<1x20x128xf32> to vector<20x128xf32>
    %852 = vector.extract_strided_slice %834 {offsets = [2, 0], sizes = [1, 128], strides = [1, 1]} : vector<5x128xf32> to vector<1x128xf32>
    %853 = vector.broadcast %852 : vector<1x128xf32> to vector<20x128xf32>
    %854 = arith.mulf %851, %853 : vector<20x128xf32>
    %855 = arith.addf %849, %854 : vector<20x128xf32>
    %856 = vector.extract_strided_slice %715 {offsets = [3, 0, 0], sizes = [1, 20, 128], strides = [1, 1, 1]} : vector<5x20x128xf32> to vector<1x20x128xf32>
    %857 = vector.shape_cast %856 : vector<1x20x128xf32> to vector<20x128xf32>
    %858 = vector.extract_strided_slice %834 {offsets = [3, 0], sizes = [1, 128], strides = [1, 1]} : vector<5x128xf32> to vector<1x128xf32>
    %859 = vector.broadcast %858 : vector<1x128xf32> to vector<20x128xf32>
    %860 = arith.mulf %857, %859 : vector<20x128xf32>
    %861 = arith.addf %855, %860 : vector<20x128xf32>
    %862 = vector.extract_strided_slice %715 {offsets = [4, 0, 0], sizes = [1, 20, 128], strides = [1, 1, 1]} : vector<5x20x128xf32> to vector<1x20x128xf32>
    %863 = vector.shape_cast %862 : vector<1x20x128xf32> to vector<20x128xf32>
    %864 = vector.extract_strided_slice %834 {offsets = [4, 0], sizes = [1, 128], strides = [1, 1]} : vector<5x128xf32> to vector<1x128xf32>
    %865 = vector.broadcast %864 : vector<1x128xf32> to vector<20x128xf32>
    %866 = arith.mulf %863, %865 : vector<20x128xf32>
    %867 = arith.addf %861, %866 : vector<20x128xf32>
    %868 = vector.extract_strided_slice %867 {offsets = [0, 0], sizes = [15, 128], strides = [1, 1]} : vector<20x128xf32> to vector<15x128xf32>
    %869 = arith.negf %868 : vector<15x128xf32>
    %870 = math.exp %869 : vector<15x128xf32>
    %cst_87 = arith.constant 1.000000e+00 : f32
    %871 = vector.broadcast %cst_87 : f32 to vector<15x128xf32>
    %872 = arith.addf %871, %870 : vector<15x128xf32>
    %873 = arith.divf %871, %872 : vector<15x128xf32>
    %874 = vector.extract_strided_slice %867 {offsets = [15, 0], sizes = [5, 128], strides = [1, 1]} : vector<20x128xf32> to vector<5x128xf32>
    %875 = math.tanh %874 : vector<5x128xf32>
    %876 = vector.extract_strided_slice %873 {offsets = [5, 0], sizes = [5, 128], strides = [1, 1]} : vector<15x128xf32> to vector<5x128xf32>
    %877 = arith.mulf %876, %831 : vector<5x128xf32>
    %878 = vector.extract_strided_slice %873 {offsets = [0, 0], sizes = [5, 128], strides = [1, 1]} : vector<15x128xf32> to vector<5x128xf32>
    %879 = arith.mulf %878, %875 : vector<5x128xf32>
    %880 = arith.addf %877, %879 : vector<5x128xf32>
    %881 = vector.extract_strided_slice %873 {offsets = [10, 0], sizes = [5, 128], strides = [1, 1]} : vector<15x128xf32> to vector<5x128xf32>
    %882 = math.tanh %880 : vector<5x128xf32>
    %883 = arith.mulf %881, %882 : vector<5x128xf32>
    %884 = vector.extract_strided_slice %765 {offsets = [3, 0, 0], sizes = [1, 20, 128], strides = [1, 1, 1]} : vector<8x20x128xf32> to vector<1x20x128xf32>
    %885 = vector.shape_cast %884 : vector<1x20x128xf32> to vector<20x128xf32>
    %886 = arith.addf %885, %716 : vector<20x128xf32>
    %887 = vector.extract_strided_slice %715 {offsets = [0, 0, 0], sizes = [1, 20, 128], strides = [1, 1, 1]} : vector<5x20x128xf32> to vector<1x20x128xf32>
    %888 = vector.shape_cast %887 : vector<1x20x128xf32> to vector<20x128xf32>
    %889 = vector.extract_strided_slice %883 {offsets = [0, 0], sizes = [1, 128], strides = [1, 1]} : vector<5x128xf32> to vector<1x128xf32>
    %890 = vector.broadcast %889 : vector<1x128xf32> to vector<20x128xf32>
    %891 = arith.mulf %888, %890 : vector<20x128xf32>
    %892 = arith.addf %886, %891 : vector<20x128xf32>
    %893 = vector.extract_strided_slice %715 {offsets = [1, 0, 0], sizes = [1, 20, 128], strides = [1, 1, 1]} : vector<5x20x128xf32> to vector<1x20x128xf32>
    %894 = vector.shape_cast %893 : vector<1x20x128xf32> to vector<20x128xf32>
    %895 = vector.extract_strided_slice %883 {offsets = [1, 0], sizes = [1, 128], strides = [1, 1]} : vector<5x128xf32> to vector<1x128xf32>
    %896 = vector.broadcast %895 : vector<1x128xf32> to vector<20x128xf32>
    %897 = arith.mulf %894, %896 : vector<20x128xf32>
    %898 = arith.addf %892, %897 : vector<20x128xf32>
    %899 = vector.extract_strided_slice %715 {offsets = [2, 0, 0], sizes = [1, 20, 128], strides = [1, 1, 1]} : vector<5x20x128xf32> to vector<1x20x128xf32>
    %900 = vector.shape_cast %899 : vector<1x20x128xf32> to vector<20x128xf32>
    %901 = vector.extract_strided_slice %883 {offsets = [2, 0], sizes = [1, 128], strides = [1, 1]} : vector<5x128xf32> to vector<1x128xf32>
    %902 = vector.broadcast %901 : vector<1x128xf32> to vector<20x128xf32>
    %903 = arith.mulf %900, %902 : vector<20x128xf32>
    %904 = arith.addf %898, %903 : vector<20x128xf32>
    %905 = vector.extract_strided_slice %715 {offsets = [3, 0, 0], sizes = [1, 20, 128], strides = [1, 1, 1]} : vector<5x20x128xf32> to vector<1x20x128xf32>
    %906 = vector.shape_cast %905 : vector<1x20x128xf32> to vector<20x128xf32>
    %907 = vector.extract_strided_slice %883 {offsets = [3, 0], sizes = [1, 128], strides = [1, 1]} : vector<5x128xf32> to vector<1x128xf32>
    %908 = vector.broadcast %907 : vector<1x128xf32> to vector<20x128xf32>
    %909 = arith.mulf %906, %908 : vector<20x128xf32>
    %910 = arith.addf %904, %909 : vector<20x128xf32>
    %911 = vector.extract_strided_slice %715 {offsets = [4, 0, 0], sizes = [1, 20, 128], strides = [1, 1, 1]} : vector<5x20x128xf32> to vector<1x20x128xf32>
    %912 = vector.shape_cast %911 : vector<1x20x128xf32> to vector<20x128xf32>
    %913 = vector.extract_strided_slice %883 {offsets = [4, 0], sizes = [1, 128], strides = [1, 1]} : vector<5x128xf32> to vector<1x128xf32>
    %914 = vector.broadcast %913 : vector<1x128xf32> to vector<20x128xf32>
    %915 = arith.mulf %912, %914 : vector<20x128xf32>
    %916 = arith.addf %910, %915 : vector<20x128xf32>
    %917 = vector.extract_strided_slice %916 {offsets = [0, 0], sizes = [15, 128], strides = [1, 1]} : vector<20x128xf32> to vector<15x128xf32>
    %918 = arith.negf %917 : vector<15x128xf32>
    %919 = math.exp %918 : vector<15x128xf32>
    %cst_88 = arith.constant 1.000000e+00 : f32
    %920 = vector.broadcast %cst_88 : f32 to vector<15x128xf32>
    %921 = arith.addf %920, %919 : vector<15x128xf32>
    %922 = arith.divf %920, %921 : vector<15x128xf32>
    %923 = vector.extract_strided_slice %916 {offsets = [15, 0], sizes = [5, 128], strides = [1, 1]} : vector<20x128xf32> to vector<5x128xf32>
    %924 = math.tanh %923 : vector<5x128xf32>
    %925 = vector.extract_strided_slice %922 {offsets = [5, 0], sizes = [5, 128], strides = [1, 1]} : vector<15x128xf32> to vector<5x128xf32>
    %926 = arith.mulf %925, %880 : vector<5x128xf32>
    %927 = vector.extract_strided_slice %922 {offsets = [0, 0], sizes = [5, 128], strides = [1, 1]} : vector<15x128xf32> to vector<5x128xf32>
    %928 = arith.mulf %927, %924 : vector<5x128xf32>
    %929 = arith.addf %926, %928 : vector<5x128xf32>
    %930 = vector.extract_strided_slice %922 {offsets = [10, 0], sizes = [5, 128], strides = [1, 1]} : vector<15x128xf32> to vector<5x128xf32>
    %931 = math.tanh %929 : vector<5x128xf32>
    %932 = arith.mulf %930, %931 : vector<5x128xf32>
    %933 = vector.extract_strided_slice %765 {offsets = [4, 0, 0], sizes = [1, 20, 128], strides = [1, 1, 1]} : vector<8x20x128xf32> to vector<1x20x128xf32>
    %934 = vector.shape_cast %933 : vector<1x20x128xf32> to vector<20x128xf32>
    %935 = arith.addf %934, %716 : vector<20x128xf32>
    %936 = vector.extract_strided_slice %715 {offsets = [0, 0, 0], sizes = [1, 20, 128], strides = [1, 1, 1]} : vector<5x20x128xf32> to vector<1x20x128xf32>
    %937 = vector.shape_cast %936 : vector<1x20x128xf32> to vector<20x128xf32>
    %938 = vector.extract_strided_slice %932 {offsets = [0, 0], sizes = [1, 128], strides = [1, 1]} : vector<5x128xf32> to vector<1x128xf32>
    %939 = vector.broadcast %938 : vector<1x128xf32> to vector<20x128xf32>
    %940 = arith.mulf %937, %939 : vector<20x128xf32>
    %941 = arith.addf %935, %940 : vector<20x128xf32>
    %942 = vector.extract_strided_slice %715 {offsets = [1, 0, 0], sizes = [1, 20, 128], strides = [1, 1, 1]} : vector<5x20x128xf32> to vector<1x20x128xf32>
    %943 = vector.shape_cast %942 : vector<1x20x128xf32> to vector<20x128xf32>
    %944 = vector.extract_strided_slice %932 {offsets = [1, 0], sizes = [1, 128], strides = [1, 1]} : vector<5x128xf32> to vector<1x128xf32>
    %945 = vector.broadcast %944 : vector<1x128xf32> to vector<20x128xf32>
    %946 = arith.mulf %943, %945 : vector<20x128xf32>
    %947 = arith.addf %941, %946 : vector<20x128xf32>
    %948 = vector.extract_strided_slice %715 {offsets = [2, 0, 0], sizes = [1, 20, 128], strides = [1, 1, 1]} : vector<5x20x128xf32> to vector<1x20x128xf32>
    %949 = vector.shape_cast %948 : vector<1x20x128xf32> to vector<20x128xf32>
    %950 = vector.extract_strided_slice %932 {offsets = [2, 0], sizes = [1, 128], strides = [1, 1]} : vector<5x128xf32> to vector<1x128xf32>
    %951 = vector.broadcast %950 : vector<1x128xf32> to vector<20x128xf32>
    %952 = arith.mulf %949, %951 : vector<20x128xf32>
    %953 = arith.addf %947, %952 : vector<20x128xf32>
    %954 = vector.extract_strided_slice %715 {offsets = [3, 0, 0], sizes = [1, 20, 128], strides = [1, 1, 1]} : vector<5x20x128xf32> to vector<1x20x128xf32>
    %955 = vector.shape_cast %954 : vector<1x20x128xf32> to vector<20x128xf32>
    %956 = vector.extract_strided_slice %932 {offsets = [3, 0], sizes = [1, 128], strides = [1, 1]} : vector<5x128xf32> to vector<1x128xf32>
    %957 = vector.broadcast %956 : vector<1x128xf32> to vector<20x128xf32>
    %958 = arith.mulf %955, %957 : vector<20x128xf32>
    %959 = arith.addf %953, %958 : vector<20x128xf32>
    %960 = vector.extract_strided_slice %715 {offsets = [4, 0, 0], sizes = [1, 20, 128], strides = [1, 1, 1]} : vector<5x20x128xf32> to vector<1x20x128xf32>
    %961 = vector.shape_cast %960 : vector<1x20x128xf32> to vector<20x128xf32>
    %962 = vector.extract_strided_slice %932 {offsets = [4, 0], sizes = [1, 128], strides = [1, 1]} : vector<5x128xf32> to vector<1x128xf32>
    %963 = vector.broadcast %962 : vector<1x128xf32> to vector<20x128xf32>
    %964 = arith.mulf %961, %963 : vector<20x128xf32>
    %965 = arith.addf %959, %964 : vector<20x128xf32>
    %966 = vector.extract_strided_slice %965 {offsets = [0, 0], sizes = [15, 128], strides = [1, 1]} : vector<20x128xf32> to vector<15x128xf32>
    %967 = arith.negf %966 : vector<15x128xf32>
    %968 = math.exp %967 : vector<15x128xf32>
    %cst_89 = arith.constant 1.000000e+00 : f32
    %969 = vector.broadcast %cst_89 : f32 to vector<15x128xf32>
    %970 = arith.addf %969, %968 : vector<15x128xf32>
    %971 = arith.divf %969, %970 : vector<15x128xf32>
    %972 = vector.extract_strided_slice %965 {offsets = [15, 0], sizes = [5, 128], strides = [1, 1]} : vector<20x128xf32> to vector<5x128xf32>
    %973 = math.tanh %972 : vector<5x128xf32>
    %974 = vector.extract_strided_slice %971 {offsets = [5, 0], sizes = [5, 128], strides = [1, 1]} : vector<15x128xf32> to vector<5x128xf32>
    %975 = arith.mulf %974, %929 : vector<5x128xf32>
    %976 = vector.extract_strided_slice %971 {offsets = [0, 0], sizes = [5, 128], strides = [1, 1]} : vector<15x128xf32> to vector<5x128xf32>
    %977 = arith.mulf %976, %973 : vector<5x128xf32>
    %978 = arith.addf %975, %977 : vector<5x128xf32>
    %979 = vector.extract_strided_slice %971 {offsets = [10, 0], sizes = [5, 128], strides = [1, 1]} : vector<15x128xf32> to vector<5x128xf32>
    %980 = math.tanh %978 : vector<5x128xf32>
    %981 = arith.mulf %979, %980 : vector<5x128xf32>
    %982 = vector.extract_strided_slice %765 {offsets = [5, 0, 0], sizes = [1, 20, 128], strides = [1, 1, 1]} : vector<8x20x128xf32> to vector<1x20x128xf32>
    %983 = vector.shape_cast %982 : vector<1x20x128xf32> to vector<20x128xf32>
    %984 = arith.addf %983, %716 : vector<20x128xf32>
    %985 = vector.extract_strided_slice %715 {offsets = [0, 0, 0], sizes = [1, 20, 128], strides = [1, 1, 1]} : vector<5x20x128xf32> to vector<1x20x128xf32>
    %986 = vector.shape_cast %985 : vector<1x20x128xf32> to vector<20x128xf32>
    %987 = vector.extract_strided_slice %981 {offsets = [0, 0], sizes = [1, 128], strides = [1, 1]} : vector<5x128xf32> to vector<1x128xf32>
    %988 = vector.broadcast %987 : vector<1x128xf32> to vector<20x128xf32>
    %989 = arith.mulf %986, %988 : vector<20x128xf32>
    %990 = arith.addf %984, %989 : vector<20x128xf32>
    %991 = vector.extract_strided_slice %715 {offsets = [1, 0, 0], sizes = [1, 20, 128], strides = [1, 1, 1]} : vector<5x20x128xf32> to vector<1x20x128xf32>
    %992 = vector.shape_cast %991 : vector<1x20x128xf32> to vector<20x128xf32>
    %993 = vector.extract_strided_slice %981 {offsets = [1, 0], sizes = [1, 128], strides = [1, 1]} : vector<5x128xf32> to vector<1x128xf32>
    %994 = vector.broadcast %993 : vector<1x128xf32> to vector<20x128xf32>
    %995 = arith.mulf %992, %994 : vector<20x128xf32>
    %996 = arith.addf %990, %995 : vector<20x128xf32>
    %997 = vector.extract_strided_slice %715 {offsets = [2, 0, 0], sizes = [1, 20, 128], strides = [1, 1, 1]} : vector<5x20x128xf32> to vector<1x20x128xf32>
    %998 = vector.shape_cast %997 : vector<1x20x128xf32> to vector<20x128xf32>
    %999 = vector.extract_strided_slice %981 {offsets = [2, 0], sizes = [1, 128], strides = [1, 1]} : vector<5x128xf32> to vector<1x128xf32>
    %1000 = vector.broadcast %999 : vector<1x128xf32> to vector<20x128xf32>
    %1001 = arith.mulf %998, %1000 : vector<20x128xf32>
    %1002 = arith.addf %996, %1001 : vector<20x128xf32>
    %1003 = vector.extract_strided_slice %715 {offsets = [3, 0, 0], sizes = [1, 20, 128], strides = [1, 1, 1]} : vector<5x20x128xf32> to vector<1x20x128xf32>
    %1004 = vector.shape_cast %1003 : vector<1x20x128xf32> to vector<20x128xf32>
    %1005 = vector.extract_strided_slice %981 {offsets = [3, 0], sizes = [1, 128], strides = [1, 1]} : vector<5x128xf32> to vector<1x128xf32>
    %1006 = vector.broadcast %1005 : vector<1x128xf32> to vector<20x128xf32>
    %1007 = arith.mulf %1004, %1006 : vector<20x128xf32>
    %1008 = arith.addf %1002, %1007 : vector<20x128xf32>
    %1009 = vector.extract_strided_slice %715 {offsets = [4, 0, 0], sizes = [1, 20, 128], strides = [1, 1, 1]} : vector<5x20x128xf32> to vector<1x20x128xf32>
    %1010 = vector.shape_cast %1009 : vector<1x20x128xf32> to vector<20x128xf32>
    %1011 = vector.extract_strided_slice %981 {offsets = [4, 0], sizes = [1, 128], strides = [1, 1]} : vector<5x128xf32> to vector<1x128xf32>
    %1012 = vector.broadcast %1011 : vector<1x128xf32> to vector<20x128xf32>
    %1013 = arith.mulf %1010, %1012 : vector<20x128xf32>
    %1014 = arith.addf %1008, %1013 : vector<20x128xf32>
    %1015 = vector.extract_strided_slice %1014 {offsets = [0, 0], sizes = [15, 128], strides = [1, 1]} : vector<20x128xf32> to vector<15x128xf32>
    %1016 = arith.negf %1015 : vector<15x128xf32>
    %1017 = math.exp %1016 : vector<15x128xf32>
    %cst_90 = arith.constant 1.000000e+00 : f32
    %1018 = vector.broadcast %cst_90 : f32 to vector<15x128xf32>
    %1019 = arith.addf %1018, %1017 : vector<15x128xf32>
    %1020 = arith.divf %1018, %1019 : vector<15x128xf32>
    %1021 = vector.extract_strided_slice %1014 {offsets = [15, 0], sizes = [5, 128], strides = [1, 1]} : vector<20x128xf32> to vector<5x128xf32>
    %1022 = math.tanh %1021 : vector<5x128xf32>
    %1023 = vector.extract_strided_slice %1020 {offsets = [5, 0], sizes = [5, 128], strides = [1, 1]} : vector<15x128xf32> to vector<5x128xf32>
    %1024 = arith.mulf %1023, %978 : vector<5x128xf32>
    %1025 = vector.extract_strided_slice %1020 {offsets = [0, 0], sizes = [5, 128], strides = [1, 1]} : vector<15x128xf32> to vector<5x128xf32>
    %1026 = arith.mulf %1025, %1022 : vector<5x128xf32>
    %1027 = arith.addf %1024, %1026 : vector<5x128xf32>
    %1028 = vector.extract_strided_slice %1020 {offsets = [10, 0], sizes = [5, 128], strides = [1, 1]} : vector<15x128xf32> to vector<5x128xf32>
    %1029 = math.tanh %1027 : vector<5x128xf32>
    %1030 = arith.mulf %1028, %1029 : vector<5x128xf32>
    %1031 = vector.extract_strided_slice %765 {offsets = [6, 0, 0], sizes = [1, 20, 128], strides = [1, 1, 1]} : vector<8x20x128xf32> to vector<1x20x128xf32>
    %1032 = vector.shape_cast %1031 : vector<1x20x128xf32> to vector<20x128xf32>
    %1033 = arith.addf %1032, %716 : vector<20x128xf32>
    %1034 = vector.extract_strided_slice %715 {offsets = [0, 0, 0], sizes = [1, 20, 128], strides = [1, 1, 1]} : vector<5x20x128xf32> to vector<1x20x128xf32>
    %1035 = vector.shape_cast %1034 : vector<1x20x128xf32> to vector<20x128xf32>
    %1036 = vector.extract_strided_slice %1030 {offsets = [0, 0], sizes = [1, 128], strides = [1, 1]} : vector<5x128xf32> to vector<1x128xf32>
    %1037 = vector.broadcast %1036 : vector<1x128xf32> to vector<20x128xf32>
    %1038 = arith.mulf %1035, %1037 : vector<20x128xf32>
    %1039 = arith.addf %1033, %1038 : vector<20x128xf32>
    %1040 = vector.extract_strided_slice %715 {offsets = [1, 0, 0], sizes = [1, 20, 128], strides = [1, 1, 1]} : vector<5x20x128xf32> to vector<1x20x128xf32>
    %1041 = vector.shape_cast %1040 : vector<1x20x128xf32> to vector<20x128xf32>
    %1042 = vector.extract_strided_slice %1030 {offsets = [1, 0], sizes = [1, 128], strides = [1, 1]} : vector<5x128xf32> to vector<1x128xf32>
    %1043 = vector.broadcast %1042 : vector<1x128xf32> to vector<20x128xf32>
    %1044 = arith.mulf %1041, %1043 : vector<20x128xf32>
    %1045 = arith.addf %1039, %1044 : vector<20x128xf32>
    %1046 = vector.extract_strided_slice %715 {offsets = [2, 0, 0], sizes = [1, 20, 128], strides = [1, 1, 1]} : vector<5x20x128xf32> to vector<1x20x128xf32>
    %1047 = vector.shape_cast %1046 : vector<1x20x128xf32> to vector<20x128xf32>
    %1048 = vector.extract_strided_slice %1030 {offsets = [2, 0], sizes = [1, 128], strides = [1, 1]} : vector<5x128xf32> to vector<1x128xf32>
    %1049 = vector.broadcast %1048 : vector<1x128xf32> to vector<20x128xf32>
    %1050 = arith.mulf %1047, %1049 : vector<20x128xf32>
    %1051 = arith.addf %1045, %1050 : vector<20x128xf32>
    %1052 = vector.extract_strided_slice %715 {offsets = [3, 0, 0], sizes = [1, 20, 128], strides = [1, 1, 1]} : vector<5x20x128xf32> to vector<1x20x128xf32>
    %1053 = vector.shape_cast %1052 : vector<1x20x128xf32> to vector<20x128xf32>
    %1054 = vector.extract_strided_slice %1030 {offsets = [3, 0], sizes = [1, 128], strides = [1, 1]} : vector<5x128xf32> to vector<1x128xf32>
    %1055 = vector.broadcast %1054 : vector<1x128xf32> to vector<20x128xf32>
    %1056 = arith.mulf %1053, %1055 : vector<20x128xf32>
    %1057 = arith.addf %1051, %1056 : vector<20x128xf32>
    %1058 = vector.extract_strided_slice %715 {offsets = [4, 0, 0], sizes = [1, 20, 128], strides = [1, 1, 1]} : vector<5x20x128xf32> to vector<1x20x128xf32>
    %1059 = vector.shape_cast %1058 : vector<1x20x128xf32> to vector<20x128xf32>
    %1060 = vector.extract_strided_slice %1030 {offsets = [4, 0], sizes = [1, 128], strides = [1, 1]} : vector<5x128xf32> to vector<1x128xf32>
    %1061 = vector.broadcast %1060 : vector<1x128xf32> to vector<20x128xf32>
    %1062 = arith.mulf %1059, %1061 : vector<20x128xf32>
    %1063 = arith.addf %1057, %1062 : vector<20x128xf32>
    %1064 = vector.extract_strided_slice %1063 {offsets = [0, 0], sizes = [15, 128], strides = [1, 1]} : vector<20x128xf32> to vector<15x128xf32>
    %1065 = arith.negf %1064 : vector<15x128xf32>
    %1066 = math.exp %1065 : vector<15x128xf32>
    %cst_91 = arith.constant 1.000000e+00 : f32
    %1067 = vector.broadcast %cst_91 : f32 to vector<15x128xf32>
    %1068 = arith.addf %1067, %1066 : vector<15x128xf32>
    %1069 = arith.divf %1067, %1068 : vector<15x128xf32>
    %1070 = vector.extract_strided_slice %1063 {offsets = [15, 0], sizes = [5, 128], strides = [1, 1]} : vector<20x128xf32> to vector<5x128xf32>
    %1071 = math.tanh %1070 : vector<5x128xf32>
    %1072 = vector.extract_strided_slice %1069 {offsets = [5, 0], sizes = [5, 128], strides = [1, 1]} : vector<15x128xf32> to vector<5x128xf32>
    %1073 = arith.mulf %1072, %1027 : vector<5x128xf32>
    %1074 = vector.extract_strided_slice %1069 {offsets = [0, 0], sizes = [5, 128], strides = [1, 1]} : vector<15x128xf32> to vector<5x128xf32>
    %1075 = arith.mulf %1074, %1071 : vector<5x128xf32>
    %1076 = arith.addf %1073, %1075 : vector<5x128xf32>
    %1077 = vector.extract_strided_slice %1069 {offsets = [10, 0], sizes = [5, 128], strides = [1, 1]} : vector<15x128xf32> to vector<5x128xf32>
    %1078 = math.tanh %1076 : vector<5x128xf32>
    %1079 = arith.mulf %1077, %1078 : vector<5x128xf32>
    %1080 = vector.extract_strided_slice %765 {offsets = [7, 0, 0], sizes = [1, 20, 128], strides = [1, 1, 1]} : vector<8x20x128xf32> to vector<1x20x128xf32>
    %1081 = vector.shape_cast %1080 : vector<1x20x128xf32> to vector<20x128xf32>
    %1082 = arith.addf %1081, %716 : vector<20x128xf32>
    %1083 = vector.extract_strided_slice %715 {offsets = [0, 0, 0], sizes = [1, 20, 128], strides = [1, 1, 1]} : vector<5x20x128xf32> to vector<1x20x128xf32>
    %1084 = vector.shape_cast %1083 : vector<1x20x128xf32> to vector<20x128xf32>
    %1085 = vector.extract_strided_slice %1079 {offsets = [0, 0], sizes = [1, 128], strides = [1, 1]} : vector<5x128xf32> to vector<1x128xf32>
    %1086 = vector.broadcast %1085 : vector<1x128xf32> to vector<20x128xf32>
    %1087 = arith.mulf %1084, %1086 : vector<20x128xf32>
    %1088 = arith.addf %1082, %1087 : vector<20x128xf32>
    %1089 = vector.extract_strided_slice %715 {offsets = [1, 0, 0], sizes = [1, 20, 128], strides = [1, 1, 1]} : vector<5x20x128xf32> to vector<1x20x128xf32>
    %1090 = vector.shape_cast %1089 : vector<1x20x128xf32> to vector<20x128xf32>
    %1091 = vector.extract_strided_slice %1079 {offsets = [1, 0], sizes = [1, 128], strides = [1, 1]} : vector<5x128xf32> to vector<1x128xf32>
    %1092 = vector.broadcast %1091 : vector<1x128xf32> to vector<20x128xf32>
    %1093 = arith.mulf %1090, %1092 : vector<20x128xf32>
    %1094 = arith.addf %1088, %1093 : vector<20x128xf32>
    %1095 = vector.extract_strided_slice %715 {offsets = [2, 0, 0], sizes = [1, 20, 128], strides = [1, 1, 1]} : vector<5x20x128xf32> to vector<1x20x128xf32>
    %1096 = vector.shape_cast %1095 : vector<1x20x128xf32> to vector<20x128xf32>
    %1097 = vector.extract_strided_slice %1079 {offsets = [2, 0], sizes = [1, 128], strides = [1, 1]} : vector<5x128xf32> to vector<1x128xf32>
    %1098 = vector.broadcast %1097 : vector<1x128xf32> to vector<20x128xf32>
    %1099 = arith.mulf %1096, %1098 : vector<20x128xf32>
    %1100 = arith.addf %1094, %1099 : vector<20x128xf32>
    %1101 = vector.extract_strided_slice %715 {offsets = [3, 0, 0], sizes = [1, 20, 128], strides = [1, 1, 1]} : vector<5x20x128xf32> to vector<1x20x128xf32>
    %1102 = vector.shape_cast %1101 : vector<1x20x128xf32> to vector<20x128xf32>
    %1103 = vector.extract_strided_slice %1079 {offsets = [3, 0], sizes = [1, 128], strides = [1, 1]} : vector<5x128xf32> to vector<1x128xf32>
    %1104 = vector.broadcast %1103 : vector<1x128xf32> to vector<20x128xf32>
    %1105 = arith.mulf %1102, %1104 : vector<20x128xf32>
    %1106 = arith.addf %1100, %1105 : vector<20x128xf32>
    %1107 = vector.extract_strided_slice %715 {offsets = [4, 0, 0], sizes = [1, 20, 128], strides = [1, 1, 1]} : vector<5x20x128xf32> to vector<1x20x128xf32>
    %1108 = vector.shape_cast %1107 : vector<1x20x128xf32> to vector<20x128xf32>
    %1109 = vector.extract_strided_slice %1079 {offsets = [4, 0], sizes = [1, 128], strides = [1, 1]} : vector<5x128xf32> to vector<1x128xf32>
    %1110 = vector.broadcast %1109 : vector<1x128xf32> to vector<20x128xf32>
    %1111 = arith.mulf %1108, %1110 : vector<20x128xf32>
    %1112 = arith.addf %1106, %1111 : vector<20x128xf32>
    %1113 = vector.extract_strided_slice %1112 {offsets = [0, 0], sizes = [15, 128], strides = [1, 1]} : vector<20x128xf32> to vector<15x128xf32>
    %1114 = arith.negf %1113 : vector<15x128xf32>
    %1115 = math.exp %1114 : vector<15x128xf32>
    %cst_92 = arith.constant 1.000000e+00 : f32
    %1116 = vector.broadcast %cst_92 : f32 to vector<15x128xf32>
    %1117 = arith.addf %1116, %1115 : vector<15x128xf32>
    %1118 = arith.divf %1116, %1117 : vector<15x128xf32>
    %1119 = vector.extract_strided_slice %1112 {offsets = [15, 0], sizes = [5, 128], strides = [1, 1]} : vector<20x128xf32> to vector<5x128xf32>
    %1120 = math.tanh %1119 : vector<5x128xf32>
    %1121 = vector.extract_strided_slice %1118 {offsets = [5, 0], sizes = [5, 128], strides = [1, 1]} : vector<15x128xf32> to vector<5x128xf32>
    %1122 = arith.mulf %1121, %1076 : vector<5x128xf32>
    %1123 = vector.extract_strided_slice %1118 {offsets = [0, 0], sizes = [5, 128], strides = [1, 1]} : vector<15x128xf32> to vector<5x128xf32>
    %1124 = arith.mulf %1123, %1120 : vector<5x128xf32>
    %1125 = arith.addf %1122, %1124 : vector<5x128xf32>
    %1126 = vector.extract_strided_slice %1118 {offsets = [10, 0], sizes = [5, 128], strides = [1, 1]} : vector<15x128xf32> to vector<5x128xf32>
    %1127 = math.tanh %1125 : vector<5x128xf32>
    %1128 = arith.mulf %1126, %1127 : vector<5x128xf32>
    %c0_93 = arith.constant 0 : index
    %c0_94 = arith.constant 0 : index
    %c0_95 = arith.constant 0 : index
    %1129 = vector.load %arg18[%c0_93, %c0_94, %c0_95] : memref<7x20x128xf32, #tpu.memory_space<vmem>>, vector<7x20x128xf32>
    %c0_96 = arith.constant 0 : index
    %c0_97 = arith.constant 0 : index
    %c0_98 = arith.constant 0 : index
    %1130 = vector.load %arg19[%c0_96, %c0_97, %c0_98] : memref<5x20x128xf32, #tpu.memory_space<vmem>>, vector<5x20x128xf32>
    %c0_99 = arith.constant 0 : index
    %c0_100 = arith.constant 0 : index
    %1131 = vector.load %arg20[%c0_99, %c0_100] : memref<20x128xf32, #tpu.memory_space<vmem>>, vector<20x128xf32>
    %c0_101 = arith.constant 0 : index
    %c0_102 = arith.constant 0 : index
    %c0_103 = arith.constant 0 : index
    %1132 = vector.load %arg21[%c0_101, %c0_102, %c0_103] : memref<5x5x128xf32, #tpu.memory_space<vmem>>, vector<5x5x128xf32>
    %c0_104 = arith.constant 0 : index
    %c0_105 = arith.constant 0 : index
    %1133 = vector.load %arg22[%c0_104, %c0_105] : memref<5x128xf32, #tpu.memory_space<vmem>>, vector<5x128xf32>
    %1134 = vector.extract_strided_slice %1129 {offsets = [0, 0, 0], sizes = [1, 20, 128], strides = [1, 1, 1]} : vector<7x20x128xf32> to vector<1x20x128xf32>
    %1135 = vector.shape_cast %1134 : vector<1x20x128xf32> to vector<20x128xf32>
    %1136 = vector.extract_strided_slice %1128 {offsets = [0, 0], sizes = [1, 128], strides = [1, 1]} : vector<5x128xf32> to vector<1x128xf32>
    %1137 = vector.broadcast %1136 : vector<1x128xf32> to vector<20x128xf32>
    %1138 = arith.mulf %1135, %1137 : vector<20x128xf32>
    %1139 = arith.addf %1131, %1138 : vector<20x128xf32>
    %1140 = vector.extract_strided_slice %1129 {offsets = [1, 0, 0], sizes = [1, 20, 128], strides = [1, 1, 1]} : vector<7x20x128xf32> to vector<1x20x128xf32>
    %1141 = vector.shape_cast %1140 : vector<1x20x128xf32> to vector<20x128xf32>
    %1142 = vector.extract_strided_slice %1128 {offsets = [1, 0], sizes = [1, 128], strides = [1, 1]} : vector<5x128xf32> to vector<1x128xf32>
    %1143 = vector.broadcast %1142 : vector<1x128xf32> to vector<20x128xf32>
    %1144 = arith.mulf %1141, %1143 : vector<20x128xf32>
    %1145 = arith.addf %1139, %1144 : vector<20x128xf32>
    %1146 = vector.extract_strided_slice %1129 {offsets = [2, 0, 0], sizes = [1, 20, 128], strides = [1, 1, 1]} : vector<7x20x128xf32> to vector<1x20x128xf32>
    %1147 = vector.shape_cast %1146 : vector<1x20x128xf32> to vector<20x128xf32>
    %1148 = vector.extract_strided_slice %1128 {offsets = [2, 0], sizes = [1, 128], strides = [1, 1]} : vector<5x128xf32> to vector<1x128xf32>
    %1149 = vector.broadcast %1148 : vector<1x128xf32> to vector<20x128xf32>
    %1150 = arith.mulf %1147, %1149 : vector<20x128xf32>
    %1151 = arith.addf %1145, %1150 : vector<20x128xf32>
    %1152 = vector.extract_strided_slice %1129 {offsets = [3, 0, 0], sizes = [1, 20, 128], strides = [1, 1, 1]} : vector<7x20x128xf32> to vector<1x20x128xf32>
    %1153 = vector.shape_cast %1152 : vector<1x20x128xf32> to vector<20x128xf32>
    %1154 = vector.extract_strided_slice %1128 {offsets = [3, 0], sizes = [1, 128], strides = [1, 1]} : vector<5x128xf32> to vector<1x128xf32>
    %1155 = vector.broadcast %1154 : vector<1x128xf32> to vector<20x128xf32>
    %1156 = arith.mulf %1153, %1155 : vector<20x128xf32>
    %1157 = arith.addf %1151, %1156 : vector<20x128xf32>
    %1158 = vector.extract_strided_slice %1129 {offsets = [4, 0, 0], sizes = [1, 20, 128], strides = [1, 1, 1]} : vector<7x20x128xf32> to vector<1x20x128xf32>
    %1159 = vector.shape_cast %1158 : vector<1x20x128xf32> to vector<20x128xf32>
    %1160 = vector.extract_strided_slice %1128 {offsets = [4, 0], sizes = [1, 128], strides = [1, 1]} : vector<5x128xf32> to vector<1x128xf32>
    %1161 = vector.broadcast %1160 : vector<1x128xf32> to vector<20x128xf32>
    %1162 = arith.mulf %1159, %1161 : vector<20x128xf32>
    %1163 = arith.addf %1157, %1162 : vector<20x128xf32>
    %1164 = vector.extract_strided_slice %1129 {offsets = [5, 0, 0], sizes = [1, 20, 128], strides = [1, 1, 1]} : vector<7x20x128xf32> to vector<1x20x128xf32>
    %1165 = vector.shape_cast %1164 : vector<1x20x128xf32> to vector<20x128xf32>
    %1166 = vector.extract_strided_slice %1129 {offsets = [6, 0, 0], sizes = [1, 20, 128], strides = [1, 1, 1]} : vector<7x20x128xf32> to vector<1x20x128xf32>
    %1167 = vector.shape_cast %1166 : vector<1x20x128xf32> to vector<20x128xf32>
    %1168 = vector.extract_strided_slice %0 {offsets = [0, 7, 0], sizes = [1, 1, 128], strides = [1, 1, 1]} : vector<2x8x128xf32> to vector<1x1x128xf32>
    %1169 = vector.shape_cast %1168 : vector<1x1x128xf32> to vector<1x128xf32>
    %1170 = vector.extract_strided_slice %0 {offsets = [1, 7, 0], sizes = [1, 1, 128], strides = [1, 1, 1]} : vector<2x8x128xf32> to vector<1x1x128xf32>
    %1171 = vector.shape_cast %1170 : vector<1x1x128xf32> to vector<1x128xf32>
    %1172 = tpu.concatenate %1169, %1171 in 0 : vector<1x128xf32>, vector<1x128xf32> -> vector<2x128xf32>
    %c0_106 = arith.constant 0 : index
    %c0_107 = arith.constant 0 : index
    %c0_108 = arith.constant 0 : index
    %1173 = vector.load %arg24[%c0_106, %c0_107, %c0_108] : memref<13x2x128xf32, #tpu.memory_space<vmem>>, vector<1x2x128xf32>
    %1174 = vector.shape_cast %1173 : vector<1x2x128xf32> to vector<2x128xf32>
    %1175 = vector.shape_cast %1172 : vector<2x128xf32> to vector<1x2x128xf32>
    tpu.vector_store %arg24[%c0_106, %c0_107, %c0_108], %1175 {strides = array<i32>} : memref<13x2x128xf32, #tpu.memory_space<vmem>>, vector<1x2x128xf32>,
    %cst_109 = arith.constant 0.000000e+00 : f32
    %1176 = vector.broadcast %cst_109 : f32 to vector<5x128xf32>
    %1177 = vector.broadcast %1169 : vector<1x128xf32> to vector<20x128xf32>
    %1178 = arith.mulf %1165, %1177 : vector<20x128xf32>
    %1179 = arith.addf %1163, %1178 : vector<20x128xf32>
    %1180 = vector.broadcast %1171 : vector<1x128xf32> to vector<20x128xf32>
    %1181 = arith.mulf %1167, %1180 : vector<20x128xf32>
    %1182 = arith.addf %1179, %1181 : vector<20x128xf32>
    %1183 = vector.extract_strided_slice %1182 {offsets = [0, 0], sizes = [15, 128], strides = [1, 1]} : vector<20x128xf32> to vector<15x128xf32>
    %1184 = arith.negf %1183 : vector<15x128xf32>
    %1185 = math.exp %1184 : vector<15x128xf32>
    %cst_110 = arith.constant 1.000000e+00 : f32
    %1186 = vector.broadcast %cst_110 : f32 to vector<15x128xf32>
    %1187 = arith.addf %1186, %1185 : vector<15x128xf32>
    %1188 = arith.divf %1186, %1187 : vector<15x128xf32>
    %1189 = vector.extract_strided_slice %1182 {offsets = [15, 0], sizes = [5, 128], strides = [1, 1]} : vector<20x128xf32> to vector<5x128xf32>
    %1190 = math.tanh %1189 : vector<5x128xf32>
    %1191 = vector.extract_strided_slice %1188 {offsets = [5, 0], sizes = [5, 128], strides = [1, 1]} : vector<15x128xf32> to vector<5x128xf32>
    %1192 = arith.mulf %1191, %1176 : vector<5x128xf32>
    %1193 = vector.extract_strided_slice %1188 {offsets = [0, 0], sizes = [5, 128], strides = [1, 1]} : vector<15x128xf32> to vector<5x128xf32>
    %1194 = arith.mulf %1193, %1190 : vector<5x128xf32>
    %1195 = arith.addf %1192, %1194 : vector<5x128xf32>
    %1196 = vector.extract_strided_slice %1188 {offsets = [10, 0], sizes = [5, 128], strides = [1, 1]} : vector<15x128xf32> to vector<5x128xf32>
    %1197 = math.tanh %1195 : vector<5x128xf32>
    %1198 = arith.mulf %1196, %1197 : vector<5x128xf32>
    %1199 = vector.extract_strided_slice %1132 {offsets = [0, 0, 0], sizes = [1, 5, 128], strides = [1, 1, 1]} : vector<5x5x128xf32> to vector<1x5x128xf32>
    %1200 = vector.shape_cast %1199 : vector<1x5x128xf32> to vector<5x128xf32>
    %1201 = vector.extract_strided_slice %1198 {offsets = [0, 0], sizes = [1, 128], strides = [1, 1]} : vector<5x128xf32> to vector<1x128xf32>
    %1202 = vector.broadcast %1201 : vector<1x128xf32> to vector<5x128xf32>
    %1203 = arith.mulf %1200, %1202 : vector<5x128xf32>
    %1204 = arith.addf %1133, %1203 : vector<5x128xf32>
    %1205 = vector.extract_strided_slice %1132 {offsets = [1, 0, 0], sizes = [1, 5, 128], strides = [1, 1, 1]} : vector<5x5x128xf32> to vector<1x5x128xf32>
    %1206 = vector.shape_cast %1205 : vector<1x5x128xf32> to vector<5x128xf32>
    %1207 = vector.extract_strided_slice %1198 {offsets = [1, 0], sizes = [1, 128], strides = [1, 1]} : vector<5x128xf32> to vector<1x128xf32>
    %1208 = vector.broadcast %1207 : vector<1x128xf32> to vector<5x128xf32>
    %1209 = arith.mulf %1206, %1208 : vector<5x128xf32>
    %1210 = arith.addf %1204, %1209 : vector<5x128xf32>
    %1211 = vector.extract_strided_slice %1132 {offsets = [2, 0, 0], sizes = [1, 5, 128], strides = [1, 1, 1]} : vector<5x5x128xf32> to vector<1x5x128xf32>
    %1212 = vector.shape_cast %1211 : vector<1x5x128xf32> to vector<5x128xf32>
    %1213 = vector.extract_strided_slice %1198 {offsets = [2, 0], sizes = [1, 128], strides = [1, 1]} : vector<5x128xf32> to vector<1x128xf32>
    %1214 = vector.broadcast %1213 : vector<1x128xf32> to vector<5x128xf32>
    %1215 = arith.mulf %1212, %1214 : vector<5x128xf32>
    %1216 = arith.addf %1210, %1215 : vector<5x128xf32>
    %1217 = vector.extract_strided_slice %1132 {offsets = [3, 0, 0], sizes = [1, 5, 128], strides = [1, 1, 1]} : vector<5x5x128xf32> to vector<1x5x128xf32>
    %1218 = vector.shape_cast %1217 : vector<1x5x128xf32> to vector<5x128xf32>
    %1219 = vector.extract_strided_slice %1198 {offsets = [3, 0], sizes = [1, 128], strides = [1, 1]} : vector<5x128xf32> to vector<1x128xf32>
    %1220 = vector.broadcast %1219 : vector<1x128xf32> to vector<5x128xf32>
    %1221 = arith.mulf %1218, %1220 : vector<5x128xf32>
    %1222 = arith.addf %1216, %1221 : vector<5x128xf32>
    %1223 = vector.extract_strided_slice %1132 {offsets = [4, 0, 0], sizes = [1, 5, 128], strides = [1, 1, 1]} : vector<5x5x128xf32> to vector<1x5x128xf32>
    %1224 = vector.shape_cast %1223 : vector<1x5x128xf32> to vector<5x128xf32>
    %1225 = vector.extract_strided_slice %1198 {offsets = [4, 0], sizes = [1, 128], strides = [1, 1]} : vector<5x128xf32> to vector<1x128xf32>
    %1226 = vector.broadcast %1225 : vector<1x128xf32> to vector<5x128xf32>
    %1227 = arith.mulf %1224, %1226 : vector<5x128xf32>
    %1228 = arith.addf %1222, %1227 : vector<5x128xf32>
    %c0_111 = arith.constant 0 : index
    %c0_112 = arith.constant 0 : index
    %c0_113 = arith.constant 0 : index
    %1229 = vector.load %arg23[%c0_111, %c0_112, %c0_113] : memref<12x5x128xf32, #tpu.memory_space<vmem>>, vector<1x5x128xf32>
    %1230 = vector.shape_cast %1229 : vector<1x5x128xf32> to vector<5x128xf32>
    %1231 = vector.shape_cast %1228 : vector<5x128xf32> to vector<1x5x128xf32>
    tpu.vector_store %arg23[%c0_111, %c0_112, %c0_113], %1231 {strides = array<i32>} : memref<12x5x128xf32, #tpu.memory_space<vmem>>, vector<1x5x128xf32>,
    %1232 = vector.extract_strided_slice %1228 {offsets = [2, 0], sizes = [2, 128], strides = [1, 1]} : vector<5x128xf32> to vector<2x128xf32>
    %1233 = math.exp %1232 : vector<2x128xf32>
    %1234 = vector.extract_strided_slice %1228 {offsets = [4, 0], sizes = [1, 128], strides = [1, 1]} : vector<5x128xf32> to vector<1x128xf32>
    %1235 = math.tanh %1234 : vector<1x128xf32>
    %c0_114 = arith.constant 0 : index
    %c0_115 = arith.constant 0 : index
    %c0_116 = arith.constant 0 : index
    %1236 = vector.load %arg3[%c0_114, %c0_115, %c0_116] : memref<12x2x128xf32, #tpu.memory_space<vmem>>, vector<1x2x128xf32>
    %1237 = vector.shape_cast %1236 : vector<1x2x128xf32> to vector<2x128xf32>
    %1238 = vector.extract_strided_slice %1228 {offsets = [0, 0], sizes = [1, 128], strides = [1, 1]} : vector<5x128xf32> to vector<1x128xf32>
    %1239 = vector.extract_strided_slice %1233 {offsets = [0, 0], sizes = [1, 128], strides = [1, 1]} : vector<2x128xf32> to vector<1x128xf32>
    %1240 = vector.extract_strided_slice %1237 {offsets = [0, 0], sizes = [1, 128], strides = [1, 1]} : vector<2x128xf32> to vector<1x128xf32>
    %1241 = arith.mulf %1239, %1240 : vector<1x128xf32>
    %1242 = arith.addf %1238, %1241 : vector<1x128xf32>
    %1243 = vector.extract_strided_slice %1228 {offsets = [1, 0], sizes = [1, 128], strides = [1, 1]} : vector<5x128xf32> to vector<1x128xf32>
    %1244 = vector.extract_strided_slice %1233 {offsets = [1, 0], sizes = [1, 128], strides = [1, 1]} : vector<2x128xf32> to vector<1x128xf32>
    %1245 = vector.extract_strided_slice %1237 {offsets = [0, 0], sizes = [1, 128], strides = [1, 1]} : vector<2x128xf32> to vector<1x128xf32>
    %1246 = arith.mulf %1235, %1245 : vector<1x128xf32>
    %1247 = arith.mulf %1235, %1235 : vector<1x128xf32>
    %cst_117 = arith.constant 1.000000e+00 : f32
    %1248 = vector.broadcast %cst_117 : f32 to vector<1x128xf32>
    %1249 = arith.subf %1248, %1247 : vector<1x128xf32>
    %1250 = math.sqrt %1249 : vector<1x128xf32>
    %1251 = vector.extract_strided_slice %1237 {offsets = [1, 0], sizes = [1, 128], strides = [1, 1]} : vector<2x128xf32> to vector<1x128xf32>
    %1252 = arith.mulf %1250, %1251 : vector<1x128xf32>
    %1253 = arith.addf %1246, %1252 : vector<1x128xf32>
    %1254 = arith.mulf %1244, %1253 : vector<1x128xf32>
    %1255 = arith.addf %1243, %1254 : vector<1x128xf32>
    %1256 = tpu.concatenate %1242, %1255 in 0 : vector<1x128xf32>, vector<1x128xf32> -> vector<2x128xf32>
    %c1_118 = arith.constant 1 : index
    %c0_119 = arith.constant 0 : index
    %c0_120 = arith.constant 0 : index
    %1257 = vector.load %arg24[%c1_118, %c0_119, %c0_120] : memref<13x2x128xf32, #tpu.memory_space<vmem>>, vector<1x2x128xf32>
    %1258 = vector.shape_cast %1257 : vector<1x2x128xf32> to vector<2x128xf32>
    %1259 = vector.shape_cast %1256 : vector<2x128xf32> to vector<1x2x128xf32>
    tpu.vector_store %arg24[%c1_118, %c0_119, %c0_120], %1259 {strides = array<i32>} : memref<13x2x128xf32, #tpu.memory_space<vmem>>, vector<1x2x128xf32>,
    %1260 = vector.broadcast %1242 : vector<1x128xf32> to vector<20x128xf32>
    %1261 = arith.mulf %1165, %1260 : vector<20x128xf32>
    %1262 = arith.addf %1163, %1261 : vector<20x128xf32>
    %1263 = vector.broadcast %1255 : vector<1x128xf32> to vector<20x128xf32>
    %1264 = arith.mulf %1167, %1263 : vector<20x128xf32>
    %1265 = arith.addf %1262, %1264 : vector<20x128xf32>
    %1266 = vector.extract_strided_slice %1130 {offsets = [0, 0, 0], sizes = [1, 20, 128], strides = [1, 1, 1]} : vector<5x20x128xf32> to vector<1x20x128xf32>
    %1267 = vector.shape_cast %1266 : vector<1x20x128xf32> to vector<20x128xf32>
    %1268 = vector.extract_strided_slice %1198 {offsets = [0, 0], sizes = [1, 128], strides = [1, 1]} : vector<5x128xf32> to vector<1x128xf32>
    %1269 = vector.broadcast %1268 : vector<1x128xf32> to vector<20x128xf32>
    %1270 = arith.mulf %1267, %1269 : vector<20x128xf32>
    %1271 = arith.addf %1265, %1270 : vector<20x128xf32>
    %1272 = vector.extract_strided_slice %1130 {offsets = [1, 0, 0], sizes = [1, 20, 128], strides = [1, 1, 1]} : vector<5x20x128xf32> to vector<1x20x128xf32>
    %1273 = vector.shape_cast %1272 : vector<1x20x128xf32> to vector<20x128xf32>
    %1274 = vector.extract_strided_slice %1198 {offsets = [1, 0], sizes = [1, 128], strides = [1, 1]} : vector<5x128xf32> to vector<1x128xf32>
    %1275 = vector.broadcast %1274 : vector<1x128xf32> to vector<20x128xf32>
    %1276 = arith.mulf %1273, %1275 : vector<20x128xf32>
    %1277 = arith.addf %1271, %1276 : vector<20x128xf32>
    %1278 = vector.extract_strided_slice %1130 {offsets = [2, 0, 0], sizes = [1, 20, 128], strides = [1, 1, 1]} : vector<5x20x128xf32> to vector<1x20x128xf32>
    %1279 = vector.shape_cast %1278 : vector<1x20x128xf32> to vector<20x128xf32>
    %1280 = vector.extract_strided_slice %1198 {offsets = [2, 0], sizes = [1, 128], strides = [1, 1]} : vector<5x128xf32> to vector<1x128xf32>
    %1281 = vector.broadcast %1280 : vector<1x128xf32> to vector<20x128xf32>
    %1282 = arith.mulf %1279, %1281 : vector<20x128xf32>
    %1283 = arith.addf %1277, %1282 : vector<20x128xf32>
    %1284 = vector.extract_strided_slice %1130 {offsets = [3, 0, 0], sizes = [1, 20, 128], strides = [1, 1, 1]} : vector<5x20x128xf32> to vector<1x20x128xf32>
    %1285 = vector.shape_cast %1284 : vector<1x20x128xf32> to vector<20x128xf32>
    %1286 = vector.extract_strided_slice %1198 {offsets = [3, 0], sizes = [1, 128], strides = [1, 1]} : vector<5x128xf32> to vector<1x128xf32>
    %1287 = vector.broadcast %1286 : vector<1x128xf32> to vector<20x128xf32>
    %1288 = arith.mulf %1285, %1287 : vector<20x128xf32>
    %1289 = arith.addf %1283, %1288 : vector<20x128xf32>
    %1290 = vector.extract_strided_slice %1130 {offsets = [4, 0, 0], sizes = [1, 20, 128], strides = [1, 1, 1]} : vector<5x20x128xf32> to vector<1x20x128xf32>
    %1291 = vector.shape_cast %1290 : vector<1x20x128xf32> to vector<20x128xf32>
    %1292 = vector.extract_strided_slice %1198 {offsets = [4, 0], sizes = [1, 128], strides = [1, 1]} : vector<5x128xf32> to vector<1x128xf32>
    %1293 = vector.broadcast %1292 : vector<1x128xf32> to vector<20x128xf32>
    %1294 = arith.mulf %1291, %1293 : vector<20x128xf32>
    %1295 = arith.addf %1289, %1294 : vector<20x128xf32>
    %1296 = vector.extract_strided_slice %1295 {offsets = [0, 0], sizes = [15, 128], strides = [1, 1]} : vector<20x128xf32> to vector<15x128xf32>
    %1297 = arith.negf %1296 : vector<15x128xf32>
    %1298 = math.exp %1297 : vector<15x128xf32>
    %cst_121 = arith.constant 1.000000e+00 : f32
    %1299 = vector.broadcast %cst_121 : f32 to vector<15x128xf32>
    %1300 = arith.addf %1299, %1298 : vector<15x128xf32>
    %1301 = arith.divf %1299, %1300 : vector<15x128xf32>
    %1302 = vector.extract_strided_slice %1295 {offsets = [15, 0], sizes = [5, 128], strides = [1, 1]} : vector<20x128xf32> to vector<5x128xf32>
    %1303 = math.tanh %1302 : vector<5x128xf32>
    %1304 = vector.extract_strided_slice %1301 {offsets = [5, 0], sizes = [5, 128], strides = [1, 1]} : vector<15x128xf32> to vector<5x128xf32>
    %1305 = arith.mulf %1304, %1195 : vector<5x128xf32>
    %1306 = vector.extract_strided_slice %1301 {offsets = [0, 0], sizes = [5, 128], strides = [1, 1]} : vector<15x128xf32> to vector<5x128xf32>
    %1307 = arith.mulf %1306, %1303 : vector<5x128xf32>
    %1308 = arith.addf %1305, %1307 : vector<5x128xf32>
    %1309 = vector.extract_strided_slice %1301 {offsets = [10, 0], sizes = [5, 128], strides = [1, 1]} : vector<15x128xf32> to vector<5x128xf32>
    %1310 = math.tanh %1308 : vector<5x128xf32>
    %1311 = arith.mulf %1309, %1310 : vector<5x128xf32>
    %1312 = vector.extract_strided_slice %1132 {offsets = [0, 0, 0], sizes = [1, 5, 128], strides = [1, 1, 1]} : vector<5x5x128xf32> to vector<1x5x128xf32>
    %1313 = vector.shape_cast %1312 : vector<1x5x128xf32> to vector<5x128xf32>
    %1314 = vector.extract_strided_slice %1311 {offsets = [0, 0], sizes = [1, 128], strides = [1, 1]} : vector<5x128xf32> to vector<1x128xf32>
    %1315 = vector.broadcast %1314 : vector<1x128xf32> to vector<5x128xf32>
    %1316 = arith.mulf %1313, %1315 : vector<5x128xf32>
    %1317 = arith.addf %1133, %1316 : vector<5x128xf32>
    %1318 = vector.extract_strided_slice %1132 {offsets = [1, 0, 0], sizes = [1, 5, 128], strides = [1, 1, 1]} : vector<5x5x128xf32> to vector<1x5x128xf32>
    %1319 = vector.shape_cast %1318 : vector<1x5x128xf32> to vector<5x128xf32>
    %1320 = vector.extract_strided_slice %1311 {offsets = [1, 0], sizes = [1, 128], strides = [1, 1]} : vector<5x128xf32> to vector<1x128xf32>
    %1321 = vector.broadcast %1320 : vector<1x128xf32> to vector<5x128xf32>
    %1322 = arith.mulf %1319, %1321 : vector<5x128xf32>
    %1323 = arith.addf %1317, %1322 : vector<5x128xf32>
    %1324 = vector.extract_strided_slice %1132 {offsets = [2, 0, 0], sizes = [1, 5, 128], strides = [1, 1, 1]} : vector<5x5x128xf32> to vector<1x5x128xf32>
    %1325 = vector.shape_cast %1324 : vector<1x5x128xf32> to vector<5x128xf32>
    %1326 = vector.extract_strided_slice %1311 {offsets = [2, 0], sizes = [1, 128], strides = [1, 1]} : vector<5x128xf32> to vector<1x128xf32>
    %1327 = vector.broadcast %1326 : vector<1x128xf32> to vector<5x128xf32>
    %1328 = arith.mulf %1325, %1327 : vector<5x128xf32>
    %1329 = arith.addf %1323, %1328 : vector<5x128xf32>
    %1330 = vector.extract_strided_slice %1132 {offsets = [3, 0, 0], sizes = [1, 5, 128], strides = [1, 1, 1]} : vector<5x5x128xf32> to vector<1x5x128xf32>
    %1331 = vector.shape_cast %1330 : vector<1x5x128xf32> to vector<5x128xf32>
    %1332 = vector.extract_strided_slice %1311 {offsets = [3, 0], sizes = [1, 128], strides = [1, 1]} : vector<5x128xf32> to vector<1x128xf32>
    %1333 = vector.broadcast %1332 : vector<1x128xf32> to vector<5x128xf32>
    %1334 = arith.mulf %1331, %1333 : vector<5x128xf32>
    %1335 = arith.addf %1329, %1334 : vector<5x128xf32>
    %1336 = vector.extract_strided_slice %1132 {offsets = [4, 0, 0], sizes = [1, 5, 128], strides = [1, 1, 1]} : vector<5x5x128xf32> to vector<1x5x128xf32>
    %1337 = vector.shape_cast %1336 : vector<1x5x128xf32> to vector<5x128xf32>
    %1338 = vector.extract_strided_slice %1311 {offsets = [4, 0], sizes = [1, 128], strides = [1, 1]} : vector<5x128xf32> to vector<1x128xf32>
    %1339 = vector.broadcast %1338 : vector<1x128xf32> to vector<5x128xf32>
    %1340 = arith.mulf %1337, %1339 : vector<5x128xf32>
    %1341 = arith.addf %1335, %1340 : vector<5x128xf32>
    %c1_122 = arith.constant 1 : index
    %c0_123 = arith.constant 0 : index
    %c0_124 = arith.constant 0 : index
    %1342 = vector.load %arg23[%c1_122, %c0_123, %c0_124] : memref<12x5x128xf32, #tpu.memory_space<vmem>>, vector<1x5x128xf32>
    %1343 = vector.shape_cast %1342 : vector<1x5x128xf32> to vector<5x128xf32>
    %1344 = vector.shape_cast %1341 : vector<5x128xf32> to vector<1x5x128xf32>
    tpu.vector_store %arg23[%c1_122, %c0_123, %c0_124], %1344 {strides = array<i32>} : memref<12x5x128xf32, #tpu.memory_space<vmem>>, vector<1x5x128xf32>,
    %1345 = vector.extract_strided_slice %1341 {offsets = [2, 0], sizes = [2, 128], strides = [1, 1]} : vector<5x128xf32> to vector<2x128xf32>
    %1346 = math.exp %1345 : vector<2x128xf32>
    %1347 = vector.extract_strided_slice %1341 {offsets = [4, 0], sizes = [1, 128], strides = [1, 1]} : vector<5x128xf32> to vector<1x128xf32>
    %1348 = math.tanh %1347 : vector<1x128xf32>
    %c1_125 = arith.constant 1 : index
    %c0_126 = arith.constant 0 : index
    %c0_127 = arith.constant 0 : index
    %1349 = vector.load %arg3[%c1_125, %c0_126, %c0_127] : memref<12x2x128xf32, #tpu.memory_space<vmem>>, vector<1x2x128xf32>
    %1350 = vector.shape_cast %1349 : vector<1x2x128xf32> to vector<2x128xf32>
    %1351 = vector.extract_strided_slice %1341 {offsets = [0, 0], sizes = [1, 128], strides = [1, 1]} : vector<5x128xf32> to vector<1x128xf32>
    %1352 = vector.extract_strided_slice %1346 {offsets = [0, 0], sizes = [1, 128], strides = [1, 1]} : vector<2x128xf32> to vector<1x128xf32>
    %1353 = vector.extract_strided_slice %1350 {offsets = [0, 0], sizes = [1, 128], strides = [1, 1]} : vector<2x128xf32> to vector<1x128xf32>
    %1354 = arith.mulf %1352, %1353 : vector<1x128xf32>
    %1355 = arith.addf %1351, %1354 : vector<1x128xf32>
    %1356 = vector.extract_strided_slice %1341 {offsets = [1, 0], sizes = [1, 128], strides = [1, 1]} : vector<5x128xf32> to vector<1x128xf32>
    %1357 = vector.extract_strided_slice %1346 {offsets = [1, 0], sizes = [1, 128], strides = [1, 1]} : vector<2x128xf32> to vector<1x128xf32>
    %1358 = vector.extract_strided_slice %1350 {offsets = [0, 0], sizes = [1, 128], strides = [1, 1]} : vector<2x128xf32> to vector<1x128xf32>
    %1359 = arith.mulf %1348, %1358 : vector<1x128xf32>
    %1360 = arith.mulf %1348, %1348 : vector<1x128xf32>
    %cst_128 = arith.constant 1.000000e+00 : f32
    %1361 = vector.broadcast %cst_128 : f32 to vector<1x128xf32>
    %1362 = arith.subf %1361, %1360 : vector<1x128xf32>
    %1363 = math.sqrt %1362 : vector<1x128xf32>
    %1364 = vector.extract_strided_slice %1350 {offsets = [1, 0], sizes = [1, 128], strides = [1, 1]} : vector<2x128xf32> to vector<1x128xf32>
    %1365 = arith.mulf %1363, %1364 : vector<1x128xf32>
    %1366 = arith.addf %1359, %1365 : vector<1x128xf32>
    %1367 = arith.mulf %1357, %1366 : vector<1x128xf32>
    %1368 = arith.addf %1356, %1367 : vector<1x128xf32>
    %1369 = tpu.concatenate %1355, %1368 in 0 : vector<1x128xf32>, vector<1x128xf32> -> vector<2x128xf32>
    %c2_129 = arith.constant 2 : index
    %c0_130 = arith.constant 0 : index
    %c0_131 = arith.constant 0 : index
    %1370 = vector.load %arg24[%c2_129, %c0_130, %c0_131] : memref<13x2x128xf32, #tpu.memory_space<vmem>>, vector<1x2x128xf32>
    %1371 = vector.shape_cast %1370 : vector<1x2x128xf32> to vector<2x128xf32>
    %1372 = vector.shape_cast %1369 : vector<2x128xf32> to vector<1x2x128xf32>
    tpu.vector_store %arg24[%c2_129, %c0_130, %c0_131], %1372 {strides = array<i32>} : memref<13x2x128xf32, #tpu.memory_space<vmem>>, vector<1x2x128xf32>,
    %1373 = vector.broadcast %1355 : vector<1x128xf32> to vector<20x128xf32>
    %1374 = arith.mulf %1165, %1373 : vector<20x128xf32>
    %1375 = arith.addf %1163, %1374 : vector<20x128xf32>
    %1376 = vector.broadcast %1368 : vector<1x128xf32> to vector<20x128xf32>
    %1377 = arith.mulf %1167, %1376 : vector<20x128xf32>
    %1378 = arith.addf %1375, %1377 : vector<20x128xf32>
    %1379 = vector.extract_strided_slice %1130 {offsets = [0, 0, 0], sizes = [1, 20, 128], strides = [1, 1, 1]} : vector<5x20x128xf32> to vector<1x20x128xf32>
    %1380 = vector.shape_cast %1379 : vector<1x20x128xf32> to vector<20x128xf32>
    %1381 = vector.extract_strided_slice %1311 {offsets = [0, 0], sizes = [1, 128], strides = [1, 1]} : vector<5x128xf32> to vector<1x128xf32>
    %1382 = vector.broadcast %1381 : vector<1x128xf32> to vector<20x128xf32>
    %1383 = arith.mulf %1380, %1382 : vector<20x128xf32>
    %1384 = arith.addf %1378, %1383 : vector<20x128xf32>
    %1385 = vector.extract_strided_slice %1130 {offsets = [1, 0, 0], sizes = [1, 20, 128], strides = [1, 1, 1]} : vector<5x20x128xf32> to vector<1x20x128xf32>
    %1386 = vector.shape_cast %1385 : vector<1x20x128xf32> to vector<20x128xf32>
    %1387 = vector.extract_strided_slice %1311 {offsets = [1, 0], sizes = [1, 128], strides = [1, 1]} : vector<5x128xf32> to vector<1x128xf32>
    %1388 = vector.broadcast %1387 : vector<1x128xf32> to vector<20x128xf32>
    %1389 = arith.mulf %1386, %1388 : vector<20x128xf32>
    %1390 = arith.addf %1384, %1389 : vector<20x128xf32>
    %1391 = vector.extract_strided_slice %1130 {offsets = [2, 0, 0], sizes = [1, 20, 128], strides = [1, 1, 1]} : vector<5x20x128xf32> to vector<1x20x128xf32>
    %1392 = vector.shape_cast %1391 : vector<1x20x128xf32> to vector<20x128xf32>
    %1393 = vector.extract_strided_slice %1311 {offsets = [2, 0], sizes = [1, 128], strides = [1, 1]} : vector<5x128xf32> to vector<1x128xf32>
    %1394 = vector.broadcast %1393 : vector<1x128xf32> to vector<20x128xf32>
    %1395 = arith.mulf %1392, %1394 : vector<20x128xf32>
    %1396 = arith.addf %1390, %1395 : vector<20x128xf32>
    %1397 = vector.extract_strided_slice %1130 {offsets = [3, 0, 0], sizes = [1, 20, 128], strides = [1, 1, 1]} : vector<5x20x128xf32> to vector<1x20x128xf32>
    %1398 = vector.shape_cast %1397 : vector<1x20x128xf32> to vector<20x128xf32>
    %1399 = vector.extract_strided_slice %1311 {offsets = [3, 0], sizes = [1, 128], strides = [1, 1]} : vector<5x128xf32> to vector<1x128xf32>
    %1400 = vector.broadcast %1399 : vector<1x128xf32> to vector<20x128xf32>
    %1401 = arith.mulf %1398, %1400 : vector<20x128xf32>
    %1402 = arith.addf %1396, %1401 : vector<20x128xf32>
    %1403 = vector.extract_strided_slice %1130 {offsets = [4, 0, 0], sizes = [1, 20, 128], strides = [1, 1, 1]} : vector<5x20x128xf32> to vector<1x20x128xf32>
    %1404 = vector.shape_cast %1403 : vector<1x20x128xf32> to vector<20x128xf32>
    %1405 = vector.extract_strided_slice %1311 {offsets = [4, 0], sizes = [1, 128], strides = [1, 1]} : vector<5x128xf32> to vector<1x128xf32>
    %1406 = vector.broadcast %1405 : vector<1x128xf32> to vector<20x128xf32>
    %1407 = arith.mulf %1404, %1406 : vector<20x128xf32>
    %1408 = arith.addf %1402, %1407 : vector<20x128xf32>
    %1409 = vector.extract_strided_slice %1408 {offsets = [0, 0], sizes = [15, 128], strides = [1, 1]} : vector<20x128xf32> to vector<15x128xf32>
    %1410 = arith.negf %1409 : vector<15x128xf32>
    %1411 = math.exp %1410 : vector<15x128xf32>
    %cst_132 = arith.constant 1.000000e+00 : f32
    %1412 = vector.broadcast %cst_132 : f32 to vector<15x128xf32>
    %1413 = arith.addf %1412, %1411 : vector<15x128xf32>
    %1414 = arith.divf %1412, %1413 : vector<15x128xf32>
    %1415 = vector.extract_strided_slice %1408 {offsets = [15, 0], sizes = [5, 128], strides = [1, 1]} : vector<20x128xf32> to vector<5x128xf32>
    %1416 = math.tanh %1415 : vector<5x128xf32>
    %1417 = vector.extract_strided_slice %1414 {offsets = [5, 0], sizes = [5, 128], strides = [1, 1]} : vector<15x128xf32> to vector<5x128xf32>
    %1418 = arith.mulf %1417, %1308 : vector<5x128xf32>
    %1419 = vector.extract_strided_slice %1414 {offsets = [0, 0], sizes = [5, 128], strides = [1, 1]} : vector<15x128xf32> to vector<5x128xf32>
    %1420 = arith.mulf %1419, %1416 : vector<5x128xf32>
    %1421 = arith.addf %1418, %1420 : vector<5x128xf32>
    %1422 = vector.extract_strided_slice %1414 {offsets = [10, 0], sizes = [5, 128], strides = [1, 1]} : vector<15x128xf32> to vector<5x128xf32>
    %1423 = math.tanh %1421 : vector<5x128xf32>
    %1424 = arith.mulf %1422, %1423 : vector<5x128xf32>
    %1425 = vector.extract_strided_slice %1132 {offsets = [0, 0, 0], sizes = [1, 5, 128], strides = [1, 1, 1]} : vector<5x5x128xf32> to vector<1x5x128xf32>
    %1426 = vector.shape_cast %1425 : vector<1x5x128xf32> to vector<5x128xf32>
    %1427 = vector.extract_strided_slice %1424 {offsets = [0, 0], sizes = [1, 128], strides = [1, 1]} : vector<5x128xf32> to vector<1x128xf32>
    %1428 = vector.broadcast %1427 : vector<1x128xf32> to vector<5x128xf32>
    %1429 = arith.mulf %1426, %1428 : vector<5x128xf32>
    %1430 = arith.addf %1133, %1429 : vector<5x128xf32>
    %1431 = vector.extract_strided_slice %1132 {offsets = [1, 0, 0], sizes = [1, 5, 128], strides = [1, 1, 1]} : vector<5x5x128xf32> to vector<1x5x128xf32>
    %1432 = vector.shape_cast %1431 : vector<1x5x128xf32> to vector<5x128xf32>
    %1433 = vector.extract_strided_slice %1424 {offsets = [1, 0], sizes = [1, 128], strides = [1, 1]} : vector<5x128xf32> to vector<1x128xf32>
    %1434 = vector.broadcast %1433 : vector<1x128xf32> to vector<5x128xf32>
    %1435 = arith.mulf %1432, %1434 : vector<5x128xf32>
    %1436 = arith.addf %1430, %1435 : vector<5x128xf32>
    %1437 = vector.extract_strided_slice %1132 {offsets = [2, 0, 0], sizes = [1, 5, 128], strides = [1, 1, 1]} : vector<5x5x128xf32> to vector<1x5x128xf32>
    %1438 = vector.shape_cast %1437 : vector<1x5x128xf32> to vector<5x128xf32>
    %1439 = vector.extract_strided_slice %1424 {offsets = [2, 0], sizes = [1, 128], strides = [1, 1]} : vector<5x128xf32> to vector<1x128xf32>
    %1440 = vector.broadcast %1439 : vector<1x128xf32> to vector<5x128xf32>
    %1441 = arith.mulf %1438, %1440 : vector<5x128xf32>
    %1442 = arith.addf %1436, %1441 : vector<5x128xf32>
    %1443 = vector.extract_strided_slice %1132 {offsets = [3, 0, 0], sizes = [1, 5, 128], strides = [1, 1, 1]} : vector<5x5x128xf32> to vector<1x5x128xf32>
    %1444 = vector.shape_cast %1443 : vector<1x5x128xf32> to vector<5x128xf32>
    %1445 = vector.extract_strided_slice %1424 {offsets = [3, 0], sizes = [1, 128], strides = [1, 1]} : vector<5x128xf32> to vector<1x128xf32>
    %1446 = vector.broadcast %1445 : vector<1x128xf32> to vector<5x128xf32>
    %1447 = arith.mulf %1444, %1446 : vector<5x128xf32>
    %1448 = arith.addf %1442, %1447 : vector<5x128xf32>
    %1449 = vector.extract_strided_slice %1132 {offsets = [4, 0, 0], sizes = [1, 5, 128], strides = [1, 1, 1]} : vector<5x5x128xf32> to vector<1x5x128xf32>
    %1450 = vector.shape_cast %1449 : vector<1x5x128xf32> to vector<5x128xf32>
    %1451 = vector.extract_strided_slice %1424 {offsets = [4, 0], sizes = [1, 128], strides = [1, 1]} : vector<5x128xf32> to vector<1x128xf32>
    %1452 = vector.broadcast %1451 : vector<1x128xf32> to vector<5x128xf32>
    %1453 = arith.mulf %1450, %1452 : vector<5x128xf32>
    %1454 = arith.addf %1448, %1453 : vector<5x128xf32>
    %c2_133 = arith.constant 2 : index
    %c0_134 = arith.constant 0 : index
    %c0_135 = arith.constant 0 : index
    %1455 = vector.load %arg23[%c2_133, %c0_134, %c0_135] : memref<12x5x128xf32, #tpu.memory_space<vmem>>, vector<1x5x128xf32>
    %1456 = vector.shape_cast %1455 : vector<1x5x128xf32> to vector<5x128xf32>
    %1457 = vector.shape_cast %1454 : vector<5x128xf32> to vector<1x5x128xf32>
    tpu.vector_store %arg23[%c2_133, %c0_134, %c0_135], %1457 {strides = array<i32>} : memref<12x5x128xf32, #tpu.memory_space<vmem>>, vector<1x5x128xf32>,
    %1458 = vector.extract_strided_slice %1454 {offsets = [2, 0], sizes = [2, 128], strides = [1, 1]} : vector<5x128xf32> to vector<2x128xf32>
    %1459 = math.exp %1458 : vector<2x128xf32>
    %1460 = vector.extract_strided_slice %1454 {offsets = [4, 0], sizes = [1, 128], strides = [1, 1]} : vector<5x128xf32> to vector<1x128xf32>
    %1461 = math.tanh %1460 : vector<1x128xf32>
    %c2_136 = arith.constant 2 : index
    %c0_137 = arith.constant 0 : index
    %c0_138 = arith.constant 0 : index
    %1462 = vector.load %arg3[%c2_136, %c0_137, %c0_138] : memref<12x2x128xf32, #tpu.memory_space<vmem>>, vector<1x2x128xf32>
    %1463 = vector.shape_cast %1462 : vector<1x2x128xf32> to vector<2x128xf32>
    %1464 = vector.extract_strided_slice %1454 {offsets = [0, 0], sizes = [1, 128], strides = [1, 1]} : vector<5x128xf32> to vector<1x128xf32>
    %1465 = vector.extract_strided_slice %1459 {offsets = [0, 0], sizes = [1, 128], strides = [1, 1]} : vector<2x128xf32> to vector<1x128xf32>
    %1466 = vector.extract_strided_slice %1463 {offsets = [0, 0], sizes = [1, 128], strides = [1, 1]} : vector<2x128xf32> to vector<1x128xf32>
    %1467 = arith.mulf %1465, %1466 : vector<1x128xf32>
    %1468 = arith.addf %1464, %1467 : vector<1x128xf32>
    %1469 = vector.extract_strided_slice %1454 {offsets = [1, 0], sizes = [1, 128], strides = [1, 1]} : vector<5x128xf32> to vector<1x128xf32>
    %1470 = vector.extract_strided_slice %1459 {offsets = [1, 0], sizes = [1, 128], strides = [1, 1]} : vector<2x128xf32> to vector<1x128xf32>
    %1471 = vector.extract_strided_slice %1463 {offsets = [0, 0], sizes = [1, 128], strides = [1, 1]} : vector<2x128xf32> to vector<1x128xf32>
    %1472 = arith.mulf %1461, %1471 : vector<1x128xf32>
    %1473 = arith.mulf %1461, %1461 : vector<1x128xf32>
    %cst_139 = arith.constant 1.000000e+00 : f32
    %1474 = vector.broadcast %cst_139 : f32 to vector<1x128xf32>
    %1475 = arith.subf %1474, %1473 : vector<1x128xf32>
    %1476 = math.sqrt %1475 : vector<1x128xf32>
    %1477 = vector.extract_strided_slice %1463 {offsets = [1, 0], sizes = [1, 128], strides = [1, 1]} : vector<2x128xf32> to vector<1x128xf32>
    %1478 = arith.mulf %1476, %1477 : vector<1x128xf32>
    %1479 = arith.addf %1472, %1478 : vector<1x128xf32>
    %1480 = arith.mulf %1470, %1479 : vector<1x128xf32>
    %1481 = arith.addf %1469, %1480 : vector<1x128xf32>
    %1482 = tpu.concatenate %1468, %1481 in 0 : vector<1x128xf32>, vector<1x128xf32> -> vector<2x128xf32>
    %c3_140 = arith.constant 3 : index
    %c0_141 = arith.constant 0 : index
    %c0_142 = arith.constant 0 : index
    %1483 = vector.load %arg24[%c3_140, %c0_141, %c0_142] : memref<13x2x128xf32, #tpu.memory_space<vmem>>, vector<1x2x128xf32>
    %1484 = vector.shape_cast %1483 : vector<1x2x128xf32> to vector<2x128xf32>
    %1485 = vector.shape_cast %1482 : vector<2x128xf32> to vector<1x2x128xf32>
    tpu.vector_store %arg24[%c3_140, %c0_141, %c0_142], %1485 {strides = array<i32>} : memref<13x2x128xf32, #tpu.memory_space<vmem>>, vector<1x2x128xf32>,
    %1486 = vector.broadcast %1468 : vector<1x128xf32> to vector<20x128xf32>
    %1487 = arith.mulf %1165, %1486 : vector<20x128xf32>
    %1488 = arith.addf %1163, %1487 : vector<20x128xf32>
    %1489 = vector.broadcast %1481 : vector<1x128xf32> to vector<20x128xf32>
    %1490 = arith.mulf %1167, %1489 : vector<20x128xf32>
    %1491 = arith.addf %1488, %1490 : vector<20x128xf32>
    %1492 = vector.extract_strided_slice %1130 {offsets = [0, 0, 0], sizes = [1, 20, 128], strides = [1, 1, 1]} : vector<5x20x128xf32> to vector<1x20x128xf32>
    %1493 = vector.shape_cast %1492 : vector<1x20x128xf32> to vector<20x128xf32>
    %1494 = vector.extract_strided_slice %1424 {offsets = [0, 0], sizes = [1, 128], strides = [1, 1]} : vector<5x128xf32> to vector<1x128xf32>
    %1495 = vector.broadcast %1494 : vector<1x128xf32> to vector<20x128xf32>
    %1496 = arith.mulf %1493, %1495 : vector<20x128xf32>
    %1497 = arith.addf %1491, %1496 : vector<20x128xf32>
    %1498 = vector.extract_strided_slice %1130 {offsets = [1, 0, 0], sizes = [1, 20, 128], strides = [1, 1, 1]} : vector<5x20x128xf32> to vector<1x20x128xf32>
    %1499 = vector.shape_cast %1498 : vector<1x20x128xf32> to vector<20x128xf32>
    %1500 = vector.extract_strided_slice %1424 {offsets = [1, 0], sizes = [1, 128], strides = [1, 1]} : vector<5x128xf32> to vector<1x128xf32>
    %1501 = vector.broadcast %1500 : vector<1x128xf32> to vector<20x128xf32>
    %1502 = arith.mulf %1499, %1501 : vector<20x128xf32>
    %1503 = arith.addf %1497, %1502 : vector<20x128xf32>
    %1504 = vector.extract_strided_slice %1130 {offsets = [2, 0, 0], sizes = [1, 20, 128], strides = [1, 1, 1]} : vector<5x20x128xf32> to vector<1x20x128xf32>
    %1505 = vector.shape_cast %1504 : vector<1x20x128xf32> to vector<20x128xf32>
    %1506 = vector.extract_strided_slice %1424 {offsets = [2, 0], sizes = [1, 128], strides = [1, 1]} : vector<5x128xf32> to vector<1x128xf32>
    %1507 = vector.broadcast %1506 : vector<1x128xf32> to vector<20x128xf32>
    %1508 = arith.mulf %1505, %1507 : vector<20x128xf32>
    %1509 = arith.addf %1503, %1508 : vector<20x128xf32>
    %1510 = vector.extract_strided_slice %1130 {offsets = [3, 0, 0], sizes = [1, 20, 128], strides = [1, 1, 1]} : vector<5x20x128xf32> to vector<1x20x128xf32>
    %1511 = vector.shape_cast %1510 : vector<1x20x128xf32> to vector<20x128xf32>
    %1512 = vector.extract_strided_slice %1424 {offsets = [3, 0], sizes = [1, 128], strides = [1, 1]} : vector<5x128xf32> to vector<1x128xf32>
    %1513 = vector.broadcast %1512 : vector<1x128xf32> to vector<20x128xf32>
    %1514 = arith.mulf %1511, %1513 : vector<20x128xf32>
    %1515 = arith.addf %1509, %1514 : vector<20x128xf32>
    %1516 = vector.extract_strided_slice %1130 {offsets = [4, 0, 0], sizes = [1, 20, 128], strides = [1, 1, 1]} : vector<5x20x128xf32> to vector<1x20x128xf32>
    %1517 = vector.shape_cast %1516 : vector<1x20x128xf32> to vector<20x128xf32>
    %1518 = vector.extract_strided_slice %1424 {offsets = [4, 0], sizes = [1, 128], strides = [1, 1]} : vector<5x128xf32> to vector<1x128xf32>
    %1519 = vector.broadcast %1518 : vector<1x128xf32> to vector<20x128xf32>
    %1520 = arith.mulf %1517, %1519 : vector<20x128xf32>
    %1521 = arith.addf %1515, %1520 : vector<20x128xf32>
    %1522 = vector.extract_strided_slice %1521 {offsets = [0, 0], sizes = [15, 128], strides = [1, 1]} : vector<20x128xf32> to vector<15x128xf32>
    %1523 = arith.negf %1522 : vector<15x128xf32>
    %1524 = math.exp %1523 : vector<15x128xf32>
    %cst_143 = arith.constant 1.000000e+00 : f32
    %1525 = vector.broadcast %cst_143 : f32 to vector<15x128xf32>
    %1526 = arith.addf %1525, %1524 : vector<15x128xf32>
    %1527 = arith.divf %1525, %1526 : vector<15x128xf32>
    %1528 = vector.extract_strided_slice %1521 {offsets = [15, 0], sizes = [5, 128], strides = [1, 1]} : vector<20x128xf32> to vector<5x128xf32>
    %1529 = math.tanh %1528 : vector<5x128xf32>
    %1530 = vector.extract_strided_slice %1527 {offsets = [5, 0], sizes = [5, 128], strides = [1, 1]} : vector<15x128xf32> to vector<5x128xf32>
    %1531 = arith.mulf %1530, %1421 : vector<5x128xf32>
    %1532 = vector.extract_strided_slice %1527 {offsets = [0, 0], sizes = [5, 128], strides = [1, 1]} : vector<15x128xf32> to vector<5x128xf32>
    %1533 = arith.mulf %1532, %1529 : vector<5x128xf32>
    %1534 = arith.addf %1531, %1533 : vector<5x128xf32>
    %1535 = vector.extract_strided_slice %1527 {offsets = [10, 0], sizes = [5, 128], strides = [1, 1]} : vector<15x128xf32> to vector<5x128xf32>
    %1536 = math.tanh %1534 : vector<5x128xf32>
    %1537 = arith.mulf %1535, %1536 : vector<5x128xf32>
    %1538 = vector.extract_strided_slice %1132 {offsets = [0, 0, 0], sizes = [1, 5, 128], strides = [1, 1, 1]} : vector<5x5x128xf32> to vector<1x5x128xf32>
    %1539 = vector.shape_cast %1538 : vector<1x5x128xf32> to vector<5x128xf32>
    %1540 = vector.extract_strided_slice %1537 {offsets = [0, 0], sizes = [1, 128], strides = [1, 1]} : vector<5x128xf32> to vector<1x128xf32>
    %1541 = vector.broadcast %1540 : vector<1x128xf32> to vector<5x128xf32>
    %1542 = arith.mulf %1539, %1541 : vector<5x128xf32>
    %1543 = arith.addf %1133, %1542 : vector<5x128xf32>
    %1544 = vector.extract_strided_slice %1132 {offsets = [1, 0, 0], sizes = [1, 5, 128], strides = [1, 1, 1]} : vector<5x5x128xf32> to vector<1x5x128xf32>
    %1545 = vector.shape_cast %1544 : vector<1x5x128xf32> to vector<5x128xf32>
    %1546 = vector.extract_strided_slice %1537 {offsets = [1, 0], sizes = [1, 128], strides = [1, 1]} : vector<5x128xf32> to vector<1x128xf32>
    %1547 = vector.broadcast %1546 : vector<1x128xf32> to vector<5x128xf32>
    %1548 = arith.mulf %1545, %1547 : vector<5x128xf32>
    %1549 = arith.addf %1543, %1548 : vector<5x128xf32>
    %1550 = vector.extract_strided_slice %1132 {offsets = [2, 0, 0], sizes = [1, 5, 128], strides = [1, 1, 1]} : vector<5x5x128xf32> to vector<1x5x128xf32>
    %1551 = vector.shape_cast %1550 : vector<1x5x128xf32> to vector<5x128xf32>
    %1552 = vector.extract_strided_slice %1537 {offsets = [2, 0], sizes = [1, 128], strides = [1, 1]} : vector<5x128xf32> to vector<1x128xf32>
    %1553 = vector.broadcast %1552 : vector<1x128xf32> to vector<5x128xf32>
    %1554 = arith.mulf %1551, %1553 : vector<5x128xf32>
    %1555 = arith.addf %1549, %1554 : vector<5x128xf32>
    %1556 = vector.extract_strided_slice %1132 {offsets = [3, 0, 0], sizes = [1, 5, 128], strides = [1, 1, 1]} : vector<5x5x128xf32> to vector<1x5x128xf32>
    %1557 = vector.shape_cast %1556 : vector<1x5x128xf32> to vector<5x128xf32>
    %1558 = vector.extract_strided_slice %1537 {offsets = [3, 0], sizes = [1, 128], strides = [1, 1]} : vector<5x128xf32> to vector<1x128xf32>
    %1559 = vector.broadcast %1558 : vector<1x128xf32> to vector<5x128xf32>
    %1560 = arith.mulf %1557, %1559 : vector<5x128xf32>
    %1561 = arith.addf %1555, %1560 : vector<5x128xf32>
    %1562 = vector.extract_strided_slice %1132 {offsets = [4, 0, 0], sizes = [1, 5, 128], strides = [1, 1, 1]} : vector<5x5x128xf32> to vector<1x5x128xf32>
    %1563 = vector.shape_cast %1562 : vector<1x5x128xf32> to vector<5x128xf32>
    %1564 = vector.extract_strided_slice %1537 {offsets = [4, 0], sizes = [1, 128], strides = [1, 1]} : vector<5x128xf32> to vector<1x128xf32>
    %1565 = vector.broadcast %1564 : vector<1x128xf32> to vector<5x128xf32>
    %1566 = arith.mulf %1563, %1565 : vector<5x128xf32>
    %1567 = arith.addf %1561, %1566 : vector<5x128xf32>
    %c3_144 = arith.constant 3 : index
    %c0_145 = arith.constant 0 : index
    %c0_146 = arith.constant 0 : index
    %1568 = vector.load %arg23[%c3_144, %c0_145, %c0_146] : memref<12x5x128xf32, #tpu.memory_space<vmem>>, vector<1x5x128xf32>
    %1569 = vector.shape_cast %1568 : vector<1x5x128xf32> to vector<5x128xf32>
    %1570 = vector.shape_cast %1567 : vector<5x128xf32> to vector<1x5x128xf32>
    tpu.vector_store %arg23[%c3_144, %c0_145, %c0_146], %1570 {strides = array<i32>} : memref<12x5x128xf32, #tpu.memory_space<vmem>>, vector<1x5x128xf32>,
    %1571 = vector.extract_strided_slice %1567 {offsets = [2, 0], sizes = [2, 128], strides = [1, 1]} : vector<5x128xf32> to vector<2x128xf32>
    %1572 = math.exp %1571 : vector<2x128xf32>
    %1573 = vector.extract_strided_slice %1567 {offsets = [4, 0], sizes = [1, 128], strides = [1, 1]} : vector<5x128xf32> to vector<1x128xf32>
    %1574 = math.tanh %1573 : vector<1x128xf32>
    %c3_147 = arith.constant 3 : index
    %c0_148 = arith.constant 0 : index
    %c0_149 = arith.constant 0 : index
    %1575 = vector.load %arg3[%c3_147, %c0_148, %c0_149] : memref<12x2x128xf32, #tpu.memory_space<vmem>>, vector<1x2x128xf32>
    %1576 = vector.shape_cast %1575 : vector<1x2x128xf32> to vector<2x128xf32>
    %1577 = vector.extract_strided_slice %1567 {offsets = [0, 0], sizes = [1, 128], strides = [1, 1]} : vector<5x128xf32> to vector<1x128xf32>
    %1578 = vector.extract_strided_slice %1572 {offsets = [0, 0], sizes = [1, 128], strides = [1, 1]} : vector<2x128xf32> to vector<1x128xf32>
    %1579 = vector.extract_strided_slice %1576 {offsets = [0, 0], sizes = [1, 128], strides = [1, 1]} : vector<2x128xf32> to vector<1x128xf32>
    %1580 = arith.mulf %1578, %1579 : vector<1x128xf32>
    %1581 = arith.addf %1577, %1580 : vector<1x128xf32>
    %1582 = vector.extract_strided_slice %1567 {offsets = [1, 0], sizes = [1, 128], strides = [1, 1]} : vector<5x128xf32> to vector<1x128xf32>
    %1583 = vector.extract_strided_slice %1572 {offsets = [1, 0], sizes = [1, 128], strides = [1, 1]} : vector<2x128xf32> to vector<1x128xf32>
    %1584 = vector.extract_strided_slice %1576 {offsets = [0, 0], sizes = [1, 128], strides = [1, 1]} : vector<2x128xf32> to vector<1x128xf32>
    %1585 = arith.mulf %1574, %1584 : vector<1x128xf32>
    %1586 = arith.mulf %1574, %1574 : vector<1x128xf32>
    %cst_150 = arith.constant 1.000000e+00 : f32
    %1587 = vector.broadcast %cst_150 : f32 to vector<1x128xf32>
    %1588 = arith.subf %1587, %1586 : vector<1x128xf32>
    %1589 = math.sqrt %1588 : vector<1x128xf32>
    %1590 = vector.extract_strided_slice %1576 {offsets = [1, 0], sizes = [1, 128], strides = [1, 1]} : vector<2x128xf32> to vector<1x128xf32>
    %1591 = arith.mulf %1589, %1590 : vector<1x128xf32>
    %1592 = arith.addf %1585, %1591 : vector<1x128xf32>
    %1593 = arith.mulf %1583, %1592 : vector<1x128xf32>
    %1594 = arith.addf %1582, %1593 : vector<1x128xf32>
    %1595 = tpu.concatenate %1581, %1594 in 0 : vector<1x128xf32>, vector<1x128xf32> -> vector<2x128xf32>
    %c4_151 = arith.constant 4 : index
    %c0_152 = arith.constant 0 : index
    %c0_153 = arith.constant 0 : index
    %1596 = vector.load %arg24[%c4_151, %c0_152, %c0_153] : memref<13x2x128xf32, #tpu.memory_space<vmem>>, vector<1x2x128xf32>
    %1597 = vector.shape_cast %1596 : vector<1x2x128xf32> to vector<2x128xf32>
    %1598 = vector.shape_cast %1595 : vector<2x128xf32> to vector<1x2x128xf32>
    tpu.vector_store %arg24[%c4_151, %c0_152, %c0_153], %1598 {strides = array<i32>} : memref<13x2x128xf32, #tpu.memory_space<vmem>>, vector<1x2x128xf32>,
    %1599 = vector.broadcast %1581 : vector<1x128xf32> to vector<20x128xf32>
    %1600 = arith.mulf %1165, %1599 : vector<20x128xf32>
    %1601 = arith.addf %1163, %1600 : vector<20x128xf32>
    %1602 = vector.broadcast %1594 : vector<1x128xf32> to vector<20x128xf32>
    %1603 = arith.mulf %1167, %1602 : vector<20x128xf32>
    %1604 = arith.addf %1601, %1603 : vector<20x128xf32>
    %1605 = vector.extract_strided_slice %1130 {offsets = [0, 0, 0], sizes = [1, 20, 128], strides = [1, 1, 1]} : vector<5x20x128xf32> to vector<1x20x128xf32>
    %1606 = vector.shape_cast %1605 : vector<1x20x128xf32> to vector<20x128xf32>
    %1607 = vector.extract_strided_slice %1537 {offsets = [0, 0], sizes = [1, 128], strides = [1, 1]} : vector<5x128xf32> to vector<1x128xf32>
    %1608 = vector.broadcast %1607 : vector<1x128xf32> to vector<20x128xf32>
    %1609 = arith.mulf %1606, %1608 : vector<20x128xf32>
    %1610 = arith.addf %1604, %1609 : vector<20x128xf32>
    %1611 = vector.extract_strided_slice %1130 {offsets = [1, 0, 0], sizes = [1, 20, 128], strides = [1, 1, 1]} : vector<5x20x128xf32> to vector<1x20x128xf32>
    %1612 = vector.shape_cast %1611 : vector<1x20x128xf32> to vector<20x128xf32>
    %1613 = vector.extract_strided_slice %1537 {offsets = [1, 0], sizes = [1, 128], strides = [1, 1]} : vector<5x128xf32> to vector<1x128xf32>
    %1614 = vector.broadcast %1613 : vector<1x128xf32> to vector<20x128xf32>
    %1615 = arith.mulf %1612, %1614 : vector<20x128xf32>
    %1616 = arith.addf %1610, %1615 : vector<20x128xf32>
    %1617 = vector.extract_strided_slice %1130 {offsets = [2, 0, 0], sizes = [1, 20, 128], strides = [1, 1, 1]} : vector<5x20x128xf32> to vector<1x20x128xf32>
    %1618 = vector.shape_cast %1617 : vector<1x20x128xf32> to vector<20x128xf32>
    %1619 = vector.extract_strided_slice %1537 {offsets = [2, 0], sizes = [1, 128], strides = [1, 1]} : vector<5x128xf32> to vector<1x128xf32>
    %1620 = vector.broadcast %1619 : vector<1x128xf32> to vector<20x128xf32>
    %1621 = arith.mulf %1618, %1620 : vector<20x128xf32>
    %1622 = arith.addf %1616, %1621 : vector<20x128xf32>
    %1623 = vector.extract_strided_slice %1130 {offsets = [3, 0, 0], sizes = [1, 20, 128], strides = [1, 1, 1]} : vector<5x20x128xf32> to vector<1x20x128xf32>
    %1624 = vector.shape_cast %1623 : vector<1x20x128xf32> to vector<20x128xf32>
    %1625 = vector.extract_strided_slice %1537 {offsets = [3, 0], sizes = [1, 128], strides = [1, 1]} : vector<5x128xf32> to vector<1x128xf32>
    %1626 = vector.broadcast %1625 : vector<1x128xf32> to vector<20x128xf32>
    %1627 = arith.mulf %1624, %1626 : vector<20x128xf32>
    %1628 = arith.addf %1622, %1627 : vector<20x128xf32>
    %1629 = vector.extract_strided_slice %1130 {offsets = [4, 0, 0], sizes = [1, 20, 128], strides = [1, 1, 1]} : vector<5x20x128xf32> to vector<1x20x128xf32>
    %1630 = vector.shape_cast %1629 : vector<1x20x128xf32> to vector<20x128xf32>
    %1631 = vector.extract_strided_slice %1537 {offsets = [4, 0], sizes = [1, 128], strides = [1, 1]} : vector<5x128xf32> to vector<1x128xf32>
    %1632 = vector.broadcast %1631 : vector<1x128xf32> to vector<20x128xf32>
    %1633 = arith.mulf %1630, %1632 : vector<20x128xf32>
    %1634 = arith.addf %1628, %1633 : vector<20x128xf32>
    %1635 = vector.extract_strided_slice %1634 {offsets = [0, 0], sizes = [15, 128], strides = [1, 1]} : vector<20x128xf32> to vector<15x128xf32>
    %1636 = arith.negf %1635 : vector<15x128xf32>
    %1637 = math.exp %1636 : vector<15x128xf32>
    %cst_154 = arith.constant 1.000000e+00 : f32
    %1638 = vector.broadcast %cst_154 : f32 to vector<15x128xf32>
    %1639 = arith.addf %1638, %1637 : vector<15x128xf32>
    %1640 = arith.divf %1638, %1639 : vector<15x128xf32>
    %1641 = vector.extract_strided_slice %1634 {offsets = [15, 0], sizes = [5, 128], strides = [1, 1]} : vector<20x128xf32> to vector<5x128xf32>
    %1642 = math.tanh %1641 : vector<5x128xf32>
    %1643 = vector.extract_strided_slice %1640 {offsets = [5, 0], sizes = [5, 128], strides = [1, 1]} : vector<15x128xf32> to vector<5x128xf32>
    %1644 = arith.mulf %1643, %1534 : vector<5x128xf32>
    %1645 = vector.extract_strided_slice %1640 {offsets = [0, 0], sizes = [5, 128], strides = [1, 1]} : vector<15x128xf32> to vector<5x128xf32>
    %1646 = arith.mulf %1645, %1642 : vector<5x128xf32>
    %1647 = arith.addf %1644, %1646 : vector<5x128xf32>
    %1648 = vector.extract_strided_slice %1640 {offsets = [10, 0], sizes = [5, 128], strides = [1, 1]} : vector<15x128xf32> to vector<5x128xf32>
    %1649 = math.tanh %1647 : vector<5x128xf32>
    %1650 = arith.mulf %1648, %1649 : vector<5x128xf32>
    %1651 = vector.extract_strided_slice %1132 {offsets = [0, 0, 0], sizes = [1, 5, 128], strides = [1, 1, 1]} : vector<5x5x128xf32> to vector<1x5x128xf32>
    %1652 = vector.shape_cast %1651 : vector<1x5x128xf32> to vector<5x128xf32>
    %1653 = vector.extract_strided_slice %1650 {offsets = [0, 0], sizes = [1, 128], strides = [1, 1]} : vector<5x128xf32> to vector<1x128xf32>
    %1654 = vector.broadcast %1653 : vector<1x128xf32> to vector<5x128xf32>
    %1655 = arith.mulf %1652, %1654 : vector<5x128xf32>
    %1656 = arith.addf %1133, %1655 : vector<5x128xf32>
    %1657 = vector.extract_strided_slice %1132 {offsets = [1, 0, 0], sizes = [1, 5, 128], strides = [1, 1, 1]} : vector<5x5x128xf32> to vector<1x5x128xf32>
    %1658 = vector.shape_cast %1657 : vector<1x5x128xf32> to vector<5x128xf32>
    %1659 = vector.extract_strided_slice %1650 {offsets = [1, 0], sizes = [1, 128], strides = [1, 1]} : vector<5x128xf32> to vector<1x128xf32>
    %1660 = vector.broadcast %1659 : vector<1x128xf32> to vector<5x128xf32>
    %1661 = arith.mulf %1658, %1660 : vector<5x128xf32>
    %1662 = arith.addf %1656, %1661 : vector<5x128xf32>
    %1663 = vector.extract_strided_slice %1132 {offsets = [2, 0, 0], sizes = [1, 5, 128], strides = [1, 1, 1]} : vector<5x5x128xf32> to vector<1x5x128xf32>
    %1664 = vector.shape_cast %1663 : vector<1x5x128xf32> to vector<5x128xf32>
    %1665 = vector.extract_strided_slice %1650 {offsets = [2, 0], sizes = [1, 128], strides = [1, 1]} : vector<5x128xf32> to vector<1x128xf32>
    %1666 = vector.broadcast %1665 : vector<1x128xf32> to vector<5x128xf32>
    %1667 = arith.mulf %1664, %1666 : vector<5x128xf32>
    %1668 = arith.addf %1662, %1667 : vector<5x128xf32>
    %1669 = vector.extract_strided_slice %1132 {offsets = [3, 0, 0], sizes = [1, 5, 128], strides = [1, 1, 1]} : vector<5x5x128xf32> to vector<1x5x128xf32>
    %1670 = vector.shape_cast %1669 : vector<1x5x128xf32> to vector<5x128xf32>
    %1671 = vector.extract_strided_slice %1650 {offsets = [3, 0], sizes = [1, 128], strides = [1, 1]} : vector<5x128xf32> to vector<1x128xf32>
    %1672 = vector.broadcast %1671 : vector<1x128xf32> to vector<5x128xf32>
    %1673 = arith.mulf %1670, %1672 : vector<5x128xf32>
    %1674 = arith.addf %1668, %1673 : vector<5x128xf32>
    %1675 = vector.extract_strided_slice %1132 {offsets = [4, 0, 0], sizes = [1, 5, 128], strides = [1, 1, 1]} : vector<5x5x128xf32> to vector<1x5x128xf32>
    %1676 = vector.shape_cast %1675 : vector<1x5x128xf32> to vector<5x128xf32>
    %1677 = vector.extract_strided_slice %1650 {offsets = [4, 0], sizes = [1, 128], strides = [1, 1]} : vector<5x128xf32> to vector<1x128xf32>
    %1678 = vector.broadcast %1677 : vector<1x128xf32> to vector<5x128xf32>
    %1679 = arith.mulf %1676, %1678 : vector<5x128xf32>
    %1680 = arith.addf %1674, %1679 : vector<5x128xf32>
    %c4_155 = arith.constant 4 : index
    %c0_156 = arith.constant 0 : index
    %c0_157 = arith.constant 0 : index
    %1681 = vector.load %arg23[%c4_155, %c0_156, %c0_157] : memref<12x5x128xf32, #tpu.memory_space<vmem>>, vector<1x5x128xf32>
    %1682 = vector.shape_cast %1681 : vector<1x5x128xf32> to vector<5x128xf32>
    %1683 = vector.shape_cast %1680 : vector<5x128xf32> to vector<1x5x128xf32>
    tpu.vector_store %arg23[%c4_155, %c0_156, %c0_157], %1683 {strides = array<i32>} : memref<12x5x128xf32, #tpu.memory_space<vmem>>, vector<1x5x128xf32>,
    %1684 = vector.extract_strided_slice %1680 {offsets = [2, 0], sizes = [2, 128], strides = [1, 1]} : vector<5x128xf32> to vector<2x128xf32>
    %1685 = math.exp %1684 : vector<2x128xf32>
    %1686 = vector.extract_strided_slice %1680 {offsets = [4, 0], sizes = [1, 128], strides = [1, 1]} : vector<5x128xf32> to vector<1x128xf32>
    %1687 = math.tanh %1686 : vector<1x128xf32>
    %c4_158 = arith.constant 4 : index
    %c0_159 = arith.constant 0 : index
    %c0_160 = arith.constant 0 : index
    %1688 = vector.load %arg3[%c4_158, %c0_159, %c0_160] : memref<12x2x128xf32, #tpu.memory_space<vmem>>, vector<1x2x128xf32>
    %1689 = vector.shape_cast %1688 : vector<1x2x128xf32> to vector<2x128xf32>
    %1690 = vector.extract_strided_slice %1680 {offsets = [0, 0], sizes = [1, 128], strides = [1, 1]} : vector<5x128xf32> to vector<1x128xf32>
    %1691 = vector.extract_strided_slice %1685 {offsets = [0, 0], sizes = [1, 128], strides = [1, 1]} : vector<2x128xf32> to vector<1x128xf32>
    %1692 = vector.extract_strided_slice %1689 {offsets = [0, 0], sizes = [1, 128], strides = [1, 1]} : vector<2x128xf32> to vector<1x128xf32>
    %1693 = arith.mulf %1691, %1692 : vector<1x128xf32>
    %1694 = arith.addf %1690, %1693 : vector<1x128xf32>
    %1695 = vector.extract_strided_slice %1680 {offsets = [1, 0], sizes = [1, 128], strides = [1, 1]} : vector<5x128xf32> to vector<1x128xf32>
    %1696 = vector.extract_strided_slice %1685 {offsets = [1, 0], sizes = [1, 128], strides = [1, 1]} : vector<2x128xf32> to vector<1x128xf32>
    %1697 = vector.extract_strided_slice %1689 {offsets = [0, 0], sizes = [1, 128], strides = [1, 1]} : vector<2x128xf32> to vector<1x128xf32>
    %1698 = arith.mulf %1687, %1697 : vector<1x128xf32>
    %1699 = arith.mulf %1687, %1687 : vector<1x128xf32>
    %cst_161 = arith.constant 1.000000e+00 : f32
    %1700 = vector.broadcast %cst_161 : f32 to vector<1x128xf32>
    %1701 = arith.subf %1700, %1699 : vector<1x128xf32>
    %1702 = math.sqrt %1701 : vector<1x128xf32>
    %1703 = vector.extract_strided_slice %1689 {offsets = [1, 0], sizes = [1, 128], strides = [1, 1]} : vector<2x128xf32> to vector<1x128xf32>
    %1704 = arith.mulf %1702, %1703 : vector<1x128xf32>
    %1705 = arith.addf %1698, %1704 : vector<1x128xf32>
    %1706 = arith.mulf %1696, %1705 : vector<1x128xf32>
    %1707 = arith.addf %1695, %1706 : vector<1x128xf32>
    %1708 = tpu.concatenate %1694, %1707 in 0 : vector<1x128xf32>, vector<1x128xf32> -> vector<2x128xf32>
    %c5_162 = arith.constant 5 : index
    %c0_163 = arith.constant 0 : index
    %c0_164 = arith.constant 0 : index
    %1709 = vector.load %arg24[%c5_162, %c0_163, %c0_164] : memref<13x2x128xf32, #tpu.memory_space<vmem>>, vector<1x2x128xf32>
    %1710 = vector.shape_cast %1709 : vector<1x2x128xf32> to vector<2x128xf32>
    %1711 = vector.shape_cast %1708 : vector<2x128xf32> to vector<1x2x128xf32>
    tpu.vector_store %arg24[%c5_162, %c0_163, %c0_164], %1711 {strides = array<i32>} : memref<13x2x128xf32, #tpu.memory_space<vmem>>, vector<1x2x128xf32>,
    %1712 = vector.broadcast %1694 : vector<1x128xf32> to vector<20x128xf32>
    %1713 = arith.mulf %1165, %1712 : vector<20x128xf32>
    %1714 = arith.addf %1163, %1713 : vector<20x128xf32>
    %1715 = vector.broadcast %1707 : vector<1x128xf32> to vector<20x128xf32>
    %1716 = arith.mulf %1167, %1715 : vector<20x128xf32>
    %1717 = arith.addf %1714, %1716 : vector<20x128xf32>
    %1718 = vector.extract_strided_slice %1130 {offsets = [0, 0, 0], sizes = [1, 20, 128], strides = [1, 1, 1]} : vector<5x20x128xf32> to vector<1x20x128xf32>
    %1719 = vector.shape_cast %1718 : vector<1x20x128xf32> to vector<20x128xf32>
    %1720 = vector.extract_strided_slice %1650 {offsets = [0, 0], sizes = [1, 128], strides = [1, 1]} : vector<5x128xf32> to vector<1x128xf32>
    %1721 = vector.broadcast %1720 : vector<1x128xf32> to vector<20x128xf32>
    %1722 = arith.mulf %1719, %1721 : vector<20x128xf32>
    %1723 = arith.addf %1717, %1722 : vector<20x128xf32>
    %1724 = vector.extract_strided_slice %1130 {offsets = [1, 0, 0], sizes = [1, 20, 128], strides = [1, 1, 1]} : vector<5x20x128xf32> to vector<1x20x128xf32>
    %1725 = vector.shape_cast %1724 : vector<1x20x128xf32> to vector<20x128xf32>
    %1726 = vector.extract_strided_slice %1650 {offsets = [1, 0], sizes = [1, 128], strides = [1, 1]} : vector<5x128xf32> to vector<1x128xf32>
    %1727 = vector.broadcast %1726 : vector<1x128xf32> to vector<20x128xf32>
    %1728 = arith.mulf %1725, %1727 : vector<20x128xf32>
    %1729 = arith.addf %1723, %1728 : vector<20x128xf32>
    %1730 = vector.extract_strided_slice %1130 {offsets = [2, 0, 0], sizes = [1, 20, 128], strides = [1, 1, 1]} : vector<5x20x128xf32> to vector<1x20x128xf32>
    %1731 = vector.shape_cast %1730 : vector<1x20x128xf32> to vector<20x128xf32>
    %1732 = vector.extract_strided_slice %1650 {offsets = [2, 0], sizes = [1, 128], strides = [1, 1]} : vector<5x128xf32> to vector<1x128xf32>
    %1733 = vector.broadcast %1732 : vector<1x128xf32> to vector<20x128xf32>
    %1734 = arith.mulf %1731, %1733 : vector<20x128xf32>
    %1735 = arith.addf %1729, %1734 : vector<20x128xf32>
    %1736 = vector.extract_strided_slice %1130 {offsets = [3, 0, 0], sizes = [1, 20, 128], strides = [1, 1, 1]} : vector<5x20x128xf32> to vector<1x20x128xf32>
    %1737 = vector.shape_cast %1736 : vector<1x20x128xf32> to vector<20x128xf32>
    %1738 = vector.extract_strided_slice %1650 {offsets = [3, 0], sizes = [1, 128], strides = [1, 1]} : vector<5x128xf32> to vector<1x128xf32>
    %1739 = vector.broadcast %1738 : vector<1x128xf32> to vector<20x128xf32>
    %1740 = arith.mulf %1737, %1739 : vector<20x128xf32>
    %1741 = arith.addf %1735, %1740 : vector<20x128xf32>
    %1742 = vector.extract_strided_slice %1130 {offsets = [4, 0, 0], sizes = [1, 20, 128], strides = [1, 1, 1]} : vector<5x20x128xf32> to vector<1x20x128xf32>
    %1743 = vector.shape_cast %1742 : vector<1x20x128xf32> to vector<20x128xf32>
    %1744 = vector.extract_strided_slice %1650 {offsets = [4, 0], sizes = [1, 128], strides = [1, 1]} : vector<5x128xf32> to vector<1x128xf32>
    %1745 = vector.broadcast %1744 : vector<1x128xf32> to vector<20x128xf32>
    %1746 = arith.mulf %1743, %1745 : vector<20x128xf32>
    %1747 = arith.addf %1741, %1746 : vector<20x128xf32>
    %1748 = vector.extract_strided_slice %1747 {offsets = [0, 0], sizes = [15, 128], strides = [1, 1]} : vector<20x128xf32> to vector<15x128xf32>
    %1749 = arith.negf %1748 : vector<15x128xf32>
    %1750 = math.exp %1749 : vector<15x128xf32>
    %cst_165 = arith.constant 1.000000e+00 : f32
    %1751 = vector.broadcast %cst_165 : f32 to vector<15x128xf32>
    %1752 = arith.addf %1751, %1750 : vector<15x128xf32>
    %1753 = arith.divf %1751, %1752 : vector<15x128xf32>
    %1754 = vector.extract_strided_slice %1747 {offsets = [15, 0], sizes = [5, 128], strides = [1, 1]} : vector<20x128xf32> to vector<5x128xf32>
    %1755 = math.tanh %1754 : vector<5x128xf32>
    %1756 = vector.extract_strided_slice %1753 {offsets = [5, 0], sizes = [5, 128], strides = [1, 1]} : vector<15x128xf32> to vector<5x128xf32>
    %1757 = arith.mulf %1756, %1647 : vector<5x128xf32>
    %1758 = vector.extract_strided_slice %1753 {offsets = [0, 0], sizes = [5, 128], strides = [1, 1]} : vector<15x128xf32> to vector<5x128xf32>
    %1759 = arith.mulf %1758, %1755 : vector<5x128xf32>
    %1760 = arith.addf %1757, %1759 : vector<5x128xf32>
    %1761 = vector.extract_strided_slice %1753 {offsets = [10, 0], sizes = [5, 128], strides = [1, 1]} : vector<15x128xf32> to vector<5x128xf32>
    %1762 = math.tanh %1760 : vector<5x128xf32>
    %1763 = arith.mulf %1761, %1762 : vector<5x128xf32>
    %1764 = vector.extract_strided_slice %1132 {offsets = [0, 0, 0], sizes = [1, 5, 128], strides = [1, 1, 1]} : vector<5x5x128xf32> to vector<1x5x128xf32>
    %1765 = vector.shape_cast %1764 : vector<1x5x128xf32> to vector<5x128xf32>
    %1766 = vector.extract_strided_slice %1763 {offsets = [0, 0], sizes = [1, 128], strides = [1, 1]} : vector<5x128xf32> to vector<1x128xf32>
    %1767 = vector.broadcast %1766 : vector<1x128xf32> to vector<5x128xf32>
    %1768 = arith.mulf %1765, %1767 : vector<5x128xf32>
    %1769 = arith.addf %1133, %1768 : vector<5x128xf32>
    %1770 = vector.extract_strided_slice %1132 {offsets = [1, 0, 0], sizes = [1, 5, 128], strides = [1, 1, 1]} : vector<5x5x128xf32> to vector<1x5x128xf32>
    %1771 = vector.shape_cast %1770 : vector<1x5x128xf32> to vector<5x128xf32>
    %1772 = vector.extract_strided_slice %1763 {offsets = [1, 0], sizes = [1, 128], strides = [1, 1]} : vector<5x128xf32> to vector<1x128xf32>
    %1773 = vector.broadcast %1772 : vector<1x128xf32> to vector<5x128xf32>
    %1774 = arith.mulf %1771, %1773 : vector<5x128xf32>
    %1775 = arith.addf %1769, %1774 : vector<5x128xf32>
    %1776 = vector.extract_strided_slice %1132 {offsets = [2, 0, 0], sizes = [1, 5, 128], strides = [1, 1, 1]} : vector<5x5x128xf32> to vector<1x5x128xf32>
    %1777 = vector.shape_cast %1776 : vector<1x5x128xf32> to vector<5x128xf32>
    %1778 = vector.extract_strided_slice %1763 {offsets = [2, 0], sizes = [1, 128], strides = [1, 1]} : vector<5x128xf32> to vector<1x128xf32>
    %1779 = vector.broadcast %1778 : vector<1x128xf32> to vector<5x128xf32>
    %1780 = arith.mulf %1777, %1779 : vector<5x128xf32>
    %1781 = arith.addf %1775, %1780 : vector<5x128xf32>
    %1782 = vector.extract_strided_slice %1132 {offsets = [3, 0, 0], sizes = [1, 5, 128], strides = [1, 1, 1]} : vector<5x5x128xf32> to vector<1x5x128xf32>
    %1783 = vector.shape_cast %1782 : vector<1x5x128xf32> to vector<5x128xf32>
    %1784 = vector.extract_strided_slice %1763 {offsets = [3, 0], sizes = [1, 128], strides = [1, 1]} : vector<5x128xf32> to vector<1x128xf32>
    %1785 = vector.broadcast %1784 : vector<1x128xf32> to vector<5x128xf32>
    %1786 = arith.mulf %1783, %1785 : vector<5x128xf32>
    %1787 = arith.addf %1781, %1786 : vector<5x128xf32>
    %1788 = vector.extract_strided_slice %1132 {offsets = [4, 0, 0], sizes = [1, 5, 128], strides = [1, 1, 1]} : vector<5x5x128xf32> to vector<1x5x128xf32>
    %1789 = vector.shape_cast %1788 : vector<1x5x128xf32> to vector<5x128xf32>
    %1790 = vector.extract_strided_slice %1763 {offsets = [4, 0], sizes = [1, 128], strides = [1, 1]} : vector<5x128xf32> to vector<1x128xf32>
    %1791 = vector.broadcast %1790 : vector<1x128xf32> to vector<5x128xf32>
    %1792 = arith.mulf %1789, %1791 : vector<5x128xf32>
    %1793 = arith.addf %1787, %1792 : vector<5x128xf32>
    %c5_166 = arith.constant 5 : index
    %c0_167 = arith.constant 0 : index
    %c0_168 = arith.constant 0 : index
    %1794 = vector.load %arg23[%c5_166, %c0_167, %c0_168] : memref<12x5x128xf32, #tpu.memory_space<vmem>>, vector<1x5x128xf32>
    %1795 = vector.shape_cast %1794 : vector<1x5x128xf32> to vector<5x128xf32>
    %1796 = vector.shape_cast %1793 : vector<5x128xf32> to vector<1x5x128xf32>
    tpu.vector_store %arg23[%c5_166, %c0_167, %c0_168], %1796 {strides = array<i32>} : memref<12x5x128xf32, #tpu.memory_space<vmem>>, vector<1x5x128xf32>,
    %1797 = vector.extract_strided_slice %1793 {offsets = [2, 0], sizes = [2, 128], strides = [1, 1]} : vector<5x128xf32> to vector<2x128xf32>
    %1798 = math.exp %1797 : vector<2x128xf32>
    %1799 = vector.extract_strided_slice %1793 {offsets = [4, 0], sizes = [1, 128], strides = [1, 1]} : vector<5x128xf32> to vector<1x128xf32>
    %1800 = math.tanh %1799 : vector<1x128xf32>
    %c5_169 = arith.constant 5 : index
    %c0_170 = arith.constant 0 : index
    %c0_171 = arith.constant 0 : index
    %1801 = vector.load %arg3[%c5_169, %c0_170, %c0_171] : memref<12x2x128xf32, #tpu.memory_space<vmem>>, vector<1x2x128xf32>
    %1802 = vector.shape_cast %1801 : vector<1x2x128xf32> to vector<2x128xf32>
    %1803 = vector.extract_strided_slice %1793 {offsets = [0, 0], sizes = [1, 128], strides = [1, 1]} : vector<5x128xf32> to vector<1x128xf32>
    %1804 = vector.extract_strided_slice %1798 {offsets = [0, 0], sizes = [1, 128], strides = [1, 1]} : vector<2x128xf32> to vector<1x128xf32>
    %1805 = vector.extract_strided_slice %1802 {offsets = [0, 0], sizes = [1, 128], strides = [1, 1]} : vector<2x128xf32> to vector<1x128xf32>
    %1806 = arith.mulf %1804, %1805 : vector<1x128xf32>
    %1807 = arith.addf %1803, %1806 : vector<1x128xf32>
    %1808 = vector.extract_strided_slice %1793 {offsets = [1, 0], sizes = [1, 128], strides = [1, 1]} : vector<5x128xf32> to vector<1x128xf32>
    %1809 = vector.extract_strided_slice %1798 {offsets = [1, 0], sizes = [1, 128], strides = [1, 1]} : vector<2x128xf32> to vector<1x128xf32>
    %1810 = vector.extract_strided_slice %1802 {offsets = [0, 0], sizes = [1, 128], strides = [1, 1]} : vector<2x128xf32> to vector<1x128xf32>
    %1811 = arith.mulf %1800, %1810 : vector<1x128xf32>
    %1812 = arith.mulf %1800, %1800 : vector<1x128xf32>
    %cst_172 = arith.constant 1.000000e+00 : f32
    %1813 = vector.broadcast %cst_172 : f32 to vector<1x128xf32>
    %1814 = arith.subf %1813, %1812 : vector<1x128xf32>
    %1815 = math.sqrt %1814 : vector<1x128xf32>
    %1816 = vector.extract_strided_slice %1802 {offsets = [1, 0], sizes = [1, 128], strides = [1, 1]} : vector<2x128xf32> to vector<1x128xf32>
    %1817 = arith.mulf %1815, %1816 : vector<1x128xf32>
    %1818 = arith.addf %1811, %1817 : vector<1x128xf32>
    %1819 = arith.mulf %1809, %1818 : vector<1x128xf32>
    %1820 = arith.addf %1808, %1819 : vector<1x128xf32>
    %1821 = tpu.concatenate %1807, %1820 in 0 : vector<1x128xf32>, vector<1x128xf32> -> vector<2x128xf32>
    %c6_173 = arith.constant 6 : index
    %c0_174 = arith.constant 0 : index
    %c0_175 = arith.constant 0 : index
    %1822 = vector.load %arg24[%c6_173, %c0_174, %c0_175] : memref<13x2x128xf32, #tpu.memory_space<vmem>>, vector<1x2x128xf32>
    %1823 = vector.shape_cast %1822 : vector<1x2x128xf32> to vector<2x128xf32>
    %1824 = vector.shape_cast %1821 : vector<2x128xf32> to vector<1x2x128xf32>
    tpu.vector_store %arg24[%c6_173, %c0_174, %c0_175], %1824 {strides = array<i32>} : memref<13x2x128xf32, #tpu.memory_space<vmem>>, vector<1x2x128xf32>,
    %1825 = vector.broadcast %1807 : vector<1x128xf32> to vector<20x128xf32>
    %1826 = arith.mulf %1165, %1825 : vector<20x128xf32>
    %1827 = arith.addf %1163, %1826 : vector<20x128xf32>
    %1828 = vector.broadcast %1820 : vector<1x128xf32> to vector<20x128xf32>
    %1829 = arith.mulf %1167, %1828 : vector<20x128xf32>
    %1830 = arith.addf %1827, %1829 : vector<20x128xf32>
    %1831 = vector.extract_strided_slice %1130 {offsets = [0, 0, 0], sizes = [1, 20, 128], strides = [1, 1, 1]} : vector<5x20x128xf32> to vector<1x20x128xf32>
    %1832 = vector.shape_cast %1831 : vector<1x20x128xf32> to vector<20x128xf32>
    %1833 = vector.extract_strided_slice %1763 {offsets = [0, 0], sizes = [1, 128], strides = [1, 1]} : vector<5x128xf32> to vector<1x128xf32>
    %1834 = vector.broadcast %1833 : vector<1x128xf32> to vector<20x128xf32>
    %1835 = arith.mulf %1832, %1834 : vector<20x128xf32>
    %1836 = arith.addf %1830, %1835 : vector<20x128xf32>
    %1837 = vector.extract_strided_slice %1130 {offsets = [1, 0, 0], sizes = [1, 20, 128], strides = [1, 1, 1]} : vector<5x20x128xf32> to vector<1x20x128xf32>
    %1838 = vector.shape_cast %1837 : vector<1x20x128xf32> to vector<20x128xf32>
    %1839 = vector.extract_strided_slice %1763 {offsets = [1, 0], sizes = [1, 128], strides = [1, 1]} : vector<5x128xf32> to vector<1x128xf32>
    %1840 = vector.broadcast %1839 : vector<1x128xf32> to vector<20x128xf32>
    %1841 = arith.mulf %1838, %1840 : vector<20x128xf32>
    %1842 = arith.addf %1836, %1841 : vector<20x128xf32>
    %1843 = vector.extract_strided_slice %1130 {offsets = [2, 0, 0], sizes = [1, 20, 128], strides = [1, 1, 1]} : vector<5x20x128xf32> to vector<1x20x128xf32>
    %1844 = vector.shape_cast %1843 : vector<1x20x128xf32> to vector<20x128xf32>
    %1845 = vector.extract_strided_slice %1763 {offsets = [2, 0], sizes = [1, 128], strides = [1, 1]} : vector<5x128xf32> to vector<1x128xf32>
    %1846 = vector.broadcast %1845 : vector<1x128xf32> to vector<20x128xf32>
    %1847 = arith.mulf %1844, %1846 : vector<20x128xf32>
    %1848 = arith.addf %1842, %1847 : vector<20x128xf32>
    %1849 = vector.extract_strided_slice %1130 {offsets = [3, 0, 0], sizes = [1, 20, 128], strides = [1, 1, 1]} : vector<5x20x128xf32> to vector<1x20x128xf32>
    %1850 = vector.shape_cast %1849 : vector<1x20x128xf32> to vector<20x128xf32>
    %1851 = vector.extract_strided_slice %1763 {offsets = [3, 0], sizes = [1, 128], strides = [1, 1]} : vector<5x128xf32> to vector<1x128xf32>
    %1852 = vector.broadcast %1851 : vector<1x128xf32> to vector<20x128xf32>
    %1853 = arith.mulf %1850, %1852 : vector<20x128xf32>
    %1854 = arith.addf %1848, %1853 : vector<20x128xf32>
    %1855 = vector.extract_strided_slice %1130 {offsets = [4, 0, 0], sizes = [1, 20, 128], strides = [1, 1, 1]} : vector<5x20x128xf32> to vector<1x20x128xf32>
    %1856 = vector.shape_cast %1855 : vector<1x20x128xf32> to vector<20x128xf32>
    %1857 = vector.extract_strided_slice %1763 {offsets = [4, 0], sizes = [1, 128], strides = [1, 1]} : vector<5x128xf32> to vector<1x128xf32>
    %1858 = vector.broadcast %1857 : vector<1x128xf32> to vector<20x128xf32>
    %1859 = arith.mulf %1856, %1858 : vector<20x128xf32>
    %1860 = arith.addf %1854, %1859 : vector<20x128xf32>
    %1861 = vector.extract_strided_slice %1860 {offsets = [0, 0], sizes = [15, 128], strides = [1, 1]} : vector<20x128xf32> to vector<15x128xf32>
    %1862 = arith.negf %1861 : vector<15x128xf32>
    %1863 = math.exp %1862 : vector<15x128xf32>
    %cst_176 = arith.constant 1.000000e+00 : f32
    %1864 = vector.broadcast %cst_176 : f32 to vector<15x128xf32>
    %1865 = arith.addf %1864, %1863 : vector<15x128xf32>
    %1866 = arith.divf %1864, %1865 : vector<15x128xf32>
    %1867 = vector.extract_strided_slice %1860 {offsets = [15, 0], sizes = [5, 128], strides = [1, 1]} : vector<20x128xf32> to vector<5x128xf32>
    %1868 = math.tanh %1867 : vector<5x128xf32>
    %1869 = vector.extract_strided_slice %1866 {offsets = [5, 0], sizes = [5, 128], strides = [1, 1]} : vector<15x128xf32> to vector<5x128xf32>
    %1870 = arith.mulf %1869, %1760 : vector<5x128xf32>
    %1871 = vector.extract_strided_slice %1866 {offsets = [0, 0], sizes = [5, 128], strides = [1, 1]} : vector<15x128xf32> to vector<5x128xf32>
    %1872 = arith.mulf %1871, %1868 : vector<5x128xf32>
    %1873 = arith.addf %1870, %1872 : vector<5x128xf32>
    %1874 = vector.extract_strided_slice %1866 {offsets = [10, 0], sizes = [5, 128], strides = [1, 1]} : vector<15x128xf32> to vector<5x128xf32>
    %1875 = math.tanh %1873 : vector<5x128xf32>
    %1876 = arith.mulf %1874, %1875 : vector<5x128xf32>
    %1877 = vector.extract_strided_slice %1132 {offsets = [0, 0, 0], sizes = [1, 5, 128], strides = [1, 1, 1]} : vector<5x5x128xf32> to vector<1x5x128xf32>
    %1878 = vector.shape_cast %1877 : vector<1x5x128xf32> to vector<5x128xf32>
    %1879 = vector.extract_strided_slice %1876 {offsets = [0, 0], sizes = [1, 128], strides = [1, 1]} : vector<5x128xf32> to vector<1x128xf32>
    %1880 = vector.broadcast %1879 : vector<1x128xf32> to vector<5x128xf32>
    %1881 = arith.mulf %1878, %1880 : vector<5x128xf32>
    %1882 = arith.addf %1133, %1881 : vector<5x128xf32>
    %1883 = vector.extract_strided_slice %1132 {offsets = [1, 0, 0], sizes = [1, 5, 128], strides = [1, 1, 1]} : vector<5x5x128xf32> to vector<1x5x128xf32>
    %1884 = vector.shape_cast %1883 : vector<1x5x128xf32> to vector<5x128xf32>
    %1885 = vector.extract_strided_slice %1876 {offsets = [1, 0], sizes = [1, 128], strides = [1, 1]} : vector<5x128xf32> to vector<1x128xf32>
    %1886 = vector.broadcast %1885 : vector<1x128xf32> to vector<5x128xf32>
    %1887 = arith.mulf %1884, %1886 : vector<5x128xf32>
    %1888 = arith.addf %1882, %1887 : vector<5x128xf32>
    %1889 = vector.extract_strided_slice %1132 {offsets = [2, 0, 0], sizes = [1, 5, 128], strides = [1, 1, 1]} : vector<5x5x128xf32> to vector<1x5x128xf32>
    %1890 = vector.shape_cast %1889 : vector<1x5x128xf32> to vector<5x128xf32>
    %1891 = vector.extract_strided_slice %1876 {offsets = [2, 0], sizes = [1, 128], strides = [1, 1]} : vector<5x128xf32> to vector<1x128xf32>
    %1892 = vector.broadcast %1891 : vector<1x128xf32> to vector<5x128xf32>
    %1893 = arith.mulf %1890, %1892 : vector<5x128xf32>
    %1894 = arith.addf %1888, %1893 : vector<5x128xf32>
    %1895 = vector.extract_strided_slice %1132 {offsets = [3, 0, 0], sizes = [1, 5, 128], strides = [1, 1, 1]} : vector<5x5x128xf32> to vector<1x5x128xf32>
    %1896 = vector.shape_cast %1895 : vector<1x5x128xf32> to vector<5x128xf32>
    %1897 = vector.extract_strided_slice %1876 {offsets = [3, 0], sizes = [1, 128], strides = [1, 1]} : vector<5x128xf32> to vector<1x128xf32>
    %1898 = vector.broadcast %1897 : vector<1x128xf32> to vector<5x128xf32>
    %1899 = arith.mulf %1896, %1898 : vector<5x128xf32>
    %1900 = arith.addf %1894, %1899 : vector<5x128xf32>
    %1901 = vector.extract_strided_slice %1132 {offsets = [4, 0, 0], sizes = [1, 5, 128], strides = [1, 1, 1]} : vector<5x5x128xf32> to vector<1x5x128xf32>
    %1902 = vector.shape_cast %1901 : vector<1x5x128xf32> to vector<5x128xf32>
    %1903 = vector.extract_strided_slice %1876 {offsets = [4, 0], sizes = [1, 128], strides = [1, 1]} : vector<5x128xf32> to vector<1x128xf32>
    %1904 = vector.broadcast %1903 : vector<1x128xf32> to vector<5x128xf32>
    %1905 = arith.mulf %1902, %1904 : vector<5x128xf32>
    %1906 = arith.addf %1900, %1905 : vector<5x128xf32>
    %c6_177 = arith.constant 6 : index
    %c0_178 = arith.constant 0 : index
    %c0_179 = arith.constant 0 : index
    %1907 = vector.load %arg23[%c6_177, %c0_178, %c0_179] : memref<12x5x128xf32, #tpu.memory_space<vmem>>, vector<1x5x128xf32>
    %1908 = vector.shape_cast %1907 : vector<1x5x128xf32> to vector<5x128xf32>
    %1909 = vector.shape_cast %1906 : vector<5x128xf32> to vector<1x5x128xf32>
    tpu.vector_store %arg23[%c6_177, %c0_178, %c0_179], %1909 {strides = array<i32>} : memref<12x5x128xf32, #tpu.memory_space<vmem>>, vector<1x5x128xf32>,
    %1910 = vector.extract_strided_slice %1906 {offsets = [2, 0], sizes = [2, 128], strides = [1, 1]} : vector<5x128xf32> to vector<2x128xf32>
    %1911 = math.exp %1910 : vector<2x128xf32>
    %1912 = vector.extract_strided_slice %1906 {offsets = [4, 0], sizes = [1, 128], strides = [1, 1]} : vector<5x128xf32> to vector<1x128xf32>
    %1913 = math.tanh %1912 : vector<1x128xf32>
    %c6_180 = arith.constant 6 : index
    %c0_181 = arith.constant 0 : index
    %c0_182 = arith.constant 0 : index
    %1914 = vector.load %arg3[%c6_180, %c0_181, %c0_182] : memref<12x2x128xf32, #tpu.memory_space<vmem>>, vector<1x2x128xf32>
    %1915 = vector.shape_cast %1914 : vector<1x2x128xf32> to vector<2x128xf32>
    %1916 = vector.extract_strided_slice %1906 {offsets = [0, 0], sizes = [1, 128], strides = [1, 1]} : vector<5x128xf32> to vector<1x128xf32>
    %1917 = vector.extract_strided_slice %1911 {offsets = [0, 0], sizes = [1, 128], strides = [1, 1]} : vector<2x128xf32> to vector<1x128xf32>
    %1918 = vector.extract_strided_slice %1915 {offsets = [0, 0], sizes = [1, 128], strides = [1, 1]} : vector<2x128xf32> to vector<1x128xf32>
    %1919 = arith.mulf %1917, %1918 : vector<1x128xf32>
    %1920 = arith.addf %1916, %1919 : vector<1x128xf32>
    %1921 = vector.extract_strided_slice %1906 {offsets = [1, 0], sizes = [1, 128], strides = [1, 1]} : vector<5x128xf32> to vector<1x128xf32>
    %1922 = vector.extract_strided_slice %1911 {offsets = [1, 0], sizes = [1, 128], strides = [1, 1]} : vector<2x128xf32> to vector<1x128xf32>
    %1923 = vector.extract_strided_slice %1915 {offsets = [0, 0], sizes = [1, 128], strides = [1, 1]} : vector<2x128xf32> to vector<1x128xf32>
    %1924 = arith.mulf %1913, %1923 : vector<1x128xf32>
    %1925 = arith.mulf %1913, %1913 : vector<1x128xf32>
    %cst_183 = arith.constant 1.000000e+00 : f32
    %1926 = vector.broadcast %cst_183 : f32 to vector<1x128xf32>
    %1927 = arith.subf %1926, %1925 : vector<1x128xf32>
    %1928 = math.sqrt %1927 : vector<1x128xf32>
    %1929 = vector.extract_strided_slice %1915 {offsets = [1, 0], sizes = [1, 128], strides = [1, 1]} : vector<2x128xf32> to vector<1x128xf32>
    %1930 = arith.mulf %1928, %1929 : vector<1x128xf32>
    %1931 = arith.addf %1924, %1930 : vector<1x128xf32>
    %1932 = arith.mulf %1922, %1931 : vector<1x128xf32>
    %1933 = arith.addf %1921, %1932 : vector<1x128xf32>
    %1934 = tpu.concatenate %1920, %1933 in 0 : vector<1x128xf32>, vector<1x128xf32> -> vector<2x128xf32>
    %c7_184 = arith.constant 7 : index
    %c0_185 = arith.constant 0 : index
    %c0_186 = arith.constant 0 : index
    %1935 = vector.load %arg24[%c7_184, %c0_185, %c0_186] : memref<13x2x128xf32, #tpu.memory_space<vmem>>, vector<1x2x128xf32>
    %1936 = vector.shape_cast %1935 : vector<1x2x128xf32> to vector<2x128xf32>
    %1937 = vector.shape_cast %1934 : vector<2x128xf32> to vector<1x2x128xf32>
    tpu.vector_store %arg24[%c7_184, %c0_185, %c0_186], %1937 {strides = array<i32>} : memref<13x2x128xf32, #tpu.memory_space<vmem>>, vector<1x2x128xf32>,
    %1938 = vector.broadcast %1920 : vector<1x128xf32> to vector<20x128xf32>
    %1939 = arith.mulf %1165, %1938 : vector<20x128xf32>
    %1940 = arith.addf %1163, %1939 : vector<20x128xf32>
    %1941 = vector.broadcast %1933 : vector<1x128xf32> to vector<20x128xf32>
    %1942 = arith.mulf %1167, %1941 : vector<20x128xf32>
    %1943 = arith.addf %1940, %1942 : vector<20x128xf32>
    %1944 = vector.extract_strided_slice %1130 {offsets = [0, 0, 0], sizes = [1, 20, 128], strides = [1, 1, 1]} : vector<5x20x128xf32> to vector<1x20x128xf32>
    %1945 = vector.shape_cast %1944 : vector<1x20x128xf32> to vector<20x128xf32>
    %1946 = vector.extract_strided_slice %1876 {offsets = [0, 0], sizes = [1, 128], strides = [1, 1]} : vector<5x128xf32> to vector<1x128xf32>
    %1947 = vector.broadcast %1946 : vector<1x128xf32> to vector<20x128xf32>
    %1948 = arith.mulf %1945, %1947 : vector<20x128xf32>
    %1949 = arith.addf %1943, %1948 : vector<20x128xf32>
    %1950 = vector.extract_strided_slice %1130 {offsets = [1, 0, 0], sizes = [1, 20, 128], strides = [1, 1, 1]} : vector<5x20x128xf32> to vector<1x20x128xf32>
    %1951 = vector.shape_cast %1950 : vector<1x20x128xf32> to vector<20x128xf32>
    %1952 = vector.extract_strided_slice %1876 {offsets = [1, 0], sizes = [1, 128], strides = [1, 1]} : vector<5x128xf32> to vector<1x128xf32>
    %1953 = vector.broadcast %1952 : vector<1x128xf32> to vector<20x128xf32>
    %1954 = arith.mulf %1951, %1953 : vector<20x128xf32>
    %1955 = arith.addf %1949, %1954 : vector<20x128xf32>
    %1956 = vector.extract_strided_slice %1130 {offsets = [2, 0, 0], sizes = [1, 20, 128], strides = [1, 1, 1]} : vector<5x20x128xf32> to vector<1x20x128xf32>
    %1957 = vector.shape_cast %1956 : vector<1x20x128xf32> to vector<20x128xf32>
    %1958 = vector.extract_strided_slice %1876 {offsets = [2, 0], sizes = [1, 128], strides = [1, 1]} : vector<5x128xf32> to vector<1x128xf32>
    %1959 = vector.broadcast %1958 : vector<1x128xf32> to vector<20x128xf32>
    %1960 = arith.mulf %1957, %1959 : vector<20x128xf32>
    %1961 = arith.addf %1955, %1960 : vector<20x128xf32>
    %1962 = vector.extract_strided_slice %1130 {offsets = [3, 0, 0], sizes = [1, 20, 128], strides = [1, 1, 1]} : vector<5x20x128xf32> to vector<1x20x128xf32>
    %1963 = vector.shape_cast %1962 : vector<1x20x128xf32> to vector<20x128xf32>
    %1964 = vector.extract_strided_slice %1876 {offsets = [3, 0], sizes = [1, 128], strides = [1, 1]} : vector<5x128xf32> to vector<1x128xf32>
    %1965 = vector.broadcast %1964 : vector<1x128xf32> to vector<20x128xf32>
    %1966 = arith.mulf %1963, %1965 : vector<20x128xf32>
    %1967 = arith.addf %1961, %1966 : vector<20x128xf32>
    %1968 = vector.extract_strided_slice %1130 {offsets = [4, 0, 0], sizes = [1, 20, 128], strides = [1, 1, 1]} : vector<5x20x128xf32> to vector<1x20x128xf32>
    %1969 = vector.shape_cast %1968 : vector<1x20x128xf32> to vector<20x128xf32>
    %1970 = vector.extract_strided_slice %1876 {offsets = [4, 0], sizes = [1, 128], strides = [1, 1]} : vector<5x128xf32> to vector<1x128xf32>
    %1971 = vector.broadcast %1970 : vector<1x128xf32> to vector<20x128xf32>
    %1972 = arith.mulf %1969, %1971 : vector<20x128xf32>
    %1973 = arith.addf %1967, %1972 : vector<20x128xf32>
    %1974 = vector.extract_strided_slice %1973 {offsets = [0, 0], sizes = [15, 128], strides = [1, 1]} : vector<20x128xf32> to vector<15x128xf32>
    %1975 = arith.negf %1974 : vector<15x128xf32>
    %1976 = math.exp %1975 : vector<15x128xf32>
    %cst_187 = arith.constant 1.000000e+00 : f32
    %1977 = vector.broadcast %cst_187 : f32 to vector<15x128xf32>
    %1978 = arith.addf %1977, %1976 : vector<15x128xf32>
    %1979 = arith.divf %1977, %1978 : vector<15x128xf32>
    %1980 = vector.extract_strided_slice %1973 {offsets = [15, 0], sizes = [5, 128], strides = [1, 1]} : vector<20x128xf32> to vector<5x128xf32>
    %1981 = math.tanh %1980 : vector<5x128xf32>
    %1982 = vector.extract_strided_slice %1979 {offsets = [5, 0], sizes = [5, 128], strides = [1, 1]} : vector<15x128xf32> to vector<5x128xf32>
    %1983 = arith.mulf %1982, %1873 : vector<5x128xf32>
    %1984 = vector.extract_strided_slice %1979 {offsets = [0, 0], sizes = [5, 128], strides = [1, 1]} : vector<15x128xf32> to vector<5x128xf32>
    %1985 = arith.mulf %1984, %1981 : vector<5x128xf32>
    %1986 = arith.addf %1983, %1985 : vector<5x128xf32>
    %1987 = vector.extract_strided_slice %1979 {offsets = [10, 0], sizes = [5, 128], strides = [1, 1]} : vector<15x128xf32> to vector<5x128xf32>
    %1988 = math.tanh %1986 : vector<5x128xf32>
    %1989 = arith.mulf %1987, %1988 : vector<5x128xf32>
    %1990 = vector.extract_strided_slice %1132 {offsets = [0, 0, 0], sizes = [1, 5, 128], strides = [1, 1, 1]} : vector<5x5x128xf32> to vector<1x5x128xf32>
    %1991 = vector.shape_cast %1990 : vector<1x5x128xf32> to vector<5x128xf32>
    %1992 = vector.extract_strided_slice %1989 {offsets = [0, 0], sizes = [1, 128], strides = [1, 1]} : vector<5x128xf32> to vector<1x128xf32>
    %1993 = vector.broadcast %1992 : vector<1x128xf32> to vector<5x128xf32>
    %1994 = arith.mulf %1991, %1993 : vector<5x128xf32>
    %1995 = arith.addf %1133, %1994 : vector<5x128xf32>
    %1996 = vector.extract_strided_slice %1132 {offsets = [1, 0, 0], sizes = [1, 5, 128], strides = [1, 1, 1]} : vector<5x5x128xf32> to vector<1x5x128xf32>
    %1997 = vector.shape_cast %1996 : vector<1x5x128xf32> to vector<5x128xf32>
    %1998 = vector.extract_strided_slice %1989 {offsets = [1, 0], sizes = [1, 128], strides = [1, 1]} : vector<5x128xf32> to vector<1x128xf32>
    %1999 = vector.broadcast %1998 : vector<1x128xf32> to vector<5x128xf32>
    %2000 = arith.mulf %1997, %1999 : vector<5x128xf32>
    %2001 = arith.addf %1995, %2000 : vector<5x128xf32>
    %2002 = vector.extract_strided_slice %1132 {offsets = [2, 0, 0], sizes = [1, 5, 128], strides = [1, 1, 1]} : vector<5x5x128xf32> to vector<1x5x128xf32>
    %2003 = vector.shape_cast %2002 : vector<1x5x128xf32> to vector<5x128xf32>
    %2004 = vector.extract_strided_slice %1989 {offsets = [2, 0], sizes = [1, 128], strides = [1, 1]} : vector<5x128xf32> to vector<1x128xf32>
    %2005 = vector.broadcast %2004 : vector<1x128xf32> to vector<5x128xf32>
    %2006 = arith.mulf %2003, %2005 : vector<5x128xf32>
    %2007 = arith.addf %2001, %2006 : vector<5x128xf32>
    %2008 = vector.extract_strided_slice %1132 {offsets = [3, 0, 0], sizes = [1, 5, 128], strides = [1, 1, 1]} : vector<5x5x128xf32> to vector<1x5x128xf32>
    %2009 = vector.shape_cast %2008 : vector<1x5x128xf32> to vector<5x128xf32>
    %2010 = vector.extract_strided_slice %1989 {offsets = [3, 0], sizes = [1, 128], strides = [1, 1]} : vector<5x128xf32> to vector<1x128xf32>
    %2011 = vector.broadcast %2010 : vector<1x128xf32> to vector<5x128xf32>
    %2012 = arith.mulf %2009, %2011 : vector<5x128xf32>
    %2013 = arith.addf %2007, %2012 : vector<5x128xf32>
    %2014 = vector.extract_strided_slice %1132 {offsets = [4, 0, 0], sizes = [1, 5, 128], strides = [1, 1, 1]} : vector<5x5x128xf32> to vector<1x5x128xf32>
    %2015 = vector.shape_cast %2014 : vector<1x5x128xf32> to vector<5x128xf32>
    %2016 = vector.extract_strided_slice %1989 {offsets = [4, 0], sizes = [1, 128], strides = [1, 1]} : vector<5x128xf32> to vector<1x128xf32>
    %2017 = vector.broadcast %2016 : vector<1x128xf32> to vector<5x128xf32>
    %2018 = arith.mulf %2015, %2017 : vector<5x128xf32>
    %2019 = arith.addf %2013, %2018 : vector<5x128xf32>
    %c7_188 = arith.constant 7 : index
    %c0_189 = arith.constant 0 : index
    %c0_190 = arith.constant 0 : index
    %2020 = vector.load %arg23[%c7_188, %c0_189, %c0_190] : memref<12x5x128xf32, #tpu.memory_space<vmem>>, vector<1x5x128xf32>
    %2021 = vector.shape_cast %2020 : vector<1x5x128xf32> to vector<5x128xf32>
    %2022 = vector.shape_cast %2019 : vector<5x128xf32> to vector<1x5x128xf32>
    tpu.vector_store %arg23[%c7_188, %c0_189, %c0_190], %2022 {strides = array<i32>} : memref<12x5x128xf32, #tpu.memory_space<vmem>>, vector<1x5x128xf32>,
    %2023 = vector.extract_strided_slice %2019 {offsets = [2, 0], sizes = [2, 128], strides = [1, 1]} : vector<5x128xf32> to vector<2x128xf32>
    %2024 = math.exp %2023 : vector<2x128xf32>
    %2025 = vector.extract_strided_slice %2019 {offsets = [4, 0], sizes = [1, 128], strides = [1, 1]} : vector<5x128xf32> to vector<1x128xf32>
    %2026 = math.tanh %2025 : vector<1x128xf32>
    %c7_191 = arith.constant 7 : index
    %c0_192 = arith.constant 0 : index
    %c0_193 = arith.constant 0 : index
    %2027 = vector.load %arg3[%c7_191, %c0_192, %c0_193] : memref<12x2x128xf32, #tpu.memory_space<vmem>>, vector<1x2x128xf32>
    %2028 = vector.shape_cast %2027 : vector<1x2x128xf32> to vector<2x128xf32>
    %2029 = vector.extract_strided_slice %2019 {offsets = [0, 0], sizes = [1, 128], strides = [1, 1]} : vector<5x128xf32> to vector<1x128xf32>
    %2030 = vector.extract_strided_slice %2024 {offsets = [0, 0], sizes = [1, 128], strides = [1, 1]} : vector<2x128xf32> to vector<1x128xf32>
    %2031 = vector.extract_strided_slice %2028 {offsets = [0, 0], sizes = [1, 128], strides = [1, 1]} : vector<2x128xf32> to vector<1x128xf32>
    %2032 = arith.mulf %2030, %2031 : vector<1x128xf32>
    %2033 = arith.addf %2029, %2032 : vector<1x128xf32>
    %2034 = vector.extract_strided_slice %2019 {offsets = [1, 0], sizes = [1, 128], strides = [1, 1]} : vector<5x128xf32> to vector<1x128xf32>
    %2035 = vector.extract_strided_slice %2024 {offsets = [1, 0], sizes = [1, 128], strides = [1, 1]} : vector<2x128xf32> to vector<1x128xf32>
    %2036 = vector.extract_strided_slice %2028 {offsets = [0, 0], sizes = [1, 128], strides = [1, 1]} : vector<2x128xf32> to vector<1x128xf32>
    %2037 = arith.mulf %2026, %2036 : vector<1x128xf32>
    %2038 = arith.mulf %2026, %2026 : vector<1x128xf32>
    %cst_194 = arith.constant 1.000000e+00 : f32
    %2039 = vector.broadcast %cst_194 : f32 to vector<1x128xf32>
    %2040 = arith.subf %2039, %2038 : vector<1x128xf32>
    %2041 = math.sqrt %2040 : vector<1x128xf32>
    %2042 = vector.extract_strided_slice %2028 {offsets = [1, 0], sizes = [1, 128], strides = [1, 1]} : vector<2x128xf32> to vector<1x128xf32>
    %2043 = arith.mulf %2041, %2042 : vector<1x128xf32>
    %2044 = arith.addf %2037, %2043 : vector<1x128xf32>
    %2045 = arith.mulf %2035, %2044 : vector<1x128xf32>
    %2046 = arith.addf %2034, %2045 : vector<1x128xf32>
    %2047 = tpu.concatenate %2033, %2046 in 0 : vector<1x128xf32>, vector<1x128xf32> -> vector<2x128xf32>
    %c8_195 = arith.constant 8 : index
    %c0_196 = arith.constant 0 : index
    %c0_197 = arith.constant 0 : index
    %2048 = vector.load %arg24[%c8_195, %c0_196, %c0_197] : memref<13x2x128xf32, #tpu.memory_space<vmem>>, vector<1x2x128xf32>
    %2049 = vector.shape_cast %2048 : vector<1x2x128xf32> to vector<2x128xf32>
    %2050 = vector.shape_cast %2047 : vector<2x128xf32> to vector<1x2x128xf32>
    tpu.vector_store %arg24[%c8_195, %c0_196, %c0_197], %2050 {strides = array<i32>} : memref<13x2x128xf32, #tpu.memory_space<vmem>>, vector<1x2x128xf32>,
    %2051 = vector.broadcast %2033 : vector<1x128xf32> to vector<20x128xf32>
    %2052 = arith.mulf %1165, %2051 : vector<20x128xf32>
    %2053 = arith.addf %1163, %2052 : vector<20x128xf32>
    %2054 = vector.broadcast %2046 : vector<1x128xf32> to vector<20x128xf32>
    %2055 = arith.mulf %1167, %2054 : vector<20x128xf32>
    %2056 = arith.addf %2053, %2055 : vector<20x128xf32>
    %2057 = vector.extract_strided_slice %1130 {offsets = [0, 0, 0], sizes = [1, 20, 128], strides = [1, 1, 1]} : vector<5x20x128xf32> to vector<1x20x128xf32>
    %2058 = vector.shape_cast %2057 : vector<1x20x128xf32> to vector<20x128xf32>
    %2059 = vector.extract_strided_slice %1989 {offsets = [0, 0], sizes = [1, 128], strides = [1, 1]} : vector<5x128xf32> to vector<1x128xf32>
    %2060 = vector.broadcast %2059 : vector<1x128xf32> to vector<20x128xf32>
    %2061 = arith.mulf %2058, %2060 : vector<20x128xf32>
    %2062 = arith.addf %2056, %2061 : vector<20x128xf32>
    %2063 = vector.extract_strided_slice %1130 {offsets = [1, 0, 0], sizes = [1, 20, 128], strides = [1, 1, 1]} : vector<5x20x128xf32> to vector<1x20x128xf32>
    %2064 = vector.shape_cast %2063 : vector<1x20x128xf32> to vector<20x128xf32>
    %2065 = vector.extract_strided_slice %1989 {offsets = [1, 0], sizes = [1, 128], strides = [1, 1]} : vector<5x128xf32> to vector<1x128xf32>
    %2066 = vector.broadcast %2065 : vector<1x128xf32> to vector<20x128xf32>
    %2067 = arith.mulf %2064, %2066 : vector<20x128xf32>
    %2068 = arith.addf %2062, %2067 : vector<20x128xf32>
    %2069 = vector.extract_strided_slice %1130 {offsets = [2, 0, 0], sizes = [1, 20, 128], strides = [1, 1, 1]} : vector<5x20x128xf32> to vector<1x20x128xf32>
    %2070 = vector.shape_cast %2069 : vector<1x20x128xf32> to vector<20x128xf32>
    %2071 = vector.extract_strided_slice %1989 {offsets = [2, 0], sizes = [1, 128], strides = [1, 1]} : vector<5x128xf32> to vector<1x128xf32>
    %2072 = vector.broadcast %2071 : vector<1x128xf32> to vector<20x128xf32>
    %2073 = arith.mulf %2070, %2072 : vector<20x128xf32>
    %2074 = arith.addf %2068, %2073 : vector<20x128xf32>
    %2075 = vector.extract_strided_slice %1130 {offsets = [3, 0, 0], sizes = [1, 20, 128], strides = [1, 1, 1]} : vector<5x20x128xf32> to vector<1x20x128xf32>
    %2076 = vector.shape_cast %2075 : vector<1x20x128xf32> to vector<20x128xf32>
    %2077 = vector.extract_strided_slice %1989 {offsets = [3, 0], sizes = [1, 128], strides = [1, 1]} : vector<5x128xf32> to vector<1x128xf32>
    %2078 = vector.broadcast %2077 : vector<1x128xf32> to vector<20x128xf32>
    %2079 = arith.mulf %2076, %2078 : vector<20x128xf32>
    %2080 = arith.addf %2074, %2079 : vector<20x128xf32>
    %2081 = vector.extract_strided_slice %1130 {offsets = [4, 0, 0], sizes = [1, 20, 128], strides = [1, 1, 1]} : vector<5x20x128xf32> to vector<1x20x128xf32>
    %2082 = vector.shape_cast %2081 : vector<1x20x128xf32> to vector<20x128xf32>
    %2083 = vector.extract_strided_slice %1989 {offsets = [4, 0], sizes = [1, 128], strides = [1, 1]} : vector<5x128xf32> to vector<1x128xf32>
    %2084 = vector.broadcast %2083 : vector<1x128xf32> to vector<20x128xf32>
    %2085 = arith.mulf %2082, %2084 : vector<20x128xf32>
    %2086 = arith.addf %2080, %2085 : vector<20x128xf32>
    %2087 = vector.extract_strided_slice %2086 {offsets = [0, 0], sizes = [15, 128], strides = [1, 1]} : vector<20x128xf32> to vector<15x128xf32>
    %2088 = arith.negf %2087 : vector<15x128xf32>
    %2089 = math.exp %2088 : vector<15x128xf32>
    %cst_198 = arith.constant 1.000000e+00 : f32
    %2090 = vector.broadcast %cst_198 : f32 to vector<15x128xf32>
    %2091 = arith.addf %2090, %2089 : vector<15x128xf32>
    %2092 = arith.divf %2090, %2091 : vector<15x128xf32>
    %2093 = vector.extract_strided_slice %2086 {offsets = [15, 0], sizes = [5, 128], strides = [1, 1]} : vector<20x128xf32> to vector<5x128xf32>
    %2094 = math.tanh %2093 : vector<5x128xf32>
    %2095 = vector.extract_strided_slice %2092 {offsets = [5, 0], sizes = [5, 128], strides = [1, 1]} : vector<15x128xf32> to vector<5x128xf32>
    %2096 = arith.mulf %2095, %1986 : vector<5x128xf32>
    %2097 = vector.extract_strided_slice %2092 {offsets = [0, 0], sizes = [5, 128], strides = [1, 1]} : vector<15x128xf32> to vector<5x128xf32>
    %2098 = arith.mulf %2097, %2094 : vector<5x128xf32>
    %2099 = arith.addf %2096, %2098 : vector<5x128xf32>
    %2100 = vector.extract_strided_slice %2092 {offsets = [10, 0], sizes = [5, 128], strides = [1, 1]} : vector<15x128xf32> to vector<5x128xf32>
    %2101 = math.tanh %2099 : vector<5x128xf32>
    %2102 = arith.mulf %2100, %2101 : vector<5x128xf32>
    %2103 = vector.extract_strided_slice %1132 {offsets = [0, 0, 0], sizes = [1, 5, 128], strides = [1, 1, 1]} : vector<5x5x128xf32> to vector<1x5x128xf32>
    %2104 = vector.shape_cast %2103 : vector<1x5x128xf32> to vector<5x128xf32>
    %2105 = vector.extract_strided_slice %2102 {offsets = [0, 0], sizes = [1, 128], strides = [1, 1]} : vector<5x128xf32> to vector<1x128xf32>
    %2106 = vector.broadcast %2105 : vector<1x128xf32> to vector<5x128xf32>
    %2107 = arith.mulf %2104, %2106 : vector<5x128xf32>
    %2108 = arith.addf %1133, %2107 : vector<5x128xf32>
    %2109 = vector.extract_strided_slice %1132 {offsets = [1, 0, 0], sizes = [1, 5, 128], strides = [1, 1, 1]} : vector<5x5x128xf32> to vector<1x5x128xf32>
    %2110 = vector.shape_cast %2109 : vector<1x5x128xf32> to vector<5x128xf32>
    %2111 = vector.extract_strided_slice %2102 {offsets = [1, 0], sizes = [1, 128], strides = [1, 1]} : vector<5x128xf32> to vector<1x128xf32>
    %2112 = vector.broadcast %2111 : vector<1x128xf32> to vector<5x128xf32>
    %2113 = arith.mulf %2110, %2112 : vector<5x128xf32>
    %2114 = arith.addf %2108, %2113 : vector<5x128xf32>
    %2115 = vector.extract_strided_slice %1132 {offsets = [2, 0, 0], sizes = [1, 5, 128], strides = [1, 1, 1]} : vector<5x5x128xf32> to vector<1x5x128xf32>
    %2116 = vector.shape_cast %2115 : vector<1x5x128xf32> to vector<5x128xf32>
    %2117 = vector.extract_strided_slice %2102 {offsets = [2, 0], sizes = [1, 128], strides = [1, 1]} : vector<5x128xf32> to vector<1x128xf32>
    %2118 = vector.broadcast %2117 : vector<1x128xf32> to vector<5x128xf32>
    %2119 = arith.mulf %2116, %2118 : vector<5x128xf32>
    %2120 = arith.addf %2114, %2119 : vector<5x128xf32>
    %2121 = vector.extract_strided_slice %1132 {offsets = [3, 0, 0], sizes = [1, 5, 128], strides = [1, 1, 1]} : vector<5x5x128xf32> to vector<1x5x128xf32>
    %2122 = vector.shape_cast %2121 : vector<1x5x128xf32> to vector<5x128xf32>
    %2123 = vector.extract_strided_slice %2102 {offsets = [3, 0], sizes = [1, 128], strides = [1, 1]} : vector<5x128xf32> to vector<1x128xf32>
    %2124 = vector.broadcast %2123 : vector<1x128xf32> to vector<5x128xf32>
    %2125 = arith.mulf %2122, %2124 : vector<5x128xf32>
    %2126 = arith.addf %2120, %2125 : vector<5x128xf32>
    %2127 = vector.extract_strided_slice %1132 {offsets = [4, 0, 0], sizes = [1, 5, 128], strides = [1, 1, 1]} : vector<5x5x128xf32> to vector<1x5x128xf32>
    %2128 = vector.shape_cast %2127 : vector<1x5x128xf32> to vector<5x128xf32>
    %2129 = vector.extract_strided_slice %2102 {offsets = [4, 0], sizes = [1, 128], strides = [1, 1]} : vector<5x128xf32> to vector<1x128xf32>
    %2130 = vector.broadcast %2129 : vector<1x128xf32> to vector<5x128xf32>
    %2131 = arith.mulf %2128, %2130 : vector<5x128xf32>
    %2132 = arith.addf %2126, %2131 : vector<5x128xf32>
    %c8_199 = arith.constant 8 : index
    %c0_200 = arith.constant 0 : index
    %c0_201 = arith.constant 0 : index
    %2133 = vector.load %arg23[%c8_199, %c0_200, %c0_201] : memref<12x5x128xf32, #tpu.memory_space<vmem>>, vector<1x5x128xf32>
    %2134 = vector.shape_cast %2133 : vector<1x5x128xf32> to vector<5x128xf32>
    %2135 = vector.shape_cast %2132 : vector<5x128xf32> to vector<1x5x128xf32>
    tpu.vector_store %arg23[%c8_199, %c0_200, %c0_201], %2135 {strides = array<i32>} : memref<12x5x128xf32, #tpu.memory_space<vmem>>, vector<1x5x128xf32>,
    %2136 = vector.extract_strided_slice %2132 {offsets = [2, 0], sizes = [2, 128], strides = [1, 1]} : vector<5x128xf32> to vector<2x128xf32>
    %2137 = math.exp %2136 : vector<2x128xf32>
    %2138 = vector.extract_strided_slice %2132 {offsets = [4, 0], sizes = [1, 128], strides = [1, 1]} : vector<5x128xf32> to vector<1x128xf32>
    %2139 = math.tanh %2138 : vector<1x128xf32>
    %c8_202 = arith.constant 8 : index
    %c0_203 = arith.constant 0 : index
    %c0_204 = arith.constant 0 : index
    %2140 = vector.load %arg3[%c8_202, %c0_203, %c0_204] : memref<12x2x128xf32, #tpu.memory_space<vmem>>, vector<1x2x128xf32>
    %2141 = vector.shape_cast %2140 : vector<1x2x128xf32> to vector<2x128xf32>
    %2142 = vector.extract_strided_slice %2132 {offsets = [0, 0], sizes = [1, 128], strides = [1, 1]} : vector<5x128xf32> to vector<1x128xf32>
    %2143 = vector.extract_strided_slice %2137 {offsets = [0, 0], sizes = [1, 128], strides = [1, 1]} : vector<2x128xf32> to vector<1x128xf32>
    %2144 = vector.extract_strided_slice %2141 {offsets = [0, 0], sizes = [1, 128], strides = [1, 1]} : vector<2x128xf32> to vector<1x128xf32>
    %2145 = arith.mulf %2143, %2144 : vector<1x128xf32>
    %2146 = arith.addf %2142, %2145 : vector<1x128xf32>
    %2147 = vector.extract_strided_slice %2132 {offsets = [1, 0], sizes = [1, 128], strides = [1, 1]} : vector<5x128xf32> to vector<1x128xf32>
    %2148 = vector.extract_strided_slice %2137 {offsets = [1, 0], sizes = [1, 128], strides = [1, 1]} : vector<2x128xf32> to vector<1x128xf32>
    %2149 = vector.extract_strided_slice %2141 {offsets = [0, 0], sizes = [1, 128], strides = [1, 1]} : vector<2x128xf32> to vector<1x128xf32>
    %2150 = arith.mulf %2139, %2149 : vector<1x128xf32>
    %2151 = arith.mulf %2139, %2139 : vector<1x128xf32>
    %cst_205 = arith.constant 1.000000e+00 : f32
    %2152 = vector.broadcast %cst_205 : f32 to vector<1x128xf32>
    %2153 = arith.subf %2152, %2151 : vector<1x128xf32>
    %2154 = math.sqrt %2153 : vector<1x128xf32>
    %2155 = vector.extract_strided_slice %2141 {offsets = [1, 0], sizes = [1, 128], strides = [1, 1]} : vector<2x128xf32> to vector<1x128xf32>
    %2156 = arith.mulf %2154, %2155 : vector<1x128xf32>
    %2157 = arith.addf %2150, %2156 : vector<1x128xf32>
    %2158 = arith.mulf %2148, %2157 : vector<1x128xf32>
    %2159 = arith.addf %2147, %2158 : vector<1x128xf32>
    %2160 = tpu.concatenate %2146, %2159 in 0 : vector<1x128xf32>, vector<1x128xf32> -> vector<2x128xf32>
    %c9_206 = arith.constant 9 : index
    %c0_207 = arith.constant 0 : index
    %c0_208 = arith.constant 0 : index
    %2161 = vector.load %arg24[%c9_206, %c0_207, %c0_208] : memref<13x2x128xf32, #tpu.memory_space<vmem>>, vector<1x2x128xf32>
    %2162 = vector.shape_cast %2161 : vector<1x2x128xf32> to vector<2x128xf32>
    %2163 = vector.shape_cast %2160 : vector<2x128xf32> to vector<1x2x128xf32>
    tpu.vector_store %arg24[%c9_206, %c0_207, %c0_208], %2163 {strides = array<i32>} : memref<13x2x128xf32, #tpu.memory_space<vmem>>, vector<1x2x128xf32>,
    %2164 = vector.broadcast %2146 : vector<1x128xf32> to vector<20x128xf32>
    %2165 = arith.mulf %1165, %2164 : vector<20x128xf32>
    %2166 = arith.addf %1163, %2165 : vector<20x128xf32>
    %2167 = vector.broadcast %2159 : vector<1x128xf32> to vector<20x128xf32>
    %2168 = arith.mulf %1167, %2167 : vector<20x128xf32>
    %2169 = arith.addf %2166, %2168 : vector<20x128xf32>
    %2170 = vector.extract_strided_slice %1130 {offsets = [0, 0, 0], sizes = [1, 20, 128], strides = [1, 1, 1]} : vector<5x20x128xf32> to vector<1x20x128xf32>
    %2171 = vector.shape_cast %2170 : vector<1x20x128xf32> to vector<20x128xf32>
    %2172 = vector.extract_strided_slice %2102 {offsets = [0, 0], sizes = [1, 128], strides = [1, 1]} : vector<5x128xf32> to vector<1x128xf32>
    %2173 = vector.broadcast %2172 : vector<1x128xf32> to vector<20x128xf32>
    %2174 = arith.mulf %2171, %2173 : vector<20x128xf32>
    %2175 = arith.addf %2169, %2174 : vector<20x128xf32>
    %2176 = vector.extract_strided_slice %1130 {offsets = [1, 0, 0], sizes = [1, 20, 128], strides = [1, 1, 1]} : vector<5x20x128xf32> to vector<1x20x128xf32>
    %2177 = vector.shape_cast %2176 : vector<1x20x128xf32> to vector<20x128xf32>
    %2178 = vector.extract_strided_slice %2102 {offsets = [1, 0], sizes = [1, 128], strides = [1, 1]} : vector<5x128xf32> to vector<1x128xf32>
    %2179 = vector.broadcast %2178 : vector<1x128xf32> to vector<20x128xf32>
    %2180 = arith.mulf %2177, %2179 : vector<20x128xf32>
    %2181 = arith.addf %2175, %2180 : vector<20x128xf32>
    %2182 = vector.extract_strided_slice %1130 {offsets = [2, 0, 0], sizes = [1, 20, 128], strides = [1, 1, 1]} : vector<5x20x128xf32> to vector<1x20x128xf32>
    %2183 = vector.shape_cast %2182 : vector<1x20x128xf32> to vector<20x128xf32>
    %2184 = vector.extract_strided_slice %2102 {offsets = [2, 0], sizes = [1, 128], strides = [1, 1]} : vector<5x128xf32> to vector<1x128xf32>
    %2185 = vector.broadcast %2184 : vector<1x128xf32> to vector<20x128xf32>
    %2186 = arith.mulf %2183, %2185 : vector<20x128xf32>
    %2187 = arith.addf %2181, %2186 : vector<20x128xf32>
    %2188 = vector.extract_strided_slice %1130 {offsets = [3, 0, 0], sizes = [1, 20, 128], strides = [1, 1, 1]} : vector<5x20x128xf32> to vector<1x20x128xf32>
    %2189 = vector.shape_cast %2188 : vector<1x20x128xf32> to vector<20x128xf32>
    %2190 = vector.extract_strided_slice %2102 {offsets = [3, 0], sizes = [1, 128], strides = [1, 1]} : vector<5x128xf32> to vector<1x128xf32>
    %2191 = vector.broadcast %2190 : vector<1x128xf32> to vector<20x128xf32>
    %2192 = arith.mulf %2189, %2191 : vector<20x128xf32>
    %2193 = arith.addf %2187, %2192 : vector<20x128xf32>
    %2194 = vector.extract_strided_slice %1130 {offsets = [4, 0, 0], sizes = [1, 20, 128], strides = [1, 1, 1]} : vector<5x20x128xf32> to vector<1x20x128xf32>
    %2195 = vector.shape_cast %2194 : vector<1x20x128xf32> to vector<20x128xf32>
    %2196 = vector.extract_strided_slice %2102 {offsets = [4, 0], sizes = [1, 128], strides = [1, 1]} : vector<5x128xf32> to vector<1x128xf32>
    %2197 = vector.broadcast %2196 : vector<1x128xf32> to vector<20x128xf32>
    %2198 = arith.mulf %2195, %2197 : vector<20x128xf32>
    %2199 = arith.addf %2193, %2198 : vector<20x128xf32>
    %2200 = vector.extract_strided_slice %2199 {offsets = [0, 0], sizes = [15, 128], strides = [1, 1]} : vector<20x128xf32> to vector<15x128xf32>
    %2201 = arith.negf %2200 : vector<15x128xf32>
    %2202 = math.exp %2201 : vector<15x128xf32>
    %cst_209 = arith.constant 1.000000e+00 : f32
    %2203 = vector.broadcast %cst_209 : f32 to vector<15x128xf32>
    %2204 = arith.addf %2203, %2202 : vector<15x128xf32>
    %2205 = arith.divf %2203, %2204 : vector<15x128xf32>
    %2206 = vector.extract_strided_slice %2199 {offsets = [15, 0], sizes = [5, 128], strides = [1, 1]} : vector<20x128xf32> to vector<5x128xf32>
    %2207 = math.tanh %2206 : vector<5x128xf32>
    %2208 = vector.extract_strided_slice %2205 {offsets = [5, 0], sizes = [5, 128], strides = [1, 1]} : vector<15x128xf32> to vector<5x128xf32>
    %2209 = arith.mulf %2208, %2099 : vector<5x128xf32>
    %2210 = vector.extract_strided_slice %2205 {offsets = [0, 0], sizes = [5, 128], strides = [1, 1]} : vector<15x128xf32> to vector<5x128xf32>
    %2211 = arith.mulf %2210, %2207 : vector<5x128xf32>
    %2212 = arith.addf %2209, %2211 : vector<5x128xf32>
    %2213 = vector.extract_strided_slice %2205 {offsets = [10, 0], sizes = [5, 128], strides = [1, 1]} : vector<15x128xf32> to vector<5x128xf32>
    %2214 = math.tanh %2212 : vector<5x128xf32>
    %2215 = arith.mulf %2213, %2214 : vector<5x128xf32>
    %2216 = vector.extract_strided_slice %1132 {offsets = [0, 0, 0], sizes = [1, 5, 128], strides = [1, 1, 1]} : vector<5x5x128xf32> to vector<1x5x128xf32>
    %2217 = vector.shape_cast %2216 : vector<1x5x128xf32> to vector<5x128xf32>
    %2218 = vector.extract_strided_slice %2215 {offsets = [0, 0], sizes = [1, 128], strides = [1, 1]} : vector<5x128xf32> to vector<1x128xf32>
    %2219 = vector.broadcast %2218 : vector<1x128xf32> to vector<5x128xf32>
    %2220 = arith.mulf %2217, %2219 : vector<5x128xf32>
    %2221 = arith.addf %1133, %2220 : vector<5x128xf32>
    %2222 = vector.extract_strided_slice %1132 {offsets = [1, 0, 0], sizes = [1, 5, 128], strides = [1, 1, 1]} : vector<5x5x128xf32> to vector<1x5x128xf32>
    %2223 = vector.shape_cast %2222 : vector<1x5x128xf32> to vector<5x128xf32>
    %2224 = vector.extract_strided_slice %2215 {offsets = [1, 0], sizes = [1, 128], strides = [1, 1]} : vector<5x128xf32> to vector<1x128xf32>
    %2225 = vector.broadcast %2224 : vector<1x128xf32> to vector<5x128xf32>
    %2226 = arith.mulf %2223, %2225 : vector<5x128xf32>
    %2227 = arith.addf %2221, %2226 : vector<5x128xf32>
    %2228 = vector.extract_strided_slice %1132 {offsets = [2, 0, 0], sizes = [1, 5, 128], strides = [1, 1, 1]} : vector<5x5x128xf32> to vector<1x5x128xf32>
    %2229 = vector.shape_cast %2228 : vector<1x5x128xf32> to vector<5x128xf32>
    %2230 = vector.extract_strided_slice %2215 {offsets = [2, 0], sizes = [1, 128], strides = [1, 1]} : vector<5x128xf32> to vector<1x128xf32>
    %2231 = vector.broadcast %2230 : vector<1x128xf32> to vector<5x128xf32>
    %2232 = arith.mulf %2229, %2231 : vector<5x128xf32>
    %2233 = arith.addf %2227, %2232 : vector<5x128xf32>
    %2234 = vector.extract_strided_slice %1132 {offsets = [3, 0, 0], sizes = [1, 5, 128], strides = [1, 1, 1]} : vector<5x5x128xf32> to vector<1x5x128xf32>
    %2235 = vector.shape_cast %2234 : vector<1x5x128xf32> to vector<5x128xf32>
    %2236 = vector.extract_strided_slice %2215 {offsets = [3, 0], sizes = [1, 128], strides = [1, 1]} : vector<5x128xf32> to vector<1x128xf32>
    %2237 = vector.broadcast %2236 : vector<1x128xf32> to vector<5x128xf32>
    %2238 = arith.mulf %2235, %2237 : vector<5x128xf32>
    %2239 = arith.addf %2233, %2238 : vector<5x128xf32>
    %2240 = vector.extract_strided_slice %1132 {offsets = [4, 0, 0], sizes = [1, 5, 128], strides = [1, 1, 1]} : vector<5x5x128xf32> to vector<1x5x128xf32>
    %2241 = vector.shape_cast %2240 : vector<1x5x128xf32> to vector<5x128xf32>
    %2242 = vector.extract_strided_slice %2215 {offsets = [4, 0], sizes = [1, 128], strides = [1, 1]} : vector<5x128xf32> to vector<1x128xf32>
    %2243 = vector.broadcast %2242 : vector<1x128xf32> to vector<5x128xf32>
    %2244 = arith.mulf %2241, %2243 : vector<5x128xf32>
    %2245 = arith.addf %2239, %2244 : vector<5x128xf32>
    %c9_210 = arith.constant 9 : index
    %c0_211 = arith.constant 0 : index
    %c0_212 = arith.constant 0 : index
    %2246 = vector.load %arg23[%c9_210, %c0_211, %c0_212] : memref<12x5x128xf32, #tpu.memory_space<vmem>>, vector<1x5x128xf32>
    %2247 = vector.shape_cast %2246 : vector<1x5x128xf32> to vector<5x128xf32>
    %2248 = vector.shape_cast %2245 : vector<5x128xf32> to vector<1x5x128xf32>
    tpu.vector_store %arg23[%c9_210, %c0_211, %c0_212], %2248 {strides = array<i32>} : memref<12x5x128xf32, #tpu.memory_space<vmem>>, vector<1x5x128xf32>,
    %2249 = vector.extract_strided_slice %2245 {offsets = [2, 0], sizes = [2, 128], strides = [1, 1]} : vector<5x128xf32> to vector<2x128xf32>
    %2250 = math.exp %2249 : vector<2x128xf32>
    %2251 = vector.extract_strided_slice %2245 {offsets = [4, 0], sizes = [1, 128], strides = [1, 1]} : vector<5x128xf32> to vector<1x128xf32>
    %2252 = math.tanh %2251 : vector<1x128xf32>
    %c9_213 = arith.constant 9 : index
    %c0_214 = arith.constant 0 : index
    %c0_215 = arith.constant 0 : index
    %2253 = vector.load %arg3[%c9_213, %c0_214, %c0_215] : memref<12x2x128xf32, #tpu.memory_space<vmem>>, vector<1x2x128xf32>
    %2254 = vector.shape_cast %2253 : vector<1x2x128xf32> to vector<2x128xf32>
    %2255 = vector.extract_strided_slice %2245 {offsets = [0, 0], sizes = [1, 128], strides = [1, 1]} : vector<5x128xf32> to vector<1x128xf32>
    %2256 = vector.extract_strided_slice %2250 {offsets = [0, 0], sizes = [1, 128], strides = [1, 1]} : vector<2x128xf32> to vector<1x128xf32>
    %2257 = vector.extract_strided_slice %2254 {offsets = [0, 0], sizes = [1, 128], strides = [1, 1]} : vector<2x128xf32> to vector<1x128xf32>
    %2258 = arith.mulf %2256, %2257 : vector<1x128xf32>
    %2259 = arith.addf %2255, %2258 : vector<1x128xf32>
    %2260 = vector.extract_strided_slice %2245 {offsets = [1, 0], sizes = [1, 128], strides = [1, 1]} : vector<5x128xf32> to vector<1x128xf32>
    %2261 = vector.extract_strided_slice %2250 {offsets = [1, 0], sizes = [1, 128], strides = [1, 1]} : vector<2x128xf32> to vector<1x128xf32>
    %2262 = vector.extract_strided_slice %2254 {offsets = [0, 0], sizes = [1, 128], strides = [1, 1]} : vector<2x128xf32> to vector<1x128xf32>
    %2263 = arith.mulf %2252, %2262 : vector<1x128xf32>
    %2264 = arith.mulf %2252, %2252 : vector<1x128xf32>
    %cst_216 = arith.constant 1.000000e+00 : f32
    %2265 = vector.broadcast %cst_216 : f32 to vector<1x128xf32>
    %2266 = arith.subf %2265, %2264 : vector<1x128xf32>
    %2267 = math.sqrt %2266 : vector<1x128xf32>
    %2268 = vector.extract_strided_slice %2254 {offsets = [1, 0], sizes = [1, 128], strides = [1, 1]} : vector<2x128xf32> to vector<1x128xf32>
    %2269 = arith.mulf %2267, %2268 : vector<1x128xf32>
    %2270 = arith.addf %2263, %2269 : vector<1x128xf32>
    %2271 = arith.mulf %2261, %2270 : vector<1x128xf32>
    %2272 = arith.addf %2260, %2271 : vector<1x128xf32>
    %2273 = tpu.concatenate %2259, %2272 in 0 : vector<1x128xf32>, vector<1x128xf32> -> vector<2x128xf32>
    %c10_217 = arith.constant 10 : index
    %c0_218 = arith.constant 0 : index
    %c0_219 = arith.constant 0 : index
    %2274 = vector.load %arg24[%c10_217, %c0_218, %c0_219] : memref<13x2x128xf32, #tpu.memory_space<vmem>>, vector<1x2x128xf32>
    %2275 = vector.shape_cast %2274 : vector<1x2x128xf32> to vector<2x128xf32>
    %2276 = vector.shape_cast %2273 : vector<2x128xf32> to vector<1x2x128xf32>
    tpu.vector_store %arg24[%c10_217, %c0_218, %c0_219], %2276 {strides = array<i32>} : memref<13x2x128xf32, #tpu.memory_space<vmem>>, vector<1x2x128xf32>,
    %2277 = vector.broadcast %2259 : vector<1x128xf32> to vector<20x128xf32>
    %2278 = arith.mulf %1165, %2277 : vector<20x128xf32>
    %2279 = arith.addf %1163, %2278 : vector<20x128xf32>
    %2280 = vector.broadcast %2272 : vector<1x128xf32> to vector<20x128xf32>
    %2281 = arith.mulf %1167, %2280 : vector<20x128xf32>
    %2282 = arith.addf %2279, %2281 : vector<20x128xf32>
    %2283 = vector.extract_strided_slice %1130 {offsets = [0, 0, 0], sizes = [1, 20, 128], strides = [1, 1, 1]} : vector<5x20x128xf32> to vector<1x20x128xf32>
    %2284 = vector.shape_cast %2283 : vector<1x20x128xf32> to vector<20x128xf32>
    %2285 = vector.extract_strided_slice %2215 {offsets = [0, 0], sizes = [1, 128], strides = [1, 1]} : vector<5x128xf32> to vector<1x128xf32>
    %2286 = vector.broadcast %2285 : vector<1x128xf32> to vector<20x128xf32>
    %2287 = arith.mulf %2284, %2286 : vector<20x128xf32>
    %2288 = arith.addf %2282, %2287 : vector<20x128xf32>
    %2289 = vector.extract_strided_slice %1130 {offsets = [1, 0, 0], sizes = [1, 20, 128], strides = [1, 1, 1]} : vector<5x20x128xf32> to vector<1x20x128xf32>
    %2290 = vector.shape_cast %2289 : vector<1x20x128xf32> to vector<20x128xf32>
    %2291 = vector.extract_strided_slice %2215 {offsets = [1, 0], sizes = [1, 128], strides = [1, 1]} : vector<5x128xf32> to vector<1x128xf32>
    %2292 = vector.broadcast %2291 : vector<1x128xf32> to vector<20x128xf32>
    %2293 = arith.mulf %2290, %2292 : vector<20x128xf32>
    %2294 = arith.addf %2288, %2293 : vector<20x128xf32>
    %2295 = vector.extract_strided_slice %1130 {offsets = [2, 0, 0], sizes = [1, 20, 128], strides = [1, 1, 1]} : vector<5x20x128xf32> to vector<1x20x128xf32>
    %2296 = vector.shape_cast %2295 : vector<1x20x128xf32> to vector<20x128xf32>
    %2297 = vector.extract_strided_slice %2215 {offsets = [2, 0], sizes = [1, 128], strides = [1, 1]} : vector<5x128xf32> to vector<1x128xf32>
    %2298 = vector.broadcast %2297 : vector<1x128xf32> to vector<20x128xf32>
    %2299 = arith.mulf %2296, %2298 : vector<20x128xf32>
    %2300 = arith.addf %2294, %2299 : vector<20x128xf32>
    %2301 = vector.extract_strided_slice %1130 {offsets = [3, 0, 0], sizes = [1, 20, 128], strides = [1, 1, 1]} : vector<5x20x128xf32> to vector<1x20x128xf32>
    %2302 = vector.shape_cast %2301 : vector<1x20x128xf32> to vector<20x128xf32>
    %2303 = vector.extract_strided_slice %2215 {offsets = [3, 0], sizes = [1, 128], strides = [1, 1]} : vector<5x128xf32> to vector<1x128xf32>
    %2304 = vector.broadcast %2303 : vector<1x128xf32> to vector<20x128xf32>
    %2305 = arith.mulf %2302, %2304 : vector<20x128xf32>
    %2306 = arith.addf %2300, %2305 : vector<20x128xf32>
    %2307 = vector.extract_strided_slice %1130 {offsets = [4, 0, 0], sizes = [1, 20, 128], strides = [1, 1, 1]} : vector<5x20x128xf32> to vector<1x20x128xf32>
    %2308 = vector.shape_cast %2307 : vector<1x20x128xf32> to vector<20x128xf32>
    %2309 = vector.extract_strided_slice %2215 {offsets = [4, 0], sizes = [1, 128], strides = [1, 1]} : vector<5x128xf32> to vector<1x128xf32>
    %2310 = vector.broadcast %2309 : vector<1x128xf32> to vector<20x128xf32>
    %2311 = arith.mulf %2308, %2310 : vector<20x128xf32>
    %2312 = arith.addf %2306, %2311 : vector<20x128xf32>
    %2313 = vector.extract_strided_slice %2312 {offsets = [0, 0], sizes = [15, 128], strides = [1, 1]} : vector<20x128xf32> to vector<15x128xf32>
    %2314 = arith.negf %2313 : vector<15x128xf32>
    %2315 = math.exp %2314 : vector<15x128xf32>
    %cst_220 = arith.constant 1.000000e+00 : f32
    %2316 = vector.broadcast %cst_220 : f32 to vector<15x128xf32>
    %2317 = arith.addf %2316, %2315 : vector<15x128xf32>
    %2318 = arith.divf %2316, %2317 : vector<15x128xf32>
    %2319 = vector.extract_strided_slice %2312 {offsets = [15, 0], sizes = [5, 128], strides = [1, 1]} : vector<20x128xf32> to vector<5x128xf32>
    %2320 = math.tanh %2319 : vector<5x128xf32>
    %2321 = vector.extract_strided_slice %2318 {offsets = [5, 0], sizes = [5, 128], strides = [1, 1]} : vector<15x128xf32> to vector<5x128xf32>
    %2322 = arith.mulf %2321, %2212 : vector<5x128xf32>
    %2323 = vector.extract_strided_slice %2318 {offsets = [0, 0], sizes = [5, 128], strides = [1, 1]} : vector<15x128xf32> to vector<5x128xf32>
    %2324 = arith.mulf %2323, %2320 : vector<5x128xf32>
    %2325 = arith.addf %2322, %2324 : vector<5x128xf32>
    %2326 = vector.extract_strided_slice %2318 {offsets = [10, 0], sizes = [5, 128], strides = [1, 1]} : vector<15x128xf32> to vector<5x128xf32>
    %2327 = math.tanh %2325 : vector<5x128xf32>
    %2328 = arith.mulf %2326, %2327 : vector<5x128xf32>
    %2329 = vector.extract_strided_slice %1132 {offsets = [0, 0, 0], sizes = [1, 5, 128], strides = [1, 1, 1]} : vector<5x5x128xf32> to vector<1x5x128xf32>
    %2330 = vector.shape_cast %2329 : vector<1x5x128xf32> to vector<5x128xf32>
    %2331 = vector.extract_strided_slice %2328 {offsets = [0, 0], sizes = [1, 128], strides = [1, 1]} : vector<5x128xf32> to vector<1x128xf32>
    %2332 = vector.broadcast %2331 : vector<1x128xf32> to vector<5x128xf32>
    %2333 = arith.mulf %2330, %2332 : vector<5x128xf32>
    %2334 = arith.addf %1133, %2333 : vector<5x128xf32>
    %2335 = vector.extract_strided_slice %1132 {offsets = [1, 0, 0], sizes = [1, 5, 128], strides = [1, 1, 1]} : vector<5x5x128xf32> to vector<1x5x128xf32>
    %2336 = vector.shape_cast %2335 : vector<1x5x128xf32> to vector<5x128xf32>
    %2337 = vector.extract_strided_slice %2328 {offsets = [1, 0], sizes = [1, 128], strides = [1, 1]} : vector<5x128xf32> to vector<1x128xf32>
    %2338 = vector.broadcast %2337 : vector<1x128xf32> to vector<5x128xf32>
    %2339 = arith.mulf %2336, %2338 : vector<5x128xf32>
    %2340 = arith.addf %2334, %2339 : vector<5x128xf32>
    %2341 = vector.extract_strided_slice %1132 {offsets = [2, 0, 0], sizes = [1, 5, 128], strides = [1, 1, 1]} : vector<5x5x128xf32> to vector<1x5x128xf32>
    %2342 = vector.shape_cast %2341 : vector<1x5x128xf32> to vector<5x128xf32>
    %2343 = vector.extract_strided_slice %2328 {offsets = [2, 0], sizes = [1, 128], strides = [1, 1]} : vector<5x128xf32> to vector<1x128xf32>
    %2344 = vector.broadcast %2343 : vector<1x128xf32> to vector<5x128xf32>
    %2345 = arith.mulf %2342, %2344 : vector<5x128xf32>
    %2346 = arith.addf %2340, %2345 : vector<5x128xf32>
    %2347 = vector.extract_strided_slice %1132 {offsets = [3, 0, 0], sizes = [1, 5, 128], strides = [1, 1, 1]} : vector<5x5x128xf32> to vector<1x5x128xf32>
    %2348 = vector.shape_cast %2347 : vector<1x5x128xf32> to vector<5x128xf32>
    %2349 = vector.extract_strided_slice %2328 {offsets = [3, 0], sizes = [1, 128], strides = [1, 1]} : vector<5x128xf32> to vector<1x128xf32>
    %2350 = vector.broadcast %2349 : vector<1x128xf32> to vector<5x128xf32>
    %2351 = arith.mulf %2348, %2350 : vector<5x128xf32>
    %2352 = arith.addf %2346, %2351 : vector<5x128xf32>
    %2353 = vector.extract_strided_slice %1132 {offsets = [4, 0, 0], sizes = [1, 5, 128], strides = [1, 1, 1]} : vector<5x5x128xf32> to vector<1x5x128xf32>
    %2354 = vector.shape_cast %2353 : vector<1x5x128xf32> to vector<5x128xf32>
    %2355 = vector.extract_strided_slice %2328 {offsets = [4, 0], sizes = [1, 128], strides = [1, 1]} : vector<5x128xf32> to vector<1x128xf32>
    %2356 = vector.broadcast %2355 : vector<1x128xf32> to vector<5x128xf32>
    %2357 = arith.mulf %2354, %2356 : vector<5x128xf32>
    %2358 = arith.addf %2352, %2357 : vector<5x128xf32>
    %c10_221 = arith.constant 10 : index
    %c0_222 = arith.constant 0 : index
    %c0_223 = arith.constant 0 : index
    %2359 = vector.load %arg23[%c10_221, %c0_222, %c0_223] : memref<12x5x128xf32, #tpu.memory_space<vmem>>, vector<1x5x128xf32>
    %2360 = vector.shape_cast %2359 : vector<1x5x128xf32> to vector<5x128xf32>
    %2361 = vector.shape_cast %2358 : vector<5x128xf32> to vector<1x5x128xf32>
    tpu.vector_store %arg23[%c10_221, %c0_222, %c0_223], %2361 {strides = array<i32>} : memref<12x5x128xf32, #tpu.memory_space<vmem>>, vector<1x5x128xf32>,
    %2362 = vector.extract_strided_slice %2358 {offsets = [2, 0], sizes = [2, 128], strides = [1, 1]} : vector<5x128xf32> to vector<2x128xf32>
    %2363 = math.exp %2362 : vector<2x128xf32>
    %2364 = vector.extract_strided_slice %2358 {offsets = [4, 0], sizes = [1, 128], strides = [1, 1]} : vector<5x128xf32> to vector<1x128xf32>
    %2365 = math.tanh %2364 : vector<1x128xf32>
    %c10_224 = arith.constant 10 : index
    %c0_225 = arith.constant 0 : index
    %c0_226 = arith.constant 0 : index
    %2366 = vector.load %arg3[%c10_224, %c0_225, %c0_226] : memref<12x2x128xf32, #tpu.memory_space<vmem>>, vector<1x2x128xf32>
    %2367 = vector.shape_cast %2366 : vector<1x2x128xf32> to vector<2x128xf32>
    %2368 = vector.extract_strided_slice %2358 {offsets = [0, 0], sizes = [1, 128], strides = [1, 1]} : vector<5x128xf32> to vector<1x128xf32>
    %2369 = vector.extract_strided_slice %2363 {offsets = [0, 0], sizes = [1, 128], strides = [1, 1]} : vector<2x128xf32> to vector<1x128xf32>
    %2370 = vector.extract_strided_slice %2367 {offsets = [0, 0], sizes = [1, 128], strides = [1, 1]} : vector<2x128xf32> to vector<1x128xf32>
    %2371 = arith.mulf %2369, %2370 : vector<1x128xf32>
    %2372 = arith.addf %2368, %2371 : vector<1x128xf32>
    %2373 = vector.extract_strided_slice %2358 {offsets = [1, 0], sizes = [1, 128], strides = [1, 1]} : vector<5x128xf32> to vector<1x128xf32>
    %2374 = vector.extract_strided_slice %2363 {offsets = [1, 0], sizes = [1, 128], strides = [1, 1]} : vector<2x128xf32> to vector<1x128xf32>
    %2375 = vector.extract_strided_slice %2367 {offsets = [0, 0], sizes = [1, 128], strides = [1, 1]} : vector<2x128xf32> to vector<1x128xf32>
    %2376 = arith.mulf %2365, %2375 : vector<1x128xf32>
    %2377 = arith.mulf %2365, %2365 : vector<1x128xf32>
    %cst_227 = arith.constant 1.000000e+00 : f32
    %2378 = vector.broadcast %cst_227 : f32 to vector<1x128xf32>
    %2379 = arith.subf %2378, %2377 : vector<1x128xf32>
    %2380 = math.sqrt %2379 : vector<1x128xf32>
    %2381 = vector.extract_strided_slice %2367 {offsets = [1, 0], sizes = [1, 128], strides = [1, 1]} : vector<2x128xf32> to vector<1x128xf32>
    %2382 = arith.mulf %2380, %2381 : vector<1x128xf32>
    %2383 = arith.addf %2376, %2382 : vector<1x128xf32>
    %2384 = arith.mulf %2374, %2383 : vector<1x128xf32>
    %2385 = arith.addf %2373, %2384 : vector<1x128xf32>
    %2386 = tpu.concatenate %2372, %2385 in 0 : vector<1x128xf32>, vector<1x128xf32> -> vector<2x128xf32>
    %c11_228 = arith.constant 11 : index
    %c0_229 = arith.constant 0 : index
    %c0_230 = arith.constant 0 : index
    %2387 = vector.load %arg24[%c11_228, %c0_229, %c0_230] : memref<13x2x128xf32, #tpu.memory_space<vmem>>, vector<1x2x128xf32>
    %2388 = vector.shape_cast %2387 : vector<1x2x128xf32> to vector<2x128xf32>
    %2389 = vector.shape_cast %2386 : vector<2x128xf32> to vector<1x2x128xf32>
    tpu.vector_store %arg24[%c11_228, %c0_229, %c0_230], %2389 {strides = array<i32>} : memref<13x2x128xf32, #tpu.memory_space<vmem>>, vector<1x2x128xf32>,
    %2390 = vector.broadcast %2372 : vector<1x128xf32> to vector<20x128xf32>
    %2391 = arith.mulf %1165, %2390 : vector<20x128xf32>
    %2392 = arith.addf %1163, %2391 : vector<20x128xf32>
    %2393 = vector.broadcast %2385 : vector<1x128xf32> to vector<20x128xf32>
    %2394 = arith.mulf %1167, %2393 : vector<20x128xf32>
    %2395 = arith.addf %2392, %2394 : vector<20x128xf32>
    %2396 = vector.extract_strided_slice %1130 {offsets = [0, 0, 0], sizes = [1, 20, 128], strides = [1, 1, 1]} : vector<5x20x128xf32> to vector<1x20x128xf32>
    %2397 = vector.shape_cast %2396 : vector<1x20x128xf32> to vector<20x128xf32>
    %2398 = vector.extract_strided_slice %2328 {offsets = [0, 0], sizes = [1, 128], strides = [1, 1]} : vector<5x128xf32> to vector<1x128xf32>
    %2399 = vector.broadcast %2398 : vector<1x128xf32> to vector<20x128xf32>
    %2400 = arith.mulf %2397, %2399 : vector<20x128xf32>
    %2401 = arith.addf %2395, %2400 : vector<20x128xf32>
    %2402 = vector.extract_strided_slice %1130 {offsets = [1, 0, 0], sizes = [1, 20, 128], strides = [1, 1, 1]} : vector<5x20x128xf32> to vector<1x20x128xf32>
    %2403 = vector.shape_cast %2402 : vector<1x20x128xf32> to vector<20x128xf32>
    %2404 = vector.extract_strided_slice %2328 {offsets = [1, 0], sizes = [1, 128], strides = [1, 1]} : vector<5x128xf32> to vector<1x128xf32>
    %2405 = vector.broadcast %2404 : vector<1x128xf32> to vector<20x128xf32>
    %2406 = arith.mulf %2403, %2405 : vector<20x128xf32>
    %2407 = arith.addf %2401, %2406 : vector<20x128xf32>
    %2408 = vector.extract_strided_slice %1130 {offsets = [2, 0, 0], sizes = [1, 20, 128], strides = [1, 1, 1]} : vector<5x20x128xf32> to vector<1x20x128xf32>
    %2409 = vector.shape_cast %2408 : vector<1x20x128xf32> to vector<20x128xf32>
    %2410 = vector.extract_strided_slice %2328 {offsets = [2, 0], sizes = [1, 128], strides = [1, 1]} : vector<5x128xf32> to vector<1x128xf32>
    %2411 = vector.broadcast %2410 : vector<1x128xf32> to vector<20x128xf32>
    %2412 = arith.mulf %2409, %2411 : vector<20x128xf32>
    %2413 = arith.addf %2407, %2412 : vector<20x128xf32>
    %2414 = vector.extract_strided_slice %1130 {offsets = [3, 0, 0], sizes = [1, 20, 128], strides = [1, 1, 1]} : vector<5x20x128xf32> to vector<1x20x128xf32>
    %2415 = vector.shape_cast %2414 : vector<1x20x128xf32> to vector<20x128xf32>
    %2416 = vector.extract_strided_slice %2328 {offsets = [3, 0], sizes = [1, 128], strides = [1, 1]} : vector<5x128xf32> to vector<1x128xf32>
    %2417 = vector.broadcast %2416 : vector<1x128xf32> to vector<20x128xf32>
    %2418 = arith.mulf %2415, %2417 : vector<20x128xf32>
    %2419 = arith.addf %2413, %2418 : vector<20x128xf32>
    %2420 = vector.extract_strided_slice %1130 {offsets = [4, 0, 0], sizes = [1, 20, 128], strides = [1, 1, 1]} : vector<5x20x128xf32> to vector<1x20x128xf32>
    %2421 = vector.shape_cast %2420 : vector<1x20x128xf32> to vector<20x128xf32>
    %2422 = vector.extract_strided_slice %2328 {offsets = [4, 0], sizes = [1, 128], strides = [1, 1]} : vector<5x128xf32> to vector<1x128xf32>
    %2423 = vector.broadcast %2422 : vector<1x128xf32> to vector<20x128xf32>
    %2424 = arith.mulf %2421, %2423 : vector<20x128xf32>
    %2425 = arith.addf %2419, %2424 : vector<20x128xf32>
    %2426 = vector.extract_strided_slice %2425 {offsets = [0, 0], sizes = [15, 128], strides = [1, 1]} : vector<20x128xf32> to vector<15x128xf32>
    %2427 = arith.negf %2426 : vector<15x128xf32>
    %2428 = math.exp %2427 : vector<15x128xf32>
    %cst_231 = arith.constant 1.000000e+00 : f32
    %2429 = vector.broadcast %cst_231 : f32 to vector<15x128xf32>
    %2430 = arith.addf %2429, %2428 : vector<15x128xf32>
    %2431 = arith.divf %2429, %2430 : vector<15x128xf32>
    %2432 = vector.extract_strided_slice %2425 {offsets = [15, 0], sizes = [5, 128], strides = [1, 1]} : vector<20x128xf32> to vector<5x128xf32>
    %2433 = math.tanh %2432 : vector<5x128xf32>
    %2434 = vector.extract_strided_slice %2431 {offsets = [5, 0], sizes = [5, 128], strides = [1, 1]} : vector<15x128xf32> to vector<5x128xf32>
    %2435 = arith.mulf %2434, %2325 : vector<5x128xf32>
    %2436 = vector.extract_strided_slice %2431 {offsets = [0, 0], sizes = [5, 128], strides = [1, 1]} : vector<15x128xf32> to vector<5x128xf32>
    %2437 = arith.mulf %2436, %2433 : vector<5x128xf32>
    %2438 = arith.addf %2435, %2437 : vector<5x128xf32>
    %2439 = vector.extract_strided_slice %2431 {offsets = [10, 0], sizes = [5, 128], strides = [1, 1]} : vector<15x128xf32> to vector<5x128xf32>
    %2440 = math.tanh %2438 : vector<5x128xf32>
    %2441 = arith.mulf %2439, %2440 : vector<5x128xf32>
    %2442 = vector.extract_strided_slice %1132 {offsets = [0, 0, 0], sizes = [1, 5, 128], strides = [1, 1, 1]} : vector<5x5x128xf32> to vector<1x5x128xf32>
    %2443 = vector.shape_cast %2442 : vector<1x5x128xf32> to vector<5x128xf32>
    %2444 = vector.extract_strided_slice %2441 {offsets = [0, 0], sizes = [1, 128], strides = [1, 1]} : vector<5x128xf32> to vector<1x128xf32>
    %2445 = vector.broadcast %2444 : vector<1x128xf32> to vector<5x128xf32>
    %2446 = arith.mulf %2443, %2445 : vector<5x128xf32>
    %2447 = arith.addf %1133, %2446 : vector<5x128xf32>
    %2448 = vector.extract_strided_slice %1132 {offsets = [1, 0, 0], sizes = [1, 5, 128], strides = [1, 1, 1]} : vector<5x5x128xf32> to vector<1x5x128xf32>
    %2449 = vector.shape_cast %2448 : vector<1x5x128xf32> to vector<5x128xf32>
    %2450 = vector.extract_strided_slice %2441 {offsets = [1, 0], sizes = [1, 128], strides = [1, 1]} : vector<5x128xf32> to vector<1x128xf32>
    %2451 = vector.broadcast %2450 : vector<1x128xf32> to vector<5x128xf32>
    %2452 = arith.mulf %2449, %2451 : vector<5x128xf32>
    %2453 = arith.addf %2447, %2452 : vector<5x128xf32>
    %2454 = vector.extract_strided_slice %1132 {offsets = [2, 0, 0], sizes = [1, 5, 128], strides = [1, 1, 1]} : vector<5x5x128xf32> to vector<1x5x128xf32>
    %2455 = vector.shape_cast %2454 : vector<1x5x128xf32> to vector<5x128xf32>
    %2456 = vector.extract_strided_slice %2441 {offsets = [2, 0], sizes = [1, 128], strides = [1, 1]} : vector<5x128xf32> to vector<1x128xf32>
    %2457 = vector.broadcast %2456 : vector<1x128xf32> to vector<5x128xf32>
    %2458 = arith.mulf %2455, %2457 : vector<5x128xf32>
    %2459 = arith.addf %2453, %2458 : vector<5x128xf32>
    %2460 = vector.extract_strided_slice %1132 {offsets = [3, 0, 0], sizes = [1, 5, 128], strides = [1, 1, 1]} : vector<5x5x128xf32> to vector<1x5x128xf32>
    %2461 = vector.shape_cast %2460 : vector<1x5x128xf32> to vector<5x128xf32>
    %2462 = vector.extract_strided_slice %2441 {offsets = [3, 0], sizes = [1, 128], strides = [1, 1]} : vector<5x128xf32> to vector<1x128xf32>
    %2463 = vector.broadcast %2462 : vector<1x128xf32> to vector<5x128xf32>
    %2464 = arith.mulf %2461, %2463 : vector<5x128xf32>
    %2465 = arith.addf %2459, %2464 : vector<5x128xf32>
    %2466 = vector.extract_strided_slice %1132 {offsets = [4, 0, 0], sizes = [1, 5, 128], strides = [1, 1, 1]} : vector<5x5x128xf32> to vector<1x5x128xf32>
    %2467 = vector.shape_cast %2466 : vector<1x5x128xf32> to vector<5x128xf32>
    %2468 = vector.extract_strided_slice %2441 {offsets = [4, 0], sizes = [1, 128], strides = [1, 1]} : vector<5x128xf32> to vector<1x128xf32>
    %2469 = vector.broadcast %2468 : vector<1x128xf32> to vector<5x128xf32>
    %2470 = arith.mulf %2467, %2469 : vector<5x128xf32>
    %2471 = arith.addf %2465, %2470 : vector<5x128xf32>
    %c11_232 = arith.constant 11 : index
    %c0_233 = arith.constant 0 : index
    %c0_234 = arith.constant 0 : index
    %2472 = vector.load %arg23[%c11_232, %c0_233, %c0_234] : memref<12x5x128xf32, #tpu.memory_space<vmem>>, vector<1x5x128xf32>
    %2473 = vector.shape_cast %2472 : vector<1x5x128xf32> to vector<5x128xf32>
    %2474 = vector.shape_cast %2471 : vector<5x128xf32> to vector<1x5x128xf32>
    tpu.vector_store %arg23[%c11_232, %c0_233, %c0_234], %2474 {strides = array<i32>} : memref<12x5x128xf32, #tpu.memory_space<vmem>>, vector<1x5x128xf32>,
    %2475 = vector.extract_strided_slice %2471 {offsets = [2, 0], sizes = [2, 128], strides = [1, 1]} : vector<5x128xf32> to vector<2x128xf32>
    %2476 = math.exp %2475 : vector<2x128xf32>
    %2477 = vector.extract_strided_slice %2471 {offsets = [4, 0], sizes = [1, 128], strides = [1, 1]} : vector<5x128xf32> to vector<1x128xf32>
    %2478 = math.tanh %2477 : vector<1x128xf32>
    %c11_235 = arith.constant 11 : index
    %c0_236 = arith.constant 0 : index
    %c0_237 = arith.constant 0 : index
    %2479 = vector.load %arg3[%c11_235, %c0_236, %c0_237] : memref<12x2x128xf32, #tpu.memory_space<vmem>>, vector<1x2x128xf32>
    %2480 = vector.shape_cast %2479 : vector<1x2x128xf32> to vector<2x128xf32>
    %2481 = vector.extract_strided_slice %2471 {offsets = [0, 0], sizes = [1, 128], strides = [1, 1]} : vector<5x128xf32> to vector<1x128xf32>
    %2482 = vector.extract_strided_slice %2476 {offsets = [0, 0], sizes = [1, 128], strides = [1, 1]} : vector<2x128xf32> to vector<1x128xf32>
    %2483 = vector.extract_strided_slice %2480 {offsets = [0, 0], sizes = [1, 128], strides = [1, 1]} : vector<2x128xf32> to vector<1x128xf32>
    %2484 = arith.mulf %2482, %2483 : vector<1x128xf32>
    %2485 = arith.addf %2481, %2484 : vector<1x128xf32>
    %2486 = vector.extract_strided_slice %2471 {offsets = [1, 0], sizes = [1, 128], strides = [1, 1]} : vector<5x128xf32> to vector<1x128xf32>
    %2487 = vector.extract_strided_slice %2476 {offsets = [1, 0], sizes = [1, 128], strides = [1, 1]} : vector<2x128xf32> to vector<1x128xf32>
    %2488 = vector.extract_strided_slice %2480 {offsets = [0, 0], sizes = [1, 128], strides = [1, 1]} : vector<2x128xf32> to vector<1x128xf32>
    %2489 = arith.mulf %2478, %2488 : vector<1x128xf32>
    %2490 = arith.mulf %2478, %2478 : vector<1x128xf32>
    %cst_238 = arith.constant 1.000000e+00 : f32
    %2491 = vector.broadcast %cst_238 : f32 to vector<1x128xf32>
    %2492 = arith.subf %2491, %2490 : vector<1x128xf32>
    %2493 = math.sqrt %2492 : vector<1x128xf32>
    %2494 = vector.extract_strided_slice %2480 {offsets = [1, 0], sizes = [1, 128], strides = [1, 1]} : vector<2x128xf32> to vector<1x128xf32>
    %2495 = arith.mulf %2493, %2494 : vector<1x128xf32>
    %2496 = arith.addf %2489, %2495 : vector<1x128xf32>
    %2497 = arith.mulf %2487, %2496 : vector<1x128xf32>
    %2498 = arith.addf %2486, %2497 : vector<1x128xf32>
    %2499 = tpu.concatenate %2485, %2498 in 0 : vector<1x128xf32>, vector<1x128xf32> -> vector<2x128xf32>
    %c12_239 = arith.constant 12 : index
    %c0_240 = arith.constant 0 : index
    %c0_241 = arith.constant 0 : index
    %2500 = vector.load %arg24[%c12_239, %c0_240, %c0_241] : memref<13x2x128xf32, #tpu.memory_space<vmem>>, vector<1x2x128xf32>
    %2501 = vector.shape_cast %2500 : vector<1x2x128xf32> to vector<2x128xf32>
    %2502 = vector.shape_cast %2499 : vector<2x128xf32> to vector<1x2x128xf32>
    tpu.vector_store %arg24[%c12_239, %c0_240, %c0_241], %2502 {strides = array<i32>} : memref<13x2x128xf32, #tpu.memory_space<vmem>>, vector<1x2x128xf32>,
    return
  }
  func.func @transform_0(%arg0: i32) -> (i32, i32, i32) {
    %c0_i32 = arith.constant 0 : i32
    %c0_i32_0 = arith.constant 0 : i32
    %c0_i32_1 = arith.constant 0 : i32
    return %c0_i32, %c0_i32_0, %arg0 : i32, i32, i32
  }
  func.func @transform_1(%arg0: i32) -> (i32, i32) {
    %c0_i32 = arith.constant 0 : i32
    %c0_i32_0 = arith.constant 0 : i32
    return %c0_i32, %arg0 : i32, i32
  }
  func.func @transform_2(%arg0: i32) -> (i32, i32, i32) {
    %c0_i32 = arith.constant 0 : i32
    %c0_i32_0 = arith.constant 0 : i32
    %c0_i32_1 = arith.constant 0 : i32
    return %c0_i32, %c0_i32_0, %arg0 : i32, i32, i32
  }
  func.func @transform_3(%arg0: i32) -> i32 {
    %c0_i32 = arith.constant 0 : i32
    %c0_i32_0 = arith.constant 0 : i32
    return %c0_i32 : i32
  }
  func.func @transform_4(%arg0: i32) -> i32 {
    %c0_i32 = arith.constant 0 : i32
    %c0_i32_0 = arith.constant 0 : i32
    return %c0_i32 : i32
  }
  func.func @transform_5(%arg0: i32) -> i32 {
    %c0_i32 = arith.constant 0 : i32
    %c0_i32_0 = arith.constant 0 : i32
    return %c0_i32 : i32
  }
  func.func @transform_6(%arg0: i32) -> i32 {
    %c0_i32 = arith.constant 0 : i32
    %c0_i32_0 = arith.constant 0 : i32
    return %c0_i32 : i32
  }
  func.func @transform_7(%arg0: i32) -> i32 {
    %c0_i32 = arith.constant 0 : i32
    %c0_i32_0 = arith.constant 0 : i32
    return %c0_i32 : i32
  }
  func.func @transform_8(%arg0: i32) -> i32 {
    %c0_i32 = arith.constant 0 : i32
    %c0_i32_0 = arith.constant 0 : i32
    return %c0_i32 : i32
  }
  func.func @transform_9(%arg0: i32) -> i32 {
    %c0_i32 = arith.constant 0 : i32
    %c0_i32_0 = arith.constant 0 : i32
    return %c0_i32 : i32
  }
  func.func @transform_10(%arg0: i32) -> (i32, i32, i32) {
    %c0_i32 = arith.constant 0 : i32
    %c0_i32_0 = arith.constant 0 : i32
    %c0_i32_1 = arith.constant 0 : i32
    %c0_i32_2 = arith.constant 0 : i32
    return %c0_i32, %c0_i32_0, %c0_i32_1 : i32, i32, i32
  }
  func.func @transform_11(%arg0: i32) -> (i32, i32, i32) {
    %c0_i32 = arith.constant 0 : i32
    %c0_i32_0 = arith.constant 0 : i32
    %c0_i32_1 = arith.constant 0 : i32
    %c0_i32_2 = arith.constant 0 : i32
    return %c0_i32, %c0_i32_0, %c0_i32_1 : i32, i32, i32
  }
  func.func @transform_12(%arg0: i32) -> (i32, i32, i32) {
    %c0_i32 = arith.constant 0 : i32
    %c0_i32_0 = arith.constant 0 : i32
    %c0_i32_1 = arith.constant 0 : i32
    %c0_i32_2 = arith.constant 0 : i32
    return %c0_i32, %c0_i32_0, %c0_i32_1 : i32, i32, i32
  }
  func.func @transform_13(%arg0: i32) -> (i32, i32, i32) {
    %c0_i32 = arith.constant 0 : i32
    %c0_i32_0 = arith.constant 0 : i32
    %c0_i32_1 = arith.constant 0 : i32
    %c0_i32_2 = arith.constant 0 : i32
    return %c0_i32, %c0_i32_0, %c0_i32_1 : i32, i32, i32
  }
  func.func @transform_14(%arg0: i32) -> (i32, i32, i32) {
    %c0_i32 = arith.constant 0 : i32
    %c0_i32_0 = arith.constant 0 : i32
    %c0_i32_1 = arith.constant 0 : i32
    %c0_i32_2 = arith.constant 0 : i32
    return %c0_i32, %c0_i32_0, %c0_i32_1 : i32, i32, i32
  }
  func.func @transform_15(%arg0: i32) -> (i32, i32, i32) {
    %c0_i32 = arith.constant 0 : i32
    %c0_i32_0 = arith.constant 0 : i32
    %c0_i32_1 = arith.constant 0 : i32
    %c0_i32_2 = arith.constant 0 : i32
    return %c0_i32, %c0_i32_0, %c0_i32_1 : i32, i32, i32
  }
  func.func @transform_16(%arg0: i32) -> (i32, i32) {
    %c0_i32 = arith.constant 0 : i32
    %c0_i32_0 = arith.constant 0 : i32
    %c0_i32_1 = arith.constant 0 : i32
    return %c0_i32, %c0_i32_0 : i32, i32
  }
  func.func @transform_17(%arg0: i32) -> (i32, i32, i32) {
    %c0_i32 = arith.constant 0 : i32
    %c0_i32_0 = arith.constant 0 : i32
    %c0_i32_1 = arith.constant 0 : i32
    %c0_i32_2 = arith.constant 0 : i32
    return %c0_i32, %c0_i32_0, %c0_i32_1 : i32, i32, i32
  }
  func.func @transform_18(%arg0: i32) -> (i32, i32, i32) {
    %c0_i32 = arith.constant 0 : i32
    %c0_i32_0 = arith.constant 0 : i32
    %c0_i32_1 = arith.constant 0 : i32
    %c0_i32_2 = arith.constant 0 : i32
    return %c0_i32, %c0_i32_0, %c0_i32_1 : i32, i32, i32
  }
  func.func @transform_19(%arg0: i32) -> (i32, i32) {
    %c0_i32 = arith.constant 0 : i32
    %c0_i32_0 = arith.constant 0 : i32
    %c0_i32_1 = arith.constant 0 : i32
    return %c0_i32, %c0_i32_0 : i32, i32
  }
  func.func @transform_20(%arg0: i32) -> (i32, i32, i32) {
    %c0_i32 = arith.constant 0 : i32
    %c0_i32_0 = arith.constant 0 : i32
    %c0_i32_1 = arith.constant 0 : i32
    %c0_i32_2 = arith.constant 0 : i32
    return %c0_i32, %c0_i32_0, %c0_i32_1 : i32, i32, i32
  }
  func.func @transform_21(%arg0: i32) -> (i32, i32) {
    %c0_i32 = arith.constant 0 : i32
    %c0_i32_0 = arith.constant 0 : i32
    %c0_i32_1 = arith.constant 0 : i32
    return %c0_i32, %c0_i32_0 : i32, i32
  }
  func.func @transform_22(%arg0: i32) -> (i32, i32, i32) {
    %c0_i32 = arith.constant 0 : i32
    %c0_i32_0 = arith.constant 0 : i32
    %c0_i32_1 = arith.constant 0 : i32
    return %c0_i32, %c0_i32_0, %arg0 : i32, i32, i32
  }
  func.func @transform_23(%arg0: i32) -> (i32, i32, i32) {
    %c0_i32 = arith.constant 0 : i32
    %c0_i32_0 = arith.constant 0 : i32
    %c0_i32_1 = arith.constant 0 : i32
    return %c0_i32, %c0_i32_0, %arg0 : i32, i32, i32
  }
}

</mosaic_0001>

<llo_original>
// kernel: goal_example_model_forward.1
$region0: #{goal_example_model_forward.1}
  #allocation0 [shape = 'u32[]', space=smem, size = 0x4, offset = 0x4, fixed_abs, tag = 'smem constant byte address 0x4 - core index']
  #allocation1 [shape = 'u32[144,128]{1,0:T(1,128)}', space=vmem, size = 0x12000, scoped, tag = 'internal scratch']
  #allocation2 [shape = 'f32[1]{0:T(128)S(6)}', space=smem, size = 0x200, scoped, tag = 'scoped memory for goal_example_model_forward.1']
  %s0 = inlined_call_operand.vmem [shape: f32[2,8,128], index: 0, kind: input, shape index: {}]
  %s1 = inlined_call_operand.vmem [shape: f32[8,128], index: 1, kind: input, shape index: {}]
  %s2 = inlined_call_operand.vmem [shape: f32[12,2,128], index: 2, kind: input, shape index: {}]
  %s3 = inlined_call_operand.vmem [shape: f32[10], index: 3, kind: input, shape index: {}]
  %s4 = inlined_call_operand.vmem [shape: f32[5], index: 4, kind: input, shape index: {}]
  %s5 = inlined_call_operand.vmem [shape: f32[10], index: 5, kind: input, shape index: {}]
  %s6 = inlined_call_operand.vmem [shape: f32[5], index: 6, kind: input, shape index: {}]
  %s7 = inlined_call_operand.vmem [shape: f32[75], index: 7, kind: input, shape index: {}]
  %s8 = inlined_call_operand.vmem [shape: f32[5], index: 8, kind: input, shape index: {}]
  %s9 = inlined_call_operand.<no memory space> [shape: f32[1], index: 9, kind: input, shape index: {}]
  %s10 = inlined_call_operand.vmem [shape: f32[5,8,128], index: 10, kind: input, shape index: {}]
  %s11 = inlined_call_operand.vmem [shape: f32[5,8,128], index: 11, kind: input, shape index: {}]
  %s12 = inlined_call_operand.vmem [shape: f32[5,8,128], index: 12, kind: input, shape index: {}]
  %s13 = inlined_call_operand.vmem [shape: f32[5,8,128], index: 13, kind: input, shape index: {}]
  %s14 = inlined_call_operand.vmem [shape: f32[5,20,128], index: 14, kind: input, shape index: {}]
  %s15 = inlined_call_operand.vmem [shape: f32[5,20,128], index: 15, kind: input, shape index: {}]
  %s16 = inlined_call_operand.vmem [shape: f32[20,128], index: 16, kind: input, shape index: {}]
  %s17 = inlined_call_operand.vmem [shape: f32[7,20,128], index: 17, kind: input, shape index: {}]
  %s18 = inlined_call_operand.vmem [shape: f32[5,20,128], index: 18, kind: input, shape index: {}]
  %s19 = inlined_call_operand.vmem [shape: f32[20,128], index: 19, kind: input, shape index: {}]
  %s20 = inlined_call_operand.vmem [shape: f32[5,5,128], index: 20, kind: input, shape index: {}]
  %s21 = inlined_call_operand.vmem [shape: f32[5,128], index: 21, kind: input, shape index: {}]
  %s22 = inlined_call_operand.vmem [shape: f32[12,5,128], index: 22, kind: output, shape index: {0}]
  %s23 = inlined_call_operand.vmem [shape: f32[13,2,128], index: 23, kind: output, shape index: {1}]
  %24 = xla_tuple %s22, %s23
  %s25 = sld [smem:[#allocation0]]
  $region130: #{goal_example_model_forward.1} parent=0
    _
  %s27 = ssub.s32 1, %s25
  %s28 = scalar_select 0, %s27, %s25
  %29 = sst [smem:[#allocation2]] %s9
  $region1: #{goal_example_model_forward.1} parent=0
    #allocation3 [shape = 'u8[512]{0}', space=smem, size = 0x200, scoped, tag = 'input window, operand 3, single buffered']
    #allocation4 [shape = 's32[1]{0}', space=sflag, size = 0x4, scoped, tag = 'scoped memory for goal_example_model_forward.1']
    #allocation5 [shape = 'u8[512]{0}', space=smem, size = 0x200, scoped, tag = 'input window, operand 4, single buffered']
    #allocation6 [shape = 's32[1]{0}', space=sflag, size = 0x4, scoped, tag = 'scoped memory for goal_example_model_forward.1']
    #allocation7 [shape = 'u8[512]{0}', space=smem, size = 0x200, scoped, tag = 'input window, operand 5, single buffered']
    #allocation8 [shape = 'u8[512]{0}', space=smem, size = 0x200, scoped, tag = 'input window, operand 6, single buffered']
    #allocation9 [shape = 's32[1]{0}', space=sflag, size = 0x4, scoped, tag = 'scoped memory for goal_example_model_forward.1']
    #allocation10 [shape = 'u8[512]{0}', space=smem, size = 0x200, scoped, tag = 'input window, operand 7, single buffered']
    #allocation11 [shape = 'u8[512]{0}', space=smem, size = 0x200, scoped, tag = 'input window, operand 8, single buffered']
    #allocation12 [shape = 's32[1]{0}', space=sflag, size = 0x4, scoped, tag = 'scoped memory for goal_example_model_forward.1']
    %30 = vsyncpa [#allocation4], 0
    %31 = vsyncpa [#allocation6], 0
    %32 = vsyncpa [#allocation9], 0
    %33 = vsyncpa [#allocation12], 0
    // Predicated region
    $region2: #{goal_example_model_forward.1} parent=1 // pred_check
      _
    $region3: #{goal_example_model_forward.1} parent=1 // pred_check_branch
      %35 = sbr.rel (0) target = $region5
    $region4: #{goal_example_model_forward.1} parent=1 // pred_region
      _
    $region5: #{goal_example_model_forward.1} parent=1 // pred_fallthru
      _
    // Predicated region
    $region6: #{goal_example_model_forward.1} parent=1 // pred_check
      _
    $region7: #{goal_example_model_forward.1} parent=1 // pred_check_branch
      %37 = sbr.rel (0) target = $region9
    $region8: #{goal_example_model_forward.1} parent=1 // pred_region
      _
    $region9: #{goal_example_model_forward.1} parent=1 // pred_fallthru
      _
    // Predicated region
    $region10: #{goal_example_model_forward.1} parent=1 // pred_check
      _
    $region11: #{goal_example_model_forward.1} parent=1 // pred_check_branch
      %39 = sbr.rel (0) target = $region13
    $region12: #{goal_example_model_forward.1} parent=1 // pred_region
      _
    $region13: #{goal_example_model_forward.1} parent=1 // pred_fallthru
      _
    // Predicated region
    $region14: #{goal_example_model_forward.1} parent=1 // pred_check
      _
    $region15: #{goal_example_model_forward.1} parent=1 // pred_check_branch
      %41 = sbr.rel (0) target = $region17
    $region16: #{goal_example_model_forward.1} parent=1 // pred_region
      %s43 = ssub.s32 16, 16
      %44 = vsyncadd [#allocation4], %s43
      %s46 = sshll.u32 %s3, 4
      %s47 = int_to_ptr.vmem [resolvable:$true] %s46
      %49 = dma.vmem_to_smem %s47, 16, [#allocation3], [#allocation4]
    $region17: #{goal_example_model_forward.1} parent=1 // pred_fallthru
      _
    // Predicated region
    $region18: #{goal_example_model_forward.1} parent=1 // pred_check
      _
    $region19: #{goal_example_model_forward.1} parent=1 // pred_check_branch
      %51 = sbr.rel (0) target = $region21
    $region20: #{goal_example_model_forward.1} parent=1 // pred_region
      %s53 = ssub.s32 16, 16
      %54 = vsyncadd [#allocation6], %s53
      %s56 = sshll.u32 %s4, 4
      %s57 = int_to_ptr.vmem [resolvable:$true] %s56
      %59 = dma.vmem_to_smem %s57, 16, [#allocation5], [#allocation6]
    $region21: #{goal_example_model_forward.1} parent=1 // pred_fallthru
      _
    // Predicated region
    $region22: #{goal_example_model_forward.1} parent=1 // pred_check
      _
    $region23: #{goal_example_model_forward.1} parent=1 // pred_check_branch
      %61 = sbr.rel (0) target = $region25
    $region24: #{goal_example_model_forward.1} parent=1 // pred_region
      %s63 = ssub.s32 16, 16
      %64 = vsyncadd [#allocation6], %s63
      %s66 = sshll.u32 %s5, 4
      %s67 = int_to_ptr.vmem [resolvable:$true] %s66
      %69 = dma.vmem_to_smem %s67, 16, [#allocation7], [#allocation6]
    $region25: #{goal_example_model_forward.1} parent=1 // pred_fallthru
      _
    // Predicated region
    $region26: #{goal_example_model_forward.1} parent=1 // pred_check
      _
    $region27: #{goal_example_model_forward.1} parent=1 // pred_check_branch
      %71 = sbr.rel (0) target = $region29
    $region28: #{goal_example_model_forward.1} parent=1 // pred_region
      %s73 = ssub.s32 16, 16
      %74 = vsyncadd [#allocation9], %s73
      %s76 = sshll.u32 %s6, 4
      %s77 = int_to_ptr.vmem [resolvable:$true] %s76
      %79 = dma.vmem_to_smem %s77, 16, [#allocation8], [#allocation9]
    $region29: #{goal_example_model_forward.1} parent=1 // pred_fallthru
      _
    // Predicated region
    $region30: #{goal_example_model_forward.1} parent=1 // pred_check
      _
    $region31: #{goal_example_model_forward.1} parent=1 // pred_check_branch
      %81 = sbr.rel (0) target = $region33
    $region32: #{goal_example_model_forward.1} parent=1 // pred_region
      %s83 = ssub.s32 16, 16
      %84 = vsyncadd [#allocation9], %s83
      %s86 = sshll.u32 %s7, 4
      %s87 = int_to_ptr.vmem [resolvable:$true] %s86
      %89 = dma.vmem_to_smem %s87, 16, [#allocation10], [#allocation9]
    $region33: #{goal_example_model_forward.1} parent=1 // pred_fallthru
      _
    // Predicated region
    $region34: #{goal_example_model_forward.1} parent=1 // pred_check
      _
    $region35: #{goal_example_model_forward.1} parent=1 // pred_check_branch
      %91 = sbr.rel (0) target = $region37
    $region36: #{goal_example_model_forward.1} parent=1 // pred_region
      %s93 = ssub.s32 16, 16
      %94 = vsyncadd [#allocation12], %s93
      %s96 = sshll.u32 %s8, 4
      %s97 = int_to_ptr.vmem [resolvable:$true] %s96
      %99 = dma.vmem_to_smem %s97, 16, [#allocation11], [#allocation12]
    $region37: #{goal_example_model_forward.1} parent=1 // pred_fallthru
      _
    // Predicated region
    $region38: #{goal_example_model_forward.1} parent=1 // pred_check
      _
    $region39: #{goal_example_model_forward.1} parent=1 // pred_check_branch
      %101 = sbr.rel (0) target = $region41
    $region40: #{goal_example_model_forward.1} parent=1 // pred_region
      _
    $region41: #{goal_example_model_forward.1} parent=1 // pred_fallthru
      _
    // Predicated region
    $region42: #{goal_example_model_forward.1} parent=1 // pred_check
      _
    $region43: #{goal_example_model_forward.1} parent=1 // pred_check_branch
      %103 = sbr.rel (0) target = $region45
    $region44: #{goal_example_model_forward.1} parent=1 // pred_region
      _
    $region45: #{goal_example_model_forward.1} parent=1 // pred_fallthru
      _
    // Predicated region
    $region46: #{goal_example_model_forward.1} parent=1 // pred_check
      _
    $region47: #{goal_example_model_forward.1} parent=1 // pred_check_branch
      %105 = sbr.rel (0) target = $region49
    $region48: #{goal_example_model_forward.1} parent=1 // pred_region
      _
    $region49: #{goal_example_model_forward.1} parent=1 // pred_fallthru
      _
    // Predicated region
    $region50: #{goal_example_model_forward.1} parent=1 // pred_check
      _
    $region51: #{goal_example_model_forward.1} parent=1 // pred_check_branch
      %107 = sbr.rel (0) target = $region53
    $region52: #{goal_example_model_forward.1} parent=1 // pred_region
      _
    $region53: #{goal_example_model_forward.1} parent=1 // pred_fallthru
      _
    // Predicated region
    $region54: #{goal_example_model_forward.1} parent=1 // pred_check
      _
    $region55: #{goal_example_model_forward.1} parent=1 // pred_check_branch
      %109 = sbr.rel (0) target = $region57
    $region56: #{goal_example_model_forward.1} parent=1 // pred_region
      _
    $region57: #{goal_example_model_forward.1} parent=1 // pred_fallthru
      _
    // Predicated region
    $region58: #{goal_example_model_forward.1} parent=1 // pred_check
      _
    $region59: #{goal_example_model_forward.1} parent=1 // pred_check_branch
      %111 = sbr.rel (0) target = $region61
    $region60: #{goal_example_model_forward.1} parent=1 // pred_region
      _
    $region61: #{goal_example_model_forward.1} parent=1 // pred_fallthru
      _
    // Predicated region
    $region62: #{goal_example_model_forward.1} parent=1 // pred_check
      _
    $region63: #{goal_example_model_forward.1} parent=1 // pred_check_branch
      %113 = sbr.rel (0) target = $region65
    $region64: #{goal_example_model_forward.1} parent=1 // pred_region
      _
    $region65: #{goal_example_model_forward.1} parent=1 // pred_fallthru
      _
    // Predicated region
    $region66: #{goal_example_model_forward.1} parent=1 // pred_check
      _
    $region67: #{goal_example_model_forward.1} parent=1 // pred_check_branch
      %115 = sbr.rel (0) target = $region69
    $region68: #{goal_example_model_forward.1} parent=1 // pred_region
      _
    $region69: #{goal_example_model_forward.1} parent=1 // pred_fallthru
      _
    // Predicated region
    $region70: #{goal_example_model_forward.1} parent=1 // pred_check
      _
    $region71: #{goal_example_model_forward.1} parent=1 // pred_check_branch
      %117 = sbr.rel (0) target = $region73
    $region72: #{goal_example_model_forward.1} parent=1 // pred_region
      _
    $region73: #{goal_example_model_forward.1} parent=1 // pred_fallthru
      _
    // Predicated region
    $region74: #{goal_example_model_forward.1} parent=1 // pred_check
      _
    $region75: #{goal_example_model_forward.1} parent=1 // pred_check_branch
      %119 = sbr.rel (0) target = $region77
    $region76: #{goal_example_model_forward.1} parent=1 // pred_region
      _
    $region77: #{goal_example_model_forward.1} parent=1 // pred_fallthru
      _
    // Predicated region
    $region78: #{goal_example_model_forward.1} parent=1 // pred_check
      _
    $region79: #{goal_example_model_forward.1} parent=1 // pred_check_branch
      %121 = sbr.rel (0) target = $region81
    $region80: #{goal_example_model_forward.1} parent=1 // pred_region
      _
    $region81: #{goal_example_model_forward.1} parent=1 // pred_fallthru
      _
    // Predicated region
    $region82: #{goal_example_model_forward.1} parent=1 // pred_check
      _
    $region83: #{goal_example_model_forward.1} parent=1 // pred_check_branch
      %123 = sbr.rel (0) target = $region85
    $region84: #{goal_example_model_forward.1} parent=1 // pred_region
      _
    $region85: #{goal_example_model_forward.1} parent=1 // pred_fallthru
      _
    // Predicated region
    $region86: #{goal_example_model_forward.1} parent=1 // pred_check
      _
    $region87: #{goal_example_model_forward.1} parent=1 // pred_check_branch
      %125 = sbr.rel (0) target = $region89
    $region88: #{goal_example_model_forward.1} parent=1 // pred_region
      _
    $region89: #{goal_example_model_forward.1} parent=1 // pred_fallthru
      _
    // Predicated region
    $region90: #{goal_example_model_forward.1} parent=1 // pred_check
      _
    $region91: #{goal_example_model_forward.1} parent=1 // pred_check_branch
      %127 = sbr.rel (0) target = $region93
    $region92: #{goal_example_model_forward.1} parent=1 // pred_region
      %128 = dma.done [#allocation4], 16
    $region93: #{goal_example_model_forward.1} parent=1 // pred_fallthru
      _
    // Predicated region
    $region94: #{goal_example_model_forward.1} parent=1 // pred_check
      _
    $region95: #{goal_example_model_forward.1} parent=1 // pred_check_branch
      %130 = sbr.rel (0) target = $region97
    $region96: #{goal_example_model_forward.1} parent=1 // pred_region
      %131 = dma.done [#allocation6], 16
    $region97: #{goal_example_model_forward.1} parent=1 // pred_fallthru
      _
    // Predicated region
    $region98: #{goal_example_model_forward.1} parent=1 // pred_check
      _
    $region99: #{goal_example_model_forward.1} parent=1 // pred_check_branch
      %133 = sbr.rel (0) target = $region101
    $region100: #{goal_example_model_forward.1} parent=1 // pred_region
      %134 = dma.done [#allocation6], 16
    $region101: #{goal_example_model_forward.1} parent=1 // pred_fallthru
      _
    // Predicated region
    $region102: #{goal_example_model_forward.1} parent=1 // pred_check
      _
    $region103: #{goal_example_model_forward.1} parent=1 // pred_check_branch
      %136 = sbr.rel (0) target = $region105
    $region104: #{goal_example_model_forward.1} parent=1 // pred_region
      %137 = dma.done [#allocation9], 16
    $region105: #{goal_example_model_forward.1} parent=1 // pred_fallthru
      _
    // Predicated region
    $region106: #{goal_example_model_forward.1} parent=1 // pred_check
      _
    $region107: #{goal_example_model_forward.1} parent=1 // pred_check_branch
      %139 = sbr.rel (0) target = $region109
    $region108: #{goal_example_model_forward.1} parent=1 // pred_region
      %140 = dma.done [#allocation9], 16
    $region109: #{goal_example_model_forward.1} parent=1 // pred_fallthru
      _
    // Predicated region
    $region110: #{goal_example_model_forward.1} parent=1 // pred_check
      _
    $region111: #{goal_example_model_forward.1} parent=1 // pred_check_branch
      %142 = sbr.rel (0) target = $region113
    $region112: #{goal_example_model_forward.1} parent=1 // pred_region
      %143 = dma.done [#allocation12], 16
    $region113: #{goal_example_model_forward.1} parent=1 // pred_fallthru
      _
    %144 = sfence
    %v145 = vld [vmem:[%s0] sm:$0xff]
    %v146 = vld [vmem:[%s0 + $0x8] sm:$0xff]
    %v147 = vld [vmem:[%s1] sm:$0xff]
    %s148 = sld [smem:[#allocation2]]
    %v149 = vld [vmem:[%s10] sm:$0xff]
    %v150 = vld [vmem:[%s10 + $0x8] sm:$0xff]
    %v151 = vld [vmem:[%s10 + $0x10] sm:$0xff]
    %v152 = vld [vmem:[%s10 + $0x18] sm:$0xff]
    %v153 = vld [vmem:[%s10 + $0x20] sm:$0xff]
    %v154 = vld [vmem:[%s11] sm:$0xff]
    %v155 = vld [vmem:[%s11 + $0x8] sm:$0xff]
    %v156 = vld [vmem:[%s11 + $0x10] sm:$0xff]
    %v157 = vld [vmem:[%s11 + $0x18] sm:$0xff]
    %v158 = vld [vmem:[%s11 + $0x20] sm:$0xff]
    %v159 = vld [vmem:[%s12] sm:$0xff]
    %v160 = vld [vmem:[%s12 + $0x8] sm:$0xff]
    %v161 = vld [vmem:[%s12 + $0x10] sm:$0xff]
    %v162 = vld [vmem:[%s12 + $0x18] sm:$0xff]
    %v163 = vld [vmem:[%s12 + $0x20] sm:$0xff]
    %v164 = vld [vmem:[%s13] sm:$0xff]
    %v165 = vld [vmem:[%s13 + $0x8] sm:$0xff]
    %v166 = vld [vmem:[%s13 + $0x10] sm:$0xff]
    %v167 = vld [vmem:[%s13 + $0x18] sm:$0xff]
    %v168 = vld [vmem:[%s13 + $0x20] sm:$0xff]
    %s169 = sld [smem:[#allocation3]]
    %v170 = vstv %s169
    %v171 = vmul.f32 %v145, %v170
    %s172 = sld [smem:[#allocation3 + $0x5]]
    %v173 = vstv %s172
    %v174 = vmul.f32 %v146, %v173
    %v175 = vadd.f32 %v171, %v174
    %s176 = sld [smem:[#allocation5]]
    %v177 = vstv %s176
    %v178 = vadd.f32 %v175, %v177
    %s179 = sld [smem:[#allocation3 + $0x1]]
    %v180 = vstv %s179
    %v181 = vmul.f32 %v145, %v180
    %s182 = sld [smem:[#allocation3 + $0x6]]
    %v183 = vstv %s182
    %v184 = vmul.f32 %v146, %v183
    %v185 = vadd.f32 %v181, %v184
    %s186 = sld [smem:[#allocation5 + $0x1]]
    %v187 = vstv %s186
    %v188 = vadd.f32 %v185, %v187
    %s189 = sld [smem:[#allocation3 + $0x2]]
    %v190 = vstv %s189
    %v191 = vmul.f32 %v145, %v190
    %s192 = sld [smem:[#allocation3 + $0x7]]
    %v193 = vstv %s192
    %v194 = vmul.f32 %v146, %v193
    %v195 = vadd.f32 %v191, %v194
    %s196 = sld [smem:[#allocation5 + $0x2]]
    %v197 = vstv %s196
    %v198 = vadd.f32 %v195, %v197
    %s199 = sld [smem:[#allocation3 + $0x3]]
    %v200 = vstv %s199
    %v201 = vmul.f32 %v145, %v200
    %s202 = sld [smem:[#allocation3 + $0x8]]
    %v203 = vstv %s202
    %v204 = vmul.f32 %v146, %v203
    %v205 = vadd.f32 %v201, %v204
    %s206 = sld [smem:[#allocation5 + $0x3]]
    %v207 = vstv %s206
    %v208 = vadd.f32 %v205, %v207
    %s209 = sld [smem:[#allocation3 + $0x4]]
    %v210 = vstv %s209
    %v211 = vmul.f32 %v145, %v210
    %s212 = sld [smem:[#allocation3 + $0x9]]
    %v213 = vstv %s212
    %v214 = vmul.f32 %v146, %v213
    %v215 = vadd.f32 %v211, %v214
    %s216 = sld [smem:[#allocation5 + $0x4]]
    %v217 = vstv %s216
    %v218 = vadd.f32 %v215, %v217
    %v219 = vmul.f32 %v178, %v147
    %v220 = vmul.f32 %v188, %v147
    %v221 = vmul.f32 %v198, %v147
    %v222 = vmul.f32 %v208, %v147
    %v223 = vmul.f32 %v218, %v147
    %v224 = vadd.f32 %v219, %v220
    %v225 = vadd.f32 %v224, %v221
    %v226 = vadd.f32 %v225, %v222
    %v227 = vadd.f32 %v226, %v223
    %v228 = vrot.slane %v227, 4
    %v229 = vadd.f32 %v227, %v228
    %v230 = vrot.slane %v229, 2
    %v231 = vadd.f32 %v229, %v230
    %v232 = vrot.slane %v231, 1
    %v233 = vadd.f32 %v231, %v232
    %v234 = vmul.f32 %v233, 0.025
    %v235 = vsub.f32 %v219, %v234
    %v236 = vsub.f32 %v220, %v234
    %v237 = vsub.f32 %v221, %v234
    %v238 = vsub.f32 %v222, %v234
    %v239 = vsub.f32 %v223, %v234
    %v240 = vmul.f32 %v235, %v235
    %v241 = vmul.f32 %v236, %v236
    %v242 = vmul.f32 %v237, %v237
    %v243 = vmul.f32 %v238, %v238
    %v244 = vmul.f32 %v239, %v239
    %v245 = vadd.f32 %v240, %v241
    %v246 = vadd.f32 %v245, %v242
    %v247 = vadd.f32 %v246, %v243
    %v248 = vadd.f32 %v247, %v244
    %v249 = vrot.slane %v248, 4
    %v250 = vadd.f32 %v248, %v249
    %v251 = vrot.slane %v250, 2
    %v252 = vadd.f32 %v250, %v251
    %v253 = vrot.slane %v252, 1
    %v254 = vadd.f32 %v252, %v253
    %v255 = vmul.f32 %v254, 0.025
    %v256 = vadd.f32 %v255, 1e-05
    %v257 = vrsqrt.pop %v256
    %v258 = vmul.f32 %v235, %v257
    %v259 = vmul.f32 %v236, %v257
    %v260 = vmul.f32 %v237, %v257
    %v261 = vmul.f32 %v238, %v257
    %v262 = vmul.f32 %v239, %v257
    %v263 = vmul.f32 %v258, %v149
    %v264 = vmul.f32 %v259, %v150
    %v265 = vmul.f32 %v260, %v151
    %v266 = vmul.f32 %v261, %v152
    %v267 = vmul.f32 %v262, %v153
    %v268 = vadd.f32 %v263, %v154
    %v269 = vadd.f32 %v264, %v155
    %v270 = vadd.f32 %v265, %v156
    %v271 = vadd.f32 %v266, %v157
    %v272 = vadd.f32 %v267, %v158
    %s273 = sld [smem:[#allocation7]]
    %v274 = vstv %s273
    %v275 = vmul.f32 %v145, %v274
    %s276 = sld [smem:[#allocation7 + $0x5]]
    %v277 = vstv %s276
    %v278 = vmul.f32 %v146, %v277
    %v279 = vadd.f32 %v275, %v278
    %s280 = sld [smem:[#allocation8]]
    %v281 = vstv %s280
    %v282 = vadd.f32 %v279, %v281
    %s283 = sld [smem:[#allocation7 + $0x1]]
    %v284 = vstv %s283
    %v285 = vmul.f32 %v145, %v284
    %s286 = sld [smem:[#allocation7 + $0x6]]
    %v287 = vstv %s286
    %v288 = vmul.f32 %v146, %v287
    %v289 = vadd.f32 %v285, %v288
    %s290 = sld [smem:[#allocation8 + $0x1]]
    %v291 = vstv %s290
    %v292 = vadd.f32 %v289, %v291
    %s293 = sld [smem:[#allocation7 + $0x2]]
    %v294 = vstv %s293
    %v295 = vmul.f32 %v145, %v294
    %s296 = sld [smem:[#allocation7 + $0x7]]
    %v297 = vstv %s296
    %v298 = vmul.f32 %v146, %v297
    %v299 = vadd.f32 %v295, %v298
    %s300 = sld [smem:[#allocation8 + $0x2]]
    %v301 = vstv %s300
    %v302 = vadd.f32 %v299, %v301
    %s303 = sld [smem:[#allocation7 + $0x3]]
    %v304 = vstv %s303
    %v305 = vmul.f32 %v145, %v304
    %s306 = sld [smem:[#allocation7 + $0x8]]
    %v307 = vstv %s306
    %v308 = vmul.f32 %v146, %v307
    %v309 = vadd.f32 %v305, %v308
    %s310 = sld [smem:[#allocation8 + $0x3]]
    %v311 = vstv %s310
    %v312 = vadd.f32 %v309, %v311
    %s313 = sld [smem:[#allocation7 + $0x4]]
    %v314 = vstv %s313
    %v315 = vmul.f32 %v145, %v314
    %s316 = sld [smem:[#allocation7 + $0x9]]
    %v317 = vstv %s316
    %v318 = vmul.f32 %v146, %v317
    %v319 = vadd.f32 %v315, %v318
    %s320 = sld [smem:[#allocation8 + $0x4]]
    %v321 = vstv %s320
    %v322 = vadd.f32 %v319, %v321
    %v323 = vmul.f32 %v282, %v147
    %v324 = vmul.f32 %v292, %v147
    %v325 = vmul.f32 %v302, %v147
    %v326 = vmul.f32 %v312, %v147
    %v327 = vmul.f32 %v322, %v147
    %v328 = vadd.f32 %v323, %v324
    %v329 = vadd.f32 %v328, %v325
    %v330 = vadd.f32 %v329, %v326
    %v331 = vadd.f32 %v330, %v327
    %v332 = vrot.slane %v331, 4
    %v333 = vadd.f32 %v331, %v332
    %v334 = vrot.slane %v333, 2
    %v335 = vadd.f32 %v333, %v334
    %v336 = vrot.slane %v335, 1
    %v337 = vadd.f32 %v335, %v336
    %v338 = vmul.f32 %v337, 0.025
    %v339 = vsub.f32 %v323, %v338
    %v340 = vsub.f32 %v324, %v338
    %v341 = vsub.f32 %v325, %v338
    %v342 = vsub.f32 %v326, %v338
    %v343 = vsub.f32 %v327, %v338
    %v344 = vmul.f32 %v339, %v339
    %v345 = vmul.f32 %v340, %v340
    %v346 = vmul.f32 %v341, %v341
    %v347 = vmul.f32 %v342, %v342
    %v348 = vmul.f32 %v343, %v343
    %v349 = vadd.f32 %v344, %v345
    %v350 = vadd.f32 %v349, %v346
    %v351 = vadd.f32 %v350, %v347
    %v352 = vadd.f32 %v351, %v348
    %v353 = vrot.slane %v352, 4
    %v354 = vadd.f32 %v352, %v353
    %v355 = vrot.slane %v354, 2
    %v356 = vadd.f32 %v354, %v355
    %v357 = vrot.slane %v356, 1
    %v358 = vadd.f32 %v356, %v357
    %v359 = vmul.f32 %v358, 0.025
    %v360 = vadd.f32 %v359, 1e-05
    %v361 = vrsqrt.pop %v360
    %v362 = vmul.f32 %v339, %v361
    %v363 = vmul.f32 %v340, %v361
    %v364 = vmul.f32 %v341, %v361
    %v365 = vmul.f32 %v342, %v361
    %v366 = vmul.f32 %v343, %v361
    %v367 = vmul.f32 %v362, %v159
    %v368 = vmul.f32 %v363, %v160
    %v369 = vmul.f32 %v364, %v161
    %v370 = vmul.f32 %v365, %v162
    %v371 = vmul.f32 %v366, %v163
    %v372 = vadd.f32 %v367, %v164
    %v373 = vadd.f32 %v368, %v165
    %v374 = vadd.f32 %v369, %v166
    %v375 = vadd.f32 %v370, %v167
    %v376 = vadd.f32 %v371, %v168
    %vm377 = vcmp.ge.f32.partialorder %v372, 0.0
    %vm378 = vcmp.ge.f32.partialorder %v373, 0.0
    %vm379 = vcmp.ge.f32.partialorder %v374, 0.0
    %vm380 = vcmp.ge.f32.partialorder %v375, 0.0
    %vm381 = vcmp.ge.f32.partialorder %v376, 0.0
    %v382 = vstv %s148
    %v383 = vmul.f32 %v382, %v372
    %v384 = vmul.f32 %v382, %v373
    %v385 = vmul.f32 %v382, %v374
    %v386 = vmul.f32 %v382, %v375
    %v387 = vmul.f32 %v382, %v376
    %v388 = vsel %vm377, %v372, %v383
    %v389 = vsel %vm378, %v373, %v384
    %v390 = vsel %vm379, %v374, %v385
    %v391 = vsel %vm380, %v375, %v386
    %v392 = vsel %vm381, %v376, %v387
    %v398 = vrot.slane %v388, 7
    %v399 = vrot.slane %v389, 7
    %v400 = vrot.slane %v390, 7
    %v401 = vrot.slane %v391, 7
    %v402 = vrot.slane %v392, 7
    %vm408 = vcmask 1040384
    %v409 = vsel %vm408, 0.0, %v398
    %v410 = vsel %vm408, 0.0, %v399
    %v411 = vsel %vm408, 0.0, %v400
    %v412 = vsel %vm408, 0.0, %v401
    %v413 = vsel %vm408, 0.0, %v402
    %v414 = vrot.slane %v388, 1
    %v415 = vrot.slane %v389, 1
    %v416 = vrot.slane %v390, 1
    %v417 = vrot.slane %v391, 1
    %v418 = vrot.slane %v392, 1
    %vm424 = vcmask 1046528
    %v425 = vsel %vm424, %v414, 0.0
    %v426 = vsel %vm424, %v415, 0.0
    %v427 = vsel %vm424, %v416, 0.0
    %v428 = vsel %vm424, %v417, 0.0
    %v429 = vsel %vm424, %v418, 0.0
    %s430 = sld [smem:[#allocation10]]
    %v431 = vstv %s430
    %v432 = vmul.f32 %v409, %v431
    %s433 = sld [smem:[#allocation10 + $0x5]]
    %v434 = vstv %s433
    %v435 = vmul.f32 %v410, %v434
    %v436 = vadd.f32 %v432, %v435
    %s437 = sld [smem:[#allocation10 + $0xa]]
    %v438 = vstv %s437
    %v439 = vmul.f32 %v411, %v438
    %v440 = vadd.f32 %v436, %v439
    %s441 = sld [smem:[#allocation10 + $0xf]]
    %v442 = vstv %s441
    %v443 = vmul.f32 %v412, %v442
    %v444 = vadd.f32 %v440, %v443
    %s445 = sld [smem:[#allocation10 + $0x14]]
    %v446 = vstv %s445
    %v447 = vmul.f32 %v413, %v446
    %v448 = vadd.f32 %v444, %v447
    %s449 = sld [smem:[#allocation10 + $0x19]]
    %v450 = vstv %s449
    %v451 = vmul.f32 %v388, %v450
    %v452 = vadd.f32 %v448, %v451
    %s453 = sld [smem:[#allocation10 + $0x1e]]
    %v454 = vstv %s453
    %v455 = vmul.f32 %v389, %v454
    %v456 = vadd.f32 %v452, %v455
    %s457 = sld [smem:[#allocation10 + $0x23]]
    %v458 = vstv %s457
    %v459 = vmul.f32 %v390, %v458
    %v460 = vadd.f32 %v456, %v459
    %s461 = sld [smem:[#allocation10 + $0x28]]
    %v462 = vstv %s461
    %v463 = vmul.f32 %v391, %v462
    %v464 = vadd.f32 %v460, %v463
    %s465 = sld [smem:[#allocation10 + $0x2d]]
    %v466 = vstv %s465
    %v467 = vmul.f32 %v392, %v466
    %v468 = vadd.f32 %v464, %v467
    %s469 = sld [smem:[#allocation10 + $0x32]]
    %v470 = vstv %s469
    %v471 = vmul.f32 %v425, %v470
    %v472 = vadd.f32 %v468, %v471
    %s473 = sld [smem:[#allocation10 + $0x37]]
    %v474 = vstv %s473
    %v475 = vmul.f32 %v426, %v474
    %v476 = vadd.f32 %v472, %v475
    %s477 = sld [smem:[#allocation10 + $0x3c]]
    %v478 = vstv %s477
    %v479 = vmul.f32 %v427, %v478
    %v480 = vadd.f32 %v476, %v479
    %s481 = sld [smem:[#allocation10 + $0x41]]
    %v482 = vstv %s481
    %v483 = vmul.f32 %v428, %v482
    %v484 = vadd.f32 %v480, %v483
    %s485 = sld [smem:[#allocation10 + $0x46]]
    %v486 = vstv %s485
    %v487 = vmul.f32 %v429, %v486
    %v488 = vadd.f32 %v484, %v487
    %s489 = sld [smem:[#allocation11]]
    %v490 = vstv %s489
    %v491 = vadd.f32 %v488, %v490
    %s492 = sld [smem:[#allocation10 + $0x1]]
    %v493 = vstv %s492
    %v494 = vmul.f32 %v409, %v493
    %s495 = sld [smem:[#allocation10 + $0x6]]
    %v496 = vstv %s495
    %v497 = vmul.f32 %v410, %v496
    %v498 = vadd.f32 %v494, %v497
    %s499 = sld [smem:[#allocation10 + $0xb]]
    %v500 = vstv %s499
    %v501 = vmul.f32 %v411, %v500
    %v502 = vadd.f32 %v498, %v501
    %s503 = sld [smem:[#allocation10 + $0x10]]
    %v504 = vstv %s503
    %v505 = vmul.f32 %v412, %v504
    %v506 = vadd.f32 %v502, %v505
    %s507 = sld [smem:[#allocation10 + $0x15]]
    %v508 = vstv %s507
    %v509 = vmul.f32 %v413, %v508
    %v510 = vadd.f32 %v506, %v509
    %s511 = sld [smem:[#allocation10 + $0x1a]]
    %v512 = vstv %s511
    %v513 = vmul.f32 %v388, %v512
    %v514 = vadd.f32 %v510, %v513
    %s515 = sld [smem:[#allocation10 + $0x1f]]
    %v516 = vstv %s515
    %v517 = vmul.f32 %v389, %v516
    %v518 = vadd.f32 %v514, %v517
    %s519 = sld [smem:[#allocation10 + $0x24]]
    %v520 = vstv %s519
    %v521 = vmul.f32 %v390, %v520
    %v522 = vadd.f32 %v518, %v521
    %s523 = sld [smem:[#allocation10 + $0x29]]
    %v524 = vstv %s523
    %v525 = vmul.f32 %v391, %v524
    %v526 = vadd.f32 %v522, %v525
    %s527 = sld [smem:[#allocation10 + $0x2e]]
    %v528 = vstv %s527
    %v529 = vmul.f32 %v392, %v528
    %v530 = vadd.f32 %v526, %v529
    %s531 = sld [smem:[#allocation10 + $0x33]]
    %v532 = vstv %s531
    %v533 = vmul.f32 %v425, %v532
    %v534 = vadd.f32 %v530, %v533
    %s535 = sld [smem:[#allocation10 + $0x38]]
    %v536 = vstv %s535
    %v537 = vmul.f32 %v426, %v536
    %v538 = vadd.f32 %v534, %v537
    %s539 = sld [smem:[#allocation10 + $0x3d]]
    %v540 = vstv %s539
    %v541 = vmul.f32 %v427, %v540
    %v542 = vadd.f32 %v538, %v541
    %s543 = sld [smem:[#allocation10 + $0x42]]
    %v544 = vstv %s543
    %v545 = vmul.f32 %v428, %v544
    %v546 = vadd.f32 %v542, %v545
    %s547 = sld [smem:[#allocation10 + $0x47]]
    %v548 = vstv %s547
    %v549 = vmul.f32 %v429, %v548
    %v550 = vadd.f32 %v546, %v549
    %s551 = sld [smem:[#allocation11 + $0x1]]
    %v552 = vstv %s551
    %v553 = vadd.f32 %v550, %v552
    %s554 = sld [smem:[#allocation10 + $0x2]]
    %v555 = vstv %s554
    %v556 = vmul.f32 %v409, %v555
    %s557 = sld [smem:[#allocation10 + $0x7]]
    %v558 = vstv %s557
    %v559 = vmul.f32 %v410, %v558
    %v560 = vadd.f32 %v556, %v559
    %s561 = sld [smem:[#allocation10 + $0xc]]
    %v562 = vstv %s561
    %v563 = vmul.f32 %v411, %v562
    %v564 = vadd.f32 %v560, %v563
    %s565 = sld [smem:[#allocation10 + $0x11]]
    %v566 = vstv %s565
    %v567 = vmul.f32 %v412, %v566
    %v568 = vadd.f32 %v564, %v567
    %s569 = sld [smem:[#allocation10 + $0x16]]
    %v570 = vstv %s569
    %v571 = vmul.f32 %v413, %v570
    %v572 = vadd.f32 %v568, %v571
    %s573 = sld [smem:[#allocation10 + $0x1b]]
    %v574 = vstv %s573
    %v575 = vmul.f32 %v388, %v574
    %v576 = vadd.f32 %v572, %v575
    %s577 = sld [smem:[#allocation10 + $0x20]]
    %v578 = vstv %s577
    %v579 = vmul.f32 %v389, %v578
    %v580 = vadd.f32 %v576, %v579
    %s581 = sld [smem:[#allocation10 + $0x25]]
    %v582 = vstv %s581
    %v583 = vmul.f32 %v390, %v582
    %v584 = vadd.f32 %v580, %v583
    %s585 = sld [smem:[#allocation10 + $0x2a]]
    %v586 = vstv %s585
    %v587 = vmul.f32 %v391, %v586
    %v588 = vadd.f32 %v584, %v587
    %s589 = sld [smem:[#allocation10 + $0x2f]]
    %v590 = vstv %s589
    %v591 = vmul.f32 %v392, %v590
    %v592 = vadd.f32 %v588, %v591
    %s593 = sld [smem:[#allocation10 + $0x34]]
    %v594 = vstv %s593
    %v595 = vmul.f32 %v425, %v594
    %v596 = vadd.f32 %v592, %v595
    %s597 = sld [smem:[#allocation10 + $0x39]]
    %v598 = vstv %s597
    %v599 = vmul.f32 %v426, %v598
    %v600 = vadd.f32 %v596, %v599
    %s601 = sld [smem:[#allocation10 + $0x3e]]
    %v602 = vstv %s601
    %v603 = vmul.f32 %v427, %v602
    %v604 = vadd.f32 %v600, %v603
    %s605 = sld [smem:[#allocation10 + $0x43]]
    %v606 = vstv %s605
    %v607 = vmul.f32 %v428, %v606
    %v608 = vadd.f32 %v604, %v607
    %s609 = sld [smem:[#allocation10 + $0x48]]
    %v610 = vstv %s609
    %v611 = vmul.f32 %v429, %v610
    %v612 = vadd.f32 %v608, %v611
    %s613 = sld [smem:[#allocation11 + $0x2]]
    %v614 = vstv %s613
    %v615 = vadd.f32 %v612, %v614
    %s616 = sld [smem:[#allocation10 + $0x3]]
    %v617 = vstv %s616
    %v618 = vmul.f32 %v409, %v617
    %s619 = sld [smem:[#allocation10 + $0x8]]
    %v620 = vstv %s619
    %v621 = vmul.f32 %v410, %v620
    %v622 = vadd.f32 %v618, %v621
    %s623 = sld [smem:[#allocation10 + $0xd]]
    %v624 = vstv %s623
    %v625 = vmul.f32 %v411, %v624
    %v626 = vadd.f32 %v622, %v625
    %s627 = sld [smem:[#allocation10 + $0x12]]
    %v628 = vstv %s627
    %v629 = vmul.f32 %v412, %v628
    %v630 = vadd.f32 %v626, %v629
    %s631 = sld [smem:[#allocation10 + $0x17]]
    %v632 = vstv %s631
    %v633 = vmul.f32 %v413, %v632
    %v634 = vadd.f32 %v630, %v633
    %s635 = sld [smem:[#allocation10 + $0x1c]]
    %v636 = vstv %s635
    %v637 = vmul.f32 %v388, %v636
    %v638 = vadd.f32 %v634, %v637
    %s639 = sld [smem:[#allocation10 + $0x21]]
    %v640 = vstv %s639
    %v641 = vmul.f32 %v389, %v640
    %v642 = vadd.f32 %v638, %v641
    %s643 = sld [smem:[#allocation10 + $0x26]]
    %v644 = vstv %s643
    %v645 = vmul.f32 %v390, %v644
    %v646 = vadd.f32 %v642, %v645
    %s647 = sld [smem:[#allocation10 + $0x2b]]
    %v648 = vstv %s647
    %v649 = vmul.f32 %v391, %v648
    %v650 = vadd.f32 %v646, %v649
    %s651 = sld [smem:[#allocation10 + $0x30]]
    %v652 = vstv %s651
    %v653 = vmul.f32 %v392, %v652
    %v654 = vadd.f32 %v650, %v653
    %s655 = sld [smem:[#allocation10 + $0x35]]
    %v656 = vstv %s655
    %v657 = vmul.f32 %v425, %v656
    %v658 = vadd.f32 %v654, %v657
    %s659 = sld [smem:[#allocation10 + $0x3a]]
    %v660 = vstv %s659
    %v661 = vmul.f32 %v426, %v660
    %v662 = vadd.f32 %v658, %v661
    %s663 = sld [smem:[#allocation10 + $0x3f]]
    %v664 = vstv %s663
    %v665 = vmul.f32 %v427, %v664
    %v666 = vadd.f32 %v662, %v665
    %s667 = sld [smem:[#allocation10 + $0x44]]
    %v668 = vstv %s667
    %v669 = vmul.f32 %v428, %v668
    %v670 = vadd.f32 %v666, %v669
    %s671 = sld [smem:[#allocation10 + $0x49]]
    %v672 = vstv %s671
    %v673 = vmul.f32 %v429, %v672
    %v674 = vadd.f32 %v670, %v673
    %s675 = sld [smem:[#allocation11 + $0x3]]
    %v676 = vstv %s675
    %v677 = vadd.f32 %v674, %v676
    %s678 = sld [smem:[#allocation10 + $0x4]]
    %v679 = vstv %s678
    %v680 = vmul.f32 %v409, %v679
    %s681 = sld [smem:[#allocation10 + $0x9]]
    %v682 = vstv %s681
    %v683 = vmul.f32 %v410, %v682
    %v684 = vadd.f32 %v680, %v683
    %s685 = sld [smem:[#allocation10 + $0xe]]
    %v686 = vstv %s685
    %v687 = vmul.f32 %v411, %v686
    %v688 = vadd.f32 %v684, %v687
    %s689 = sld [smem:[#allocation10 + $0x13]]
    %v690 = vstv %s689
    %v691 = vmul.f32 %v412, %v690
    %v692 = vadd.f32 %v688, %v691
    %s693 = sld [smem:[#allocation10 + $0x18]]
    %v694 = vstv %s693
    %v695 = vmul.f32 %v413, %v694
    %v696 = vadd.f32 %v692, %v695
    %s697 = sld [smem:[#allocation10 + $0x1d]]
    %v698 = vstv %s697
    %v699 = vmul.f32 %v388, %v698
    %v700 = vadd.f32 %v696, %v699
    %s701 = sld [smem:[#allocation10 + $0x22]]
    %v702 = vstv %s701
    %v703 = vmul.f32 %v389, %v702
    %v704 = vadd.f32 %v700, %v703
    %s705 = sld [smem:[#allocation10 + $0x27]]
    %v706 = vstv %s705
    %v707 = vmul.f32 %v390, %v706
    %v708 = vadd.f32 %v704, %v707
    %s709 = sld [smem:[#allocation10 + $0x2c]]
    %v710 = vstv %s709
    %v711 = vmul.f32 %v391, %v710
    %v712 = vadd.f32 %v708, %v711
    %s713 = sld [smem:[#allocation10 + $0x31]]
    %v714 = vstv %s713
    %v715 = vmul.f32 %v392, %v714
    %v716 = vadd.f32 %v712, %v715
    %s717 = sld [smem:[#allocation10 + $0x36]]
    %v718 = vstv %s717
    %v719 = vmul.f32 %v425, %v718
    %v720 = vadd.f32 %v716, %v719
    %s721 = sld [smem:[#allocation10 + $0x3b]]
    %v722 = vstv %s721
    %v723 = vmul.f32 %v426, %v722
    %v724 = vadd.f32 %v720, %v723
    %s725 = sld [smem:[#allocation10 + $0x40]]
    %v726 = vstv %s725
    %v727 = vmul.f32 %v427, %v726
    %v728 = vadd.f32 %v724, %v727
    %s729 = sld [smem:[#allocation10 + $0x45]]
    %v730 = vstv %s729
    %v731 = vmul.f32 %v428, %v730
    %v732 = vadd.f32 %v728, %v731
    %s733 = sld [smem:[#allocation10 + $0x4a]]
    %v734 = vstv %s733
    %v735 = vmul.f32 %v429, %v734
    %v736 = vadd.f32 %v732, %v735
    %s737 = sld [smem:[#allocation11 + $0x4]]
    %v738 = vstv %s737
    %v739 = vadd.f32 %v736, %v738
    %v740 = vmul.f32 %v491, %v147
    %v741 = vmul.f32 %v553, %v147
    %v742 = vmul.f32 %v615, %v147
    %v743 = vmul.f32 %v677, %v147
    %v744 = vmul.f32 %v739, %v147
    %v745 = vadd.f32 %v740, %v741
    %v746 = vadd.f32 %v745, %v742
    %v747 = vadd.f32 %v746, %v743
    %v748 = vadd.f32 %v747, %v744
    %v749 = vrot.slane %v748, 4
    %v750 = vadd.f32 %v748, %v749
    %v751 = vrot.slane %v750, 2
    %v752 = vadd.f32 %v750, %v751
    %v753 = vrot.slane %v752, 1
    %v754 = vadd.f32 %v752, %v753
    %v755 = vmul.f32 %v754, 0.025
    %v756 = vsub.f32 %v740, %v755
    %v757 = vsub.f32 %v741, %v755
    %v758 = vsub.f32 %v742, %v755
    %v759 = vsub.f32 %v743, %v755
    %v760 = vsub.f32 %v744, %v755
    %v761 = vmul.f32 %v756, %v756
    %v762 = vmul.f32 %v757, %v757
    %v763 = vmul.f32 %v758, %v758
    %v764 = vmul.f32 %v759, %v759
    %v765 = vmul.f32 %v760, %v760
    %v766 = vadd.f32 %v761, %v762
    %v767 = vadd.f32 %v766, %v763
    %v768 = vadd.f32 %v767, %v764
    %v769 = vadd.f32 %v768, %v765
    %v770 = vrot.slane %v769, 4
    %v771 = vadd.f32 %v769, %v770
    %v772 = vrot.slane %v771, 2
    %v773 = vadd.f32 %v771, %v772
    %v774 = vrot.slane %v773, 1
    %v775 = vadd.f32 %v773, %v774
    %v776 = vmul.f32 %v775, 0.025
    %v777 = vadd.f32 %v776, 1e-05
    %v778 = vrsqrt.pop %v777
    %v779 = vmul.f32 %v756, %v778
    %v780 = vmul.f32 %v757, %v778
    %v781 = vmul.f32 %v758, %v778
    %v782 = vmul.f32 %v759, %v778
    %v783 = vmul.f32 %v760, %v778
    %v784 = vmul.f32 %v779, %v149
    %v785 = vmul.f32 %v780, %v150
    %v786 = vmul.f32 %v781, %v151
    %v787 = vmul.f32 %v782, %v152
    %v788 = vmul.f32 %v783, %v153
    %v789 = vadd.f32 %v784, %v154
    %v790 = vadd.f32 %v785, %v155
    %v791 = vadd.f32 %v786, %v156
    %v792 = vadd.f32 %v787, %v157
    %v793 = vadd.f32 %v788, %v158
    %v794 = vadd.f32 %v789, %v268
    %v795 = vadd.f32 %v790, %v269
    %v796 = vadd.f32 %v791, %v270
    %v797 = vadd.f32 %v792, %v271
    %v798 = vadd.f32 %v793, %v272
    %vm799 = vcmp.ge.f32.partialorder %v794, 0.0
    %vm800 = vcmp.ge.f32.partialorder %v795, 0.0
    %vm801 = vcmp.ge.f32.partialorder %v796, 0.0
    %vm802 = vcmp.ge.f32.partialorder %v797, 0.0
    %vm803 = vcmp.ge.f32.partialorder %v798, 0.0
    %v804 = vmul.f32 %v382, %v794
    %v805 = vmul.f32 %v382, %v795
    %v806 = vmul.f32 %v382, %v796
    %v807 = vmul.f32 %v382, %v797
    %v808 = vmul.f32 %v382, %v798
    %v809 = vsel %vm799, %v794, %v804
    %v810 = vsel %vm800, %v795, %v805
    %v811 = vsel %vm801, %v796, %v806
    %v812 = vsel %vm802, %v797, %v807
    %v813 = vsel %vm803, %v798, %v808
    %v814 = vld [vmem:[%s14] sm:$0xff]
    %v815 = vld [vmem:[%s14 + $0x8] sm:$0xff]
    %v816 = vld [vmem:[%s14 + $0x10] sm:$0xf]
    %v817 = vld [vmem:[%s14 + $0x18] sm:$0xff]
    %v818 = vld [vmem:[%s14 + $0x20] sm:$0xff]
    %v819 = vld [vmem:[%s14 + $0x28] sm:$0xf]
    %v820 = vld [vmem:[%s14 + $0x30] sm:$0xff]
    %v821 = vld [vmem:[%s14 + $0x38] sm:$0xff]
    %v822 = vld [vmem:[%s14 + $0x40] sm:$0xf]
    %v823 = vld [vmem:[%s14 + $0x48] sm:$0xff]
    %v824 = vld [vmem:[%s14 + $0x50] sm:$0xff]
    %v825 = vld [vmem:[%s14 + $0x58] sm:$0xf]
    %v826 = vld [vmem:[%s14 + $0x60] sm:$0xff]
    %v827 = vld [vmem:[%s14 + $0x68] sm:$0xff]
    %v828 = vld [vmem:[%s14 + $0x70] sm:$0xf]
    %v829 = vld [vmem:[%s15] sm:$0xff]
    %v830 = vld [vmem:[%s15 + $0x8] sm:$0xff]
    %v831 = vld [vmem:[%s15 + $0x10] sm:$0xf]
    %v832 = vld [vmem:[%s15 + $0x18] sm:$0xff]
    %v833 = vld [vmem:[%s15 + $0x20] sm:$0xff]
    %v834 = vld [vmem:[%s15 + $0x28] sm:$0xf]
    %v835 = vld [vmem:[%s15 + $0x30] sm:$0xff]
    %v836 = vld [vmem:[%s15 + $0x38] sm:$0xff]
    %v837 = vld [vmem:[%s15 + $0x40] sm:$0xf]
    %v838 = vld [vmem:[%s15 + $0x48] sm:$0xff]
    %v839 = vld [vmem:[%s15 + $0x50] sm:$0xff]
    %v840 = vld [vmem:[%s15 + $0x58] sm:$0xf]
    %v841 = vld [vmem:[%s15 + $0x60] sm:$0xff]
    %v842 = vld [vmem:[%s15 + $0x68] sm:$0xff]
    %v843 = vld [vmem:[%s15 + $0x70] sm:$0xf]
    %v844 = vld [vmem:[%s16] sm:$0xff]
    %v845 = vld [vmem:[%s16 + $0x8] sm:$0xff]
    %v846 = vld [vmem:[%s16 + $0x10] sm:$0xf]
    %v848 = vcombine.high %v809, %v809
    %v850 = vunpack.c.l.s4 1966171168
    %v851 = vunpack.c.0.s8 %v850
    %v852 = vlaneseq
    %v853 = vshrl.u32 %v852, 7
    %v854 = vsub.s32 %v851, %v853
    %v855 = vrot.slane %v809, %v854
    %v857 = vunpack.c.l.s4 1966171168
    %v858 = vunpack.c.0.s8 %v857
    %v859 = vlaneseq
    %v860 = vshrl.u32 %v859, 7
    %v861 = vsub.s32 %v858, %v860
    %v862 = vrot.slane %v848, %v861
    %v863 = vcombine.high %v855, %v855
    %v864 = vcombine.high %v862, %v862
    %v866 = vunpack.c.l.s4 1966171168
    %v867 = vunpack.c.0.s8 %v866
    %v868 = vlaneseq
    %v869 = vshrl.u32 %v868, 7
    %v870 = vsub.s32 %v867, %v869
    %v871 = vrot.slane %v855, %v870
    %v873 = vunpack.c.l.s4 1966171168
    %v874 = vunpack.c.0.s8 %v873
    %v875 = vlaneseq
    %v876 = vshrl.u32 %v875, 7
    %v877 = vsub.s32 %v874, %v876
    %v878 = vrot.slane %v862, %v877
    %v880 = vunpack.c.l.s4 1966171168
    %v881 = vunpack.c.0.s8 %v880
    %v882 = vlaneseq
    %v883 = vshrl.u32 %v882, 7
    %v884 = vsub.s32 %v881, %v883
    %v885 = vrot.slane %v863, %v884
    %v887 = vunpack.c.l.s4 1966171168
    %v888 = vunpack.c.0.s8 %v887
    %v889 = vlaneseq
    %v890 = vshrl.u32 %v889, 7
    %v891 = vsub.s32 %v888, %v890
    %v892 = vrot.slane %v864, %v891
    %v893 = vcombine.high %v871, %v871
    %v894 = vcombine.high %v878, %v878
    %v895 = vcombine.high %v885, %v885
    %v896 = vcombine.high %v892, %v892
    %v897 = vlaneseq
    %v898 = vshrl.u32 %v897, 7
    %v899 = vsub.s32 0, %v898
    %v900 = vrot.slane %v871, %v899
    %v901 = vlaneseq
    %v902 = vshrl.u32 %v901, 7
    %v903 = vsub.s32 0, %v902
    %v904 = vrot.slane %v885, %v903
    %v905 = vlaneseq
    %v906 = vshrl.u32 %v905, 7
    %v907 = vsub.s32 0, %v906
    %v908 = vrot.slane %v893, %v907
    %v909 = vlaneseq
    %v910 = vshrl.u32 %v909, 7
    %v911 = vsub.s32 0, %v910
    %v912 = vrot.slane %v895, %v911
    %v913 = vlaneseq
    %v914 = vshrl.u32 %v913, 7
    %v915 = vsub.s32 0, %v914
    %v916 = vrot.slane %v878, %v915
    %v917 = vlaneseq
    %v918 = vshrl.u32 %v917, 7
    %v919 = vsub.s32 0, %v918
    %v920 = vrot.slane %v892, %v919
    %v921 = vlaneseq
    %v922 = vshrl.u32 %v921, 7
    %v923 = vsub.s32 0, %v922
    %v924 = vrot.slane %v894, %v923
    %v925 = vlaneseq
    %v926 = vshrl.u32 %v925, 7
    %v927 = vsub.s32 0, %v926
    %v928 = vrot.slane %v896, %v927
    %v937 = vmul.f32 %v814, %v900
    %v938 = vmul.f32 %v815, %v900
    %v939 = vmul.f32 %v816, %v900
    %v940 = vmul.f32 %v814, %v904
    %v941 = vmul.f32 %v815, %v904
    %v942 = vmul.f32 %v816, %v904
    %v943 = vmul.f32 %v814, %v908
    %v944 = vmul.f32 %v815, %v908
    %v945 = vmul.f32 %v816, %v908
    %v946 = vmul.f32 %v814, %v912
    %v947 = vmul.f32 %v815, %v912
    %v948 = vmul.f32 %v816, %v912
    %v949 = vmul.f32 %v814, %v916
    %v950 = vmul.f32 %v815, %v916
    %v951 = vmul.f32 %v816, %v916
    %v952 = vmul.f32 %v814, %v920
    %v953 = vmul.f32 %v815, %v920
    %v954 = vmul.f32 %v816, %v920
    %v955 = vmul.f32 %v814, %v924
    %v956 = vmul.f32 %v815, %v924
    %v957 = vmul.f32 %v816, %v924
    %v958 = vmul.f32 %v814, %v928
    %v959 = vmul.f32 %v815, %v928
    %v960 = vmul.f32 %v816, %v928
    %v962 = vcombine.high %v810, %v810
    %v964 = vunpack.c.l.s4 1966171168
    %v965 = vunpack.c.0.s8 %v964
    %v966 = vlaneseq
    %v967 = vshrl.u32 %v966, 7
    %v968 = vsub.s32 %v965, %v967
    %v969 = vrot.slane %v810, %v968
    %v971 = vunpack.c.l.s4 1966171168
    %v972 = vunpack.c.0.s8 %v971
    %v973 = vlaneseq
    %v974 = vshrl.u32 %v973, 7
    %v975 = vsub.s32 %v972, %v974
    %v976 = vrot.slane %v962, %v975
    %v977 = vcombine.high %v969, %v969
    %v978 = vcombine.high %v976, %v976
    %v980 = vunpack.c.l.s4 1966171168
    %v981 = vunpack.c.0.s8 %v980
    %v982 = vlaneseq
    %v983 = vshrl.u32 %v982, 7
    %v984 = vsub.s32 %v981, %v983
    %v985 = vrot.slane %v969, %v984
    %v987 = vunpack.c.l.s4 1966171168
    %v988 = vunpack.c.0.s8 %v987
    %v989 = vlaneseq
    %v990 = vshrl.u32 %v989, 7
    %v991 = vsub.s32 %v988, %v990
    %v992 = vrot.slane %v976, %v991
    %v994 = vunpack.c.l.s4 1966171168
    %v995 = vunpack.c.0.s8 %v994
    %v996 = vlaneseq
    %v997 = vshrl.u32 %v996, 7
    %v998 = vsub.s32 %v995, %v997
    %v999 = vrot.slane %v977, %v998
    %v1001 = vunpack.c.l.s4 1966171168
    %v1002 = vunpack.c.0.s8 %v1001
    %v1003 = vlaneseq
    %v1004 = vshrl.u32 %v1003, 7
    %v1005 = vsub.s32 %v1002, %v1004
    %v1006 = vrot.slane %v978, %v1005
    %v1007 = vcombine.high %v985, %v985
    %v1008 = vcombine.high %v992, %v992
    %v1009 = vcombine.high %v999, %v999
    %v1010 = vcombine.high %v1006, %v1006
    %v1011 = vlaneseq
    %v1012 = vshrl.u32 %v1011, 7
    %v1013 = vsub.s32 0, %v1012
    %v1014 = vrot.slane %v985, %v1013
    %v1015 = vlaneseq
    %v1016 = vshrl.u32 %v1015, 7
    %v1017 = vsub.s32 0, %v1016
    %v1018 = vrot.slane %v999, %v1017
    %v1019 = vlaneseq
    %v1020 = vshrl.u32 %v1019, 7
    %v1021 = vsub.s32 0, %v1020
    %v1022 = vrot.slane %v1007, %v1021
    %v1023 = vlaneseq
    %v1024 = vshrl.u32 %v1023, 7
    %v1025 = vsub.s32 0, %v1024
    %v1026 = vrot.slane %v1009, %v1025
    %v1027 = vlaneseq
    %v1028 = vshrl.u32 %v1027, 7
    %v1029 = vsub.s32 0, %v1028
    %v1030 = vrot.slane %v992, %v1029
    %v1031 = vlaneseq
    %v1032 = vshrl.u32 %v1031, 7
    %v1033 = vsub.s32 0, %v1032
    %v1034 = vrot.slane %v1006, %v1033
    %v1035 = vlaneseq
    %v1036 = vshrl.u32 %v1035, 7
    %v1037 = vsub.s32 0, %v1036
    %v1038 = vrot.slane %v1008, %v1037
    %v1039 = vlaneseq
    %v1040 = vshrl.u32 %v1039, 7
    %v1041 = vsub.s32 0, %v1040
    %v1042 = vrot.slane %v1010, %v1041
    %v1051 = vmul.f32 %v817, %v1014
    %v1052 = vmul.f32 %v818, %v1014
    %v1053 = vmul.f32 %v819, %v1014
    %v1054 = vmul.f32 %v817, %v1018
    %v1055 = vmul.f32 %v818, %v1018
    %v1056 = vmul.f32 %v819, %v1018
    %v1057 = vmul.f32 %v817, %v1022
    %v1058 = vmul.f32 %v818, %v1022
    %v1059 = vmul.f32 %v819, %v1022
    %v1060 = vmul.f32 %v817, %v1026
    %v1061 = vmul.f32 %v818, %v1026
    %v1062 = vmul.f32 %v819, %v1026
    %v1063 = vmul.f32 %v817, %v1030
    %v1064 = vmul.f32 %v818, %v1030
    %v1065 = vmul.f32 %v819, %v1030
    %v1066 = vmul.f32 %v817, %v1034
    %v1067 = vmul.f32 %v818, %v1034
    %v1068 = vmul.f32 %v819, %v1034
    %v1069 = vmul.f32 %v817, %v1038
    %v1070 = vmul.f32 %v818, %v1038
    %v1071 = vmul.f32 %v819, %v1038
    %v1072 = vmul.f32 %v817, %v1042
    %v1073 = vmul.f32 %v818, %v1042
    %v1074 = vmul.f32 %v819, %v1042
    %v1075 = vadd.f32 %v937, %v1051
    %v1076 = vadd.f32 %v938, %v1052
    %v1077 = vadd.f32 %v939, %v1053
    %v1078 = vadd.f32 %v940, %v1054
    %v1079 = vadd.f32 %v941, %v1055
    %v1080 = vadd.f32 %v942, %v1056
    %v1081 = vadd.f32 %v943, %v1057
    %v1082 = vadd.f32 %v944, %v1058
    %v1083 = vadd.f32 %v945, %v1059
    %v1084 = vadd.f32 %v946, %v1060
    %v1085 = vadd.f32 %v947, %v1061
    %v1086 = vadd.f32 %v948, %v1062
    %v1087 = vadd.f32 %v949, %v1063
    %v1088 = vadd.f32 %v950, %v1064
    %v1089 = vadd.f32 %v951, %v1065
    %v1090 = vadd.f32 %v952, %v1066
    %v1091 = vadd.f32 %v953, %v1067
    %v1092 = vadd.f32 %v954, %v1068
    %v1093 = vadd.f32 %v955, %v1069
    %v1094 = vadd.f32 %v956, %v1070
    %v1095 = vadd.f32 %v957, %v1071
    %v1096 = vadd.f32 %v958, %v1072
    %v1097 = vadd.f32 %v959, %v1073
    %v1098 = vadd.f32 %v960, %v1074
    %v1100 = vcombine.high %v811, %v811
    %v1102 = vunpack.c.l.s4 1966171168
    %v1103 = vunpack.c.0.s8 %v1102
    %v1104 = vlaneseq
    %v1105 = vshrl.u32 %v1104, 7
    %v1106 = vsub.s32 %v1103, %v1105
    %v1107 = vrot.slane %v811, %v1106
    %v1109 = vunpack.c.l.s4 1966171168
    %v1110 = vunpack.c.0.s8 %v1109
    %v1111 = vlaneseq
    %v1112 = vshrl.u32 %v1111, 7
    %v1113 = vsub.s32 %v1110, %v1112
    %v1114 = vrot.slane %v1100, %v1113
    %v1115 = vcombine.high %v1107, %v1107
    %v1116 = vcombine.high %v1114, %v1114
    %v1118 = vunpack.c.l.s4 1966171168
    %v1119 = vunpack.c.0.s8 %v1118
    %v1120 = vlaneseq
    %v1121 = vshrl.u32 %v1120, 7
    %v1122 = vsub.s32 %v1119, %v1121
    %v1123 = vrot.slane %v1107, %v1122
    %v1125 = vunpack.c.l.s4 1966171168
    %v1126 = vunpack.c.0.s8 %v1125
    %v1127 = vlaneseq
    %v1128 = vshrl.u32 %v1127, 7
    %v1129 = vsub.s32 %v1126, %v1128
    %v1130 = vrot.slane %v1114, %v1129
    %v1132 = vunpack.c.l.s4 1966171168
    %v1133 = vunpack.c.0.s8 %v1132
    %v1134 = vlaneseq
    %v1135 = vshrl.u32 %v1134, 7
    %v1136 = vsub.s32 %v1133, %v1135
    %v1137 = vrot.slane %v1115, %v1136
    %v1139 = vunpack.c.l.s4 1966171168
    %v1140 = vunpack.c.0.s8 %v1139
    %v1141 = vlaneseq
    %v1142 = vshrl.u32 %v1141, 7
    %v1143 = vsub.s32 %v1140, %v1142
    %v1144 = vrot.slane %v1116, %v1143
    %v1145 = vcombine.high %v1123, %v1123
    %v1146 = vcombine.high %v1130, %v1130
    %v1147 = vcombine.high %v1137, %v1137
    %v1148 = vcombine.high %v1144, %v1144
    %v1149 = vlaneseq
    %v1150 = vshrl.u32 %v1149, 7
    %v1151 = vsub.s32 0, %v1150
    %v1152 = vrot.slane %v1123, %v1151
    %v1153 = vlaneseq
    %v1154 = vshrl.u32 %v1153, 7
    %v1155 = vsub.s32 0, %v1154
    %v1156 = vrot.slane %v1137, %v1155
    %v1157 = vlaneseq
    %v1158 = vshrl.u32 %v1157, 7
    %v1159 = vsub.s32 0, %v1158
    %v1160 = vrot.slane %v1145, %v1159
    %v1161 = vlaneseq
    %v1162 = vshrl.u32 %v1161, 7
    %v1163 = vsub.s32 0, %v1162
    %v1164 = vrot.slane %v1147, %v1163
    %v1165 = vlaneseq
    %v1166 = vshrl.u32 %v1165, 7
    %v1167 = vsub.s32 0, %v1166
    %v1168 = vrot.slane %v1130, %v1167
    %v1169 = vlaneseq
    %v1170 = vshrl.u32 %v1169, 7
    %v1171 = vsub.s32 0, %v1170
    %v1172 = vrot.slane %v1144, %v1171
    %v1173 = vlaneseq
    %v1174 = vshrl.u32 %v1173, 7
    %v1175 = vsub.s32 0, %v1174
    %v1176 = vrot.slane %v1146, %v1175
    %v1177 = vlaneseq
    %v1178 = vshrl.u32 %v1177, 7
    %v1179 = vsub.s32 0, %v1178
    %v1180 = vrot.slane %v1148, %v1179
    %v1189 = vmul.f32 %v820, %v1152
    %v1190 = vmul.f32 %v821, %v1152
    %v1191 = vmul.f32 %v822, %v1152
    %v1192 = vmul.f32 %v820, %v1156
    %v1193 = vmul.f32 %v821, %v1156
    %v1194 = vmul.f32 %v822, %v1156
    %v1195 = vmul.f32 %v820, %v1160
    %v1196 = vmul.f32 %v821, %v1160
    %v1197 = vmul.f32 %v822, %v1160
    %v1198 = vmul.f32 %v820, %v1164
    %v1199 = vmul.f32 %v821, %v1164
    %v1200 = vmul.f32 %v822, %v1164
    %v1201 = vmul.f32 %v820, %v1168
    %v1202 = vmul.f32 %v821, %v1168
    %v1203 = vmul.f32 %v822, %v1168
    %v1204 = vmul.f32 %v820, %v1172
    %v1205 = vmul.f32 %v821, %v1172
    %v1206 = vmul.f32 %v822, %v1172
    %v1207 = vmul.f32 %v820, %v1176
    %v1208 = vmul.f32 %v821, %v1176
    %v1209 = vmul.f32 %v822, %v1176
    %v1210 = vmul.f32 %v820, %v1180
    %v1211 = vmul.f32 %v821, %v1180
    %v1212 = vmul.f32 %v822, %v1180
    %v1213 = vadd.f32 %v1075, %v1189
    %v1214 = vadd.f32 %v1076, %v1190
    %v1215 = vadd.f32 %v1077, %v1191
    %v1216 = vadd.f32 %v1078, %v1192
    %v1217 = vadd.f32 %v1079, %v1193
    %v1218 = vadd.f32 %v1080, %v1194
    %v1219 = vadd.f32 %v1081, %v1195
    %v1220 = vadd.f32 %v1082, %v1196
    %v1221 = vadd.f32 %v1083, %v1197
    %v1222 = vadd.f32 %v1084, %v1198
    %v1223 = vadd.f32 %v1085, %v1199
    %v1224 = vadd.f32 %v1086, %v1200
    %v1225 = vadd.f32 %v1087, %v1201
    %v1226 = vadd.f32 %v1088, %v1202
    %v1227 = vadd.f32 %v1089, %v1203
    %v1228 = vadd.f32 %v1090, %v1204
    %v1229 = vadd.f32 %v1091, %v1205
    %v1230 = vadd.f32 %v1092, %v1206
    %v1231 = vadd.f32 %v1093, %v1207
    %v1232 = vadd.f32 %v1094, %v1208
    %v1233 = vadd.f32 %v1095, %v1209
    %v1234 = vadd.f32 %v1096, %v1210
    %v1235 = vadd.f32 %v1097, %v1211
    %v1236 = vadd.f32 %v1098, %v1212
    %v1238 = vcombine.high %v812, %v812
    %v1240 = vunpack.c.l.s4 1966171168
    %v1241 = vunpack.c.0.s8 %v1240
    %v1242 = vlaneseq
    %v1243 = vshrl.u32 %v1242, 7
    %v1244 = vsub.s32 %v1241, %v1243
    %v1245 = vrot.slane %v812, %v1244
    %v1247 = vunpack.c.l.s4 1966171168
    %v1248 = vunpack.c.0.s8 %v1247
    %v1249 = vlaneseq
    %v1250 = vshrl.u32 %v1249, 7
    %v1251 = vsub.s32 %v1248, %v1250
    %v1252 = vrot.slane %v1238, %v1251
    %v1253 = vcombine.high %v1245, %v1245
    %v1254 = vcombine.high %v1252, %v1252
    %v1256 = vunpack.c.l.s4 1966171168
    %v1257 = vunpack.c.0.s8 %v1256
    %v1258 = vlaneseq
    %v1259 = vshrl.u32 %v1258, 7
    %v1260 = vsub.s32 %v1257, %v1259
    %v1261 = vrot.slane %v1245, %v1260
    %v1263 = vunpack.c.l.s4 1966171168
    %v1264 = vunpack.c.0.s8 %v1263
    %v1265 = vlaneseq
    %v1266 = vshrl.u32 %v1265, 7
    %v1267 = vsub.s32 %v1264, %v1266
    %v1268 = vrot.slane %v1252, %v1267
    %v1270 = vunpack.c.l.s4 1966171168
    %v1271 = vunpack.c.0.s8 %v1270
    %v1272 = vlaneseq
    %v1273 = vshrl.u32 %v1272, 7
    %v1274 = vsub.s32 %v1271, %v1273
    %v1275 = vrot.slane %v1253, %v1274
    %v1277 = vunpack.c.l.s4 1966171168
    %v1278 = vunpack.c.0.s8 %v1277
    %v1279 = vlaneseq
    %v1280 = vshrl.u32 %v1279, 7
    %v1281 = vsub.s32 %v1278, %v1280
    %v1282 = vrot.slane %v1254, %v1281
    %v1283 = vcombine.high %v1261, %v1261
    %v1284 = vcombine.high %v1268, %v1268
    %v1285 = vcombine.high %v1275, %v1275
    %v1286 = vcombine.high %v1282, %v1282
    %v1287 = vlaneseq
    %v1288 = vshrl.u32 %v1287, 7
    %v1289 = vsub.s32 0, %v1288
    %v1290 = vrot.slane %v1261, %v1289
    %v1291 = vlaneseq
    %v1292 = vshrl.u32 %v1291, 7
    %v1293 = vsub.s32 0, %v1292
    %v1294 = vrot.slane %v1275, %v1293
    %v1295 = vlaneseq
    %v1296 = vshrl.u32 %v1295, 7
    %v1297 = vsub.s32 0, %v1296
    %v1298 = vrot.slane %v1283, %v1297
    %v1299 = vlaneseq
    %v1300 = vshrl.u32 %v1299, 7
    %v1301 = vsub.s32 0, %v1300
    %v1302 = vrot.slane %v1285, %v1301
    %v1303 = vlaneseq
    %v1304 = vshrl.u32 %v1303, 7
    %v1305 = vsub.s32 0, %v1304
    %v1306 = vrot.slane %v1268, %v1305
    %v1307 = vlaneseq
    %v1308 = vshrl.u32 %v1307, 7
    %v1309 = vsub.s32 0, %v1308
    %v1310 = vrot.slane %v1282, %v1309
    %v1311 = vlaneseq
    %v1312 = vshrl.u32 %v1311, 7
    %v1313 = vsub.s32 0, %v1312
    %v1314 = vrot.slane %v1284, %v1313
    %v1315 = vlaneseq
    %v1316 = vshrl.u32 %v1315, 7
    %v1317 = vsub.s32 0, %v1316
    %v1318 = vrot.slane %v1286, %v1317
    %v1327 = vmul.f32 %v823, %v1290
    %v1328 = vmul.f32 %v824, %v1290
    %v1329 = vmul.f32 %v825, %v1290
    %v1330 = vmul.f32 %v823, %v1294
    %v1331 = vmul.f32 %v824, %v1294
    %v1332 = vmul.f32 %v825, %v1294
    %v1333 = vmul.f32 %v823, %v1298
    %v1334 = vmul.f32 %v824, %v1298
    %v1335 = vmul.f32 %v825, %v1298
    %v1336 = vmul.f32 %v823, %v1302
    %v1337 = vmul.f32 %v824, %v1302
    %v1338 = vmul.f32 %v825, %v1302
    %v1339 = vmul.f32 %v823, %v1306
    %v1340 = vmul.f32 %v824, %v1306
    %v1341 = vmul.f32 %v825, %v1306
    %v1342 = vmul.f32 %v823, %v1310
    %v1343 = vmul.f32 %v824, %v1310
    %v1344 = vmul.f32 %v825, %v1310
    %v1345 = vmul.f32 %v823, %v1314
    %v1346 = vmul.f32 %v824, %v1314
    %v1347 = vmul.f32 %v825, %v1314
    %v1348 = vmul.f32 %v823, %v1318
    %v1349 = vmul.f32 %v824, %v1318
    %v1350 = vmul.f32 %v825, %v1318
    %v1351 = vadd.f32 %v1213, %v1327
    %v1352 = vadd.f32 %v1214, %v1328
    %v1353 = vadd.f32 %v1215, %v1329
    %v1354 = vadd.f32 %v1216, %v1330
    %v1355 = vadd.f32 %v1217, %v1331
    %v1356 = vadd.f32 %v1218, %v1332
    %v1357 = vadd.f32 %v1219, %v1333
    %v1358 = vadd.f32 %v1220, %v1334
    %v1359 = vadd.f32 %v1221, %v1335
    %v1360 = vadd.f32 %v1222, %v1336
    %v1361 = vadd.f32 %v1223, %v1337
    %v1362 = vadd.f32 %v1224, %v1338
    %v1363 = vadd.f32 %v1225, %v1339
    %v1364 = vadd.f32 %v1226, %v1340
    %v1365 = vadd.f32 %v1227, %v1341
    %v1366 = vadd.f32 %v1228, %v1342
    %v1367 = vadd.f32 %v1229, %v1343
    %v1368 = vadd.f32 %v1230, %v1344
    %v1369 = vadd.f32 %v1231, %v1345
    %v1370 = vadd.f32 %v1232, %v1346
    %v1371 = vadd.f32 %v1233, %v1347
    %v1372 = vadd.f32 %v1234, %v1348
    %v1373 = vadd.f32 %v1235, %v1349
    %v1374 = vadd.f32 %v1236, %v1350
    %v1376 = vcombine.high %v813, %v813
    %v1378 = vunpack.c.l.s4 1966171168
    %v1379 = vunpack.c.0.s8 %v1378
    %v1380 = vlaneseq
    %v1381 = vshrl.u32 %v1380, 7
    %v1382 = vsub.s32 %v1379, %v1381
    %v1383 = vrot.slane %v813, %v1382
    %v1385 = vunpack.c.l.s4 1966171168
    %v1386 = vunpack.c.0.s8 %v1385
    %v1387 = vlaneseq
    %v1388 = vshrl.u32 %v1387, 7
    %v1389 = vsub.s32 %v1386, %v1388
    %v1390 = vrot.slane %v1376, %v1389
    %v1391 = vcombine.high %v1383, %v1383
    %v1392 = vcombine.high %v1390, %v1390
    %v1394 = vunpack.c.l.s4 1966171168
    %v1395 = vunpack.c.0.s8 %v1394
    %v1396 = vlaneseq
    %v1397 = vshrl.u32 %v1396, 7
    %v1398 = vsub.s32 %v1395, %v1397
    %v1399 = vrot.slane %v1383, %v1398
    %v1401 = vunpack.c.l.s4 1966171168
    %v1402 = vunpack.c.0.s8 %v1401
    %v1403 = vlaneseq
    %v1404 = vshrl.u32 %v1403, 7
    %v1405 = vsub.s32 %v1402, %v1404
    %v1406 = vrot.slane %v1390, %v1405
    %v1408 = vunpack.c.l.s4 1966171168
    %v1409 = vunpack.c.0.s8 %v1408
    %v1410 = vlaneseq
    %v1411 = vshrl.u32 %v1410, 7
    %v1412 = vsub.s32 %v1409, %v1411
    %v1413 = vrot.slane %v1391, %v1412
    %v1415 = vunpack.c.l.s4 1966171168
    %v1416 = vunpack.c.0.s8 %v1415
    %v1417 = vlaneseq
    %v1418 = vshrl.u32 %v1417, 7
    %v1419 = vsub.s32 %v1416, %v1418
    %v1420 = vrot.slane %v1392, %v1419
    %v1421 = vcombine.high %v1399, %v1399
    %v1422 = vcombine.high %v1406, %v1406
    %v1423 = vcombine.high %v1413, %v1413
    %v1424 = vcombine.high %v1420, %v1420
    %v1425 = vlaneseq
    %v1426 = vshrl.u32 %v1425, 7
    %v1427 = vsub.s32 0, %v1426
    %v1428 = vrot.slane %v1399, %v1427
    %v1429 = vlaneseq
    %v1430 = vshrl.u32 %v1429, 7
    %v1431 = vsub.s32 0, %v1430
    %v1432 = vrot.slane %v1413, %v1431
    %v1433 = vlaneseq
    %v1434 = vshrl.u32 %v1433, 7
    %v1435 = vsub.s32 0, %v1434
    %v1436 = vrot.slane %v1421, %v1435
    %v1437 = vlaneseq
    %v1438 = vshrl.u32 %v1437, 7
    %v1439 = vsub.s32 0, %v1438
    %v1440 = vrot.slane %v1423, %v1439
    %v1441 = vlaneseq
    %v1442 = vshrl.u32 %v1441, 7
    %v1443 = vsub.s32 0, %v1442
    %v1444 = vrot.slane %v1406, %v1443
    %v1445 = vlaneseq
    %v1446 = vshrl.u32 %v1445, 7
    %v1447 = vsub.s32 0, %v1446
    %v1448 = vrot.slane %v1420, %v1447
    %v1449 = vlaneseq
    %v1450 = vshrl.u32 %v1449, 7
    %v1451 = vsub.s32 0, %v1450
    %v1452 = vrot.slane %v1422, %v1451
    %v1453 = vlaneseq
    %v1454 = vshrl.u32 %v1453, 7
    %v1455 = vsub.s32 0, %v1454
    %v1456 = vrot.slane %v1424, %v1455
    %v1465 = vmul.f32 %v826, %v1428
    %v1466 = vmul.f32 %v827, %v1428
    %v1467 = vmul.f32 %v828, %v1428
    %v1468 = vmul.f32 %v826, %v1432
    %v1469 = vmul.f32 %v827, %v1432
    %v1470 = vmul.f32 %v828, %v1432
    %v1471 = vmul.f32 %v826, %v1436
    %v1472 = vmul.f32 %v827, %v1436
    %v1473 = vmul.f32 %v828, %v1436
    %v1474 = vmul.f32 %v826, %v1440
    %v1475 = vmul.f32 %v827, %v1440
    %v1476 = vmul.f32 %v828, %v1440
    %v1477 = vmul.f32 %v826, %v1444
    %v1478 = vmul.f32 %v827, %v1444
    %v1479 = vmul.f32 %v828, %v1444
    %v1480 = vmul.f32 %v826, %v1448
    %v1481 = vmul.f32 %v827, %v1448
    %v1482 = vmul.f32 %v828, %v1448
    %v1483 = vmul.f32 %v826, %v1452
    %v1484 = vmul.f32 %v827, %v1452
    %v1485 = vmul.f32 %v828, %v1452
    %v1486 = vmul.f32 %v826, %v1456
    %v1487 = vmul.f32 %v827, %v1456
    %v1488 = vmul.f32 %v828, %v1456
    %v1489 = vadd.f32 %v1351, %v1465
    %v1490 = vadd.f32 %v1352, %v1466
    %v1491 = vadd.f32 %v1353, %v1467
    %v1492 = vadd.f32 %v1354, %v1468
    %v1493 = vadd.f32 %v1355, %v1469
    %v1494 = vadd.f32 %v1356, %v1470
    %v1495 = vadd.f32 %v1357, %v1471
    %v1496 = vadd.f32 %v1358, %v1472
    %v1497 = vadd.f32 %v1359, %v1473
    %v1498 = vadd.f32 %v1360, %v1474
    %v1499 = vadd.f32 %v1361, %v1475
    %v1500 = vadd.f32 %v1362, %v1476
    %v1501 = vadd.f32 %v1363, %v1477
    %v1502 = vadd.f32 %v1364, %v1478
    %v1503 = vadd.f32 %v1365, %v1479
    %v1504 = vadd.f32 %v1366, %v1480
    %v1505 = vadd.f32 %v1367, %v1481
    %v1506 = vadd.f32 %v1368, %v1482
    %v1507 = vadd.f32 %v1369, %v1483
    %v1508 = vadd.f32 %v1370, %v1484
    %v1509 = vadd.f32 %v1371, %v1485
    %v1510 = vadd.f32 %v1372, %v1486
    %v1511 = vadd.f32 %v1373, %v1487
    %v1512 = vadd.f32 %v1374, %v1488
    %v1513 = vadd.f32 %v1489, %v844
    %v1514 = vadd.f32 %v1490, %v845
    %v1515 = vadd.f32 %v1491, %v846
    %v1516 = vxor.u32 %v1513, 2147483648
    %v1517 = vxor.u32 %v1514, 2147483648
    %v1518 = vmul.f32 %v1516, 1.442695
    %v1519 = vpow.pop %v1518
    %v1520 = vmul.f32 %v1517, 1.442695
    %v1521 = vpow.pop %v1520
    %v1522 = vadd.f32 %v1519, 1.0
    %v1523 = vadd.f32 %v1521, 1.0
    %v1524 = vrcp.pop %v1522
    %v1525 = vmul.f32 1.0, %v1524
    %v1526 = vrcp.pop %v1523
    %v1527 = vmul.f32 1.0, %v1526
    %v1528 = vtanh.pop %v1514
    %v1529 = vtanh.pop %v1515
    %v1530 = vmul.f32 %v1525, 0.0
    %v1531 = vmul.f32 %v1527, 0.0
    %v1534 = vrot.slane %v1528, 7
    %v1535 = vrot.slane %v1529, 7
    %v1536 = vsel %vm408, %v1534, %v1535
    %v1538 = vmul.f32 %v1525, %v1536
    %v1540 = vrot.slane %v1538, 3
    %v1542 = vadd.f32 %v1530, %v1540
    %v1543 = vadd.f32 %v1531, %v1540
    %v1544 = vtanh.pop %v1542
    %v1545 = vtanh.pop %v1543
    %vm1548 = vcmask 1044480
    %v1549 = vrot.slane %v1544, 3
    %v1550 = vrot.slane %v1545, 3
    %v1551 = vsel %vm1548, %v1549, %v1550
    %v1553 = vmul.f32 %v1527, %v1551
    %v1554 = vadd.f32 %v1492, %v844
    %v1555 = vadd.f32 %v1493, %v845
    %v1556 = vadd.f32 %v1494, %v846
    %v1557 = vlaneseq
    %v1558 = vshrl.u32 %v1557, 7
    %v1559 = vsub.s32 2, %v1558
    %v1560 = vrot.slane %v1553, %v1559
    %v1561 = vmul.f32 %v829, %v1560
    %v1562 = vmul.f32 %v830, %v1560
    %v1563 = vmul.f32 %v831, %v1560
    %v1564 = vadd.f32 %v1554, %v1561
    %v1565 = vadd.f32 %v1555, %v1562
    %v1566 = vadd.f32 %v1556, %v1563
    %v1567 = vlaneseq
    %v1568 = vshrl.u32 %v1567, 7
    %v1569 = vsub.s32 3, %v1568
    %v1570 = vrot.slane %v1553, %v1569
    %v1571 = vmul.f32 %v832, %v1570
    %v1572 = vmul.f32 %v833, %v1570
    %v1573 = vmul.f32 %v834, %v1570
    %v1574 = vadd.f32 %v1564, %v1571
    %v1575 = vadd.f32 %v1565, %v1572
    %v1576 = vadd.f32 %v1566, %v1573
    %v1577 = vlaneseq
    %v1578 = vshrl.u32 %v1577, 7
    %v1579 = vsub.s32 4, %v1578
    %v1580 = vrot.slane %v1553, %v1579
    %v1581 = vmul.f32 %v835, %v1580
    %v1582 = vmul.f32 %v836, %v1580
    %v1583 = vmul.f32 %v837, %v1580
    %v1584 = vadd.f32 %v1574, %v1581
    %v1585 = vadd.f32 %v1575, %v1582
    %v1586 = vadd.f32 %v1576, %v1583
    %v1587 = vlaneseq
    %v1588 = vshrl.u32 %v1587, 7
    %v1589 = vsub.s32 5, %v1588
    %v1590 = vrot.slane %v1553, %v1589
    %v1591 = vmul.f32 %v838, %v1590
    %v1592 = vmul.f32 %v839, %v1590
    %v1593 = vmul.f32 %v840, %v1590
    %v1594 = vadd.f32 %v1584, %v1591
    %v1595 = vadd.f32 %v1585, %v1592
    %v1596 = vadd.f32 %v1586, %v1593
    %v1597 = vlaneseq
    %v1598 = vshrl.u32 %v1597, 7
    %v1599 = vsub.s32 6, %v1598
    %v1600 = vrot.slane %v1553, %v1599
    %v1601 = vmul.f32 %v841, %v1600
    %v1602 = vmul.f32 %v842, %v1600
    %v1603 = vmul.f32 %v843, %v1600
    %v1604 = vadd.f32 %v1594, %v1601
    %v1605 = vadd.f32 %v1595, %v1602
    %v1606 = vadd.f32 %v1596, %v1603
    %v1607 = vxor.u32 %v1604, 2147483648
    %v1608 = vxor.u32 %v1605, 2147483648
    %v1609 = vmul.f32 %v1607, 1.442695
    %v1610 = vpow.pop %v1609
    %v1611 = vmul.f32 %v1608, 1.442695
    %v1612 = vpow.pop %v1611
    %v1613 = vadd.f32 %v1610, 1.0
    %v1614 = vadd.f32 %v1612, 1.0
    %v1615 = vrcp.pop %v1613
    %v1616 = vmul.f32 1.0, %v1615
    %v1617 = vrcp.pop %v1614
    %v1618 = vmul.f32 1.0, %v1617
    %v1619 = vtanh.pop %v1605
    %v1620 = vtanh.pop %v1606
    %v1621 = vmul.f32 %v1616, %v1542
    %v1622 = vmul.f32 %v1618, %v1543
    %v1625 = vrot.slane %v1619, 7
    %v1626 = vrot.slane %v1620, 7
    %v1627 = vsel %vm408, %v1625, %v1626
    %v1629 = vmul.f32 %v1616, %v1627
    %v1631 = vrot.slane %v1629, 3
    %v1633 = vadd.f32 %v1621, %v1631
    %v1634 = vadd.f32 %v1622, %v1631
    %v1635 = vtanh.pop %v1633
    %v1636 = vtanh.pop %v1634
    %v1639 = vrot.slane %v1635, 3
    %v1640 = vrot.slane %v1636, 3
    %v1641 = vsel %vm1548, %v1639, %v1640
    %v1643 = vmul.f32 %v1618, %v1641
    %v1644 = vadd.f32 %v1495, %v844
    %v1645 = vadd.f32 %v1496, %v845
    %v1646 = vadd.f32 %v1497, %v846
    %v1647 = vlaneseq
    %v1648 = vshrl.u32 %v1647, 7
    %v1649 = vsub.s32 2, %v1648
    %v1650 = vrot.slane %v1643, %v1649
    %v1651 = vmul.f32 %v829, %v1650
    %v1652 = vmul.f32 %v830, %v1650
    %v1653 = vmul.f32 %v831, %v1650
    %v1654 = vadd.f32 %v1644, %v1651
    %v1655 = vadd.f32 %v1645, %v1652
    %v1656 = vadd.f32 %v1646, %v1653
    %v1657 = vlaneseq
    %v1658 = vshrl.u32 %v1657, 7
    %v1659 = vsub.s32 3, %v1658
    %v1660 = vrot.slane %v1643, %v1659
    %v1661 = vmul.f32 %v832, %v1660
    %v1662 = vmul.f32 %v833, %v1660
    %v1663 = vmul.f32 %v834, %v1660
    %v1664 = vadd.f32 %v1654, %v1661
    %v1665 = vadd.f32 %v1655, %v1662
    %v1666 = vadd.f32 %v1656, %v1663
    %v1667 = vlaneseq
    %v1668 = vshrl.u32 %v1667, 7
    %v1669 = vsub.s32 4, %v1668
    %v1670 = vrot.slane %v1643, %v1669
    %v1671 = vmul.f32 %v835, %v1670
    %v1672 = vmul.f32 %v836, %v1670
    %v1673 = vmul.f32 %v837, %v1670
    %v1674 = vadd.f32 %v1664, %v1671
    %v1675 = vadd.f32 %v1665, %v1672
    %v1676 = vadd.f32 %v1666, %v1673
    %v1677 = vlaneseq
    %v1678 = vshrl.u32 %v1677, 7
    %v1679 = vsub.s32 5, %v1678
    %v1680 = vrot.slane %v1643, %v1679
    %v1681 = vmul.f32 %v838, %v1680
    %v1682 = vmul.f32 %v839, %v1680
    %v1683 = vmul.f32 %v840, %v1680
    %v1684 = vadd.f32 %v1674, %v1681
    %v1685 = vadd.f32 %v1675, %v1682
    %v1686 = vadd.f32 %v1676, %v1683
    %v1687 = vlaneseq
    %v1688 = vshrl.u32 %v1687, 7
    %v1689 = vsub.s32 6, %v1688
    %v1690 = vrot.slane %v1643, %v1689
    %v1691 = vmul.f32 %v841, %v1690
    %v1692 = vmul.f32 %v842, %v1690
    %v1693 = vmul.f32 %v843, %v1690
    %v1694 = vadd.f32 %v1684, %v1691
    %v1695 = vadd.f32 %v1685, %v1692
    %v1696 = vadd.f32 %v1686, %v1693
    %v1697 = vxor.u32 %v1694, 2147483648
    %v1698 = vxor.u32 %v1695, 2147483648
    %v1699 = vmul.f32 %v1697, 1.442695
    %v1700 = vpow.pop %v1699
    %v1701 = vmul.f32 %v1698, 1.442695
    %v1702 = vpow.pop %v1701
    %v1703 = vadd.f32 %v1700, 1.0
    %v1704 = vadd.f32 %v1702, 1.0
    %v1705 = vrcp.pop %v1703
    %v1706 = vmul.f32 1.0, %v1705
    %v1707 = vrcp.pop %v1704
    %v1708 = vmul.f32 1.0, %v1707
    %v1709 = vtanh.pop %v1695
    %v1710 = vtanh.pop %v1696
    %v1711 = vmul.f32 %v1706, %v1633
    %v1712 = vmul.f32 %v1708, %v1634
    %v1715 = vrot.slane %v1709, 7
    %v1716 = vrot.slane %v1710, 7
    %v1717 = vsel %vm408, %v1715, %v1716
    %v1719 = vmul.f32 %v1706, %v1717
    %v1721 = vrot.slane %v1719, 3
    %v1723 = vadd.f32 %v1711, %v1721
    %v1724 = vadd.f32 %v1712, %v1721
    %v1725 = vtanh.pop %v1723
    %v1726 = vtanh.pop %v1724
    %v1729 = vrot.slane %v1725, 3
    %v1730 = vrot.slane %v1726, 3
    %v1731 = vsel %vm1548, %v1729, %v1730
    %v1733 = vmul.f32 %v1708, %v1731
    %v1734 = vadd.f32 %v1498, %v844
    %v1735 = vadd.f32 %v1499, %v845
    %v1736 = vadd.f32 %v1500, %v846
    %v1737 = vlaneseq
    %v1738 = vshrl.u32 %v1737, 7
    %v1739 = vsub.s32 2, %v1738
    %v1740 = vrot.slane %v1733, %v1739
    %v1741 = vmul.f32 %v829, %v1740
    %v1742 = vmul.f32 %v830, %v1740
    %v1743 = vmul.f32 %v831, %v1740
    %v1744 = vadd.f32 %v1734, %v1741
    %v1745 = vadd.f32 %v1735, %v1742
    %v1746 = vadd.f32 %v1736, %v1743
    %v1747 = vlaneseq
    %v1748 = vshrl.u32 %v1747, 7
    %v1749 = vsub.s32 3, %v1748
    %v1750 = vrot.slane %v1733, %v1749
    %v1751 = vmul.f32 %v832, %v1750
    %v1752 = vmul.f32 %v833, %v1750
    %v1753 = vmul.f32 %v834, %v1750
    %v1754 = vadd.f32 %v1744, %v1751
    %v1755 = vadd.f32 %v1745, %v1752
    %v1756 = vadd.f32 %v1746, %v1753
    %v1757 = vlaneseq
    %v1758 = vshrl.u32 %v1757, 7
    %v1759 = vsub.s32 4, %v1758
    %v1760 = vrot.slane %v1733, %v1759
    %v1761 = vmul.f32 %v835, %v1760
    %v1762 = vmul.f32 %v836, %v1760
    %v1763 = vmul.f32 %v837, %v1760
    %v1764 = vadd.f32 %v1754, %v1761
    %v1765 = vadd.f32 %v1755, %v1762
    %v1766 = vadd.f32 %v1756, %v1763
    %v1767 = vlaneseq
    %v1768 = vshrl.u32 %v1767, 7
    %v1769 = vsub.s32 5, %v1768
    %v1770 = vrot.slane %v1733, %v1769
    %v1771 = vmul.f32 %v838, %v1770
    %v1772 = vmul.f32 %v839, %v1770
    %v1773 = vmul.f32 %v840, %v1770
    %v1774 = vadd.f32 %v1764, %v1771
    %v1775 = vadd.f32 %v1765, %v1772
    %v1776 = vadd.f32 %v1766, %v1773
    %v1777 = vlaneseq
    %v1778 = vshrl.u32 %v1777, 7
    %v1779 = vsub.s32 6, %v1778
    %v1780 = vrot.slane %v1733, %v1779
    %v1781 = vmul.f32 %v841, %v1780
    %v1782 = vmul.f32 %v842, %v1780
    %v1783 = vmul.f32 %v843, %v1780
    %v1784 = vadd.f32 %v1774, %v1781
    %v1785 = vadd.f32 %v1775, %v1782
    %v1786 = vadd.f32 %v1776, %v1783
    %v1787 = vxor.u32 %v1784, 2147483648
    %v1788 = vxor.u32 %v1785, 2147483648
    %v1789 = vmul.f32 %v1787, 1.442695
    %v1790 = vpow.pop %v1789
    %v1791 = vmul.f32 %v1788, 1.442695
    %v1792 = vpow.pop %v1791
    %v1793 = vadd.f32 %v1790, 1.0
    %v1794 = vadd.f32 %v1792, 1.0
    %v1795 = vrcp.pop %v1793
    %v1796 = vmul.f32 1.0, %v1795
    %v1797 = vrcp.pop %v1794
    %v1798 = vmul.f32 1.0, %v1797
    %v1799 = vtanh.pop %v1785
    %v1800 = vtanh.pop %v1786
    %v1801 = vmul.f32 %v1796, %v1723
    %v1802 = vmul.f32 %v1798, %v1724
    %v1805 = vrot.slane %v1799, 7
    %v1806 = vrot.slane %v1800, 7
    %v1807 = vsel %vm408, %v1805, %v1806
    %v1809 = vmul.f32 %v1796, %v1807
    %v1811 = vrot.slane %v1809, 3
    %v1813 = vadd.f32 %v1801, %v1811
    %v1814 = vadd.f32 %v1802, %v1811
    %v1815 = vtanh.pop %v1813
    %v1816 = vtanh.pop %v1814
    %v1819 = vrot.slane %v1815, 3
    %v1820 = vrot.slane %v1816, 3
    %v1821 = vsel %vm1548, %v1819, %v1820
    %v1823 = vmul.f32 %v1798, %v1821
    %v1824 = vadd.f32 %v1501, %v844
    %v1825 = vadd.f32 %v1502, %v845
    %v1826 = vadd.f32 %v1503, %v846
    %v1827 = vlaneseq
    %v1828 = vshrl.u32 %v1827, 7
    %v1829 = vsub.s32 2, %v1828
    %v1830 = vrot.slane %v1823, %v1829
    %v1831 = vmul.f32 %v829, %v1830
    %v1832 = vmul.f32 %v830, %v1830
    %v1833 = vmul.f32 %v831, %v1830
    %v1834 = vadd.f32 %v1824, %v1831
    %v1835 = vadd.f32 %v1825, %v1832
    %v1836 = vadd.f32 %v1826, %v1833
    %v1837 = vlaneseq
    %v1838 = vshrl.u32 %v1837, 7
    %v1839 = vsub.s32 3, %v1838
    %v1840 = vrot.slane %v1823, %v1839
    %v1841 = vmul.f32 %v832, %v1840
    %v1842 = vmul.f32 %v833, %v1840
    %v1843 = vmul.f32 %v834, %v1840
    %v1844 = vadd.f32 %v1834, %v1841
    %v1845 = vadd.f32 %v1835, %v1842
    %v1846 = vadd.f32 %v1836, %v1843
    %v1847 = vlaneseq
    %v1848 = vshrl.u32 %v1847, 7
    %v1849 = vsub.s32 4, %v1848
    %v1850 = vrot.slane %v1823, %v1849
    %v1851 = vmul.f32 %v835, %v1850
    %v1852 = vmul.f32 %v836, %v1850
    %v1853 = vmul.f32 %v837, %v1850
    %v1854 = vadd.f32 %v1844, %v1851
    %v1855 = vadd.f32 %v1845, %v1852
    %v1856 = vadd.f32 %v1846, %v1853
    %v1857 = vlaneseq
    %v1858 = vshrl.u32 %v1857, 7
    %v1859 = vsub.s32 5, %v1858
    %v1860 = vrot.slane %v1823, %v1859
    %v1861 = vmul.f32 %v838, %v1860
    %v1862 = vmul.f32 %v839, %v1860
    %v1863 = vmul.f32 %v840, %v1860
    %v1864 = vadd.f32 %v1854, %v1861
    %v1865 = vadd.f32 %v1855, %v1862
    %v1866 = vadd.f32 %v1856, %v1863
    %v1867 = vlaneseq
    %v1868 = vshrl.u32 %v1867, 7
    %v1869 = vsub.s32 6, %v1868
    %v1870 = vrot.slane %v1823, %v1869
    %v1871 = vmul.f32 %v841, %v1870
    %v1872 = vmul.f32 %v842, %v1870
    %v1873 = vmul.f32 %v843, %v1870
    %v1874 = vadd.f32 %v1864, %v1871
    %v1875 = vadd.f32 %v1865, %v1872
    %v1876 = vadd.f32 %v1866, %v1873
    %v1877 = vxor.u32 %v1874, 2147483648
    %v1878 = vxor.u32 %v1875, 2147483648
    %v1879 = vmul.f32 %v1877, 1.442695
    %v1880 = vpow.pop %v1879
    %v1881 = vmul.f32 %v1878, 1.442695
    %v1882 = vpow.pop %v1881
    %v1883 = vadd.f32 %v1880, 1.0
    %v1884 = vadd.f32 %v1882, 1.0
    %v1885 = vrcp.pop %v1883
    %v1886 = vmul.f32 1.0, %v1885
    %v1887 = vrcp.pop %v1884
    %v1888 = vmul.f32 1.0, %v1887
    %v1889 = vtanh.pop %v1875
    %v1890 = vtanh.pop %v1876
    %v1891 = vmul.f32 %v1886, %v1813
    %v1892 = vmul.f32 %v1888, %v1814
    %v1895 = vrot.slane %v1889, 7
    %v1896 = vrot.slane %v1890, 7
    %v1897 = vsel %vm408, %v1895, %v1896
    %v1899 = vmul.f32 %v1886, %v1897
    %v1901 = vrot.slane %v1899, 3
    %v1903 = vadd.f32 %v1891, %v1901
    %v1904 = vadd.f32 %v1892, %v1901
    %v1905 = vtanh.pop %v1903
    %v1906 = vtanh.pop %v1904
    %v1909 = vrot.slane %v1905, 3
    %v1910 = vrot.slane %v1906, 3
    %v1911 = vsel %vm1548, %v1909, %v1910
    %v1913 = vmul.f32 %v1888, %v1911
    %v1914 = vadd.f32 %v1504, %v844
    %v1915 = vadd.f32 %v1505, %v845
    %v1916 = vadd.f32 %v1506, %v846
    %v1917 = vlaneseq
    %v1918 = vshrl.u32 %v1917, 7
    %v1919 = vsub.s32 2, %v1918
    %v1920 = vrot.slane %v1913, %v1919
    %v1921 = vmul.f32 %v829, %v1920
    %v1922 = vmul.f32 %v830, %v1920
    %v1923 = vmul.f32 %v831, %v1920
    %v1924 = vadd.f32 %v1914, %v1921
    %v1925 = vadd.f32 %v1915, %v1922
    %v1926 = vadd.f32 %v1916, %v1923
    %v1927 = vlaneseq
    %v1928 = vshrl.u32 %v1927, 7
    %v1929 = vsub.s32 3, %v1928
    %v1930 = vrot.slane %v1913, %v1929
    %v1931 = vmul.f32 %v832, %v1930
    %v1932 = vmul.f32 %v833, %v1930
    %v1933 = vmul.f32 %v834, %v1930
    %v1934 = vadd.f32 %v1924, %v1931
    %v1935 = vadd.f32 %v1925, %v1932
    %v1936 = vadd.f32 %v1926, %v1933
    %v1937 = vlaneseq
    %v1938 = vshrl.u32 %v1937, 7
    %v1939 = vsub.s32 4, %v1938
    %v1940 = vrot.slane %v1913, %v1939
    %v1941 = vmul.f32 %v835, %v1940
    %v1942 = vmul.f32 %v836, %v1940
    %v1943 = vmul.f32 %v837, %v1940
    %v1944 = vadd.f32 %v1934, %v1941
    %v1945 = vadd.f32 %v1935, %v1942
    %v1946 = vadd.f32 %v1936, %v1943
    %v1947 = vlaneseq
    %v1948 = vshrl.u32 %v1947, 7
    %v1949 = vsub.s32 5, %v1948
    %v1950 = vrot.slane %v1913, %v1949
    %v1951 = vmul.f32 %v838, %v1950
    %v1952 = vmul.f32 %v839, %v1950
    %v1953 = vmul.f32 %v840, %v1950
    %v1954 = vadd.f32 %v1944, %v1951
    %v1955 = vadd.f32 %v1945, %v1952
    %v1956 = vadd.f32 %v1946, %v1953
    %v1957 = vlaneseq
    %v1958 = vshrl.u32 %v1957, 7
    %v1959 = vsub.s32 6, %v1958
    %v1960 = vrot.slane %v1913, %v1959
    %v1961 = vmul.f32 %v841, %v1960
    %v1962 = vmul.f32 %v842, %v1960
    %v1963 = vmul.f32 %v843, %v1960
    %v1964 = vadd.f32 %v1954, %v1961
    %v1965 = vadd.f32 %v1955, %v1962
    %v1966 = vadd.f32 %v1956, %v1963
    %v1967 = vxor.u32 %v1964, 2147483648
    %v1968 = vxor.u32 %v1965, 2147483648
    %v1969 = vmul.f32 %v1967, 1.442695
    %v1970 = vpow.pop %v1969
    %v1971 = vmul.f32 %v1968, 1.442695
    %v1972 = vpow.pop %v1971
    %v1973 = vadd.f32 %v1970, 1.0
    %v1974 = vadd.f32 %v1972, 1.0
    %v1975 = vrcp.pop %v1973
    %v1976 = vmul.f32 1.0, %v1975
    %v1977 = vrcp.pop %v1974
    %v1978 = vmul.f32 1.0, %v1977
    %v1979 = vtanh.pop %v1965
    %v1980 = vtanh.pop %v1966
    %v1981 = vmul.f32 %v1976, %v1903
    %v1982 = vmul.f32 %v1978, %v1904
    %v1985 = vrot.slane %v1979, 7
    %v1986 = vrot.slane %v1980, 7
    %v1987 = vsel %vm408, %v1985, %v1986
    %v1989 = vmul.f32 %v1976, %v1987
    %v1991 = vrot.slane %v1989, 3
    %v1993 = vadd.f32 %v1981, %v1991
    %v1994 = vadd.f32 %v1982, %v1991
    %v1995 = vtanh.pop %v1993
    %v1996 = vtanh.pop %v1994
    %v1999 = vrot.slane %v1995, 3
    %v2000 = vrot.slane %v1996, 3
    %v2001 = vsel %vm1548, %v1999, %v2000
    %v2003 = vmul.f32 %v1978, %v2001
    %v2004 = vadd.f32 %v1507, %v844
    %v2005 = vadd.f32 %v1508, %v845
    %v2006 = vadd.f32 %v1509, %v846
    %v2007 = vlaneseq
    %v2008 = vshrl.u32 %v2007, 7
    %v2009 = vsub.s32 2, %v2008
    %v2010 = vrot.slane %v2003, %v2009
    %v2011 = vmul.f32 %v829, %v2010
    %v2012 = vmul.f32 %v830, %v2010
    %v2013 = vmul.f32 %v831, %v2010
    %v2014 = vadd.f32 %v2004, %v2011
    %v2015 = vadd.f32 %v2005, %v2012
    %v2016 = vadd.f32 %v2006, %v2013
    %v2017 = vlaneseq
    %v2018 = vshrl.u32 %v2017, 7
    %v2019 = vsub.s32 3, %v2018
    %v2020 = vrot.slane %v2003, %v2019
    %v2021 = vmul.f32 %v832, %v2020
    %v2022 = vmul.f32 %v833, %v2020
    %v2023 = vmul.f32 %v834, %v2020
    %v2024 = vadd.f32 %v2014, %v2021
    %v2025 = vadd.f32 %v2015, %v2022
    %v2026 = vadd.f32 %v2016, %v2023
    %v2027 = vlaneseq
    %v2028 = vshrl.u32 %v2027, 7
    %v2029 = vsub.s32 4, %v2028
    %v2030 = vrot.slane %v2003, %v2029
    %v2031 = vmul.f32 %v835, %v2030
    %v2032 = vmul.f32 %v836, %v2030
    %v2033 = vmul.f32 %v837, %v2030
    %v2034 = vadd.f32 %v2024, %v2031
    %v2035 = vadd.f32 %v2025, %v2032
    %v2036 = vadd.f32 %v2026, %v2033
    %v2037 = vlaneseq
    %v2038 = vshrl.u32 %v2037, 7
    %v2039 = vsub.s32 5, %v2038
    %v2040 = vrot.slane %v2003, %v2039
    %v2041 = vmul.f32 %v838, %v2040
    %v2042 = vmul.f32 %v839, %v2040
    %v2043 = vmul.f32 %v840, %v2040
    %v2044 = vadd.f32 %v2034, %v2041
    %v2045 = vadd.f32 %v2035, %v2042
    %v2046 = vadd.f32 %v2036, %v2043
    %v2047 = vlaneseq
    %v2048 = vshrl.u32 %v2047, 7
    %v2049 = vsub.s32 6, %v2048
    %v2050 = vrot.slane %v2003, %v2049
    %v2051 = vmul.f32 %v841, %v2050
    %v2052 = vmul.f32 %v842, %v2050
    %v2053 = vmul.f32 %v843, %v2050
    %v2054 = vadd.f32 %v2044, %v2051
    %v2055 = vadd.f32 %v2045, %v2052
    %v2056 = vadd.f32 %v2046, %v2053
    %v2057 = vxor.u32 %v2054, 2147483648
    %v2058 = vxor.u32 %v2055, 2147483648
    %v2059 = vmul.f32 %v2057, 1.442695
    %v2060 = vpow.pop %v2059
    %v2061 = vmul.f32 %v2058, 1.442695
    %v2062 = vpow.pop %v2061
    %v2063 = vadd.f32 %v2060, 1.0
    %v2064 = vadd.f32 %v2062, 1.0
    %v2065 = vrcp.pop %v2063
    %v2066 = vmul.f32 1.0, %v2065
    %v2067 = vrcp.pop %v2064
    %v2068 = vmul.f32 1.0, %v2067
    %v2069 = vtanh.pop %v2055
    %v2070 = vtanh.pop %v2056
    %v2071 = vmul.f32 %v2066, %v1993
    %v2072 = vmul.f32 %v2068, %v1994
    %v2075 = vrot.slane %v2069, 7
    %v2076 = vrot.slane %v2070, 7
    %v2077 = vsel %vm408, %v2075, %v2076
    %v2079 = vmul.f32 %v2066, %v2077
    %v2081 = vrot.slane %v2079, 3
    %v2083 = vadd.f32 %v2071, %v2081
    %v2084 = vadd.f32 %v2072, %v2081
    %v2085 = vtanh.pop %v2083
    %v2086 = vtanh.pop %v2084
    %v2089 = vrot.slane %v2085, 3
    %v2090 = vrot.slane %v2086, 3
    %v2091 = vsel %vm1548, %v2089, %v2090
    %v2093 = vmul.f32 %v2068, %v2091
    %v2094 = vadd.f32 %v1510, %v844
    %v2095 = vadd.f32 %v1511, %v845
    %v2096 = vadd.f32 %v1512, %v846
    %v2097 = vlaneseq
    %v2098 = vshrl.u32 %v2097, 7
    %v2099 = vsub.s32 2, %v2098
    %v2100 = vrot.slane %v2093, %v2099
    %v2101 = vmul.f32 %v829, %v2100
    %v2102 = vmul.f32 %v830, %v2100
    %v2103 = vmul.f32 %v831, %v2100
    %v2104 = vadd.f32 %v2094, %v2101
    %v2105 = vadd.f32 %v2095, %v2102
    %v2106 = vadd.f32 %v2096, %v2103
    %v2107 = vlaneseq
    %v2108 = vshrl.u32 %v2107, 7
    %v2109 = vsub.s32 3, %v2108
    %v2110 = vrot.slane %v2093, %v2109
    %v2111 = vmul.f32 %v832, %v2110
    %v2112 = vmul.f32 %v833, %v2110
    %v2113 = vmul.f32 %v834, %v2110
    %v2114 = vadd.f32 %v2104, %v2111
    %v2115 = vadd.f32 %v2105, %v2112
    %v2116 = vadd.f32 %v2106, %v2113
    %v2117 = vlaneseq
    %v2118 = vshrl.u32 %v2117, 7
    %v2119 = vsub.s32 4, %v2118
    %v2120 = vrot.slane %v2093, %v2119
    %v2121 = vmul.f32 %v835, %v2120
    %v2122 = vmul.f32 %v836, %v2120
    %v2123 = vmul.f32 %v837, %v2120
    %v2124 = vadd.f32 %v2114, %v2121
    %v2125 = vadd.f32 %v2115, %v2122
    %v2126 = vadd.f32 %v2116, %v2123
    %v2127 = vlaneseq
    %v2128 = vshrl.u32 %v2127, 7
    %v2129 = vsub.s32 5, %v2128
    %v2130 = vrot.slane %v2093, %v2129
    %v2131 = vmul.f32 %v838, %v2130
    %v2132 = vmul.f32 %v839, %v2130
    %v2133 = vmul.f32 %v840, %v2130
    %v2134 = vadd.f32 %v2124, %v2131
    %v2135 = vadd.f32 %v2125, %v2132
    %v2136 = vadd.f32 %v2126, %v2133
    %v2137 = vlaneseq
    %v2138 = vshrl.u32 %v2137, 7
    %v2139 = vsub.s32 6, %v2138
    %v2140 = vrot.slane %v2093, %v2139
    %v2141 = vmul.f32 %v841, %v2140
    %v2142 = vmul.f32 %v842, %v2140
    %v2143 = vmul.f32 %v843, %v2140
    %v2144 = vadd.f32 %v2134, %v2141
    %v2145 = vadd.f32 %v2135, %v2142
    %v2146 = vadd.f32 %v2136, %v2143
    %v2147 = vxor.u32 %v2144, 2147483648
    %v2148 = vxor.u32 %v2145, 2147483648
    %v2149 = vmul.f32 %v2147, 1.442695
    %v2150 = vpow.pop %v2149
    %v2151 = vmul.f32 %v2148, 1.442695
    %v2152 = vpow.pop %v2151
    %v2153 = vadd.f32 %v2150, 1.0
    %v2154 = vadd.f32 %v2152, 1.0
    %v2155 = vrcp.pop %v2153
    %v2156 = vmul.f32 1.0, %v2155
    %v2157 = vrcp.pop %v2154
    %v2158 = vmul.f32 1.0, %v2157
    %v2159 = vtanh.pop %v2145
    %v2160 = vtanh.pop %v2146
    %v2161 = vmul.f32 %v2156, %v2083
    %v2162 = vmul.f32 %v2158, %v2084
    %v2165 = vrot.slane %v2159, 7
    %v2166 = vrot.slane %v2160, 7
    %v2167 = vsel %vm408, %v2165, %v2166
    %v2169 = vmul.f32 %v2156, %v2167
    %v2171 = vrot.slane %v2169, 3
    %v2173 = vadd.f32 %v2161, %v2171
    %v2174 = vadd.f32 %v2162, %v2171
    %v2175 = vtanh.pop %v2173
    %v2176 = vtanh.pop %v2174
    %v2179 = vrot.slane %v2175, 3
    %v2180 = vrot.slane %v2176, 3
    %v2181 = vsel %vm1548, %v2179, %v2180
    %v2183 = vmul.f32 %v2158, %v2181
    %v2184 = vld [vmem:[%s17] sm:$0xff]
    %v2185 = vld [vmem:[%s17 + $0x8] sm:$0xff]
    %v2186 = vld [vmem:[%s17 + $0x10] sm:$0xf]
    %v2187 = vld [vmem:[%s17 + $0x18] sm:$0xff]
    %v2188 = vld [vmem:[%s17 + $0x20] sm:$0xff]
    %v2189 = vld [vmem:[%s17 + $0x28] sm:$0xf]
    %v2190 = vld [vmem:[%s17 + $0x30] sm:$0xff]
    %v2191 = vld [vmem:[%s17 + $0x38] sm:$0xff]
    %v2192 = vld [vmem:[%s17 + $0x40] sm:$0xf]
    %v2193 = vld [vmem:[%s17 + $0x48] sm:$0xff]
    %v2194 = vld [vmem:[%s17 + $0x50] sm:$0xff]
    %v2195 = vld [vmem:[%s17 + $0x58] sm:$0xf]
    %v2196 = vld [vmem:[%s17 + $0x60] sm:$0xff]
    %v2197 = vld [vmem:[%s17 + $0x68] sm:$0xff]
    %v2198 = vld [vmem:[%s17 + $0x70] sm:$0xf]
    %v2199 = vld [vmem:[%s17 + $0x78] sm:$0xff]
    %v2200 = vld [vmem:[%s17 + $0x80] sm:$0xff]
    %v2201 = vld [vmem:[%s17 + $0x88] sm:$0xf]
    %v2202 = vld [vmem:[%s17 + $0x90] sm:$0xff]
    %v2203 = vld [vmem:[%s17 + $0x98] sm:$0xff]
    %v2204 = vld [vmem:[%s17 + $0xa0] sm:$0xf]
    %v2205 = vld [vmem:[%s18] sm:$0xff]
    %v2206 = vld [vmem:[%s18 + $0x8] sm:$0xff]
    %v2207 = vld [vmem:[%s18 + $0x10] sm:$0xf]
    %v2208 = vld [vmem:[%s18 + $0x18] sm:$0xff]
    %v2209 = vld [vmem:[%s18 + $0x20] sm:$0xff]
    %v2210 = vld [vmem:[%s18 + $0x28] sm:$0xf]
    %v2211 = vld [vmem:[%s18 + $0x30] sm:$0xff]
    %v2212 = vld [vmem:[%s18 + $0x38] sm:$0xff]
    %v2213 = vld [vmem:[%s18 + $0x40] sm:$0xf]
    %v2214 = vld [vmem:[%s18 + $0x48] sm:$0xff]
    %v2215 = vld [vmem:[%s18 + $0x50] sm:$0xff]
    %v2216 = vld [vmem:[%s18 + $0x58] sm:$0xf]
    %v2217 = vld [vmem:[%s18 + $0x60] sm:$0xff]
    %v2218 = vld [vmem:[%s18 + $0x68] sm:$0xff]
    %v2219 = vld [vmem:[%s18 + $0x70] sm:$0xf]
    %v2220 = vld [vmem:[%s19] sm:$0xff]
    %v2221 = vld [vmem:[%s19 + $0x8] sm:$0xff]
    %v2222 = vld [vmem:[%s19 + $0x10] sm:$0xf]
    %v2223 = vld [vmem:[%s20] sm:$0x1f]
    %v2224 = vld [vmem:[%s20 + $0x8] sm:$0x1f]
    %v2225 = vld [vmem:[%s20 + $0x10] sm:$0x1f]
    %v2226 = vld [vmem:[%s20 + $0x18] sm:$0x1f]
    %v2227 = vld [vmem:[%s20 + $0x20] sm:$0x1f]
    %v2228 = vld [vmem:[%s21] sm:$0x1f]
    %v2229 = vlaneseq
    %v2230 = vshrl.u32 %v2229, 7
    %v2231 = vsub.s32 2, %v2230
    %v2232 = vrot.slane %v2183, %v2231
    %v2233 = vmul.f32 %v2184, %v2232
    %v2234 = vmul.f32 %v2185, %v2232
    %v2235 = vmul.f32 %v2186, %v2232
    %v2236 = vadd.f32 %v2220, %v2233
    %v2237 = vadd.f32 %v2221, %v2234
    %v2238 = vadd.f32 %v2222, %v2235
    %v2239 = vlaneseq
    %v2240 = vshrl.u32 %v2239, 7
    %v2241 = vsub.s32 3, %v2240
    %v2242 = vrot.slane %v2183, %v2241
    %v2243 = vmul.f32 %v2187, %v2242
    %v2244 = vmul.f32 %v2188, %v2242
    %v2245 = vmul.f32 %v2189, %v2242
    %v2246 = vadd.f32 %v2236, %v2243
    %v2247 = vadd.f32 %v2237, %v2244
    %v2248 = vadd.f32 %v2238, %v2245
    %v2249 = vlaneseq
    %v2250 = vshrl.u32 %v2249, 7
    %v2251 = vsub.s32 4, %v2250
    %v2252 = vrot.slane %v2183, %v2251
    %v2253 = vmul.f32 %v2190, %v2252
    %v2254 = vmul.f32 %v2191, %v2252
    %v2255 = vmul.f32 %v2192, %v2252
    %v2256 = vadd.f32 %v2246, %v2253
    %v2257 = vadd.f32 %v2247, %v2254
    %v2258 = vadd.f32 %v2248, %v2255
    %v2259 = vlaneseq
    %v2260 = vshrl.u32 %v2259, 7
    %v2261 = vsub.s32 5, %v2260
    %v2262 = vrot.slane %v2183, %v2261
    %v2263 = vmul.f32 %v2193, %v2262
    %v2264 = vmul.f32 %v2194, %v2262
    %v2265 = vmul.f32 %v2195, %v2262
    %v2266 = vadd.f32 %v2256, %v2263
    %v2267 = vadd.f32 %v2257, %v2264
    %v2268 = vadd.f32 %v2258, %v2265
    %v2269 = vlaneseq
    %v2270 = vshrl.u32 %v2269, 7
    %v2271 = vsub.s32 6, %v2270
    %v2272 = vrot.slane %v2183, %v2271
    %v2273 = vmul.f32 %v2196, %v2272
    %v2274 = vmul.f32 %v2197, %v2272
    %v2275 = vmul.f32 %v2198, %v2272
    %v2276 = vadd.f32 %v2266, %v2273
    %v2277 = vadd.f32 %v2267, %v2274
    %v2278 = vadd.f32 %v2268, %v2275
    %v2280 = vrot.slane %v145, 7
    %v2283 = vrot.slane %v146, 6
    %v2285 = vsel %vm408, %v2280, %v2283
    %2286 = vst [vmem:[%s23] sm:$0x3] %v2285
    %v2287 = vlaneseq
    %v2288 = vshrl.u32 %v2287, 7
    %v2289 = vsub.s32 7, %v2288
    %v2290 = vrot.slane %v145, %v2289
    %v2291 = vmul.f32 %v2199, %v2290
    %v2292 = vmul.f32 %v2200, %v2290
    %v2293 = vmul.f32 %v2201, %v2290
    %v2294 = vadd.f32 %v2276, %v2291
    %v2295 = vadd.f32 %v2277, %v2292
    %v2296 = vadd.f32 %v2278, %v2293
    %v2297 = vlaneseq
    %v2298 = vshrl.u32 %v2297, 7
    %v2299 = vsub.s32 7, %v2298
    %v2300 = vrot.slane %v146, %v2299
    %v2301 = vmul.f32 %v2202, %v2300
    %v2302 = vmul.f32 %v2203, %v2300
    %v2303 = vmul.f32 %v2204, %v2300
    %v2304 = vadd.f32 %v2294, %v2301
    %v2305 = vadd.f32 %v2295, %v2302
    %v2306 = vadd.f32 %v2296, %v2303
    %v2307 = vxor.u32 %v2304, 2147483648
    %v2308 = vxor.u32 %v2305, 2147483648
    %v2309 = vmul.f32 %v2307, 1.442695
    %v2310 = vpow.pop %v2309
    %v2311 = vmul.f32 %v2308, 1.442695
    %v2312 = vpow.pop %v2311
    %v2313 = vadd.f32 %v2310, 1.0
    %v2314 = vadd.f32 %v2312, 1.0
    %v2315 = vrcp.pop %v2313
    %v2316 = vmul.f32 1.0, %v2315
    %v2317 = vrcp.pop %v2314
    %v2318 = vmul.f32 1.0, %v2317
    %v2319 = vtanh.pop %v2305
    %v2320 = vtanh.pop %v2306
    %v2321 = vmul.f32 %v2316, 0.0
    %v2322 = vmul.f32 %v2318, 0.0
    %v2325 = vrot.slane %v2319, 7
    %v2326 = vrot.slane %v2320, 7
    %v2327 = vsel %vm408, %v2325, %v2326
    %v2329 = vmul.f32 %v2316, %v2327
    %v2331 = vrot.slane %v2329, 3
    %v2333 = vadd.f32 %v2321, %v2331
    %v2334 = vadd.f32 %v2322, %v2331
    %v2335 = vtanh.pop %v2333
    %v2336 = vtanh.pop %v2334
    %v2339 = vrot.slane %v2335, 3
    %v2340 = vrot.slane %v2336, 3
    %v2341 = vsel %vm1548, %v2339, %v2340
    %v2343 = vmul.f32 %v2318, %v2341
    %v2344 = vlaneseq
    %v2345 = vshrl.u32 %v2344, 7
    %v2346 = vsub.s32 2, %v2345
    %v2347 = vrot.slane %v2343, %v2346
    %v2348 = vmul.f32 %v2223, %v2347
    %v2349 = vadd.f32 %v2228, %v2348
    %v2350 = vlaneseq
    %v2351 = vshrl.u32 %v2350, 7
    %v2352 = vsub.s32 3, %v2351
    %v2353 = vrot.slane %v2343, %v2352
    %v2354 = vmul.f32 %v2224, %v2353
    %v2355 = vadd.f32 %v2349, %v2354
    %v2356 = vlaneseq
    %v2357 = vshrl.u32 %v2356, 7
    %v2358 = vsub.s32 4, %v2357
    %v2359 = vrot.slane %v2343, %v2358
    %v2360 = vmul.f32 %v2225, %v2359
    %v2361 = vadd.f32 %v2355, %v2360
    %v2362 = vlaneseq
    %v2363 = vshrl.u32 %v2362, 7
    %v2364 = vsub.s32 5, %v2363
    %v2365 = vrot.slane %v2343, %v2364
    %v2366 = vmul.f32 %v2226, %v2365
    %v2367 = vadd.f32 %v2361, %v2366
    %v2368 = vlaneseq
    %v2369 = vshrl.u32 %v2368, 7
    %v2370 = vsub.s32 6, %v2369
    %v2371 = vrot.slane %v2343, %v2370
    %v2372 = vmul.f32 %v2227, %v2371
    %v2373 = vadd.f32 %v2367, %v2372
    %2374 = vst [vmem:[%s22] sm:$0x1f] %v2373
    %v2375 = vmul.f32 %v2373, 1.442695
    %v2376 = vpow.pop %v2375
    %v2377 = vtanh.pop %v2373
    %v2378 = vld [vmem:[%s2] sm:$0x3]
    %v2380 = vrot.slane %v2378, 6
    %v2382 = vmul.f32 %v2376, %v2380
    %v2384 = vrot.slane %v2382, 2
    %v2386 = vadd.f32 %v2373, %v2384
    %v2387 = vrot.slane %v2378, 4
    %v2389 = vmul.f32 %v2377, %v2387
    %v2390 = vmul.f32 %v2377, %v2377
    %v2391 = vsub.f32 1.0, %v2390
    %v2392 = vrsqrt.pop %v2391
    %v2393 = vmul.f32 %v2391, %v2392
    %vm2394 = vcmp.eq.f32.partialorder %v2391, inf
    %v2395 = vsel %vm2394, %v2391, %v2393
    %vm2396 = vcmp.eq.f32.partialorder %v2391, 0.0
    %v2397 = vand.u32 %v2391, 2147483648
    %v2398 = vsel %vm2396, %v2397, %v2395
    %v2399 = vrot.slane %v2378, 5
    %v2401 = vmul.f32 %v2398, %v2399
    %v2402 = vadd.f32 %v2389, %v2401
    %v2404 = vrot.slane %v2402, 1
    %v2406 = vmul.f32 %v2376, %v2404
    %v2408 = vrot.slane %v2406, 2
    %v2410 = vadd.f32 %v2373, %v2408
    %v2411 = vsel %vm408, %v2386, %v2410
    %s2412 = scalar_lea.vmem %s23, 2
    %2413 = vst [vmem:[%s2412] sm:$0x3] %v2411
    %v2414 = vlaneseq
    %v2415 = vshrl.u32 %v2414, 7
    %v2416 = vsub.s32 0, %v2415
    %v2417 = vrot.slane %v2386, %v2416
    %v2418 = vmul.f32 %v2199, %v2417
    %v2419 = vmul.f32 %v2200, %v2417
    %v2420 = vmul.f32 %v2201, %v2417
    %v2421 = vadd.f32 %v2276, %v2418
    %v2422 = vadd.f32 %v2277, %v2419
    %v2423 = vadd.f32 %v2278, %v2420
    %v2424 = vlaneseq
    %v2425 = vshrl.u32 %v2424, 7
    %v2426 = vsub.s32 1, %v2425
    %v2427 = vrot.slane %v2410, %v2426
    %v2428 = vmul.f32 %v2202, %v2427
    %v2429 = vmul.f32 %v2203, %v2427
    %v2430 = vmul.f32 %v2204, %v2427
    %v2431 = vadd.f32 %v2421, %v2428
    %v2432 = vadd.f32 %v2422, %v2429
    %v2433 = vadd.f32 %v2423, %v2430
    %v2434 = vmul.f32 %v2205, %v2347
    %v2435 = vmul.f32 %v2206, %v2347
    %v2436 = vmul.f32 %v2207, %v2347
    %v2437 = vadd.f32 %v2431, %v2434
    %v2438 = vadd.f32 %v2432, %v2435
    %v2439 = vadd.f32 %v2433, %v2436
    %v2440 = vmul.f32 %v2208, %v2353
    %v2441 = vmul.f32 %v2209, %v2353
    %v2442 = vmul.f32 %v2210, %v2353
    %v2443 = vadd.f32 %v2437, %v2440
    %v2444 = vadd.f32 %v2438, %v2441
    %v2445 = vadd.f32 %v2439, %v2442
    %v2446 = vmul.f32 %v2211, %v2359
    %v2447 = vmul.f32 %v2212, %v2359
    %v2448 = vmul.f32 %v2213, %v2359
    %v2449 = vadd.f32 %v2443, %v2446
    %v2450 = vadd.f32 %v2444, %v2447
    %v2451 = vadd.f32 %v2445, %v2448
    %v2452 = vmul.f32 %v2214, %v2365
    %v2453 = vmul.f32 %v2215, %v2365
    %v2454 = vmul.f32 %v2216, %v2365
    %v2455 = vadd.f32 %v2449, %v2452
    %v2456 = vadd.f32 %v2450, %v2453
    %v2457 = vadd.f32 %v2451, %v2454
    %v2458 = vmul.f32 %v2217, %v2371
    %v2459 = vmul.f32 %v2218, %v2371
    %v2460 = vmul.f32 %v2219, %v2371
    %v2461 = vadd.f32 %v2455, %v2458
    %v2462 = vadd.f32 %v2456, %v2459
    %v2463 = vadd.f32 %v2457, %v2460
    %v2464 = vxor.u32 %v2461, 2147483648
    %v2465 = vxor.u32 %v2462, 2147483648
    %v2466 = vmul.f32 %v2464, 1.442695
    %v2467 = vpow.pop %v2466
    %v2468 = vmul.f32 %v2465, 1.442695
    %v2469 = vpow.pop %v2468
    %v2470 = vadd.f32 %v2467, 1.0
    %v2471 = vadd.f32 %v2469, 1.0
    %v2472 = vrcp.pop %v2470
    %v2473 = vmul.f32 1.0, %v2472
    %v2474 = vrcp.pop %v2471
    %v2475 = vmul.f32 1.0, %v2474
    %v2476 = vtanh.pop %v2462
    %v2477 = vtanh.pop %v2463
    %v2478 = vmul.f32 %v2473, %v2333
    %v2479 = vmul.f32 %v2475, %v2334
    %v2482 = vrot.slane %v2476, 7
    %v2483 = vrot.slane %v2477, 7
    %v2484 = vsel %vm408, %v2482, %v2483
    %v2486 = vmul.f32 %v2473, %v2484
    %v2488 = vrot.slane %v2486, 3
    %v2490 = vadd.f32 %v2478, %v2488
    %v2491 = vadd.f32 %v2479, %v2488
    %v2492 = vtanh.pop %v2490
    %v2493 = vtanh.pop %v2491
    %v2496 = vrot.slane %v2492, 3
    %v2497 = vrot.slane %v2493, 3
    %v2498 = vsel %vm1548, %v2496, %v2497
    %v2500 = vmul.f32 %v2475, %v2498
    %v2501 = vlaneseq
    %v2502 = vshrl.u32 %v2501, 7
    %v2503 = vsub.s32 2, %v2502
    %v2504 = vrot.slane %v2500, %v2503
    %v2505 = vmul.f32 %v2223, %v2504
    %v2506 = vadd.f32 %v2228, %v2505
    %v2507 = vlaneseq
    %v2508 = vshrl.u32 %v2507, 7
    %v2509 = vsub.s32 3, %v2508
    %v2510 = vrot.slane %v2500, %v2509
    %v2511 = vmul.f32 %v2224, %v2510
    %v2512 = vadd.f32 %v2506, %v2511
    %v2513 = vlaneseq
    %v2514 = vshrl.u32 %v2513, 7
    %v2515 = vsub.s32 4, %v2514
    %v2516 = vrot.slane %v2500, %v2515
    %v2517 = vmul.f32 %v2225, %v2516
    %v2518 = vadd.f32 %v2512, %v2517
    %v2519 = vlaneseq
    %v2520 = vshrl.u32 %v2519, 7
    %v2521 = vsub.s32 5, %v2520
    %v2522 = vrot.slane %v2500, %v2521
    %v2523 = vmul.f32 %v2226, %v2522
    %v2524 = vadd.f32 %v2518, %v2523
    %v2525 = vlaneseq
    %v2526 = vshrl.u32 %v2525, 7
    %v2527 = vsub.s32 6, %v2526
    %v2528 = vrot.slane %v2500, %v2527
    %v2529 = vmul.f32 %v2227, %v2528
    %v2530 = vadd.f32 %v2524, %v2529
    %s2531 = scalar_lea.vmem %s22, 8
    %2532 = vst [vmem:[%s2531] sm:$0x1f] %v2530
    %v2533 = vmul.f32 %v2530, 1.442695
    %v2534 = vpow.pop %v2533
    %v2535 = vtanh.pop %v2530
    %s2536 = scalar_lea.vmem %s2, 2
    %v2537 = vld [vmem:[%s2536] sm:$0x3]
    %v2539 = vrot.slane %v2537, 6
    %v2541 = vmul.f32 %v2534, %v2539
    %v2543 = vrot.slane %v2541, 2
    %v2545 = vadd.f32 %v2530, %v2543
    %v2546 = vrot.slane %v2537, 4
    %v2548 = vmul.f32 %v2535, %v2546
    %v2549 = vmul.f32 %v2535, %v2535
    %v2550 = vsub.f32 1.0, %v2549
    %v2551 = vrsqrt.pop %v2550
    %v2552 = vmul.f32 %v2550, %v2551
    %vm2553 = vcmp.eq.f32.partialorder %v2550, inf
    %v2554 = vsel %vm2553, %v2550, %v2552
    %vm2555 = vcmp.eq.f32.partialorder %v2550, 0.0
    %v2556 = vand.u32 %v2550, 2147483648
    %v2557 = vsel %vm2555, %v2556, %v2554
    %v2558 = vrot.slane %v2537, 5
    %v2560 = vmul.f32 %v2557, %v2558
    %v2561 = vadd.f32 %v2548, %v2560
    %v2563 = vrot.slane %v2561, 1
    %v2565 = vmul.f32 %v2534, %v2563
    %v2567 = vrot.slane %v2565, 2
    %v2569 = vadd.f32 %v2530, %v2567
    %v2570 = vsel %vm408, %v2545, %v2569
    %s2571 = scalar_lea.vmem %s23, 4
    %2572 = vst [vmem:[%s2571] sm:$0x3] %v2570
    %v2573 = vlaneseq
    %v2574 = vshrl.u32 %v2573, 7
    %v2575 = vsub.s32 0, %v2574
    %v2576 = vrot.slane %v2545, %v2575
    %v2577 = vmul.f32 %v2199, %v2576
    %v2578 = vmul.f32 %v2200, %v2576
    %v2579 = vmul.f32 %v2201, %v2576
    %v2580 = vadd.f32 %v2276, %v2577
    %v2581 = vadd.f32 %v2277, %v2578
    %v2582 = vadd.f32 %v2278, %v2579
    %v2583 = vlaneseq
    %v2584 = vshrl.u32 %v2583, 7
    %v2585 = vsub.s32 1, %v2584
    %v2586 = vrot.slane %v2569, %v2585
    %v2587 = vmul.f32 %v2202, %v2586
    %v2588 = vmul.f32 %v2203, %v2586
    %v2589 = vmul.f32 %v2204, %v2586
    %v2590 = vadd.f32 %v2580, %v2587
    %v2591 = vadd.f32 %v2581, %v2588
    %v2592 = vadd.f32 %v2582, %v2589
    %v2593 = vmul.f32 %v2205, %v2504
    %v2594 = vmul.f32 %v2206, %v2504
    %v2595 = vmul.f32 %v2207, %v2504
    %v2596 = vadd.f32 %v2590, %v2593
    %v2597 = vadd.f32 %v2591, %v2594
    %v2598 = vadd.f32 %v2592, %v2595
    %v2599 = vmul.f32 %v2208, %v2510
    %v2600 = vmul.f32 %v2209, %v2510
    %v2601 = vmul.f32 %v2210, %v2510
    %v2602 = vadd.f32 %v2596, %v2599
    %v2603 = vadd.f32 %v2597, %v2600
    %v2604 = vadd.f32 %v2598, %v2601
    %v2605 = vmul.f32 %v2211, %v2516
    %v2606 = vmul.f32 %v2212, %v2516
    %v2607 = vmul.f32 %v2213, %v2516
    %v2608 = vadd.f32 %v2602, %v2605
    %v2609 = vadd.f32 %v2603, %v2606
    %v2610 = vadd.f32 %v2604, %v2607
    %v2611 = vmul.f32 %v2214, %v2522
    %v2612 = vmul.f32 %v2215, %v2522
    %v2613 = vmul.f32 %v2216, %v2522
    %v2614 = vadd.f32 %v2608, %v2611
    %v2615 = vadd.f32 %v2609, %v2612
    %v2616 = vadd.f32 %v2610, %v2613
    %v2617 = vmul.f32 %v2217, %v2528
    %v2618 = vmul.f32 %v2218, %v2528
    %v2619 = vmul.f32 %v2219, %v2528
    %v2620 = vadd.f32 %v2614, %v2617
    %v2621 = vadd.f32 %v2615, %v2618
    %v2622 = vadd.f32 %v2616, %v2619
    %v2623 = vxor.u32 %v2620, 2147483648
    %v2624 = vxor.u32 %v2621, 2147483648
    %v2625 = vmul.f32 %v2623, 1.442695
    %v2626 = vpow.pop %v2625
    %v2627 = vmul.f32 %v2624, 1.442695
    %v2628 = vpow.pop %v2627
    %v2629 = vadd.f32 %v2626, 1.0
    %v2630 = vadd.f32 %v2628, 1.0
    %v2631 = vrcp.pop %v2629
    %v2632 = vmul.f32 1.0, %v2631
    %v2633 = vrcp.pop %v2630
    %v2634 = vmul.f32 1.0, %v2633
    %v2635 = vtanh.pop %v2621
    %v2636 = vtanh.pop %v2622
    %v2637 = vmul.f32 %v2632, %v2490
    %v2638 = vmul.f32 %v2634, %v2491
    %v2641 = vrot.slane %v2635, 7
    %v2642 = vrot.slane %v2636, 7
    %v2643 = vsel %vm408, %v2641, %v2642
    %v2645 = vmul.f32 %v2632, %v2643
    %v2647 = vrot.slane %v2645, 3
    %v2649 = vadd.f32 %v2637, %v2647
    %v2650 = vadd.f32 %v2638, %v2647
    %v2651 = vtanh.pop %v2649
    %v2652 = vtanh.pop %v2650
    %v2655 = vrot.slane %v2651, 3
    %v2656 = vrot.slane %v2652, 3
    %v2657 = vsel %vm1548, %v2655, %v2656
    %v2659 = vmul.f32 %v2634, %v2657
    %v2660 = vlaneseq
    %v2661 = vshrl.u32 %v2660, 7
    %v2662 = vsub.s32 2, %v2661
    %v2663 = vrot.slane %v2659, %v2662
    %v2664 = vmul.f32 %v2223, %v2663
    %v2665 = vadd.f32 %v2228, %v2664
    %v2666 = vlaneseq
    %v2667 = vshrl.u32 %v2666, 7
    %v2668 = vsub.s32 3, %v2667
    %v2669 = vrot.slane %v2659, %v2668
    %v2670 = vmul.f32 %v2224, %v2669
    %v2671 = vadd.f32 %v2665, %v2670
    %v2672 = vlaneseq
    %v2673 = vshrl.u32 %v2672, 7
    %v2674 = vsub.s32 4, %v2673
    %v2675 = vrot.slane %v2659, %v2674
    %v2676 = vmul.f32 %v2225, %v2675
    %v2677 = vadd.f32 %v2671, %v2676
    %v2678 = vlaneseq
    %v2679 = vshrl.u32 %v2678, 7
    %v2680 = vsub.s32 5, %v2679
    %v2681 = vrot.slane %v2659, %v2680
    %v2682 = vmul.f32 %v2226, %v2681
    %v2683 = vadd.f32 %v2677, %v2682
    %v2684 = vlaneseq
    %v2685 = vshrl.u32 %v2684, 7
    %v2686 = vsub.s32 6, %v2685
    %v2687 = vrot.slane %v2659, %v2686
    %v2688 = vmul.f32 %v2227, %v2687
    %v2689 = vadd.f32 %v2683, %v2688
    %s2690 = scalar_lea.vmem %s22, 16
    %2691 = vst [vmem:[%s2690] sm:$0x1f] %v2689
    %v2692 = vmul.f32 %v2689, 1.442695
    %v2693 = vpow.pop %v2692
    %v2694 = vtanh.pop %v2689
    %s2695 = scalar_lea.vmem %s2, 4
    %v2696 = vld [vmem:[%s2695] sm:$0x3]
    %v2698 = vrot.slane %v2696, 6
    %v2700 = vmul.f32 %v2693, %v2698
    %v2702 = vrot.slane %v2700, 2
    %v2704 = vadd.f32 %v2689, %v2702
    %v2705 = vrot.slane %v2696, 4
    %v2707 = vmul.f32 %v2694, %v2705
    %v2708 = vmul.f32 %v2694, %v2694
    %v2709 = vsub.f32 1.0, %v2708
    %v2710 = vrsqrt.pop %v2709
    %v2711 = vmul.f32 %v2709, %v2710
    %vm2712 = vcmp.eq.f32.partialorder %v2709, inf
    %v2713 = vsel %vm2712, %v2709, %v2711
    %vm2714 = vcmp.eq.f32.partialorder %v2709, 0.0
    %v2715 = vand.u32 %v2709, 2147483648
    %v2716 = vsel %vm2714, %v2715, %v2713
    %v2717 = vrot.slane %v2696, 5
    %v2719 = vmul.f32 %v2716, %v2717
    %v2720 = vadd.f32 %v2707, %v2719
    %v2722 = vrot.slane %v2720, 1
    %v2724 = vmul.f32 %v2693, %v2722
    %v2726 = vrot.slane %v2724, 2
    %v2728 = vadd.f32 %v2689, %v2726
    %v2729 = vsel %vm408, %v2704, %v2728
    %s2730 = scalar_lea.vmem %s23, 6
    %2731 = vst [vmem:[%s2730] sm:$0x3] %v2729
    %v2732 = vlaneseq
    %v2733 = vshrl.u32 %v2732, 7
    %v2734 = vsub.s32 0, %v2733
    %v2735 = vrot.slane %v2704, %v2734
    %v2736 = vmul.f32 %v2199, %v2735
    %v2737 = vmul.f32 %v2200, %v2735
    %v2738 = vmul.f32 %v2201, %v2735
    %v2739 = vadd.f32 %v2276, %v2736
    %v2740 = vadd.f32 %v2277, %v2737
    %v2741 = vadd.f32 %v2278, %v2738
    %v2742 = vlaneseq
    %v2743 = vshrl.u32 %v2742, 7
    %v2744 = vsub.s32 1, %v2743
    %v2745 = vrot.slane %v2728, %v2744
    %v2746 = vmul.f32 %v2202, %v2745
    %v2747 = vmul.f32 %v2203, %v2745
    %v2748 = vmul.f32 %v2204, %v2745
    %v2749 = vadd.f32 %v2739, %v2746
    %v2750 = vadd.f32 %v2740, %v2747
    %v2751 = vadd.f32 %v2741, %v2748
    %v2752 = vmul.f32 %v2205, %v2663
    %v2753 = vmul.f32 %v2206, %v2663
    %v2754 = vmul.f32 %v2207, %v2663
    %v2755 = vadd.f32 %v2749, %v2752
    %v2756 = vadd.f32 %v2750, %v2753
    %v2757 = vadd.f32 %v2751, %v2754
    %v2758 = vmul.f32 %v2208, %v2669
    %v2759 = vmul.f32 %v2209, %v2669
    %v2760 = vmul.f32 %v2210, %v2669
    %v2761 = vadd.f32 %v2755, %v2758
    %v2762 = vadd.f32 %v2756, %v2759
    %v2763 = vadd.f32 %v2757, %v2760
    %v2764 = vmul.f32 %v2211, %v2675
    %v2765 = vmul.f32 %v2212, %v2675
    %v2766 = vmul.f32 %v2213, %v2675
    %v2767 = vadd.f32 %v2761, %v2764
    %v2768 = vadd.f32 %v2762, %v2765
    %v2769 = vadd.f32 %v2763, %v2766
    %v2770 = vmul.f32 %v2214, %v2681
    %v2771 = vmul.f32 %v2215, %v2681
    %v2772 = vmul.f32 %v2216, %v2681
    %v2773 = vadd.f32 %v2767, %v2770
    %v2774 = vadd.f32 %v2768, %v2771
    %v2775 = vadd.f32 %v2769, %v2772
    %v2776 = vmul.f32 %v2217, %v2687
    %v2777 = vmul.f32 %v2218, %v2687
    %v2778 = vmul.f32 %v2219, %v2687
    %v2779 = vadd.f32 %v2773, %v2776
    %v2780 = vadd.f32 %v2774, %v2777
    %v2781 = vadd.f32 %v2775, %v2778
    %v2782 = vxor.u32 %v2779, 2147483648
    %v2783 = vxor.u32 %v2780, 2147483648
    %v2784 = vmul.f32 %v2782, 1.442695
    %v2785 = vpow.pop %v2784
    %v2786 = vmul.f32 %v2783, 1.442695
    %v2787 = vpow.pop %v2786
    %v2788 = vadd.f32 %v2785, 1.0
    %v2789 = vadd.f32 %v2787, 1.0
    %v2790 = vrcp.pop %v2788
    %v2791 = vmul.f32 1.0, %v2790
    %v2792 = vrcp.pop %v2789
    %v2793 = vmul.f32 1.0, %v2792
    %v2794 = vtanh.pop %v2780
    %v2795 = vtanh.pop %v2781
    %v2796 = vmul.f32 %v2791, %v2649
    %v2797 = vmul.f32 %v2793, %v2650
    %v2800 = vrot.slane %v2794, 7
    %v2801 = vrot.slane %v2795, 7
    %v2802 = vsel %vm408, %v2800, %v2801
    %v2804 = vmul.f32 %v2791, %v2802
    %v2806 = vrot.slane %v2804, 3
    %v2808 = vadd.f32 %v2796, %v2806
    %v2809 = vadd.f32 %v2797, %v2806
    %v2810 = vtanh.pop %v2808
    %v2811 = vtanh.pop %v2809
    %v2814 = vrot.slane %v2810, 3
    %v2815 = vrot.slane %v2811, 3
    %v2816 = vsel %vm1548, %v2814, %v2815
    %v2818 = vmul.f32 %v2793, %v2816
    %v2819 = vlaneseq
    %v2820 = vshrl.u32 %v2819, 7
    %v2821 = vsub.s32 2, %v2820
    %v2822 = vrot.slane %v2818, %v2821
    %v2823 = vmul.f32 %v2223, %v2822
    %v2824 = vadd.f32 %v2228, %v2823
    %v2825 = vlaneseq
    %v2826 = vshrl.u32 %v2825, 7
    %v2827 = vsub.s32 3, %v2826
    %v2828 = vrot.slane %v2818, %v2827
    %v2829 = vmul.f32 %v2224, %v2828
    %v2830 = vadd.f32 %v2824, %v2829
    %v2831 = vlaneseq
    %v2832 = vshrl.u32 %v2831, 7
    %v2833 = vsub.s32 4, %v2832
    %v2834 = vrot.slane %v2818, %v2833
    %v2835 = vmul.f32 %v2225, %v2834
    %v2836 = vadd.f32 %v2830, %v2835
    %v2837 = vlaneseq
    %v2838 = vshrl.u32 %v2837, 7
    %v2839 = vsub.s32 5, %v2838
    %v2840 = vrot.slane %v2818, %v2839
    %v2841 = vmul.f32 %v2226, %v2840
    %v2842 = vadd.f32 %v2836, %v2841
    %v2843 = vlaneseq
    %v2844 = vshrl.u32 %v2843, 7
    %v2845 = vsub.s32 6, %v2844
    %v2846 = vrot.slane %v2818, %v2845
    %v2847 = vmul.f32 %v2227, %v2846
    %v2848 = vadd.f32 %v2842, %v2847
    %s2849 = scalar_lea.vmem %s22, 24
    %2850 = vst [vmem:[%s2849] sm:$0x1f] %v2848
    %v2851 = vmul.f32 %v2848, 1.442695
    %v2852 = vpow.pop %v2851
    %v2853 = vtanh.pop %v2848
    %s2854 = scalar_lea.vmem %s2, 6
    %v2855 = vld [vmem:[%s2854] sm:$0x3]
    %v2857 = vrot.slane %v2855, 6
    %v2859 = vmul.f32 %v2852, %v2857
    %v2861 = vrot.slane %v2859, 2
    %v2863 = vadd.f32 %v2848, %v2861
    %v2864 = vrot.slane %v2855, 4
    %v2866 = vmul.f32 %v2853, %v2864
    %v2867 = vmul.f32 %v2853, %v2853
    %v2868 = vsub.f32 1.0, %v2867
    %v2869 = vrsqrt.pop %v2868
    %v2870 = vmul.f32 %v2868, %v2869
    %vm2871 = vcmp.eq.f32.partialorder %v2868, inf
    %v2872 = vsel %vm2871, %v2868, %v2870
    %vm2873 = vcmp.eq.f32.partialorder %v2868, 0.0
    %v2874 = vand.u32 %v2868, 2147483648
    %v2875 = vsel %vm2873, %v2874, %v2872
    %v2876 = vrot.slane %v2855, 5
    %v2878 = vmul.f32 %v2875, %v2876
    %v2879 = vadd.f32 %v2866, %v2878
    %v2881 = vrot.slane %v2879, 1
    %v2883 = vmul.f32 %v2852, %v2881
    %v2885 = vrot.slane %v2883, 2
    %v2887 = vadd.f32 %v2848, %v2885
    %v2888 = vsel %vm408, %v2863, %v2887
    %s2889 = scalar_lea.vmem %s23, 8
    %2890 = vst [vmem:[%s2889] sm:$0x3] %v2888
    %v2891 = vlaneseq
    %v2892 = vshrl.u32 %v2891, 7
    %v2893 = vsub.s32 0, %v2892
    %v2894 = vrot.slane %v2863, %v2893
    %v2895 = vmul.f32 %v2199, %v2894
    %v2896 = vmul.f32 %v2200, %v2894
    %v2897 = vmul.f32 %v2201, %v2894
    %v2898 = vadd.f32 %v2276, %v2895
    %v2899 = vadd.f32 %v2277, %v2896
    %v2900 = vadd.f32 %v2278, %v2897
    %v2901 = vlaneseq
    %v2902 = vshrl.u32 %v2901, 7
    %v2903 = vsub.s32 1, %v2902
    %v2904 = vrot.slane %v2887, %v2903
    %v2905 = vmul.f32 %v2202, %v2904
    %v2906 = vmul.f32 %v2203, %v2904
    %v2907 = vmul.f32 %v2204, %v2904
    %v2908 = vadd.f32 %v2898, %v2905
    %v2909 = vadd.f32 %v2899, %v2906
    %v2910 = vadd.f32 %v2900, %v2907
    %v2911 = vmul.f32 %v2205, %v2822
    %v2912 = vmul.f32 %v2206, %v2822
    %v2913 = vmul.f32 %v2207, %v2822
    %v2914 = vadd.f32 %v2908, %v2911
    %v2915 = vadd.f32 %v2909, %v2912
    %v2916 = vadd.f32 %v2910, %v2913
    %v2917 = vmul.f32 %v2208, %v2828
    %v2918 = vmul.f32 %v2209, %v2828
    %v2919 = vmul.f32 %v2210, %v2828
    %v2920 = vadd.f32 %v2914, %v2917
    %v2921 = vadd.f32 %v2915, %v2918
    %v2922 = vadd.f32 %v2916, %v2919
    %v2923 = vmul.f32 %v2211, %v2834
    %v2924 = vmul.f32 %v2212, %v2834
    %v2925 = vmul.f32 %v2213, %v2834
    %v2926 = vadd.f32 %v2920, %v2923
    %v2927 = vadd.f32 %v2921, %v2924
    %v2928 = vadd.f32 %v2922, %v2925
    %v2929 = vmul.f32 %v2214, %v2840
    %v2930 = vmul.f32 %v2215, %v2840
    %v2931 = vmul.f32 %v2216, %v2840
    %v2932 = vadd.f32 %v2926, %v2929
    %v2933 = vadd.f32 %v2927, %v2930
    %v2934 = vadd.f32 %v2928, %v2931
    %v2935 = vmul.f32 %v2217, %v2846
    %v2936 = vmul.f32 %v2218, %v2846
    %v2937 = vmul.f32 %v2219, %v2846
    %v2938 = vadd.f32 %v2932, %v2935
    %v2939 = vadd.f32 %v2933, %v2936
    %v2940 = vadd.f32 %v2934, %v2937
    %v2941 = vxor.u32 %v2938, 2147483648
    %v2942 = vxor.u32 %v2939, 2147483648
    %v2943 = vmul.f32 %v2941, 1.442695
    %v2944 = vpow.pop %v2943
    %v2945 = vmul.f32 %v2942, 1.442695
    %v2946 = vpow.pop %v2945
    %v2947 = vadd.f32 %v2944, 1.0
    %v2948 = vadd.f32 %v2946, 1.0
    %v2949 = vrcp.pop %v2947
    %v2950 = vmul.f32 1.0, %v2949
    %v2951 = vrcp.pop %v2948
    %v2952 = vmul.f32 1.0, %v2951
    %v2953 = vtanh.pop %v2939
    %v2954 = vtanh.pop %v2940
    %v2955 = vmul.f32 %v2950, %v2808
    %v2956 = vmul.f32 %v2952, %v2809
    %v2959 = vrot.slane %v2953, 7
    %v2960 = vrot.slane %v2954, 7
    %v2961 = vsel %vm408, %v2959, %v2960
    %v2963 = vmul.f32 %v2950, %v2961
    %v2965 = vrot.slane %v2963, 3
    %v2967 = vadd.f32 %v2955, %v2965
    %v2968 = vadd.f32 %v2956, %v2965
    %v2969 = vtanh.pop %v2967
    %v2970 = vtanh.pop %v2968
    %v2973 = vrot.slane %v2969, 3
    %v2974 = vrot.slane %v2970, 3
    %v2975 = vsel %vm1548, %v2973, %v2974
    %v2977 = vmul.f32 %v2952, %v2975
    %v2978 = vlaneseq
    %v2979 = vshrl.u32 %v2978, 7
    %v2980 = vsub.s32 2, %v2979
    %v2981 = vrot.slane %v2977, %v2980
    %v2982 = vmul.f32 %v2223, %v2981
    %v2983 = vadd.f32 %v2228, %v2982
    %v2984 = vlaneseq
    %v2985 = vshrl.u32 %v2984, 7
    %v2986 = vsub.s32 3, %v2985
    %v2987 = vrot.slane %v2977, %v2986
    %v2988 = vmul.f32 %v2224, %v2987
    %v2989 = vadd.f32 %v2983, %v2988
    %v2990 = vlaneseq
    %v2991 = vshrl.u32 %v2990, 7
    %v2992 = vsub.s32 4, %v2991
    %v2993 = vrot.slane %v2977, %v2992
    %v2994 = vmul.f32 %v2225, %v2993
    %v2995 = vadd.f32 %v2989, %v2994
    %v2996 = vlaneseq
    %v2997 = vshrl.u32 %v2996, 7
    %v2998 = vsub.s32 5, %v2997
    %v2999 = vrot.slane %v2977, %v2998
    %v3000 = vmul.f32 %v2226, %v2999
    %v3001 = vadd.f32 %v2995, %v3000
    %v3002 = vlaneseq
    %v3003 = vshrl.u32 %v3002, 7
    %v3004 = vsub.s32 6, %v3003
    %v3005 = vrot.slane %v2977, %v3004
    %v3006 = vmul.f32 %v2227, %v3005
    %v3007 = vadd.f32 %v3001, %v3006
    %s3008 = scalar_lea.vmem %s22, 32
    %3009 = vst [vmem:[%s3008] sm:$0x1f] %v3007
    %v3010 = vmul.f32 %v3007, 1.442695
    %v3011 = vpow.pop %v3010
    %v3012 = vtanh.pop %v3007
    %s3013 = scalar_lea.vmem %s2, 8
    %v3014 = vld [vmem:[%s3013] sm:$0x3]
    %v3016 = vrot.slane %v3014, 6
    %v3018 = vmul.f32 %v3011, %v3016
    %v3020 = vrot.slane %v3018, 2
    %v3022 = vadd.f32 %v3007, %v3020
    %v3023 = vrot.slane %v3014, 4
    %v3025 = vmul.f32 %v3012, %v3023
    %v3026 = vmul.f32 %v3012, %v3012
    %v3027 = vsub.f32 1.0, %v3026
    %v3028 = vrsqrt.pop %v3027
    %v3029 = vmul.f32 %v3027, %v3028
    %vm3030 = vcmp.eq.f32.partialorder %v3027, inf
    %v3031 = vsel %vm3030, %v3027, %v3029
    %vm3032 = vcmp.eq.f32.partialorder %v3027, 0.0
    %v3033 = vand.u32 %v3027, 2147483648
    %v3034 = vsel %vm3032, %v3033, %v3031
    %v3035 = vrot.slane %v3014, 5
    %v3037 = vmul.f32 %v3034, %v3035
    %v3038 = vadd.f32 %v3025, %v3037
    %v3040 = vrot.slane %v3038, 1
    %v3042 = vmul.f32 %v3011, %v3040
    %v3044 = vrot.slane %v3042, 2
    %v3046 = vadd.f32 %v3007, %v3044
    %v3047 = vsel %vm408, %v3022, %v3046
    %s3048 = scalar_lea.vmem %s23, 10
    %3049 = vst [vmem:[%s3048] sm:$0x3] %v3047
    %v3050 = vlaneseq
    %v3051 = vshrl.u32 %v3050, 7
    %v3052 = vsub.s32 0, %v3051
    %v3053 = vrot.slane %v3022, %v3052
    %v3054 = vmul.f32 %v2199, %v3053
    %v3055 = vmul.f32 %v2200, %v3053
    %v3056 = vmul.f32 %v2201, %v3053
    %v3057 = vadd.f32 %v2276, %v3054
    %v3058 = vadd.f32 %v2277, %v3055
    %v3059 = vadd.f32 %v2278, %v3056
    %v3060 = vlaneseq
    %v3061 = vshrl.u32 %v3060, 7
    %v3062 = vsub.s32 1, %v3061
    %v3063 = vrot.slane %v3046, %v3062
    %v3064 = vmul.f32 %v2202, %v3063
    %v3065 = vmul.f32 %v2203, %v3063
    %v3066 = vmul.f32 %v2204, %v3063
    %v3067 = vadd.f32 %v3057, %v3064
    %v3068 = vadd.f32 %v3058, %v3065
    %v3069 = vadd.f32 %v3059, %v3066
    %v3070 = vmul.f32 %v2205, %v2981
    %v3071 = vmul.f32 %v2206, %v2981
    %v3072 = vmul.f32 %v2207, %v2981
    %v3073 = vadd.f32 %v3067, %v3070
    %v3074 = vadd.f32 %v3068, %v3071
    %v3075 = vadd.f32 %v3069, %v3072
    %v3076 = vmul.f32 %v2208, %v2987
    %v3077 = vmul.f32 %v2209, %v2987
    %v3078 = vmul.f32 %v2210, %v2987
    %v3079 = vadd.f32 %v3073, %v3076
    %v3080 = vadd.f32 %v3074, %v3077
    %v3081 = vadd.f32 %v3075, %v3078
    %v3082 = vmul.f32 %v2211, %v2993
    %v3083 = vmul.f32 %v2212, %v2993
    %v3084 = vmul.f32 %v2213, %v2993
    %v3085 = vadd.f32 %v3079, %v3082
    %v3086 = vadd.f32 %v3080, %v3083
    %v3087 = vadd.f32 %v3081, %v3084
    %v3088 = vmul.f32 %v2214, %v2999
    %v3089 = vmul.f32 %v2215, %v2999
    %v3090 = vmul.f32 %v2216, %v2999
    %v3091 = vadd.f32 %v3085, %v3088
    %v3092 = vadd.f32 %v3086, %v3089
    %v3093 = vadd.f32 %v3087, %v3090
    %v3094 = vmul.f32 %v2217, %v3005
    %v3095 = vmul.f32 %v2218, %v3005
    %v3096 = vmul.f32 %v2219, %v3005
    %v3097 = vadd.f32 %v3091, %v3094
    %v3098 = vadd.f32 %v3092, %v3095
    %v3099 = vadd.f32 %v3093, %v3096
    %v3100 = vxor.u32 %v3097, 2147483648
    %v3101 = vxor.u32 %v3098, 2147483648
    %v3102 = vmul.f32 %v3100, 1.442695
    %v3103 = vpow.pop %v3102
    %v3104 = vmul.f32 %v3101, 1.442695
    %v3105 = vpow.pop %v3104
    %v3106 = vadd.f32 %v3103, 1.0
    %v3107 = vadd.f32 %v3105, 1.0
    %v3108 = vrcp.pop %v3106
    %v3109 = vmul.f32 1.0, %v3108
    %v3110 = vrcp.pop %v3107
    %v3111 = vmul.f32 1.0, %v3110
    %v3112 = vtanh.pop %v3098
    %v3113 = vtanh.pop %v3099
    %v3114 = vmul.f32 %v3109, %v2967
    %v3115 = vmul.f32 %v3111, %v2968
    %v3118 = vrot.slane %v3112, 7
    %v3119 = vrot.slane %v3113, 7
    %v3120 = vsel %vm408, %v3118, %v3119
    %v3122 = vmul.f32 %v3109, %v3120
    %v3124 = vrot.slane %v3122, 3
    %v3126 = vadd.f32 %v3114, %v3124
    %v3127 = vadd.f32 %v3115, %v3124
    %v3128 = vtanh.pop %v3126
    %v3129 = vtanh.pop %v3127
    %v3132 = vrot.slane %v3128, 3
    %v3133 = vrot.slane %v3129, 3
    %v3134 = vsel %vm1548, %v3132, %v3133
    %v3136 = vmul.f32 %v3111, %v3134
    %v3137 = vlaneseq
    %v3138 = vshrl.u32 %v3137, 7
    %v3139 = vsub.s32 2, %v3138
    %v3140 = vrot.slane %v3136, %v3139
    %v3141 = vmul.f32 %v2223, %v3140
    %v3142 = vadd.f32 %v2228, %v3141
    %v3143 = vlaneseq
    %v3144 = vshrl.u32 %v3143, 7
    %v3145 = vsub.s32 3, %v3144
    %v3146 = vrot.slane %v3136, %v3145
    %v3147 = vmul.f32 %v2224, %v3146
    %v3148 = vadd.f32 %v3142, %v3147
    %v3149 = vlaneseq
    %v3150 = vshrl.u32 %v3149, 7
    %v3151 = vsub.s32 4, %v3150
    %v3152 = vrot.slane %v3136, %v3151
    %v3153 = vmul.f32 %v2225, %v3152
    %v3154 = vadd.f32 %v3148, %v3153
    %v3155 = vlaneseq
    %v3156 = vshrl.u32 %v3155, 7
    %v3157 = vsub.s32 5, %v3156
    %v3158 = vrot.slane %v3136, %v3157
    %v3159 = vmul.f32 %v2226, %v3158
    %v3160 = vadd.f32 %v3154, %v3159
    %v3161 = vlaneseq
    %v3162 = vshrl.u32 %v3161, 7
    %v3163 = vsub.s32 6, %v3162
    %v3164 = vrot.slane %v3136, %v3163
    %v3165 = vmul.f32 %v2227, %v3164
    %v3166 = vadd.f32 %v3160, %v3165
    %s3167 = scalar_lea.vmem %s22, 40
    %3168 = vst [vmem:[%s3167] sm:$0x1f] %v3166
    %v3169 = vmul.f32 %v3166, 1.442695
    %v3170 = vpow.pop %v3169
    %v3171 = vtanh.pop %v3166
    %s3172 = scalar_lea.vmem %s2, 10
    %v3173 = vld [vmem:[%s3172] sm:$0x3]
    %v3175 = vrot.slane %v3173, 6
    %v3177 = vmul.f32 %v3170, %v3175
    %v3179 = vrot.slane %v3177, 2
    %v3181 = vadd.f32 %v3166, %v3179
    %v3182 = vrot.slane %v3173, 4
    %v3184 = vmul.f32 %v3171, %v3182
    %v3185 = vmul.f32 %v3171, %v3171
    %v3186 = vsub.f32 1.0, %v3185
    %v3187 = vrsqrt.pop %v3186
    %v3188 = vmul.f32 %v3186, %v3187
    %vm3189 = vcmp.eq.f32.partialorder %v3186, inf
    %v3190 = vsel %vm3189, %v3186, %v3188
    %vm3191 = vcmp.eq.f32.partialorder %v3186, 0.0
    %v3192 = vand.u32 %v3186, 2147483648
    %v3193 = vsel %vm3191, %v3192, %v3190
    %v3194 = vrot.slane %v3173, 5
    %v3196 = vmul.f32 %v3193, %v3194
    %v3197 = vadd.f32 %v3184, %v3196
    %v3199 = vrot.slane %v3197, 1
    %v3201 = vmul.f32 %v3170, %v3199
    %v3203 = vrot.slane %v3201, 2
    %v3205 = vadd.f32 %v3166, %v3203
    %v3206 = vsel %vm408, %v3181, %v3205
    %s3207 = scalar_lea.vmem %s23, 12
    %3208 = vst [vmem:[%s3207] sm:$0x3] %v3206
    %v3209 = vlaneseq
    %v3210 = vshrl.u32 %v3209, 7
    %v3211 = vsub.s32 0, %v3210
    %v3212 = vrot.slane %v3181, %v3211
    %v3213 = vmul.f32 %v2199, %v3212
    %v3214 = vmul.f32 %v2200, %v3212
    %v3215 = vmul.f32 %v2201, %v3212
    %v3216 = vadd.f32 %v2276, %v3213
    %v3217 = vadd.f32 %v2277, %v3214
    %v3218 = vadd.f32 %v2278, %v3215
    %v3219 = vlaneseq
    %v3220 = vshrl.u32 %v3219, 7
    %v3221 = vsub.s32 1, %v3220
    %v3222 = vrot.slane %v3205, %v3221
    %v3223 = vmul.f32 %v2202, %v3222
    %v3224 = vmul.f32 %v2203, %v3222
    %v3225 = vmul.f32 %v2204, %v3222
    %v3226 = vadd.f32 %v3216, %v3223
    %v3227 = vadd.f32 %v3217, %v3224
    %v3228 = vadd.f32 %v3218, %v3225
    %v3229 = vmul.f32 %v2205, %v3140
    %v3230 = vmul.f32 %v2206, %v3140
    %v3231 = vmul.f32 %v2207, %v3140
    %v3232 = vadd.f32 %v3226, %v3229
    %v3233 = vadd.f32 %v3227, %v3230
    %v3234 = vadd.f32 %v3228, %v3231
    %v3235 = vmul.f32 %v2208, %v3146
    %v3236 = vmul.f32 %v2209, %v3146
    %v3237 = vmul.f32 %v2210, %v3146
    %v3238 = vadd.f32 %v3232, %v3235
    %v3239 = vadd.f32 %v3233, %v3236
    %v3240 = vadd.f32 %v3234, %v3237
    %v3241 = vmul.f32 %v2211, %v3152
    %v3242 = vmul.f32 %v2212, %v3152
    %v3243 = vmul.f32 %v2213, %v3152
    %v3244 = vadd.f32 %v3238, %v3241
    %v3245 = vadd.f32 %v3239, %v3242
    %v3246 = vadd.f32 %v3240, %v3243
    %v3247 = vmul.f32 %v2214, %v3158
    %v3248 = vmul.f32 %v2215, %v3158
    %v3249 = vmul.f32 %v2216, %v3158
    %v3250 = vadd.f32 %v3244, %v3247
    %v3251 = vadd.f32 %v3245, %v3248
    %v3252 = vadd.f32 %v3246, %v3249
    %v3253 = vmul.f32 %v2217, %v3164
    %v3254 = vmul.f32 %v2218, %v3164
    %v3255 = vmul.f32 %v2219, %v3164
    %v3256 = vadd.f32 %v3250, %v3253
    %v3257 = vadd.f32 %v3251, %v3254
    %v3258 = vadd.f32 %v3252, %v3255
    %v3259 = vxor.u32 %v3256, 2147483648
    %v3260 = vxor.u32 %v3257, 2147483648
    %v3261 = vmul.f32 %v3259, 1.442695
    %v3262 = vpow.pop %v3261
    %v3263 = vmul.f32 %v3260, 1.442695
    %v3264 = vpow.pop %v3263
    %v3265 = vadd.f32 %v3262, 1.0
    %v3266 = vadd.f32 %v3264, 1.0
    %v3267 = vrcp.pop %v3265
    %v3268 = vmul.f32 1.0, %v3267
    %v3269 = vrcp.pop %v3266
    %v3270 = vmul.f32 1.0, %v3269
    %v3271 = vtanh.pop %v3257
    %v3272 = vtanh.pop %v3258
    %v3273 = vmul.f32 %v3268, %v3126
    %v3274 = vmul.f32 %v3270, %v3127
    %v3277 = vrot.slane %v3271, 7
    %v3278 = vrot.slane %v3272, 7
    %v3279 = vsel %vm408, %v3277, %v3278
    %v3281 = vmul.f32 %v3268, %v3279
    %v3283 = vrot.slane %v3281, 3
    %v3285 = vadd.f32 %v3273, %v3283
    %v3286 = vadd.f32 %v3274, %v3283
    %v3287 = vtanh.pop %v3285
    %v3288 = vtanh.pop %v3286
    %v3291 = vrot.slane %v3287, 3
    %v3292 = vrot.slane %v3288, 3
    %v3293 = vsel %vm1548, %v3291, %v3292
    %v3295 = vmul.f32 %v3270, %v3293
    %v3296 = vlaneseq
    %v3297 = vshrl.u32 %v3296, 7
    %v3298 = vsub.s32 2, %v3297
    %v3299 = vrot.slane %v3295, %v3298
    %v3300 = vmul.f32 %v2223, %v3299
    %v3301 = vadd.f32 %v2228, %v3300
    %v3302 = vlaneseq
    %v3303 = vshrl.u32 %v3302, 7
    %v3304 = vsub.s32 3, %v3303
    %v3305 = vrot.slane %v3295, %v3304
    %v3306 = vmul.f32 %v2224, %v3305
    %v3307 = vadd.f32 %v3301, %v3306
    %v3308 = vlaneseq
    %v3309 = vshrl.u32 %v3308, 7
    %v3310 = vsub.s32 4, %v3309
    %v3311 = vrot.slane %v3295, %v3310
    %v3312 = vmul.f32 %v2225, %v3311
    %v3313 = vadd.f32 %v3307, %v3312
    %v3314 = vlaneseq
    %v3315 = vshrl.u32 %v3314, 7
    %v3316 = vsub.s32 5, %v3315
    %v3317 = vrot.slane %v3295, %v3316
    %v3318 = vmul.f32 %v2226, %v3317
    %v3319 = vadd.f32 %v3313, %v3318
    %v3320 = vlaneseq
    %v3321 = vshrl.u32 %v3320, 7
    %v3322 = vsub.s32 6, %v3321
    %v3323 = vrot.slane %v3295, %v3322
    %v3324 = vmul.f32 %v2227, %v3323
    %v3325 = vadd.f32 %v3319, %v3324
    %s3326 = scalar_lea.vmem %s22, 48
    %3327 = vst [vmem:[%s3326] sm:$0x1f] %v3325
    %v3328 = vmul.f32 %v3325, 1.442695
    %v3329 = vpow.pop %v3328
    %v3330 = vtanh.pop %v3325
    %s3331 = scalar_lea.vmem %s2, 12
    %v3332 = vld [vmem:[%s3331] sm:$0x3]
    %v3334 = vrot.slane %v3332, 6
    %v3336 = vmul.f32 %v3329, %v3334
    %v3338 = vrot.slane %v3336, 2
    %v3340 = vadd.f32 %v3325, %v3338
    %v3341 = vrot.slane %v3332, 4
    %v3343 = vmul.f32 %v3330, %v3341
    %v3344 = vmul.f32 %v3330, %v3330
    %v3345 = vsub.f32 1.0, %v3344
    %v3346 = vrsqrt.pop %v3345
    %v3347 = vmul.f32 %v3345, %v3346
    %vm3348 = vcmp.eq.f32.partialorder %v3345, inf
    %v3349 = vsel %vm3348, %v3345, %v3347
    %vm3350 = vcmp.eq.f32.partialorder %v3345, 0.0
    %v3351 = vand.u32 %v3345, 2147483648
    %v3352 = vsel %vm3350, %v3351, %v3349
    %v3353 = vrot.slane %v3332, 5
    %v3355 = vmul.f32 %v3352, %v3353
    %v3356 = vadd.f32 %v3343, %v3355
    %v3358 = vrot.slane %v3356, 1
    %v3360 = vmul.f32 %v3329, %v3358
    %v3362 = vrot.slane %v3360, 2
    %v3364 = vadd.f32 %v3325, %v3362
    %v3365 = vsel %vm408, %v3340, %v3364
    %s3366 = scalar_lea.vmem %s23, 14
    %3367 = vst [vmem:[%s3366] sm:$0x3] %v3365
    %v3368 = vlaneseq
    %v3369 = vshrl.u32 %v3368, 7
    %v3370 = vsub.s32 0, %v3369
    %v3371 = vrot.slane %v3340, %v3370
    %v3372 = vmul.f32 %v2199, %v3371
    %v3373 = vmul.f32 %v2200, %v3371
    %v3374 = vmul.f32 %v2201, %v3371
    %v3375 = vadd.f32 %v2276, %v3372
    %v3376 = vadd.f32 %v2277, %v3373
    %v3377 = vadd.f32 %v2278, %v3374
    %v3378 = vlaneseq
    %v3379 = vshrl.u32 %v3378, 7
    %v3380 = vsub.s32 1, %v3379
    %v3381 = vrot.slane %v3364, %v3380
    %v3382 = vmul.f32 %v2202, %v3381
    %v3383 = vmul.f32 %v2203, %v3381
    %v3384 = vmul.f32 %v2204, %v3381
    %v3385 = vadd.f32 %v3375, %v3382
    %v3386 = vadd.f32 %v3376, %v3383
    %v3387 = vadd.f32 %v3377, %v3384
    %v3388 = vmul.f32 %v2205, %v3299
    %v3389 = vmul.f32 %v2206, %v3299
    %v3390 = vmul.f32 %v2207, %v3299
    %v3391 = vadd.f32 %v3385, %v3388
    %v3392 = vadd.f32 %v3386, %v3389
    %v3393 = vadd.f32 %v3387, %v3390
    %v3394 = vmul.f32 %v2208, %v3305
    %v3395 = vmul.f32 %v2209, %v3305
    %v3396 = vmul.f32 %v2210, %v3305
    %v3397 = vadd.f32 %v3391, %v3394
    %v3398 = vadd.f32 %v3392, %v3395
    %v3399 = vadd.f32 %v3393, %v3396
    %v3400 = vmul.f32 %v2211, %v3311
    %v3401 = vmul.f32 %v2212, %v3311
    %v3402 = vmul.f32 %v2213, %v3311
    %v3403 = vadd.f32 %v3397, %v3400
    %v3404 = vadd.f32 %v3398, %v3401
    %v3405 = vadd.f32 %v3399, %v3402
    %v3406 = vmul.f32 %v2214, %v3317
    %v3407 = vmul.f32 %v2215, %v3317
    %v3408 = vmul.f32 %v2216, %v3317
    %v3409 = vadd.f32 %v3403, %v3406
    %v3410 = vadd.f32 %v3404, %v3407
    %v3411 = vadd.f32 %v3405, %v3408
    %v3412 = vmul.f32 %v2217, %v3323
    %v3413 = vmul.f32 %v2218, %v3323
    %v3414 = vmul.f32 %v2219, %v3323
    %v3415 = vadd.f32 %v3409, %v3412
    %v3416 = vadd.f32 %v3410, %v3413
    %v3417 = vadd.f32 %v3411, %v3414
    %v3418 = vxor.u32 %v3415, 2147483648
    %v3419 = vxor.u32 %v3416, 2147483648
    %v3420 = vmul.f32 %v3418, 1.442695
    %v3421 = vpow.pop %v3420
    %v3422 = vmul.f32 %v3419, 1.442695
    %v3423 = vpow.pop %v3422
    %v3424 = vadd.f32 %v3421, 1.0
    %v3425 = vadd.f32 %v3423, 1.0
    %v3426 = vrcp.pop %v3424
    %v3427 = vmul.f32 1.0, %v3426
    %v3428 = vrcp.pop %v3425
    %v3429 = vmul.f32 1.0, %v3428
    %v3430 = vtanh.pop %v3416
    %v3431 = vtanh.pop %v3417
    %v3432 = vmul.f32 %v3427, %v3285
    %v3433 = vmul.f32 %v3429, %v3286
    %v3436 = vrot.slane %v3430, 7
    %v3437 = vrot.slane %v3431, 7
    %v3438 = vsel %vm408, %v3436, %v3437
    %v3440 = vmul.f32 %v3427, %v3438
    %v3442 = vrot.slane %v3440, 3
    %v3444 = vadd.f32 %v3432, %v3442
    %v3445 = vadd.f32 %v3433, %v3442
    %v3446 = vtanh.pop %v3444
    %v3447 = vtanh.pop %v3445
    %v3450 = vrot.slane %v3446, 3
    %v3451 = vrot.slane %v3447, 3
    %v3452 = vsel %vm1548, %v3450, %v3451
    %v3454 = vmul.f32 %v3429, %v3452
    %v3455 = vlaneseq
    %v3456 = vshrl.u32 %v3455, 7
    %v3457 = vsub.s32 2, %v3456
    %v3458 = vrot.slane %v3454, %v3457
    %v3459 = vmul.f32 %v2223, %v3458
    %v3460 = vadd.f32 %v2228, %v3459
    %v3461 = vlaneseq
    %v3462 = vshrl.u32 %v3461, 7
    %v3463 = vsub.s32 3, %v3462
    %v3464 = vrot.slane %v3454, %v3463
    %v3465 = vmul.f32 %v2224, %v3464
    %v3466 = vadd.f32 %v3460, %v3465
    %v3467 = vlaneseq
    %v3468 = vshrl.u32 %v3467, 7
    %v3469 = vsub.s32 4, %v3468
    %v3470 = vrot.slane %v3454, %v3469
    %v3471 = vmul.f32 %v2225, %v3470
    %v3472 = vadd.f32 %v3466, %v3471
    %v3473 = vlaneseq
    %v3474 = vshrl.u32 %v3473, 7
    %v3475 = vsub.s32 5, %v3474
    %v3476 = vrot.slane %v3454, %v3475
    %v3477 = vmul.f32 %v2226, %v3476
    %v3478 = vadd.f32 %v3472, %v3477
    %v3479 = vlaneseq
    %v3480 = vshrl.u32 %v3479, 7
    %v3481 = vsub.s32 6, %v3480
    %v3482 = vrot.slane %v3454, %v3481
    %v3483 = vmul.f32 %v2227, %v3482
    %v3484 = vadd.f32 %v3478, %v3483
    %s3485 = scalar_lea.vmem %s22, 56
    %3486 = vst [vmem:[%s3485] sm:$0x1f] %v3484
    %v3487 = vmul.f32 %v3484, 1.442695
    %v3488 = vpow.pop %v3487
    %v3489 = vtanh.pop %v3484
    %s3490 = scalar_lea.vmem %s2, 14
    %v3491 = vld [vmem:[%s3490] sm:$0x3]
    %v3493 = vrot.slane %v3491, 6
    %v3495 = vmul.f32 %v3488, %v3493
    %v3497 = vrot.slane %v3495, 2
    %v3499 = vadd.f32 %v3484, %v3497
    %v3500 = vrot.slane %v3491, 4
    %v3502 = vmul.f32 %v3489, %v3500
    %v3503 = vmul.f32 %v3489, %v3489
    %v3504 = vsub.f32 1.0, %v3503
    %v3505 = vrsqrt.pop %v3504
    %v3506 = vmul.f32 %v3504, %v3505
    %vm3507 = vcmp.eq.f32.partialorder %v3504, inf
    %v3508 = vsel %vm3507, %v3504, %v3506
    %vm3509 = vcmp.eq.f32.partialorder %v3504, 0.0
    %v3510 = vand.u32 %v3504, 2147483648
    %v3511 = vsel %vm3509, %v3510, %v3508
    %v3512 = vrot.slane %v3491, 5
    %v3514 = vmul.f32 %v3511, %v3512
    %v3515 = vadd.f32 %v3502, %v3514
    %v3517 = vrot.slane %v3515, 1
    %v3519 = vmul.f32 %v3488, %v3517
    %v3521 = vrot.slane %v3519, 2
    %v3523 = vadd.f32 %v3484, %v3521
    %v3524 = vsel %vm408, %v3499, %v3523
    %s3525 = scalar_lea.vmem %s23, 16
    %3526 = vst [vmem:[%s3525] sm:$0x3] %v3524
    %v3527 = vlaneseq
    %v3528 = vshrl.u32 %v3527, 7
    %v3529 = vsub.s32 0, %v3528
    %v3530 = vrot.slane %v3499, %v3529
    %v3531 = vmul.f32 %v2199, %v3530
    %v3532 = vmul.f32 %v2200, %v3530
    %v3533 = vmul.f32 %v2201, %v3530
    %v3534 = vadd.f32 %v2276, %v3531
    %v3535 = vadd.f32 %v2277, %v3532
    %v3536 = vadd.f32 %v2278, %v3533
    %v3537 = vlaneseq
    %v3538 = vshrl.u32 %v3537, 7
    %v3539 = vsub.s32 1, %v3538
    %v3540 = vrot.slane %v3523, %v3539
    %v3541 = vmul.f32 %v2202, %v3540
    %v3542 = vmul.f32 %v2203, %v3540
    %v3543 = vmul.f32 %v2204, %v3540
    %v3544 = vadd.f32 %v3534, %v3541
    %v3545 = vadd.f32 %v3535, %v3542
    %v3546 = vadd.f32 %v3536, %v3543
    %v3547 = vmul.f32 %v2205, %v3458
    %v3548 = vmul.f32 %v2206, %v3458
    %v3549 = vmul.f32 %v2207, %v3458
    %v3550 = vadd.f32 %v3544, %v3547
    %v3551 = vadd.f32 %v3545, %v3548
    %v3552 = vadd.f32 %v3546, %v3549
    %v3553 = vmul.f32 %v2208, %v3464
    %v3554 = vmul.f32 %v2209, %v3464
    %v3555 = vmul.f32 %v2210, %v3464
    %v3556 = vadd.f32 %v3550, %v3553
    %v3557 = vadd.f32 %v3551, %v3554
    %v3558 = vadd.f32 %v3552, %v3555
    %v3559 = vmul.f32 %v2211, %v3470
    %v3560 = vmul.f32 %v2212, %v3470
    %v3561 = vmul.f32 %v2213, %v3470
    %v3562 = vadd.f32 %v3556, %v3559
    %v3563 = vadd.f32 %v3557, %v3560
    %v3564 = vadd.f32 %v3558, %v3561
    %v3565 = vmul.f32 %v2214, %v3476
    %v3566 = vmul.f32 %v2215, %v3476
    %v3567 = vmul.f32 %v2216, %v3476
    %v3568 = vadd.f32 %v3562, %v3565
    %v3569 = vadd.f32 %v3563, %v3566
    %v3570 = vadd.f32 %v3564, %v3567
    %v3571 = vmul.f32 %v2217, %v3482
    %v3572 = vmul.f32 %v2218, %v3482
    %v3573 = vmul.f32 %v2219, %v3482
    %v3574 = vadd.f32 %v3568, %v3571
    %v3575 = vadd.f32 %v3569, %v3572
    %v3576 = vadd.f32 %v3570, %v3573
    %v3577 = vxor.u32 %v3574, 2147483648
    %v3578 = vxor.u32 %v3575, 2147483648
    %v3579 = vmul.f32 %v3577, 1.442695
    %v3580 = vpow.pop %v3579
    %v3581 = vmul.f32 %v3578, 1.442695
    %v3582 = vpow.pop %v3581
    %v3583 = vadd.f32 %v3580, 1.0
    %v3584 = vadd.f32 %v3582, 1.0
    %v3585 = vrcp.pop %v3583
    %v3586 = vmul.f32 1.0, %v3585
    %v3587 = vrcp.pop %v3584
    %v3588 = vmul.f32 1.0, %v3587
    %v3589 = vtanh.pop %v3575
    %v3590 = vtanh.pop %v3576
    %v3591 = vmul.f32 %v3586, %v3444
    %v3592 = vmul.f32 %v3588, %v3445
    %v3595 = vrot.slane %v3589, 7
    %v3596 = vrot.slane %v3590, 7
    %v3597 = vsel %vm408, %v3595, %v3596
    %v3599 = vmul.f32 %v3586, %v3597
    %v3601 = vrot.slane %v3599, 3
    %v3603 = vadd.f32 %v3591, %v3601
    %v3604 = vadd.f32 %v3592, %v3601
    %v3605 = vtanh.pop %v3603
    %v3606 = vtanh.pop %v3604
    %v3609 = vrot.slane %v3605, 3
    %v3610 = vrot.slane %v3606, 3
    %v3611 = vsel %vm1548, %v3609, %v3610
    %v3613 = vmul.f32 %v3588, %v3611
    %v3614 = vlaneseq
    %v3615 = vshrl.u32 %v3614, 7
    %v3616 = vsub.s32 2, %v3615
    %v3617 = vrot.slane %v3613, %v3616
    %v3618 = vmul.f32 %v2223, %v3617
    %v3619 = vadd.f32 %v2228, %v3618
    %v3620 = vlaneseq
    %v3621 = vshrl.u32 %v3620, 7
    %v3622 = vsub.s32 3, %v3621
    %v3623 = vrot.slane %v3613, %v3622
    %v3624 = vmul.f32 %v2224, %v3623
    %v3625 = vadd.f32 %v3619, %v3624
    %v3626 = vlaneseq
    %v3627 = vshrl.u32 %v3626, 7
    %v3628 = vsub.s32 4, %v3627
    %v3629 = vrot.slane %v3613, %v3628
    %v3630 = vmul.f32 %v2225, %v3629
    %v3631 = vadd.f32 %v3625, %v3630
    %v3632 = vlaneseq
    %v3633 = vshrl.u32 %v3632, 7
    %v3634 = vsub.s32 5, %v3633
    %v3635 = vrot.slane %v3613, %v3634
    %v3636 = vmul.f32 %v2226, %v3635
    %v3637 = vadd.f32 %v3631, %v3636
    %v3638 = vlaneseq
    %v3639 = vshrl.u32 %v3638, 7
    %v3640 = vsub.s32 6, %v3639
    %v3641 = vrot.slane %v3613, %v3640
    %v3642 = vmul.f32 %v2227, %v3641
    %v3643 = vadd.f32 %v3637, %v3642
    %s3644 = scalar_lea.vmem %s22, 64
    %3645 = vst [vmem:[%s3644] sm:$0x1f] %v3643
    %v3646 = vmul.f32 %v3643, 1.442695
    %v3647 = vpow.pop %v3646
    %v3648 = vtanh.pop %v3643
    %s3649 = scalar_lea.vmem %s2, 16
    %v3650 = vld [vmem:[%s3649] sm:$0x3]
    %v3652 = vrot.slane %v3650, 6
    %v3654 = vmul.f32 %v3647, %v3652
    %v3656 = vrot.slane %v3654, 2
    %v3658 = vadd.f32 %v3643, %v3656
    %v3659 = vrot.slane %v3650, 4
    %v3661 = vmul.f32 %v3648, %v3659
    %v3662 = vmul.f32 %v3648, %v3648
    %v3663 = vsub.f32 1.0, %v3662
    %v3664 = vrsqrt.pop %v3663
    %v3665 = vmul.f32 %v3663, %v3664
    %vm3666 = vcmp.eq.f32.partialorder %v3663, inf
    %v3667 = vsel %vm3666, %v3663, %v3665
    %vm3668 = vcmp.eq.f32.partialorder %v3663, 0.0
    %v3669 = vand.u32 %v3663, 2147483648
    %v3670 = vsel %vm3668, %v3669, %v3667
    %v3671 = vrot.slane %v3650, 5
    %v3673 = vmul.f32 %v3670, %v3671
    %v3674 = vadd.f32 %v3661, %v3673
    %v3676 = vrot.slane %v3674, 1
    %v3678 = vmul.f32 %v3647, %v3676
    %v3680 = vrot.slane %v3678, 2
    %v3682 = vadd.f32 %v3643, %v3680
    %v3683 = vsel %vm408, %v3658, %v3682
    %s3684 = scalar_lea.vmem %s23, 18
    %3685 = vst [vmem:[%s3684] sm:$0x3] %v3683
    %v3686 = vlaneseq
    %v3687 = vshrl.u32 %v3686, 7
    %v3688 = vsub.s32 0, %v3687
    %v3689 = vrot.slane %v3658, %v3688
    %v3690 = vmul.f32 %v2199, %v3689
    %v3691 = vmul.f32 %v2200, %v3689
    %v3692 = vmul.f32 %v2201, %v3689
    %v3693 = vadd.f32 %v2276, %v3690
    %v3694 = vadd.f32 %v2277, %v3691
    %v3695 = vadd.f32 %v2278, %v3692
    %v3696 = vlaneseq
    %v3697 = vshrl.u32 %v3696, 7
    %v3698 = vsub.s32 1, %v3697
    %v3699 = vrot.slane %v3682, %v3698
    %v3700 = vmul.f32 %v2202, %v3699
    %v3701 = vmul.f32 %v2203, %v3699
    %v3702 = vmul.f32 %v2204, %v3699
    %v3703 = vadd.f32 %v3693, %v3700
    %v3704 = vadd.f32 %v3694, %v3701
    %v3705 = vadd.f32 %v3695, %v3702
    %v3706 = vmul.f32 %v2205, %v3617
    %v3707 = vmul.f32 %v2206, %v3617
    %v3708 = vmul.f32 %v2207, %v3617
    %v3709 = vadd.f32 %v3703, %v3706
    %v3710 = vadd.f32 %v3704, %v3707
    %v3711 = vadd.f32 %v3705, %v3708
    %v3712 = vmul.f32 %v2208, %v3623
    %v3713 = vmul.f32 %v2209, %v3623
    %v3714 = vmul.f32 %v2210, %v3623
    %v3715 = vadd.f32 %v3709, %v3712
    %v3716 = vadd.f32 %v3710, %v3713
    %v3717 = vadd.f32 %v3711, %v3714
    %v3718 = vmul.f32 %v2211, %v3629
    %v3719 = vmul.f32 %v2212, %v3629
    %v3720 = vmul.f32 %v2213, %v3629
    %v3721 = vadd.f32 %v3715, %v3718
    %v3722 = vadd.f32 %v3716, %v3719
    %v3723 = vadd.f32 %v3717, %v3720
    %v3724 = vmul.f32 %v2214, %v3635
    %v3725 = vmul.f32 %v2215, %v3635
    %v3726 = vmul.f32 %v2216, %v3635
    %v3727 = vadd.f32 %v3721, %v3724
    %v3728 = vadd.f32 %v3722, %v3725
    %v3729 = vadd.f32 %v3723, %v3726
    %v3730 = vmul.f32 %v2217, %v3641
    %v3731 = vmul.f32 %v2218, %v3641
    %v3732 = vmul.f32 %v2219, %v3641
    %v3733 = vadd.f32 %v3727, %v3730
    %v3734 = vadd.f32 %v3728, %v3731
    %v3735 = vadd.f32 %v3729, %v3732
    %v3736 = vxor.u32 %v3733, 2147483648
    %v3737 = vxor.u32 %v3734, 2147483648
    %v3738 = vmul.f32 %v3736, 1.442695
    %v3739 = vpow.pop %v3738
    %v3740 = vmul.f32 %v3737, 1.442695
    %v3741 = vpow.pop %v3740
    %v3742 = vadd.f32 %v3739, 1.0
    %v3743 = vadd.f32 %v3741, 1.0
    %v3744 = vrcp.pop %v3742
    %v3745 = vmul.f32 1.0, %v3744
    %v3746 = vrcp.pop %v3743
    %v3747 = vmul.f32 1.0, %v3746
    %v3748 = vtanh.pop %v3734
    %v3749 = vtanh.pop %v3735
    %v3750 = vmul.f32 %v3745, %v3603
    %v3751 = vmul.f32 %v3747, %v3604
    %v3754 = vrot.slane %v3748, 7
    %v3755 = vrot.slane %v3749, 7
    %v3756 = vsel %vm408, %v3754, %v3755
    %v3758 = vmul.f32 %v3745, %v3756
    %v3760 = vrot.slane %v3758, 3
    %v3762 = vadd.f32 %v3750, %v3760
    %v3763 = vadd.f32 %v3751, %v3760
    %v3764 = vtanh.pop %v3762
    %v3765 = vtanh.pop %v3763
    %v3768 = vrot.slane %v3764, 3
    %v3769 = vrot.slane %v3765, 3
    %v3770 = vsel %vm1548, %v3768, %v3769
    %v3772 = vmul.f32 %v3747, %v3770
    %v3773 = vlaneseq
    %v3774 = vshrl.u32 %v3773, 7
    %v3775 = vsub.s32 2, %v3774
    %v3776 = vrot.slane %v3772, %v3775
    %v3777 = vmul.f32 %v2223, %v3776
    %v3778 = vadd.f32 %v2228, %v3777
    %v3779 = vlaneseq
    %v3780 = vshrl.u32 %v3779, 7
    %v3781 = vsub.s32 3, %v3780
    %v3782 = vrot.slane %v3772, %v3781
    %v3783 = vmul.f32 %v2224, %v3782
    %v3784 = vadd.f32 %v3778, %v3783
    %v3785 = vlaneseq
    %v3786 = vshrl.u32 %v3785, 7
    %v3787 = vsub.s32 4, %v3786
    %v3788 = vrot.slane %v3772, %v3787
    %v3789 = vmul.f32 %v2225, %v3788
    %v3790 = vadd.f32 %v3784, %v3789
    %v3791 = vlaneseq
    %v3792 = vshrl.u32 %v3791, 7
    %v3793 = vsub.s32 5, %v3792
    %v3794 = vrot.slane %v3772, %v3793
    %v3795 = vmul.f32 %v2226, %v3794
    %v3796 = vadd.f32 %v3790, %v3795
    %v3797 = vlaneseq
    %v3798 = vshrl.u32 %v3797, 7
    %v3799 = vsub.s32 6, %v3798
    %v3800 = vrot.slane %v3772, %v3799
    %v3801 = vmul.f32 %v2227, %v3800
    %v3802 = vadd.f32 %v3796, %v3801
    %s3803 = scalar_lea.vmem %s22, 72
    %3804 = vst [vmem:[%s3803] sm:$0x1f] %v3802
    %v3805 = vmul.f32 %v3802, 1.442695
    %v3806 = vpow.pop %v3805
    %v3807 = vtanh.pop %v3802
    %s3808 = scalar_lea.vmem %s2, 18
    %v3809 = vld [vmem:[%s3808] sm:$0x3]
    %v3811 = vrot.slane %v3809, 6
    %v3813 = vmul.f32 %v3806, %v3811
    %v3815 = vrot.slane %v3813, 2
    %v3817 = vadd.f32 %v3802, %v3815
    %v3818 = vrot.slane %v3809, 4
    %v3820 = vmul.f32 %v3807, %v3818
    %v3821 = vmul.f32 %v3807, %v3807
    %v3822 = vsub.f32 1.0, %v3821
    %v3823 = vrsqrt.pop %v3822
    %v3824 = vmul.f32 %v3822, %v3823
    %vm3825 = vcmp.eq.f32.partialorder %v3822, inf
    %v3826 = vsel %vm3825, %v3822, %v3824
    %vm3827 = vcmp.eq.f32.partialorder %v3822, 0.0
    %v3828 = vand.u32 %v3822, 2147483648
    %v3829 = vsel %vm3827, %v3828, %v3826
    %v3830 = vrot.slane %v3809, 5
    %v3832 = vmul.f32 %v3829, %v3830
    %v3833 = vadd.f32 %v3820, %v3832
    %v3835 = vrot.slane %v3833, 1
    %v3837 = vmul.f32 %v3806, %v3835
    %v3839 = vrot.slane %v3837, 2
    %v3841 = vadd.f32 %v3802, %v3839
    %v3842 = vsel %vm408, %v3817, %v3841
    %s3843 = scalar_lea.vmem %s23, 20
    %3844 = vst [vmem:[%s3843] sm:$0x3] %v3842
    %v3845 = vlaneseq
    %v3846 = vshrl.u32 %v3845, 7
    %v3847 = vsub.s32 0, %v3846
    %v3848 = vrot.slane %v3817, %v3847
    %v3849 = vmul.f32 %v2199, %v3848
    %v3850 = vmul.f32 %v2200, %v3848
    %v3851 = vmul.f32 %v2201, %v3848
    %v3852 = vadd.f32 %v2276, %v3849
    %v3853 = vadd.f32 %v2277, %v3850
    %v3854 = vadd.f32 %v2278, %v3851
    %v3855 = vlaneseq
    %v3856 = vshrl.u32 %v3855, 7
    %v3857 = vsub.s32 1, %v3856
    %v3858 = vrot.slane %v3841, %v3857
    %v3859 = vmul.f32 %v2202, %v3858
    %v3860 = vmul.f32 %v2203, %v3858
    %v3861 = vmul.f32 %v2204, %v3858
    %v3862 = vadd.f32 %v3852, %v3859
    %v3863 = vadd.f32 %v3853, %v3860
    %v3864 = vadd.f32 %v3854, %v3861
    %v3865 = vmul.f32 %v2205, %v3776
    %v3866 = vmul.f32 %v2206, %v3776
    %v3867 = vmul.f32 %v2207, %v3776
    %v3868 = vadd.f32 %v3862, %v3865
    %v3869 = vadd.f32 %v3863, %v3866
    %v3870 = vadd.f32 %v3864, %v3867
    %v3871 = vmul.f32 %v2208, %v3782
    %v3872 = vmul.f32 %v2209, %v3782
    %v3873 = vmul.f32 %v2210, %v3782
    %v3874 = vadd.f32 %v3868, %v3871
    %v3875 = vadd.f32 %v3869, %v3872
    %v3876 = vadd.f32 %v3870, %v3873
    %v3877 = vmul.f32 %v2211, %v3788
    %v3878 = vmul.f32 %v2212, %v3788
    %v3879 = vmul.f32 %v2213, %v3788
    %v3880 = vadd.f32 %v3874, %v3877
    %v3881 = vadd.f32 %v3875, %v3878
    %v3882 = vadd.f32 %v3876, %v3879
    %v3883 = vmul.f32 %v2214, %v3794
    %v3884 = vmul.f32 %v2215, %v3794
    %v3885 = vmul.f32 %v2216, %v3794
    %v3886 = vadd.f32 %v3880, %v3883
    %v3887 = vadd.f32 %v3881, %v3884
    %v3888 = vadd.f32 %v3882, %v3885
    %v3889 = vmul.f32 %v2217, %v3800
    %v3890 = vmul.f32 %v2218, %v3800
    %v3891 = vmul.f32 %v2219, %v3800
    %v3892 = vadd.f32 %v3886, %v3889
    %v3893 = vadd.f32 %v3887, %v3890
    %v3894 = vadd.f32 %v3888, %v3891
    %v3895 = vxor.u32 %v3892, 2147483648
    %v3896 = vxor.u32 %v3893, 2147483648
    %v3897 = vmul.f32 %v3895, 1.442695
    %v3898 = vpow.pop %v3897
    %v3899 = vmul.f32 %v3896, 1.442695
    %v3900 = vpow.pop %v3899
    %v3901 = vadd.f32 %v3898, 1.0
    %v3902 = vadd.f32 %v3900, 1.0
    %v3903 = vrcp.pop %v3901
    %v3904 = vmul.f32 1.0, %v3903
    %v3905 = vrcp.pop %v3902
    %v3906 = vmul.f32 1.0, %v3905
    %v3907 = vtanh.pop %v3893
    %v3908 = vtanh.pop %v3894
    %v3909 = vmul.f32 %v3904, %v3762
    %v3910 = vmul.f32 %v3906, %v3763
    %v3913 = vrot.slane %v3907, 7
    %v3914 = vrot.slane %v3908, 7
    %v3915 = vsel %vm408, %v3913, %v3914
    %v3917 = vmul.f32 %v3904, %v3915
    %v3919 = vrot.slane %v3917, 3
    %v3921 = vadd.f32 %v3909, %v3919
    %v3922 = vadd.f32 %v3910, %v3919
    %v3923 = vtanh.pop %v3921
    %v3924 = vtanh.pop %v3922
    %v3927 = vrot.slane %v3923, 3
    %v3928 = vrot.slane %v3924, 3
    %v3929 = vsel %vm1548, %v3927, %v3928
    %v3931 = vmul.f32 %v3906, %v3929
    %v3932 = vlaneseq
    %v3933 = vshrl.u32 %v3932, 7
    %v3934 = vsub.s32 2, %v3933
    %v3935 = vrot.slane %v3931, %v3934
    %v3936 = vmul.f32 %v2223, %v3935
    %v3937 = vadd.f32 %v2228, %v3936
    %v3938 = vlaneseq
    %v3939 = vshrl.u32 %v3938, 7
    %v3940 = vsub.s32 3, %v3939
    %v3941 = vrot.slane %v3931, %v3940
    %v3942 = vmul.f32 %v2224, %v3941
    %v3943 = vadd.f32 %v3937, %v3942
    %v3944 = vlaneseq
    %v3945 = vshrl.u32 %v3944, 7
    %v3946 = vsub.s32 4, %v3945
    %v3947 = vrot.slane %v3931, %v3946
    %v3948 = vmul.f32 %v2225, %v3947
    %v3949 = vadd.f32 %v3943, %v3948
    %v3950 = vlaneseq
    %v3951 = vshrl.u32 %v3950, 7
    %v3952 = vsub.s32 5, %v3951
    %v3953 = vrot.slane %v3931, %v3952
    %v3954 = vmul.f32 %v2226, %v3953
    %v3955 = vadd.f32 %v3949, %v3954
    %v3956 = vlaneseq
    %v3957 = vshrl.u32 %v3956, 7
    %v3958 = vsub.s32 6, %v3957
    %v3959 = vrot.slane %v3931, %v3958
    %v3960 = vmul.f32 %v2227, %v3959
    %v3961 = vadd.f32 %v3955, %v3960
    %s3962 = scalar_lea.vmem %s22, 80
    %3963 = vst [vmem:[%s3962] sm:$0x1f] %v3961
    %v3964 = vmul.f32 %v3961, 1.442695
    %v3965 = vpow.pop %v3964
    %v3966 = vtanh.pop %v3961
    %s3967 = scalar_lea.vmem %s2, 20
    %v3968 = vld [vmem:[%s3967] sm:$0x3]
    %v3970 = vrot.slane %v3968, 6
    %v3972 = vmul.f32 %v3965, %v3970
    %v3974 = vrot.slane %v3972, 2
    %v3976 = vadd.f32 %v3961, %v3974
    %v3977 = vrot.slane %v3968, 4
    %v3979 = vmul.f32 %v3966, %v3977
    %v3980 = vmul.f32 %v3966, %v3966
    %v3981 = vsub.f32 1.0, %v3980
    %v3982 = vrsqrt.pop %v3981
    %v3983 = vmul.f32 %v3981, %v3982
    %vm3984 = vcmp.eq.f32.partialorder %v3981, inf
    %v3985 = vsel %vm3984, %v3981, %v3983
    %vm3986 = vcmp.eq.f32.partialorder %v3981, 0.0
    %v3987 = vand.u32 %v3981, 2147483648
    %v3988 = vsel %vm3986, %v3987, %v3985
    %v3989 = vrot.slane %v3968, 5
    %v3991 = vmul.f32 %v3988, %v3989
    %v3992 = vadd.f32 %v3979, %v3991
    %v3994 = vrot.slane %v3992, 1
    %v3996 = vmul.f32 %v3965, %v3994
    %v3998 = vrot.slane %v3996, 2
    %v4000 = vadd.f32 %v3961, %v3998
    %v4001 = vsel %vm408, %v3976, %v4000
    %s4002 = scalar_lea.vmem %s23, 22
    %4003 = vst [vmem:[%s4002] sm:$0x3] %v4001
    %v4004 = vlaneseq
    %v4005 = vshrl.u32 %v4004, 7
    %v4006 = vsub.s32 0, %v4005
    %v4007 = vrot.slane %v3976, %v4006
    %v4008 = vmul.f32 %v2199, %v4007
    %v4009 = vmul.f32 %v2200, %v4007
    %v4010 = vmul.f32 %v2201, %v4007
    %v4011 = vadd.f32 %v2276, %v4008
    %v4012 = vadd.f32 %v2277, %v4009
    %v4013 = vadd.f32 %v2278, %v4010
    %v4014 = vlaneseq
    %v4015 = vshrl.u32 %v4014, 7
    %v4016 = vsub.s32 1, %v4015
    %v4017 = vrot.slane %v4000, %v4016
    %v4018 = vmul.f32 %v2202, %v4017
    %v4019 = vmul.f32 %v2203, %v4017
    %v4020 = vmul.f32 %v2204, %v4017
    %v4021 = vadd.f32 %v4011, %v4018
    %v4022 = vadd.f32 %v4012, %v4019
    %v4023 = vadd.f32 %v4013, %v4020
    %v4024 = vmul.f32 %v2205, %v3935
    %v4025 = vmul.f32 %v2206, %v3935
    %v4026 = vmul.f32 %v2207, %v3935
    %v4027 = vadd.f32 %v4021, %v4024
    %v4028 = vadd.f32 %v4022, %v4025
    %v4029 = vadd.f32 %v4023, %v4026
    %v4030 = vmul.f32 %v2208, %v3941
    %v4031 = vmul.f32 %v2209, %v3941
    %v4032 = vmul.f32 %v2210, %v3941
    %v4033 = vadd.f32 %v4027, %v4030
    %v4034 = vadd.f32 %v4028, %v4031
    %v4035 = vadd.f32 %v4029, %v4032
    %v4036 = vmul.f32 %v2211, %v3947
    %v4037 = vmul.f32 %v2212, %v3947
    %v4038 = vmul.f32 %v2213, %v3947
    %v4039 = vadd.f32 %v4033, %v4036
    %v4040 = vadd.f32 %v4034, %v4037
    %v4041 = vadd.f32 %v4035, %v4038
    %v4042 = vmul.f32 %v2214, %v3953
    %v4043 = vmul.f32 %v2215, %v3953
    %v4044 = vmul.f32 %v2216, %v3953
    %v4045 = vadd.f32 %v4039, %v4042
    %v4046 = vadd.f32 %v4040, %v4043
    %v4047 = vadd.f32 %v4041, %v4044
    %v4048 = vmul.f32 %v2217, %v3959
    %v4049 = vmul.f32 %v2218, %v3959
    %v4050 = vmul.f32 %v2219, %v3959
    %v4051 = vadd.f32 %v4045, %v4048
    %v4052 = vadd.f32 %v4046, %v4049
    %v4053 = vadd.f32 %v4047, %v4050
    %v4054 = vxor.u32 %v4051, 2147483648
    %v4055 = vxor.u32 %v4052, 2147483648
    %v4056 = vmul.f32 %v4054, 1.442695
    %v4057 = vpow.pop %v4056
    %v4058 = vmul.f32 %v4055, 1.442695
    %v4059 = vpow.pop %v4058
    %v4060 = vadd.f32 %v4057, 1.0
    %v4061 = vadd.f32 %v4059, 1.0
    %v4062 = vrcp.pop %v4060
    %v4063 = vmul.f32 1.0, %v4062
    %v4064 = vrcp.pop %v4061
    %v4065 = vmul.f32 1.0, %v4064
    %v4066 = vtanh.pop %v4052
    %v4067 = vtanh.pop %v4053
    %v4068 = vmul.f32 %v4063, %v3921
    %v4069 = vmul.f32 %v4065, %v3922
    %v4072 = vrot.slane %v4066, 7
    %v4073 = vrot.slane %v4067, 7
    %v4074 = vsel %vm408, %v4072, %v4073
    %v4076 = vmul.f32 %v4063, %v4074
    %v4078 = vrot.slane %v4076, 3
    %v4080 = vadd.f32 %v4068, %v4078
    %v4081 = vadd.f32 %v4069, %v4078
    %v4082 = vtanh.pop %v4080
    %v4083 = vtanh.pop %v4081
    %v4086 = vrot.slane %v4082, 3
    %v4087 = vrot.slane %v4083, 3
    %v4088 = vsel %vm1548, %v4086, %v4087
    %v4090 = vmul.f32 %v4065, %v4088
    %v4091 = vlaneseq
    %v4092 = vshrl.u32 %v4091, 7
    %v4093 = vsub.s32 2, %v4092
    %v4094 = vrot.slane %v4090, %v4093
    %v4095 = vmul.f32 %v2223, %v4094
    %v4096 = vadd.f32 %v2228, %v4095
    %v4097 = vlaneseq
    %v4098 = vshrl.u32 %v4097, 7
    %v4099 = vsub.s32 3, %v4098
    %v4100 = vrot.slane %v4090, %v4099
    %v4101 = vmul.f32 %v2224, %v4100
    %v4102 = vadd.f32 %v4096, %v4101
    %v4103 = vlaneseq
    %v4104 = vshrl.u32 %v4103, 7
    %v4105 = vsub.s32 4, %v4104
    %v4106 = vrot.slane %v4090, %v4105
    %v4107 = vmul.f32 %v2225, %v4106
    %v4108 = vadd.f32 %v4102, %v4107
    %v4109 = vlaneseq
    %v4110 = vshrl.u32 %v4109, 7
    %v4111 = vsub.s32 5, %v4110
    %v4112 = vrot.slane %v4090, %v4111
    %v4113 = vmul.f32 %v2226, %v4112
    %v4114 = vadd.f32 %v4108, %v4113
    %v4115 = vlaneseq
    %v4116 = vshrl.u32 %v4115, 7
    %v4117 = vsub.s32 6, %v4116
    %v4118 = vrot.slane %v4090, %v4117
    %v4119 = vmul.f32 %v2227, %v4118
    %v4120 = vadd.f32 %v4114, %v4119
    %s4121 = scalar_lea.vmem %s22, 88
    %4122 = vst [vmem:[%s4121] sm:$0x1f] %v4120
    %v4123 = vmul.f32 %v4120, 1.442695
    %v4124 = vpow.pop %v4123
    %v4125 = vtanh.pop %v4120
    %s4126 = scalar_lea.vmem %s2, 22
    %v4127 = vld [vmem:[%s4126] sm:$0x3]
    %v4129 = vrot.slane %v4127, 6
    %v4131 = vmul.f32 %v4124, %v4129
    %v4133 = vrot.slane %v4131, 2
    %v4135 = vadd.f32 %v4120, %v4133
    %v4136 = vrot.slane %v4127, 4
    %v4138 = vmul.f32 %v4125, %v4136
    %v4139 = vmul.f32 %v4125, %v4125
    %v4140 = vsub.f32 1.0, %v4139
    %v4141 = vrsqrt.pop %v4140
    %v4142 = vmul.f32 %v4140, %v4141
    %vm4143 = vcmp.eq.f32.partialorder %v4140, inf
    %v4144 = vsel %vm4143, %v4140, %v4142
    %vm4145 = vcmp.eq.f32.partialorder %v4140, 0.0
    %v4146 = vand.u32 %v4140, 2147483648
    %v4147 = vsel %vm4145, %v4146, %v4144
    %v4148 = vrot.slane %v4127, 5
    %v4150 = vmul.f32 %v4147, %v4148
    %v4151 = vadd.f32 %v4138, %v4150
    %v4153 = vrot.slane %v4151, 1
    %v4155 = vmul.f32 %v4124, %v4153
    %v4157 = vrot.slane %v4155, 2
    %v4159 = vadd.f32 %v4120, %v4157
    %v4160 = vsel %vm408, %v4135, %v4159
    %s4161 = scalar_lea.vmem %s23, 24
    %4162 = vst [vmem:[%s4161] sm:$0x3] %v4160
    // Predicated region
    $region114: #{goal_example_model_forward.1} parent=1 // pred_check
      _
    $region115: #{goal_example_model_forward.1} parent=1 // pred_check_branch
      %4164 = sbr.rel (0) target = $region117
    $region116: #{goal_example_model_forward.1} parent=1 // pred_region
      _
    $region117: #{goal_example_model_forward.1} parent=1 // pred_fallthru
      _
    // Predicated region
    $region118: #{goal_example_model_forward.1} parent=1 // pred_check
      _
    $region119: #{goal_example_model_forward.1} parent=1 // pred_check_branch
      %4166 = sbr.rel (0) target = $region121
    $region120: #{goal_example_model_forward.1} parent=1 // pred_region
      _
    $region121: #{goal_example_model_forward.1} parent=1 // pred_fallthru
      _
    // Predicated region
    $region122: #{goal_example_model_forward.1} parent=1 // pred_check
      _
    $region123: #{goal_example_model_forward.1} parent=1 // pred_check_branch
      %4168 = sbr.rel (0) target = $region125
    $region124: #{goal_example_model_forward.1} parent=1 // pred_region
      _
    $region125: #{goal_example_model_forward.1} parent=1 // pred_fallthru
      _
    // Predicated region
    $region126: #{goal_example_model_forward.1} parent=1 // pred_check
      _
    $region127: #{goal_example_model_forward.1} parent=1 // pred_check_branch
      %4170 = sbr.rel (0) target = $region129
    $region128: #{goal_example_model_forward.1} parent=1 // pred_region
      _
    $region129: #{goal_example_model_forward.1} parent=1 // pred_fallthru
      _
    %4171 = vsyncpa [#allocation4], 1
    %4172 = vsyncpa [#allocation6], 1
    %4173 = vsyncpa [#allocation9], 1
    %4174 = vsyncpa [#allocation12], 1

</llo_original>
